<compile_context>
chip_gen: v6e
topology: v6e:2x2x1
jax: 0.10.0
libtpu: 0.0.40
codegen_flags: <defaults>
</compile_context>

<pallas_src>
import functools

import numpy as np
import jax
import jax.numpy as jnp
from jax import lax
from jax.experimental import pallas as pl
from jax.experimental.pallas import tpu as pltpu

EPS = 1e-5
OUT_SIZE = 544  # hard-coded in the reference forward


# --------------------------- fused Pallas kernel -----------------------------

def _fused_reduce_resize_kernel(x_ref, w1_ref, b1_ref, w2_ref, h2_ref, g_ref, shift_ref,
                                o_ref, *, H, W):
    """One grid step = (one batch element, one block of output rows).

    x_ref    : (1, Cin, H*W) f32   -- NCHW batch slice, flat spatial (free view of NCHW)
    w1_ref   : (64, Cin)     bf16  -- folded Conv1x1+BN weight
    b1_ref   : (64, 1)       f32   -- folded Conv1x1+BN bias
    w2_ref   : (9, 64)       f32   -- folded Conv3x3+BN weight, tap-major (dy*3+dx)
    h2_ref   : (ROWS, H*W)   bf16  -- row-resize weights on flat spatial: Wy[a, p//W]
    g_ref    : (H*W, 544)    bf16  -- col-resize weights on flat spatial: Wx[b, p%W]
    shift_ref: SMEM (1,)     f32   -- folded Conv3x3 BN shift
    o_ref    : (1, ROWS, 544) f32
    """
    HW = H * W

    # ---- 1x1 conv + folded BN + ReLU on the MXU (Cin-major, bf16 in / f32 acc) ----------
    xb = x_ref[0].astype(jnp.bfloat16)                                     # (Cin, HW)
    yT = jnp.dot(w1_ref[...], xb, preferred_element_type=jnp.float32)      # (64, HW)
    yT = jnp.maximum(yT + b1_ref[...], 0.0)

    # ---- 3x3 conv: per-tap 64-channel reduction as ONE (tiny) MXU matmul ----------------
    tapsT = jnp.dot(w2_ref[...], yT, preferred_element_type=jnp.float32)   # (9, HW) f32

    # ---- combine the 9 taps with shifted adds on flat (1, HW) planes --------------------
    # out[p] = sum_t tapsT[t, p + off_t] with zero padding at the image border.
    idx = lax.broadcasted_iota(jnp.int32, (1, HW), 1)
    col = idx & (W - 1)                      # W is a power of two (asserted in the wrapper)
    not_top = idx >= W                       # h >= 1
    not_bot = idx < (H - 1) * W              # h <= H-2
    not_left = col >= 1                      # w >= 1
    not_right = col < (W - 1)                # w <= W-2

    acc = jnp.zeros((1, HW), jnp.float32)
    for dy in range(3):
        for dx in range(3):
            t = dy * 3 + dx
            off = (dy - 1) * W + (dx - 1)
            p = tapsT[t:t + 1, :]                                          # (1, HW)
            if off != 0:
                p = pltpu.roll(p, shift=(-off) % HW, axis=1)               # lane roll (XLU)
            valid = None
            if dy == 0:
                valid = not_top
            elif dy == 2:
                valid = not_bot
            if dx == 0:
                valid = not_left if valid is None else (valid & not_left)
            elif dx == 2:
                valid = not_right if valid is None else (valid & not_right)
            if valid is not None:
                p = jnp.where(valid, p, 0.0)
            acc = acc + p

    # ---- folded BN shift + sigmoid (EUP exp + approx reciprocal) ------------------------
    z = pl.reciprocal(1.0 + jnp.exp(-(acc + shift_ref[0])), approx=True)   # (1, HW) in (0,1)

    # ---- bilinear resize as ONE lane-dense bf16 MXU matmul ------------------------------
    #   out[a, b] = sum_p Wy[a, p//W] * z[p] * Wx[b, p%W]  =  (H2 * z) @ G
    h2z = h2_ref[...] * z.astype(jnp.bfloat16)                             # (ROWS, HW) bf16
    o_ref[0] = jnp.dot(h2z, g_ref[...], preferred_element_type=jnp.float32)


# --------------------------- parameters & folding -----------------------------

def init_reduce_params(key, cin):
    ks = jax.random.split(key, 7)
    return dict(
        w1=jax.random.normal(ks[0], (64, cin), jnp.float32) * 0.05,   # Conv2d(cin,64,1).weight
        b1=jax.random.normal(ks[1], (64,), jnp.float32) * 0.05,       # its bias
        g1=1.0 + 0.1 * jax.random.normal(ks[2], (64,), jnp.float32),  # BatchNorm2d(64)
        be1=0.1 * jax.random.normal(ks[3], (64,), jnp.float32),
        m1=0.1 * jax.random.normal(ks[4], (64,), jnp.float32),
        v1=1.0 + 0.1 * jax.random.uniform(ks[5], (64,), jnp.float32),
        w2=jax.random.normal(ks[6], (3, 3, 64), jnp.float32) * 0.05,  # Conv2d(64,1,3,bias=False)
        g2=jnp.array([1.1], jnp.float32),                             # BatchNorm2d(1)
        be2=jnp.array([0.05], jnp.float32),
        m2=jnp.array([0.02], jnp.float32),
        v2=jnp.array([0.9], jnp.float32),
    )


def fold_params(p):
    # BatchNorm (inference mode, running stats) folded into the preceding convolutions.
    scale1 = p["g1"] / jnp.sqrt(p["v1"] + EPS)                       # (64,)
    w1_eff = p["w1"] * scale1[:, None]                               # (64, Cin)
    b1_eff = p["b1"] * scale1 + (p["be1"] - p["m1"] * scale1)        # (64,)
    scale2 = p["g2"][0] / jnp.sqrt(p["v2"][0] + EPS)
    w2_eff = p["w2"].reshape(9, 64) * scale2                         # (9, 64) tap-major
    shift2 = p["be2"][0] - p["m2"][0] * scale2
    return w1_eff, b1_eff, w2_eff, jnp.reshape(shift2, (1,))


@functools.lru_cache(maxsize=None)
def _resize_matrix(in_size, out_size):
    # PyTorch bilinear, align_corners=False: src = max(0, (d + 0.5) * in/out - 0.5)
    scale = in_size / out_size
    d = np.arange(out_size, dtype=np.float64)
    src = np.maximum((d + 0.5) * scale - 0.5, 0.0)
    i0 = np.minimum(np.floor(src).astype(np.int64), in_size - 1)
    i1 = np.minimum(i0 + 1, in_size - 1)
    w1 = src - i0
    w0 = 1.0 - w1
    rows = np.arange(out_size)
    M = np.zeros((out_size, in_size), np.float64)
    M[rows, i0] += w0
    M[rows, i1] += w1
    return M.astype(np.float32)


@functools.lru_cache(maxsize=None)
def _resize_operands(h, w):
    wy = _resize_matrix(h, OUT_SIZE)                     # (544, h)
    wx = _resize_matrix(w, OUT_SIZE)                     # (544, w)
    h2 = np.repeat(wy, w, axis=1)                        # (544, h*w): H2[a, p] = Wy[a, p//w]
    g = np.tile(wx.T, (h, 1))                            # (h*w, 544): G[p, b]  = Wx[b, p%w]
    return h2, g


def _num_row_blocks():
    # v7x has 2 TensorCores per chip: split the 544 output rows across a second "parallel"
    # grid axis so both stay busy regardless of batch size.  v5e/v6e: single block.
    try:
        kind = jax.devices()[0].device_kind.lower()
    except Exception:
        return 1
    return 2 if "7" in kind else 1


# --------------------------- wrapper around pallas_call ------------------------

def reduce_resize(x_nchw, p, row_blocks=1):
    """Conv1x1(cin,64)+BN+ReLU -> Conv3x3(64,1,no bias)+BN+Sigmoid -> bilinear 544x544."""
    N, Cin, H, W = x_nchw.shape
    assert (W & (W - 1)) == 0, "kernel border masks assume power-of-two feature-map width"
    if OUT_SIZE % row_blocks:
        row_blocks = 1
    rows = OUT_SIZE // row_blocks
    HW = H * W

    w1_eff, b1_eff, w2_eff, shift2 = fold_params(p)
    h2_np, g_np = _resize_operands(H, W)

    x = x_nchw.reshape(N, Cin, HW)                       # free view of NCHW; bf16 cast in-kernel
    h2 = jnp.asarray(h2_np, jnp.bfloat16)                # (544, HW)
    g = jnp.asarray(g_np, jnp.bfloat16)                  # (HW, 544) lane-dense

    kernel = functools.partial(_fused_reduce_resize_kernel, H=H, W=W)
    return pl.pallas_call(
        kernel,
        out_shape=jax.ShapeDtypeStruct((N, OUT_SIZE, OUT_SIZE), jnp.float32),
        grid=(N, row_blocks),
        in_specs=[
            pl.BlockSpec((1, Cin, HW), lambda n, r: (n, 0, 0)),         # x (f32, NCHW view)
            pl.BlockSpec((64, Cin), lambda n, r: (0, 0)),               # folded 1x1 weight (bf16)
            pl.BlockSpec((64, 1), lambda n, r: (0, 0)),                 # folded 1x1 bias (f32)
            pl.BlockSpec((9, 64), lambda n, r: (0, 0)),                 # folded 3x3 weight (f32)
            pl.BlockSpec((rows, HW), lambda n, r: (r, 0)),              # H2 row block (bf16)
            pl.BlockSpec((HW, OUT_SIZE), lambda n, r: (0, 0)),          # G (bf16)
            pl.BlockSpec(memory_space=pltpu.MemorySpace.SMEM),          # BN2 shift scalar
        ],
        out_specs=pl.BlockSpec((1, rows, OUT_SIZE), lambda n, r: (n, r, 0)),
        compiler_params=pltpu.CompilerParams(
            dimension_semantics=("parallel", "parallel")),
    )(x, w1_eff.astype(jnp.bfloat16), b1_eff[:, None], w2_eff, h2, g, shift2)


@functools.partial(jax.jit, static_argnames=("row_blocks",))
def model_forward(x4, x3, x2, x1, params, row_blocks=1):
    # reduce4(x4) is computed-and-discarded in the PyTorch forward (pure dead code) -> elided.
    z1 = reduce_resize(x1, params["r1"], row_blocks)
    z2 = reduce_resize(x2, params["r2"], row_blocks)
    z3 = reduce_resize(x3, params["r3"], row_blocks)
    return z3[:, None], z2[:, None], z1[:, None]          # each (N, 1, 544, 544)


# --------------------------- pure-JAX reference -------------------------------

@jax.jit
def reference_forward(x4, x3, x2, x1, params):
    def red(x_nchw, p):
        w1_eff, b1_eff, w2_eff, shift2 = fold_params(p)
        y = jnp.einsum("oc,nchw->nhwo", w1_eff, x_nchw) + b1_eff
        y = jnp.maximum(y, 0.0)
        z = lax.conv_general_dilated(
            y, w2_eff.reshape(3, 3, 64)[..., None], (1, 1), "SAME",
            dimension_numbers=("NHWC", "HWIO", "NHWC"))[..., 0]
        return jax.nn.sigmoid(z + shift2[0])

    def rsz(z):
        wy = jnp.asarray(_resize_matrix(z.shape[1], OUT_SIZE), jnp.float32)
        wx = jnp.asarray(_resize_matrix(z.shape[2], OUT_SIZE), jnp.float32)
        return jnp.einsum("ah,nhw,bw->nab", wy, z, wx)

    z1, z2, z3 = red(x1, params["r1"]), red(x2, params["r2"]), red(x3, params["r3"])
    return rsz(z3)[:, None], rsz(z2)[:, None], rsz(z1)[:, None]


# ------------------------------- main -----------------------------------------

if __name__ == "__main__":
    key = jax.random.PRNGKey(0)
    kx, kp = jax.random.split(key)
    kx1, kx2, kx3, kx4 = jax.random.split(kx, 4)
    # small feature-pyramid-like inputs (NCHW, as in the PyTorch module)
    x1 = jax.random.normal(kx1, (2, 256, 16, 16), jnp.float32)
    x2 = jax.random.normal(kx2, (2, 512, 8, 8), jnp.float32)
    x3 = jax.random.normal(kx3, (2, 1024, 8, 8), jnp.float32)
    x4 = jax.random.normal(kx4, (2, 2048, 8, 8), jnp.float32)

    kp1, kp2, kp3, kp4 = jax.random.split(kp, 4)
    params = {
        "r1": init_reduce_params(kp1, 256),
        "r2": init_reduce_params(kp2, 512),
        "r3": init_reduce_params(kp3, 1024),
        "r4": init_reduce_params(kp4, 2048),
    }

    rb = _num_row_blocks()
    o3, o2, o1 = model_forward(x4, x3, x2, x1, params, row_blocks=rb)
    jax.block_until_ready((o3, o2, o1))

    r3, r2, r1 = reference_forward(x4, x3, x2, x1, params)
    jax.block_until_ready((r3, r2, r1))
    for got, ref in ((o3, r3), (o2, r2), (o1, r1)):
        assert got.shape == (2, 1, OUT_SIZE, OUT_SIZE), got.shape
        assert bool(jnp.all(jnp.isfinite(got)))
        err = float(jnp.max(jnp.abs(got - ref)))
        assert err < 5e-2, err

    print("KERNEL_OK")
</pallas_src>

<mosaic_0001>
module attributes {stable_mosaic.version = 11 : i64} {
  func.func @_fused_reduce_resize_kernel(%arg0: i32, %arg1: i32, %arg2: memref<1x1024x64xf32, #tpu.memory_space<vmem>>, %arg3: memref<64x1024xbf16, #tpu.memory_space<vmem>>, %arg4: memref<64x1xf32, #tpu.memory_space<vmem>>, %arg5: memref<9x64xf32, #tpu.memory_space<vmem>>, %arg6: memref<544x64xbf16, #tpu.memory_space<vmem>>, %arg7: memref<64x544xbf16, #tpu.memory_space<vmem>>, %arg8: memref<1xf32, #tpu.memory_space<smem>>, %arg9: memref<1x544x544xf32, #tpu.memory_space<vmem>>) attributes {dimension_semantics = [#tpu.dimension_semantics<parallel>, #tpu.dimension_semantics<parallel>], iteration_bounds = array<i64: 2, 1>, scalar_prefetch = 0 : i64, scratch_operands = 0 : i64, tpu.core_type = #tpu.core_type<tc>, window_params = [{transform_indices = @transform_0, window_bounds = array<i64: 1, 1024, 64>}, {pipeline_mode = #tpu.pipeline_mode<synchronous>, transform_indices = @transform_1, window_bounds = array<i64: 64, 1024>}, {pipeline_mode = #tpu.pipeline_mode<synchronous>, transform_indices = @transform_2, window_bounds = array<i64: 64, 1>}, {pipeline_mode = #tpu.pipeline_mode<synchronous>, transform_indices = @transform_3, window_bounds = array<i64: 9, 64>}, {transform_indices = @transform_4, window_bounds = array<i64: 544, 64>}, {pipeline_mode = #tpu.pipeline_mode<synchronous>, transform_indices = @transform_5, window_bounds = array<i64: 64, 544>}, {transform_indices = @transform_6, window_bounds = array<i64: 1>}, {transform_indices = @transform_7, window_bounds = array<i64: 1, 544, 544>}]} {
    %c0 = arith.constant 0 : index
    %c0_0 = arith.constant 0 : index
    %c0_1 = arith.constant 0 : index
    %0 = vector.load %arg2[%c0, %c0_0, %c0_1] : memref<1x1024x64xf32, #tpu.memory_space<vmem>>, vector<1x1024x64xf32>
    %1 = vector.shape_cast %0 : vector<1x1024x64xf32> to vector<1024x64xf32>
    %2 = arith.truncf %1 : vector<1024x64xf32> to vector<1024x64xbf16>
    %c0_2 = arith.constant 0 : index
    %c0_3 = arith.constant 0 : index
    %3 = vector.load %arg3[%c0_2, %c0_3] : memref<64x1024xbf16, #tpu.memory_space<vmem>>, vector<64x1024xbf16>
    %cst = arith.constant dense<0.000000e+00> : vector<64x64xf32>
    %4 = tpu.matmul %3, %2, %cst {dimension_numbers = #tpu.dot_dimension_numbers<[1], [0], [0], [1], [0, 0, 1, 1], [], []>} : vector<64x1024xbf16>, vector<1024x64xbf16>, vector<64x64xf32> -> vector<64x64xf32>
    %c0_4 = arith.constant 0 : index
    %c0_5 = arith.constant 0 : index
    %5 = vector.load %arg4[%c0_4, %c0_5] : memref<64x1xf32, #tpu.memory_space<vmem>>, vector<64x1xf32>
    %6 = vector.broadcast %5 : vector<64x1xf32> to vector<64x64xf32>
    %7 = arith.addf %4, %6 : vector<64x64xf32>
    %cst_6 = arith.constant 0.000000e+00 : f32
    %8 = vector.broadcast %cst_6 : f32 to vector<64x64xf32>
    %9 = arith.maximumf %7, %8 : vector<64x64xf32>
    %c0_7 = arith.constant 0 : index
    %c0_8 = arith.constant 0 : index
    %10 = vector.load %arg5[%c0_7, %c0_8] : memref<9x64xf32, #tpu.memory_space<vmem>>, vector<9x64xf32>
    %cst_9 = arith.constant dense<0.000000e+00> : vector<9x64xf32>
    %11 = tpu.matmul %10, %9, %cst_9 {dimension_numbers = #tpu.dot_dimension_numbers<[1], [0], [0], [1], [0, 0, 1, 1], [], []>} : vector<9x64xf32>, vector<64x64xf32>, vector<9x64xf32> -> vector<9x64xf32>
    %12 = tpu.iota {dimensions = array<i32: 1>} : vector<1x64xi32>
    %c7_i32 = arith.constant 7 : i32
    %13 = vector.broadcast %c7_i32 : i32 to vector<1x64xi32>
    %14 = arith.andi %12, %13 : vector<1x64xi32>
    %c8_i32 = arith.constant 8 : i32
    %15 = vector.broadcast %c8_i32 : i32 to vector<1x64xi32>
    %16 = arith.cmpi sge, %12, %15 : vector<1x64xi32>
    %c56_i32 = arith.constant 56 : i32
    %17 = vector.broadcast %c56_i32 : i32 to vector<1x64xi32>
    %18 = arith.cmpi slt, %12, %17 : vector<1x64xi32>
    %c1_i32 = arith.constant 1 : i32
    %19 = vector.broadcast %c1_i32 : i32 to vector<1x64xi32>
    %20 = arith.cmpi sge, %14, %19 : vector<1x64xi32>
    %c7_i32_10 = arith.constant 7 : i32
    %21 = vector.broadcast %c7_i32_10 : i32 to vector<1x64xi32>
    %22 = arith.cmpi slt, %14, %21 : vector<1x64xi32>
    %cst_11 = arith.constant 0.000000e+00 : f32
    %23 = vector.broadcast %cst_11 : f32 to vector<1x64xf32>
    %24 = vector.extract_strided_slice %11 {offsets = [0, 0], sizes = [1, 64], strides = [1, 1]} : vector<9x64xf32> to vector<1x64xf32>
    %c9_i32 = arith.constant 9 : i32
    %25 = tpu.dynamic_rotate %24 by %c9_i32 dim 1 : vector<1x64xf32>, i32 -> vector<1x64xf32>
    %26 = arith.andi %16, %20 : vector<1x64xi1>
    %cst_12 = arith.constant 0.000000e+00 : f32
    %27 = vector.broadcast %cst_12 : f32 to vector<1x64xf32>
    %28 = arith.select %26, %25, %27 : vector<1x64xi1>, vector<1x64xf32>
    %29 = arith.addf %23, %28 : vector<1x64xf32>
    %30 = vector.extract_strided_slice %11 {offsets = [1, 0], sizes = [1, 64], strides = [1, 1]} : vector<9x64xf32> to vector<1x64xf32>
    %c8_i32_13 = arith.constant 8 : i32
    %31 = tpu.dynamic_rotate %30 by %c8_i32_13 dim 1 : vector<1x64xf32>, i32 -> vector<1x64xf32>
    %cst_14 = arith.constant 0.000000e+00 : f32
    %32 = vector.broadcast %cst_14 : f32 to vector<1x64xf32>
    %33 = arith.select %16, %31, %32 : vector<1x64xi1>, vector<1x64xf32>
    %34 = arith.addf %29, %33 : vector<1x64xf32>
    %35 = vector.extract_strided_slice %11 {offsets = [2, 0], sizes = [1, 64], strides = [1, 1]} : vector<9x64xf32> to vector<1x64xf32>
    %c7_i32_15 = arith.constant 7 : i32
    %36 = tpu.dynamic_rotate %35 by %c7_i32_15 dim 1 : vector<1x64xf32>, i32 -> vector<1x64xf32>
    %37 = arith.andi %16, %22 : vector<1x64xi1>
    %cst_16 = arith.constant 0.000000e+00 : f32
    %38 = vector.broadcast %cst_16 : f32 to vector<1x64xf32>
    %39 = arith.select %37, %36, %38 : vector<1x64xi1>, vector<1x64xf32>
    %40 = arith.addf %34, %39 : vector<1x64xf32>
    %41 = vector.extract_strided_slice %11 {offsets = [3, 0], sizes = [1, 64], strides = [1, 1]} : vector<9x64xf32> to vector<1x64xf32>
    %c1_i32_17 = arith.constant 1 : i32
    %42 = tpu.dynamic_rotate %41 by %c1_i32_17 dim 1 : vector<1x64xf32>, i32 -> vector<1x64xf32>
    %cst_18 = arith.constant 0.000000e+00 : f32
    %43 = vector.broadcast %cst_18 : f32 to vector<1x64xf32>
    %44 = arith.select %20, %42, %43 : vector<1x64xi1>, vector<1x64xf32>
    %45 = arith.addf %40, %44 : vector<1x64xf32>
    %46 = vector.extract_strided_slice %11 {offsets = [4, 0], sizes = [1, 64], strides = [1, 1]} : vector<9x64xf32> to vector<1x64xf32>
    %47 = arith.addf %45, %46 : vector<1x64xf32>
    %48 = vector.extract_strided_slice %11 {offsets = [5, 0], sizes = [1, 64], strides = [1, 1]} : vector<9x64xf32> to vector<1x64xf32>
    %c63_i32 = arith.constant 63 : i32
    %49 = tpu.dynamic_rotate %48 by %c63_i32 dim 1 : vector<1x64xf32>, i32 -> vector<1x64xf32>
    %cst_19 = arith.constant 0.000000e+00 : f32
    %50 = vector.broadcast %cst_19 : f32 to vector<1x64xf32>
    %51 = arith.select %22, %49, %50 : vector<1x64xi1>, vector<1x64xf32>
    %52 = arith.addf %47, %51 : vector<1x64xf32>
    %53 = vector.extract_strided_slice %11 {offsets = [6, 0], sizes = [1, 64], strides = [1, 1]} : vector<9x64xf32> to vector<1x64xf32>
    %c57_i32 = arith.constant 57 : i32
    %54 = tpu.dynamic_rotate %53 by %c57_i32 dim 1 : vector<1x64xf32>, i32 -> vector<1x64xf32>
    %55 = arith.andi %18, %20 : vector<1x64xi1>
    %cst_20 = arith.constant 0.000000e+00 : f32
    %56 = vector.broadcast %cst_20 : f32 to vector<1x64xf32>
    %57 = arith.select %55, %54, %56 : vector<1x64xi1>, vector<1x64xf32>
    %58 = arith.addf %52, %57 : vector<1x64xf32>
    %59 = vector.extract_strided_slice %11 {offsets = [7, 0], sizes = [1, 64], strides = [1, 1]} : vector<9x64xf32> to vector<1x64xf32>
    %c56_i32_21 = arith.constant 56 : i32
    %60 = tpu.dynamic_rotate %59 by %c56_i32_21 dim 1 : vector<1x64xf32>, i32 -> vector<1x64xf32>
    %cst_22 = arith.constant 0.000000e+00 : f32
    %61 = vector.broadcast %cst_22 : f32 to vector<1x64xf32>
    %62 = arith.select %18, %60, %61 : vector<1x64xi1>, vector<1x64xf32>
    %63 = arith.addf %58, %62 : vector<1x64xf32>
    %64 = vector.extract_strided_slice %11 {offsets = [8, 0], sizes = [1, 64], strides = [1, 1]} : vector<9x64xf32> to vector<1x64xf32>
    %c55_i32 = arith.constant 55 : i32
    %65 = tpu.dynamic_rotate %64 by %c55_i32 dim 1 : vector<1x64xf32>, i32 -> vector<1x64xf32>
    %66 = arith.andi %18, %22 : vector<1x64xi1>
    %cst_23 = arith.constant 0.000000e+00 : f32
    %67 = vector.broadcast %cst_23 : f32 to vector<1x64xf32>
    %68 = arith.select %66, %65, %67 : vector<1x64xi1>, vector<1x64xf32>
    %69 = arith.addf %63, %68 : vector<1x64xf32>
    %c0_24 = arith.constant 0 : index
    %70 = memref.load %arg8[%c0_24] : memref<1xf32, #tpu.memory_space<smem>>
    %71 = vector.broadcast %70 : f32 to vector<1x64xf32>
    %72 = arith.addf %69, %71 : vector<1x64xf32>
    %cst_25 = arith.constant 0.000000e+00 : f32
    %73 = vector.broadcast %cst_25 : f32 to vector<1x64xf32>
    %74 = arith.subf %73, %72 : vector<1x64xf32>
    %75 = math.exp %74 : vector<1x64xf32>
    %cst_26 = arith.constant 1.000000e+00 : f32
    %76 = vector.broadcast %cst_26 : f32 to vector<1x64xf32>
    %77 = arith.addf %76, %75 : vector<1x64xf32>
    %78 = tpu.reciprocal %77 {approx = true} : vector<1x64xf32> -> vector<1x64xf32>
    %c0_27 = arith.constant 0 : index
    %c0_28 = arith.constant 0 : index
    %79 = vector.load %arg6[%c0_27, %c0_28] : memref<544x64xbf16, #tpu.memory_space<vmem>>, vector<544x64xbf16>
    %80 = arith.truncf %78 : vector<1x64xf32> to vector<1x64xbf16>
    %81 = vector.broadcast %80 : vector<1x64xbf16> to vector<544x64xbf16>
    %82 = arith.mulf %79, %81 : vector<544x64xbf16>
    %c0_29 = arith.constant 0 : index
    %c0_30 = arith.constant 0 : index
    %83 = vector.load %arg7[%c0_29, %c0_30] : memref<64x544xbf16, #tpu.memory_space<vmem>>, vector<64x544xbf16>
    %cst_31 = arith.constant dense<0.000000e+00> : vector<544x544xf32>
    %84 = tpu.matmul %82, %83, %cst_31 {dimension_numbers = #tpu.dot_dimension_numbers<[1], [0], [0], [1], [0, 0, 1, 1], [], []>} : vector<544x64xbf16>, vector<64x544xbf16>, vector<544x544xf32> -> vector<544x544xf32>
    %c0_32 = arith.constant 0 : index
    %c0_33 = arith.constant 0 : index
    %c0_34 = arith.constant 0 : index
    %85 = vector.load %arg9[%c0_32, %c0_33, %c0_34] : memref<1x544x544xf32, #tpu.memory_space<vmem>>, vector<1x544x544xf32>
    %86 = vector.shape_cast %85 : vector<1x544x544xf32> to vector<544x544xf32>
    %87 = vector.shape_cast %84 : vector<544x544xf32> to vector<1x544x544xf32>
    tpu.vector_store %arg9[%c0_32, %c0_33, %c0_34], %87 {strides = array<i32>} : memref<1x544x544xf32, #tpu.memory_space<vmem>>, vector<1x544x544xf32>,
    return
  }
  func.func @transform_0(%arg0: i32, %arg1: i32) -> (i32, i32, i32) {
    %c0_i32 = arith.constant 0 : i32
    %c0_i32_0 = arith.constant 0 : i32
    %c0_i32_1 = arith.constant 0 : i32
    return %arg0, %c0_i32, %c0_i32_0 : i32, i32, i32
  }
  func.func @transform_1(%arg0: i32, %arg1: i32) -> (i32, i32) {
    %c0_i32 = arith.constant 0 : i32
    %c0_i32_0 = arith.constant 0 : i32
    %c0_i32_1 = arith.constant 0 : i32
    return %c0_i32, %c0_i32_0 : i32, i32
  }
  func.func @transform_2(%arg0: i32, %arg1: i32) -> (i32, i32) {
    %c0_i32 = arith.constant 0 : i32
    %c0_i32_0 = arith.constant 0 : i32
    %c0_i32_1 = arith.constant 0 : i32
    return %c0_i32, %c0_i32_0 : i32, i32
  }
  func.func @transform_3(%arg0: i32, %arg1: i32) -> (i32, i32) {
    %c0_i32 = arith.constant 0 : i32
    %c0_i32_0 = arith.constant 0 : i32
    %c0_i32_1 = arith.constant 0 : i32
    return %c0_i32, %c0_i32_0 : i32, i32
  }
  func.func @transform_4(%arg0: i32, %arg1: i32) -> (i32, i32) {
    %c0_i32 = arith.constant 0 : i32
    %c0_i32_0 = arith.constant 0 : i32
    return %arg1, %c0_i32 : i32, i32
  }
  func.func @transform_5(%arg0: i32, %arg1: i32) -> (i32, i32) {
    %c0_i32 = arith.constant 0 : i32
    %c0_i32_0 = arith.constant 0 : i32
    %c0_i32_1 = arith.constant 0 : i32
    return %c0_i32, %c0_i32_0 : i32, i32
  }
  func.func @transform_6(%arg0: i32, %arg1: i32) -> i32 {
    %c0_i32 = arith.constant 0 : i32
    %c0_i32_0 = arith.constant 0 : i32
    return %c0_i32 : i32
  }
  func.func @transform_7(%arg0: i32, %arg1: i32) -> (i32, i32, i32) {
    %c0_i32 = arith.constant 0 : i32
    %c0_i32_0 = arith.constant 0 : i32
    return %arg0, %arg1, %c0_i32 : i32, i32, i32
  }
}

module attributes {stable_mosaic.version = 11 : i64} {
  func.func @_fused_reduce_resize_kernel(%arg0: i32, %arg1: i32, %arg2: memref<1x512x64xf32, #tpu.memory_space<vmem>>, %arg3: memref<64x512xbf16, #tpu.memory_space<vmem>>, %arg4: memref<64x1xf32, #tpu.memory_space<vmem>>, %arg5: memref<9x64xf32, #tpu.memory_space<vmem>>, %arg6: memref<544x64xbf16, #tpu.memory_space<vmem>>, %arg7: memref<64x544xbf16, #tpu.memory_space<vmem>>, %arg8: memref<1xf32, #tpu.memory_space<smem>>, %arg9: memref<1x544x544xf32, #tpu.memory_space<vmem>>) attributes {dimension_semantics = [#tpu.dimension_semantics<parallel>, #tpu.dimension_semantics<parallel>], iteration_bounds = array<i64: 2, 1>, scalar_prefetch = 0 : i64, scratch_operands = 0 : i64, tpu.core_type = #tpu.core_type<tc>, window_params = [{transform_indices = @transform_0, window_bounds = array<i64: 1, 512, 64>}, {pipeline_mode = #tpu.pipeline_mode<synchronous>, transform_indices = @transform_1, window_bounds = array<i64: 64, 512>}, {pipeline_mode = #tpu.pipeline_mode<synchronous>, transform_indices = @transform_2, window_bounds = array<i64: 64, 1>}, {pipeline_mode = #tpu.pipeline_mode<synchronous>, transform_indices = @transform_3, window_bounds = array<i64: 9, 64>}, {transform_indices = @transform_4, window_bounds = array<i64: 544, 64>}, {pipeline_mode = #tpu.pipeline_mode<synchronous>, transform_indices = @transform_5, window_bounds = array<i64: 64, 544>}, {transform_indices = @transform_6, window_bounds = array<i64: 1>}, {transform_indices = @transform_7, window_bounds = array<i64: 1, 544, 544>}]} {
    %c0 = arith.constant 0 : index
    %c0_0 = arith.constant 0 : index
    %c0_1 = arith.constant 0 : index
    %0 = vector.load %arg2[%c0, %c0_0, %c0_1] : memref<1x512x64xf32, #tpu.memory_space<vmem>>, vector<1x512x64xf32>
    %1 = vector.shape_cast %0 : vector<1x512x64xf32> to vector<512x64xf32>
    %2 = arith.truncf %1 : vector<512x64xf32> to vector<512x64xbf16>
    %c0_2 = arith.constant 0 : index
    %c0_3 = arith.constant 0 : index
    %3 = vector.load %arg3[%c0_2, %c0_3] : memref<64x512xbf16, #tpu.memory_space<vmem>>, vector<64x512xbf16>
    %cst = arith.constant dense<0.000000e+00> : vector<64x64xf32>
    %4 = tpu.matmul %3, %2, %cst {dimension_numbers = #tpu.dot_dimension_numbers<[1], [0], [0], [1], [0, 0, 1, 1], [], []>} : vector<64x512xbf16>, vector<512x64xbf16>, vector<64x64xf32> -> vector<64x64xf32>
    %c0_4 = arith.constant 0 : index
    %c0_5 = arith.constant 0 : index
    %5 = vector.load %arg4[%c0_4, %c0_5] : memref<64x1xf32, #tpu.memory_space<vmem>>, vector<64x1xf32>
    %6 = vector.broadcast %5 : vector<64x1xf32> to vector<64x64xf32>
    %7 = arith.addf %4, %6 : vector<64x64xf32>
    %cst_6 = arith.constant 0.000000e+00 : f32
    %8 = vector.broadcast %cst_6 : f32 to vector<64x64xf32>
    %9 = arith.maximumf %7, %8 : vector<64x64xf32>
    %c0_7 = arith.constant 0 : index
    %c0_8 = arith.constant 0 : index
    %10 = vector.load %arg5[%c0_7, %c0_8] : memref<9x64xf32, #tpu.memory_space<vmem>>, vector<9x64xf32>
    %cst_9 = arith.constant dense<0.000000e+00> : vector<9x64xf32>
    %11 = tpu.matmul %10, %9, %cst_9 {dimension_numbers = #tpu.dot_dimension_numbers<[1], [0], [0], [1], [0, 0, 1, 1], [], []>} : vector<9x64xf32>, vector<64x64xf32>, vector<9x64xf32> -> vector<9x64xf32>
    %12 = tpu.iota {dimensions = array<i32: 1>} : vector<1x64xi32>
    %c7_i32 = arith.constant 7 : i32
    %13 = vector.broadcast %c7_i32 : i32 to vector<1x64xi32>
    %14 = arith.andi %12, %13 : vector<1x64xi32>
    %c8_i32 = arith.constant 8 : i32
    %15 = vector.broadcast %c8_i32 : i32 to vector<1x64xi32>
    %16 = arith.cmpi sge, %12, %15 : vector<1x64xi32>
    %c56_i32 = arith.constant 56 : i32
    %17 = vector.broadcast %c56_i32 : i32 to vector<1x64xi32>
    %18 = arith.cmpi slt, %12, %17 : vector<1x64xi32>
    %c1_i32 = arith.constant 1 : i32
    %19 = vector.broadcast %c1_i32 : i32 to vector<1x64xi32>
    %20 = arith.cmpi sge, %14, %19 : vector<1x64xi32>
    %c7_i32_10 = arith.constant 7 : i32
    %21 = vector.broadcast %c7_i32_10 : i32 to vector<1x64xi32>
    %22 = arith.cmpi slt, %14, %21 : vector<1x64xi32>
    %cst_11 = arith.constant 0.000000e+00 : f32
    %23 = vector.broadcast %cst_11 : f32 to vector<1x64xf32>
    %24 = vector.extract_strided_slice %11 {offsets = [0, 0], sizes = [1, 64], strides = [1, 1]} : vector<9x64xf32> to vector<1x64xf32>
    %c9_i32 = arith.constant 9 : i32
    %25 = tpu.dynamic_rotate %24 by %c9_i32 dim 1 : vector<1x64xf32>, i32 -> vector<1x64xf32>
    %26 = arith.andi %16, %20 : vector<1x64xi1>
    %cst_12 = arith.constant 0.000000e+00 : f32
    %27 = vector.broadcast %cst_12 : f32 to vector<1x64xf32>
    %28 = arith.select %26, %25, %27 : vector<1x64xi1>, vector<1x64xf32>
    %29 = arith.addf %23, %28 : vector<1x64xf32>
    %30 = vector.extract_strided_slice %11 {offsets = [1, 0], sizes = [1, 64], strides = [1, 1]} : vector<9x64xf32> to vector<1x64xf32>
    %c8_i32_13 = arith.constant 8 : i32
    %31 = tpu.dynamic_rotate %30 by %c8_i32_13 dim 1 : vector<1x64xf32>, i32 -> vector<1x64xf32>
    %cst_14 = arith.constant 0.000000e+00 : f32
    %32 = vector.broadcast %cst_14 : f32 to vector<1x64xf32>
    %33 = arith.select %16, %31, %32 : vector<1x64xi1>, vector<1x64xf32>
    %34 = arith.addf %29, %33 : vector<1x64xf32>
    %35 = vector.extract_strided_slice %11 {offsets = [2, 0], sizes = [1, 64], strides = [1, 1]} : vector<9x64xf32> to vector<1x64xf32>
    %c7_i32_15 = arith.constant 7 : i32
    %36 = tpu.dynamic_rotate %35 by %c7_i32_15 dim 1 : vector<1x64xf32>, i32 -> vector<1x64xf32>
    %37 = arith.andi %16, %22 : vector<1x64xi1>
    %cst_16 = arith.constant 0.000000e+00 : f32
    %38 = vector.broadcast %cst_16 : f32 to vector<1x64xf32>
    %39 = arith.select %37, %36, %38 : vector<1x64xi1>, vector<1x64xf32>
    %40 = arith.addf %34, %39 : vector<1x64xf32>
    %41 = vector.extract_strided_slice %11 {offsets = [3, 0], sizes = [1, 64], strides = [1, 1]} : vector<9x64xf32> to vector<1x64xf32>
    %c1_i32_17 = arith.constant 1 : i32
    %42 = tpu.dynamic_rotate %41 by %c1_i32_17 dim 1 : vector<1x64xf32>, i32 -> vector<1x64xf32>
    %cst_18 = arith.constant 0.000000e+00 : f32
    %43 = vector.broadcast %cst_18 : f32 to vector<1x64xf32>
    %44 = arith.select %20, %42, %43 : vector<1x64xi1>, vector<1x64xf32>
    %45 = arith.addf %40, %44 : vector<1x64xf32>
    %46 = vector.extract_strided_slice %11 {offsets = [4, 0], sizes = [1, 64], strides = [1, 1]} : vector<9x64xf32> to vector<1x64xf32>
    %47 = arith.addf %45, %46 : vector<1x64xf32>
    %48 = vector.extract_strided_slice %11 {offsets = [5, 0], sizes = [1, 64], strides = [1, 1]} : vector<9x64xf32> to vector<1x64xf32>
    %c63_i32 = arith.constant 63 : i32
    %49 = tpu.dynamic_rotate %48 by %c63_i32 dim 1 : vector<1x64xf32>, i32 -> vector<1x64xf32>
    %cst_19 = arith.constant 0.000000e+00 : f32
    %50 = vector.broadcast %cst_19 : f32 to vector<1x64xf32>
    %51 = arith.select %22, %49, %50 : vector<1x64xi1>, vector<1x64xf32>
    %52 = arith.addf %47, %51 : vector<1x64xf32>
    %53 = vector.extract_strided_slice %11 {offsets = [6, 0], sizes = [1, 64], strides = [1, 1]} : vector<9x64xf32> to vector<1x64xf32>
    %c57_i32 = arith.constant 57 : i32
    %54 = tpu.dynamic_rotate %53 by %c57_i32 dim 1 : vector<1x64xf32>, i32 -> vector<1x64xf32>
    %55 = arith.andi %18, %20 : vector<1x64xi1>
    %cst_20 = arith.constant 0.000000e+00 : f32
    %56 = vector.broadcast %cst_20 : f32 to vector<1x64xf32>
    %57 = arith.select %55, %54, %56 : vector<1x64xi1>, vector<1x64xf32>
    %58 = arith.addf %52, %57 : vector<1x64xf32>
    %59 = vector.extract_strided_slice %11 {offsets = [7, 0], sizes = [1, 64], strides = [1, 1]} : vector<9x64xf32> to vector<1x64xf32>
    %c56_i32_21 = arith.constant 56 : i32
    %60 = tpu.dynamic_rotate %59 by %c56_i32_21 dim 1 : vector<1x64xf32>, i32 -> vector<1x64xf32>
    %cst_22 = arith.constant 0.000000e+00 : f32
    %61 = vector.broadcast %cst_22 : f32 to vector<1x64xf32>
    %62 = arith.select %18, %60, %61 : vector<1x64xi1>, vector<1x64xf32>
    %63 = arith.addf %58, %62 : vector<1x64xf32>
    %64 = vector.extract_strided_slice %11 {offsets = [8, 0], sizes = [1, 64], strides = [1, 1]} : vector<9x64xf32> to vector<1x64xf32>
    %c55_i32 = arith.constant 55 : i32
    %65 = tpu.dynamic_rotate %64 by %c55_i32 dim 1 : vector<1x64xf32>, i32 -> vector<1x64xf32>
    %66 = arith.andi %18, %22 : vector<1x64xi1>
    %cst_23 = arith.constant 0.000000e+00 : f32
    %67 = vector.broadcast %cst_23 : f32 to vector<1x64xf32>
    %68 = arith.select %66, %65, %67 : vector<1x64xi1>, vector<1x64xf32>
    %69 = arith.addf %63, %68 : vector<1x64xf32>
    %c0_24 = arith.constant 0 : index
    %70 = memref.load %arg8[%c0_24] : memref<1xf32, #tpu.memory_space<smem>>
    %71 = vector.broadcast %70 : f32 to vector<1x64xf32>
    %72 = arith.addf %69, %71 : vector<1x64xf32>
    %cst_25 = arith.constant 0.000000e+00 : f32
    %73 = vector.broadcast %cst_25 : f32 to vector<1x64xf32>
    %74 = arith.subf %73, %72 : vector<1x64xf32>
    %75 = math.exp %74 : vector<1x64xf32>
    %cst_26 = arith.constant 1.000000e+00 : f32
    %76 = vector.broadcast %cst_26 : f32 to vector<1x64xf32>
    %77 = arith.addf %76, %75 : vector<1x64xf32>
    %78 = tpu.reciprocal %77 {approx = true} : vector<1x64xf32> -> vector<1x64xf32>
    %c0_27 = arith.constant 0 : index
    %c0_28 = arith.constant 0 : index
    %79 = vector.load %arg6[%c0_27, %c0_28] : memref<544x64xbf16, #tpu.memory_space<vmem>>, vector<544x64xbf16>
    %80 = arith.truncf %78 : vector<1x64xf32> to vector<1x64xbf16>
    %81 = vector.broadcast %80 : vector<1x64xbf16> to vector<544x64xbf16>
    %82 = arith.mulf %79, %81 : vector<544x64xbf16>
    %c0_29 = arith.constant 0 : index
    %c0_30 = arith.constant 0 : index
    %83 = vector.load %arg7[%c0_29, %c0_30] : memref<64x544xbf16, #tpu.memory_space<vmem>>, vector<64x544xbf16>
    %cst_31 = arith.constant dense<0.000000e+00> : vector<544x544xf32>
    %84 = tpu.matmul %82, %83, %cst_31 {dimension_numbers = #tpu.dot_dimension_numbers<[1], [0], [0], [1], [0, 0, 1, 1], [], []>} : vector<544x64xbf16>, vector<64x544xbf16>, vector<544x544xf32> -> vector<544x544xf32>
    %c0_32 = arith.constant 0 : index
    %c0_33 = arith.constant 0 : index
    %c0_34 = arith.constant 0 : index
    %85 = vector.load %arg9[%c0_32, %c0_33, %c0_34] : memref<1x544x544xf32, #tpu.memory_space<vmem>>, vector<1x544x544xf32>
    %86 = vector.shape_cast %85 : vector<1x544x544xf32> to vector<544x544xf32>
    %87 = vector.shape_cast %84 : vector<544x544xf32> to vector<1x544x544xf32>
    tpu.vector_store %arg9[%c0_32, %c0_33, %c0_34], %87 {strides = array<i32>} : memref<1x544x544xf32, #tpu.memory_space<vmem>>, vector<1x544x544xf32>,
    return
  }
  func.func @transform_0(%arg0: i32, %arg1: i32) -> (i32, i32, i32) {
    %c0_i32 = arith.constant 0 : i32
    %c0_i32_0 = arith.constant 0 : i32
    %c0_i32_1 = arith.constant 0 : i32
    return %arg0, %c0_i32, %c0_i32_0 : i32, i32, i32
  }
  func.func @transform_1(%arg0: i32, %arg1: i32) -> (i32, i32) {
    %c0_i32 = arith.constant 0 : i32
    %c0_i32_0 = arith.constant 0 : i32
    %c0_i32_1 = arith.constant 0 : i32
    return %c0_i32, %c0_i32_0 : i32, i32
  }
  func.func @transform_2(%arg0: i32, %arg1: i32) -> (i32, i32) {
    %c0_i32 = arith.constant 0 : i32
    %c0_i32_0 = arith.constant 0 : i32
    %c0_i32_1 = arith.constant 0 : i32
    return %c0_i32, %c0_i32_0 : i32, i32
  }
  func.func @transform_3(%arg0: i32, %arg1: i32) -> (i32, i32) {
    %c0_i32 = arith.constant 0 : i32
    %c0_i32_0 = arith.constant 0 : i32
    %c0_i32_1 = arith.constant 0 : i32
    return %c0_i32, %c0_i32_0 : i32, i32
  }
  func.func @transform_4(%arg0: i32, %arg1: i32) -> (i32, i32) {
    %c0_i32 = arith.constant 0 : i32
    %c0_i32_0 = arith.constant 0 : i32
    return %arg1, %c0_i32 : i32, i32
  }
  func.func @transform_5(%arg0: i32, %arg1: i32) -> (i32, i32) {
    %c0_i32 = arith.constant 0 : i32
    %c0_i32_0 = arith.constant 0 : i32
    %c0_i32_1 = arith.constant 0 : i32
    return %c0_i32, %c0_i32_0 : i32, i32
  }
  func.func @transform_6(%arg0: i32, %arg1: i32) -> i32 {
    %c0_i32 = arith.constant 0 : i32
    %c0_i32_0 = arith.constant 0 : i32
    return %c0_i32 : i32
  }
  func.func @transform_7(%arg0: i32, %arg1: i32) -> (i32, i32, i32) {
    %c0_i32 = arith.constant 0 : i32
    %c0_i32_0 = arith.constant 0 : i32
    return %arg0, %arg1, %c0_i32 : i32, i32, i32
  }
}

module attributes {stable_mosaic.version = 11 : i64} {
  func.func @_fused_reduce_resize_kernel(%arg0: i32, %arg1: i32, %arg2: memref<1x256x256xf32, #tpu.memory_space<vmem>>, %arg3: memref<64x256xbf16, #tpu.memory_space<vmem>>, %arg4: memref<64x1xf32, #tpu.memory_space<vmem>>, %arg5: memref<9x64xf32, #tpu.memory_space<vmem>>, %arg6: memref<544x256xbf16, #tpu.memory_space<vmem>>, %arg7: memref<256x544xbf16, #tpu.memory_space<vmem>>, %arg8: memref<1xf32, #tpu.memory_space<smem>>, %arg9: memref<1x544x544xf32, #tpu.memory_space<vmem>>) attributes {dimension_semantics = [#tpu.dimension_semantics<parallel>, #tpu.dimension_semantics<parallel>], iteration_bounds = array<i64: 2, 1>, scalar_prefetch = 0 : i64, scratch_operands = 0 : i64, tpu.core_type = #tpu.core_type<tc>, window_params = [{transform_indices = @transform_0, window_bounds = array<i64: 1, 256, 256>}, {pipeline_mode = #tpu.pipeline_mode<synchronous>, transform_indices = @transform_1, window_bounds = array<i64: 64, 256>}, {pipeline_mode = #tpu.pipeline_mode<synchronous>, transform_indices = @transform_2, window_bounds = array<i64: 64, 1>}, {pipeline_mode = #tpu.pipeline_mode<synchronous>, transform_indices = @transform_3, window_bounds = array<i64: 9, 64>}, {transform_indices = @transform_4, window_bounds = array<i64: 544, 256>}, {pipeline_mode = #tpu.pipeline_mode<synchronous>, transform_indices = @transform_5, window_bounds = array<i64: 256, 544>}, {transform_indices = @transform_6, window_bounds = array<i64: 1>}, {transform_indices = @transform_7, window_bounds = array<i64: 1, 544, 544>}]} {
    %c0 = arith.constant 0 : index
    %c0_0 = arith.constant 0 : index
    %c0_1 = arith.constant 0 : index
    %0 = vector.load %arg2[%c0, %c0_0, %c0_1] : memref<1x256x256xf32, #tpu.memory_space<vmem>>, vector<1x256x256xf32>
    %1 = vector.shape_cast %0 : vector<1x256x256xf32> to vector<256x256xf32>
    %2 = arith.truncf %1 : vector<256x256xf32> to vector<256x256xbf16>
    %c0_2 = arith.constant 0 : index
    %c0_3 = arith.constant 0 : index
    %3 = vector.load %arg3[%c0_2, %c0_3] : memref<64x256xbf16, #tpu.memory_space<vmem>>, vector<64x256xbf16>
    %cst = arith.constant dense<0.000000e+00> : vector<64x256xf32>
    %4 = tpu.matmul %3, %2, %cst {dimension_numbers = #tpu.dot_dimension_numbers<[1], [0], [0], [1], [0, 0, 1, 1], [], []>} : vector<64x256xbf16>, vector<256x256xbf16>, vector<64x256xf32> -> vector<64x256xf32>
    %c0_4 = arith.constant 0 : index
    %c0_5 = arith.constant 0 : index
    %5 = vector.load %arg4[%c0_4, %c0_5] : memref<64x1xf32, #tpu.memory_space<vmem>>, vector<64x1xf32>
    %6 = vector.broadcast %5 : vector<64x1xf32> to vector<64x256xf32>
    %7 = arith.addf %4, %6 : vector<64x256xf32>
    %cst_6 = arith.constant 0.000000e+00 : f32
    %8 = vector.broadcast %cst_6 : f32 to vector<64x256xf32>
    %9 = arith.maximumf %7, %8 : vector<64x256xf32>
    %c0_7 = arith.constant 0 : index
    %c0_8 = arith.constant 0 : index
    %10 = vector.load %arg5[%c0_7, %c0_8] : memref<9x64xf32, #tpu.memory_space<vmem>>, vector<9x64xf32>
    %cst_9 = arith.constant dense<0.000000e+00> : vector<9x256xf32>
    %11 = tpu.matmul %10, %9, %cst_9 {dimension_numbers = #tpu.dot_dimension_numbers<[1], [0], [0], [1], [0, 0, 1, 1], [], []>} : vector<9x64xf32>, vector<64x256xf32>, vector<9x256xf32> -> vector<9x256xf32>
    %12 = tpu.iota {dimensions = array<i32: 1>} : vector<1x256xi32>
    %c15_i32 = arith.constant 15 : i32
    %13 = vector.broadcast %c15_i32 : i32 to vector<1x256xi32>
    %14 = arith.andi %12, %13 : vector<1x256xi32>
    %c16_i32 = arith.constant 16 : i32
    %15 = vector.broadcast %c16_i32 : i32 to vector<1x256xi32>
    %16 = arith.cmpi sge, %12, %15 : vector<1x256xi32>
    %c240_i32 = arith.constant 240 : i32
    %17 = vector.broadcast %c240_i32 : i32 to vector<1x256xi32>
    %18 = arith.cmpi slt, %12, %17 : vector<1x256xi32>
    %c1_i32 = arith.constant 1 : i32
    %19 = vector.broadcast %c1_i32 : i32 to vector<1x256xi32>
    %20 = arith.cmpi sge, %14, %19 : vector<1x256xi32>
    %c15_i32_10 = arith.constant 15 : i32
    %21 = vector.broadcast %c15_i32_10 : i32 to vector<1x256xi32>
    %22 = arith.cmpi slt, %14, %21 : vector<1x256xi32>
    %cst_11 = arith.constant 0.000000e+00 : f32
    %23 = vector.broadcast %cst_11 : f32 to vector<1x256xf32>
    %24 = vector.extract_strided_slice %11 {offsets = [0, 0], sizes = [1, 256], strides = [1, 1]} : vector<9x256xf32> to vector<1x256xf32>
    %c17_i32 = arith.constant 17 : i32
    %25 = tpu.dynamic_rotate %24 by %c17_i32 dim 1 : vector<1x256xf32>, i32 -> vector<1x256xf32>
    %26 = arith.andi %16, %20 : vector<1x256xi1>
    %cst_12 = arith.constant 0.000000e+00 : f32
    %27 = vector.broadcast %cst_12 : f32 to vector<1x256xf32>
    %28 = arith.select %26, %25, %27 : vector<1x256xi1>, vector<1x256xf32>
    %29 = arith.addf %23, %28 : vector<1x256xf32>
    %30 = vector.extract_strided_slice %11 {offsets = [1, 0], sizes = [1, 256], strides = [1, 1]} : vector<9x256xf32> to vector<1x256xf32>
    %c16_i32_13 = arith.constant 16 : i32
    %31 = tpu.dynamic_rotate %30 by %c16_i32_13 dim 1 : vector<1x256xf32>, i32 -> vector<1x256xf32>
    %cst_14 = arith.constant 0.000000e+00 : f32
    %32 = vector.broadcast %cst_14 : f32 to vector<1x256xf32>
    %33 = arith.select %16, %31, %32 : vector<1x256xi1>, vector<1x256xf32>
    %34 = arith.addf %29, %33 : vector<1x256xf32>
    %35 = vector.extract_strided_slice %11 {offsets = [2, 0], sizes = [1, 256], strides = [1, 1]} : vector<9x256xf32> to vector<1x256xf32>
    %c15_i32_15 = arith.constant 15 : i32
    %36 = tpu.dynamic_rotate %35 by %c15_i32_15 dim 1 : vector<1x256xf32>, i32 -> vector<1x256xf32>
    %37 = arith.andi %16, %22 : vector<1x256xi1>
    %cst_16 = arith.constant 0.000000e+00 : f32
    %38 = vector.broadcast %cst_16 : f32 to vector<1x256xf32>
    %39 = arith.select %37, %36, %38 : vector<1x256xi1>, vector<1x256xf32>
    %40 = arith.addf %34, %39 : vector<1x256xf32>
    %41 = vector.extract_strided_slice %11 {offsets = [3, 0], sizes = [1, 256], strides = [1, 1]} : vector<9x256xf32> to vector<1x256xf32>
    %c1_i32_17 = arith.constant 1 : i32
    %42 = tpu.dynamic_rotate %41 by %c1_i32_17 dim 1 : vector<1x256xf32>, i32 -> vector<1x256xf32>
    %cst_18 = arith.constant 0.000000e+00 : f32
    %43 = vector.broadcast %cst_18 : f32 to vector<1x256xf32>
    %44 = arith.select %20, %42, %43 : vector<1x256xi1>, vector<1x256xf32>
    %45 = arith.addf %40, %44 : vector<1x256xf32>
    %46 = vector.extract_strided_slice %11 {offsets = [4, 0], sizes = [1, 256], strides = [1, 1]} : vector<9x256xf32> to vector<1x256xf32>
    %47 = arith.addf %45, %46 : vector<1x256xf32>
    %48 = vector.extract_strided_slice %11 {offsets = [5, 0], sizes = [1, 256], strides = [1, 1]} : vector<9x256xf32> to vector<1x256xf32>
    %c255_i32 = arith.constant 255 : i32
    %49 = tpu.dynamic_rotate %48 by %c255_i32 dim 1 : vector<1x256xf32>, i32 -> vector<1x256xf32>
    %cst_19 = arith.constant 0.000000e+00 : f32
    %50 = vector.broadcast %cst_19 : f32 to vector<1x256xf32>
    %51 = arith.select %22, %49, %50 : vector<1x256xi1>, vector<1x256xf32>
    %52 = arith.addf %47, %51 : vector<1x256xf32>
    %53 = vector.extract_strided_slice %11 {offsets = [6, 0], sizes = [1, 256], strides = [1, 1]} : vector<9x256xf32> to vector<1x256xf32>
    %c241_i32 = arith.constant 241 : i32
    %54 = tpu.dynamic_rotate %53 by %c241_i32 dim 1 : vector<1x256xf32>, i32 -> vector<1x256xf32>
    %55 = arith.andi %18, %20 : vector<1x256xi1>
    %cst_20 = arith.constant 0.000000e+00 : f32
    %56 = vector.broadcast %cst_20 : f32 to vector<1x256xf32>
    %57 = arith.select %55, %54, %56 : vector<1x256xi1>, vector<1x256xf32>
    %58 = arith.addf %52, %57 : vector<1x256xf32>
    %59 = vector.extract_strided_slice %11 {offsets = [7, 0], sizes = [1, 256], strides = [1, 1]} : vector<9x256xf32> to vector<1x256xf32>
    %c240_i32_21 = arith.constant 240 : i32
    %60 = tpu.dynamic_rotate %59 by %c240_i32_21 dim 1 : vector<1x256xf32>, i32 -> vector<1x256xf32>
    %cst_22 = arith.constant 0.000000e+00 : f32
    %61 = vector.broadcast %cst_22 : f32 to vector<1x256xf32>
    %62 = arith.select %18, %60, %61 : vector<1x256xi1>, vector<1x256xf32>
    %63 = arith.addf %58, %62 : vector<1x256xf32>
    %64 = vector.extract_strided_slice %11 {offsets = [8, 0], sizes = [1, 256], strides = [1, 1]} : vector<9x256xf32> to vector<1x256xf32>
    %c239_i32 = arith.constant 239 : i32
    %65 = tpu.dynamic_rotate %64 by %c239_i32 dim 1 : vector<1x256xf32>, i32 -> vector<1x256xf32>
    %66 = arith.andi %18, %22 : vector<1x256xi1>
    %cst_23 = arith.constant 0.000000e+00 : f32
    %67 = vector.broadcast %cst_23 : f32 to vector<1x256xf32>
    %68 = arith.select %66, %65, %67 : vector<1x256xi1>, vector<1x256xf32>
    %69 = arith.addf %63, %68 : vector<1x256xf32>
    %c0_24 = arith.constant 0 : index
    %70 = memref.load %arg8[%c0_24] : memref<1xf32, #tpu.memory_space<smem>>
    %71 = vector.broadcast %70 : f32 to vector<1x256xf32>
    %72 = arith.addf %69, %71 : vector<1x256xf32>
    %cst_25 = arith.constant 0.000000e+00 : f32
    %73 = vector.broadcast %cst_25 : f32 to vector<1x256xf32>
    %74 = arith.subf %73, %72 : vector<1x256xf32>
    %75 = math.exp %74 : vector<1x256xf32>
    %cst_26 = arith.constant 1.000000e+00 : f32
    %76 = vector.broadcast %cst_26 : f32 to vector<1x256xf32>
    %77 = arith.addf %76, %75 : vector<1x256xf32>
    %78 = tpu.reciprocal %77 {approx = true} : vector<1x256xf32> -> vector<1x256xf32>
    %c0_27 = arith.constant 0 : index
    %c0_28 = arith.constant 0 : index
    %79 = vector.load %arg6[%c0_27, %c0_28] : memref<544x256xbf16, #tpu.memory_space<vmem>>, vector<544x256xbf16>
    %80 = arith.truncf %78 : vector<1x256xf32> to vector<1x256xbf16>
    %81 = vector.broadcast %80 : vector<1x256xbf16> to vector<544x256xbf16>
    %82 = arith.mulf %79, %81 : vector<544x256xbf16>
    %c0_29 = arith.constant 0 : index
    %c0_30 = arith.constant 0 : index
    %83 = vector.load %arg7[%c0_29, %c0_30] : memref<256x544xbf16, #tpu.memory_space<vmem>>, vector<256x544xbf16>
    %cst_31 = arith.constant dense<0.000000e+00> : vector<544x544xf32>
    %84 = tpu.matmul %82, %83, %cst_31 {dimension_numbers = #tpu.dot_dimension_numbers<[1], [0], [0], [1], [0, 0, 1, 1], [], []>} : vector<544x256xbf16>, vector<256x544xbf16>, vector<544x544xf32> -> vector<544x544xf32>
    %c0_32 = arith.constant 0 : index
    %c0_33 = arith.constant 0 : index
    %c0_34 = arith.constant 0 : index
    %85 = vector.load %arg9[%c0_32, %c0_33, %c0_34] : memref<1x544x544xf32, #tpu.memory_space<vmem>>, vector<1x544x544xf32>
    %86 = vector.shape_cast %85 : vector<1x544x544xf32> to vector<544x544xf32>
    %87 = vector.shape_cast %84 : vector<544x544xf32> to vector<1x544x544xf32>
    tpu.vector_store %arg9[%c0_32, %c0_33, %c0_34], %87 {strides = array<i32>} : memref<1x544x544xf32, #tpu.memory_space<vmem>>, vector<1x544x544xf32>,
    return
  }
  func.func @transform_0(%arg0: i32, %arg1: i32) -> (i32, i32, i32) {
    %c0_i32 = arith.constant 0 : i32
    %c0_i32_0 = arith.constant 0 : i32
    %c0_i32_1 = arith.constant 0 : i32
    return %arg0, %c0_i32, %c0_i32_0 : i32, i32, i32
  }
  func.func @transform_1(%arg0: i32, %arg1: i32) -> (i32, i32) {
    %c0_i32 = arith.constant 0 : i32
    %c0_i32_0 = arith.constant 0 : i32
    %c0_i32_1 = arith.constant 0 : i32
    return %c0_i32, %c0_i32_0 : i32, i32
  }
  func.func @transform_2(%arg0: i32, %arg1: i32) -> (i32, i32) {
    %c0_i32 = arith.constant 0 : i32
    %c0_i32_0 = arith.constant 0 : i32
    %c0_i32_1 = arith.constant 0 : i32
    return %c0_i32, %c0_i32_0 : i32, i32
  }
  func.func @transform_3(%arg0: i32, %arg1: i32) -> (i32, i32) {
    %c0_i32 = arith.constant 0 : i32
    %c0_i32_0 = arith.constant 0 : i32
    %c0_i32_1 = arith.constant 0 : i32
    return %c0_i32, %c0_i32_0 : i32, i32
  }
  func.func @transform_4(%arg0: i32, %arg1: i32) -> (i32, i32) {
    %c0_i32 = arith.constant 0 : i32
    %c0_i32_0 = arith.constant 0 : i32
    return %arg1, %c0_i32 : i32, i32
  }
  func.func @transform_5(%arg0: i32, %arg1: i32) -> (i32, i32) {
    %c0_i32 = arith.constant 0 : i32
    %c0_i32_0 = arith.constant 0 : i32
    %c0_i32_1 = arith.constant 0 : i32
    return %c0_i32, %c0_i32_0 : i32, i32
  }
  func.func @transform_6(%arg0: i32, %arg1: i32) -> i32 {
    %c0_i32 = arith.constant 0 : i32
    %c0_i32_0 = arith.constant 0 : i32
    return %c0_i32 : i32
  }
  func.func @transform_7(%arg0: i32, %arg1: i32) -> (i32, i32, i32) {
    %c0_i32 = arith.constant 0 : i32
    %c0_i32_0 = arith.constant 0 : i32
    return %arg0, %arg1, %c0_i32 : i32, i32, i32
  }
}

</mosaic_0001>

<llo_original>
// kernel: model_forward.4
$region0: #{model_forward.4}
  #allocation0 [shape = 'u32[]', space=smem, size = 0x4, offset = 0x4, fixed_abs, tag = 'smem constant byte address 0x4 - core index']
  #allocation1 [shape = 'u32[144,128]{1,0:T(1,128)}', space=vmem, size = 0x12000, scoped, tag = 'internal scratch']
  #allocation2 [shape = 'f32[1]{0:T(128)S(6)}', space=smem, size = 0x200, scoped, tag = 'scoped memory for model_forward.4']
  %s0 = inlined_call_operand.vmem [shape: f32[2,512,64], index: 0, kind: input, shape index: {}]
  %s1 = inlined_call_operand.vmem [shape: bf16[64,512], index: 1, kind: input, shape index: {}]
  %s2 = inlined_call_operand.vmem [shape: f32[64,1], index: 2, kind: input, shape index: {}]
  %s3 = inlined_call_operand.vmem [shape: f32[9,64], index: 3, kind: input, shape index: {}]
  %s4 = inlined_call_operand.vmem [shape: bf16[544,64], index: 4, kind: input, shape index: {}]
  %s5 = inlined_call_operand.vmem [shape: bf16[64,544], index: 5, kind: input, shape index: {}]
  %s6 = inlined_call_operand.<no memory space> [shape: f32[1], index: 6, kind: input, shape index: {}]
  %s7 = inlined_call_operand.hbm [shape: f32[2,544,544], index: 7, kind: output, shape index: {}]
  %s8 = sld [smem:[#allocation0]]
  $region61: #{model_forward.4} parent=0
    _
  %s10 = ssub.s32 1, %s8
  %s11 = scalar_select 0, %s10, %s8
  %12 = sst [smem:[#allocation2]] %s6
  $region1: #{model_forward.4} parent=0
    #allocation3 [shape = 'u8[2785280]{0}', space=vmem, size = 0x2a8000, scoped, tag = 'output window, operand 0']
    #allocation4 [shape = 's32[2]{0}', space=sflag, size = 0x8, scoped, tag = 'scoped memory for model_forward.4']
    %13 = vsyncpa [#allocation4], 0
    %s14 = scalar_lea.sflag [#allocation4], 1
    %15 = vsyncpa %s14, 0
    loop: start=0, step=1, limit=4
    $region2: #{model_forward.4} parent=1 // loop_pre_header
      _
    $region3: #{model_forward.4} parent=1 // loop_header
      %s17 = sphi 0, %s21
      %p18 = scmp.ge.s32.totalorder %s17, 4
      %s24 = sphi 0, %s36
      %s25 = sphi 0, %s32
      %s26 = sphi 0, %s24
      %s27 = sphi 0, %s25
      %s28 = sphi 0, %s26
      %s29 = sphi 0, %s27
      %s39 = sphi 0, %s41
      %s42 = sphi 0, %s39
      %s43 = sphi 0, %s42
      %s59 = sphi 0, %s43
      %s63 = sphi 0, %s63
      %s65 = sphi 0, %s63
      %s66 = sphi 0, %s65
      %s80 = sphi 0, %s66
      %s84 = sphi 0, %s84
      %s86 = sphi 0, %s84
      %s87 = sphi 0, %s86
      %s101 = sphi 0, %s87
      %s105 = sphi 0, %s105
      %s107 = sphi 0, %s105
      %s108 = sphi 0, %s107
      %s122 = sphi 0, %s108
      %s128 = sphi 0, %s130
      %s131 = sphi 0, %s128
      %s132 = sphi 0, %s131
      %s148 = sphi 0, %s132
      %s152 = sphi 0, %s152
      %s154 = sphi 0, %s152
      %s155 = sphi 0, %s154
      %s169 = sphi 0, %s155
      %s173 = sphi 0, %s173
      %s175 = sphi 0, %s173
      %s176 = sphi 0, %s175
      %s190 = sphi 0, %s176
      %s198 = sphi 0, %s200
      %s201 = sphi 0, %s198
      %s202 = sphi 0, %s201
      %s218 = sphi 0, %s202
    $region4: #{model_forward.4} parent=1 // loop_header_branch
      %20 = sbr.rel (%p18) target = $region8
    $region5: #{model_forward.4} parent=1 // loop_body
      %s22 = ssub.s32 %s17, 1
      %s23 = ssub.s32 %s17, 2
      %s30 = sadd.s32 1, %s25
      %p31 = scmp.ge.s32.totalorder %s30, 1
      %s32 = scalar_select %p31, 0, %s30
      %s33 = sadd.s32 1, %s24
      %s34 = scalar_select %p31, %s33, %s24
      %p35 = scmp.ge.s32.totalorder %s34, 2
      %s36 = scalar_select %p35, 0, %s34
      %s37 = ssub.s32 %s24, %s36
      %p38 = scmp.eq.s32.totalorder %s37, 0
      %s40 = sadd.s32 %s39, 1
      %s41 = scalar_select %p38, %s39, %s40
      %p44 = pneg %p38
      %p45 = scmp.eq.s32.totalorder %s17, 1
      %p46 = por %p44, %p45
      %p47 = scmp.ne.s32.totalorder %s39, %s42
      %p48 = scmp.eq.s32.totalorder %s17, 0
      %p49 = por %p47, %p48
      %p50 = scmp.ne.s32.totalorder %s39, %s42
      %p51 = scmp.eq.s32.totalorder %s22, 1
      %p52 = por %p50, %p51
      %p53 = scmp.ne.s32.totalorder %s42, %s43
      %p54 = scmp.eq.s32.totalorder %s22, 0
      %p55 = por %p53, %p54
      %p56 = scmp.ne.s32.totalorder %s42, %s43
      %p57 = scmp.eq.s32.totalorder %s23, 1
      %p58 = por %p56, %p57
      %p60 = scmp.ne.s32.totalorder %s43, %s59
      %p61 = scmp.eq.s32.totalorder %s23, 0
      %p62 = por %p60, %p61
      %s64 = sadd.s32 %s63, 1
      %p67 = scmp.eq.s32.totalorder %s17, 1
      %p68 = scmp.ne.s32.totalorder %s63, %s65
      %p69 = scmp.eq.s32.totalorder %s17, 0
      %p70 = por %p68, %p69
      %p71 = scmp.ne.s32.totalorder %s63, %s65
      %p72 = scmp.eq.s32.totalorder %s22, 1
      %p73 = por %p71, %p72
      %p74 = scmp.ne.s32.totalorder %s65, %s66
      %p75 = scmp.eq.s32.totalorder %s22, 0
      %p76 = por %p74, %p75
      %p77 = scmp.ne.s32.totalorder %s65, %s66
      %p78 = scmp.eq.s32.totalorder %s23, 1
      %p79 = por %p77, %p78
      %p81 = scmp.ne.s32.totalorder %s66, %s80
      %p82 = scmp.eq.s32.totalorder %s23, 0
      %p83 = por %p81, %p82
      %s85 = sadd.s32 %s84, 1
      %p88 = scmp.eq.s32.totalorder %s17, 1
      %p89 = scmp.ne.s32.totalorder %s84, %s86
      %p90 = scmp.eq.s32.totalorder %s17, 0
      %p91 = por %p89, %p90
      %p92 = scmp.ne.s32.totalorder %s84, %s86
      %p93 = scmp.eq.s32.totalorder %s22, 1
      %p94 = por %p92, %p93
      %p95 = scmp.ne.s32.totalorder %s86, %s87
      %p96 = scmp.eq.s32.totalorder %s22, 0
      %p97 = por %p95, %p96
      %p98 = scmp.ne.s32.totalorder %s86, %s87
      %p99 = scmp.eq.s32.totalorder %s23, 1
      %p100 = por %p98, %p99
      %p102 = scmp.ne.s32.totalorder %s87, %s101
      %p103 = scmp.eq.s32.totalorder %s23, 0
      %p104 = por %p102, %p103
      %s106 = sadd.s32 %s105, 1
      %p109 = scmp.eq.s32.totalorder %s17, 1
      %p110 = scmp.ne.s32.totalorder %s105, %s107
      %p111 = scmp.eq.s32.totalorder %s17, 0
      %p112 = por %p110, %p111
      %p113 = scmp.ne.s32.totalorder %s105, %s107
      %p114 = scmp.eq.s32.totalorder %s22, 1
      %p115 = por %p113, %p114
      %p116 = scmp.ne.s32.totalorder %s107, %s108
      %p117 = scmp.eq.s32.totalorder %s22, 0
      %p118 = por %p116, %p117
      %p119 = scmp.ne.s32.totalorder %s107, %s108
      %p120 = scmp.eq.s32.totalorder %s23, 1
      %p121 = por %p119, %p120
      %p123 = scmp.ne.s32.totalorder %s108, %s122
      %p124 = scmp.eq.s32.totalorder %s23, 0
      %p125 = por %p123, %p124
      %s126 = ssub.s32 %s25, %s32
      %p127 = scmp.eq.s32.totalorder %s126, 0
      %s129 = sadd.s32 %s128, 1
      %s130 = scalar_select %p127, %s128, %s129
      %p133 = pneg %p127
      %p134 = scmp.eq.s32.totalorder %s17, 1
      %p135 = por %p133, %p134
      %p136 = scmp.ne.s32.totalorder %s128, %s131
      %p137 = scmp.eq.s32.totalorder %s17, 0
      %p138 = por %p136, %p137
      %p139 = scmp.ne.s32.totalorder %s128, %s131
      %p140 = scmp.eq.s32.totalorder %s22, 1
      %p141 = por %p139, %p140
      %p142 = scmp.ne.s32.totalorder %s131, %s132
      %p143 = scmp.eq.s32.totalorder %s22, 0
      %p144 = por %p142, %p143
      %p145 = scmp.ne.s32.totalorder %s131, %s132
      %p146 = scmp.eq.s32.totalorder %s23, 1
      %p147 = por %p145, %p146
      %p149 = scmp.ne.s32.totalorder %s132, %s148
      %p150 = scmp.eq.s32.totalorder %s23, 0
      %p151 = por %p149, %p150
      %s153 = sadd.s32 %s152, 1
      %p156 = scmp.eq.s32.totalorder %s17, 1
      %p157 = scmp.ne.s32.totalorder %s152, %s154
      %p158 = scmp.eq.s32.totalorder %s17, 0
      %p159 = por %p157, %p158
      %p160 = scmp.ne.s32.totalorder %s152, %s154
      %p161 = scmp.eq.s32.totalorder %s22, 1
      %p162 = por %p160, %p161
      %p163 = scmp.ne.s32.totalorder %s154, %s155
      %p164 = scmp.eq.s32.totalorder %s22, 0
      %p165 = por %p163, %p164
      %p166 = scmp.ne.s32.totalorder %s154, %s155
      %p167 = scmp.eq.s32.totalorder %s23, 1
      %p168 = por %p166, %p167
      %p170 = scmp.ne.s32.totalorder %s155, %s169
      %p171 = scmp.eq.s32.totalorder %s23, 0
      %p172 = por %p170, %p171
      %s174 = sadd.s32 %s173, 1
      %p177 = scmp.eq.s32.totalorder %s17, 1
      %p178 = scmp.ne.s32.totalorder %s173, %s175
      %p179 = scmp.eq.s32.totalorder %s17, 0
      %p180 = por %p178, %p179
      %p181 = scmp.ne.s32.totalorder %s173, %s175
      %p182 = scmp.eq.s32.totalorder %s22, 1
      %p183 = por %p181, %p182
      %p184 = scmp.ne.s32.totalorder %s175, %s176
      %p185 = scmp.eq.s32.totalorder %s22, 0
      %p186 = por %p184, %p185
      %p187 = scmp.ne.s32.totalorder %s175, %s176
      %p188 = scmp.eq.s32.totalorder %s23, 1
      %p189 = por %p187, %p188
      %p191 = scmp.ne.s32.totalorder %s176, %s190
      %p192 = scmp.eq.s32.totalorder %s23, 0
      %p193 = por %p191, %p192
      %s194 = ssub.s32 %s24, %s36
      %s195 = ssub.s32 %s25, %s32
      %s196 = sor.u32 %s194, %s195
      %p197 = scmp.eq.s32.totalorder %s196, 0
      %s199 = sadd.s32 %s198, 1
      %s200 = scalar_select %p197, %s198, %s199
      %p203 = pneg %p197
      %p204 = scmp.eq.s32.totalorder %s17, 1
      %p205 = por %p203, %p204
      %p206 = scmp.ne.s32.totalorder %s198, %s201
      %p207 = scmp.eq.s32.totalorder %s17, 0
      %p208 = por %p206, %p207
      %p209 = scmp.ne.s32.totalorder %s198, %s201
      %p210 = scmp.eq.s32.totalorder %s22, 1
      %p211 = por %p209, %p210
      %p212 = scmp.ne.s32.totalorder %s201, %s202
      %p213 = scmp.eq.s32.totalorder %s22, 0
      %p214 = por %p212, %p213
      %p215 = scmp.ne.s32.totalorder %s201, %s202
      %p216 = scmp.eq.s32.totalorder %s23, 1
      %p217 = por %p215, %p216
      %p219 = scmp.ne.s32.totalorder %s202, %s218
      %p220 = scmp.eq.s32.totalorder %s23, 0
      %p221 = por %p219, %p220
      %p222 = scmp.le.s32.totalorder 1, %s17
      %p223 = scmp.lt.s32.totalorder %s17, 3
      %p224 = pnand %p222, %p223
      %p225 = pneg %p224
      // Predicated region
      $region9: #{model_forward.4} parent=5 // pred_check
        _
      $region10: #{model_forward.4} parent=5 // pred_check_branch
        %227 = sbr.rel (%p224) target = $region12
      $region11: #{model_forward.4} parent=5 // pred_region
        %s228 = ssub.s32 %s17, 1
        // Predicated region
        $region13: #{model_forward.4} parent=11 // pred_check
          %p229 = pneg %p76
        $region14: #{model_forward.4} parent=11 // pred_check_branch
          %231 = sbr.rel (%p229) target = $region16
        $region15: #{model_forward.4} parent=11 // pred_region
          _
        $region16: #{model_forward.4} parent=11 // pred_fallthru
          _
        // Predicated region
        $region17: #{model_forward.4} parent=11 // pred_check
          %p232 = pneg %p97
        $region18: #{model_forward.4} parent=11 // pred_check_branch
          %234 = sbr.rel (%p232) target = $region20
        $region19: #{model_forward.4} parent=11 // pred_region
          _
        $region20: #{model_forward.4} parent=11 // pred_fallthru
          _
        // Predicated region
        $region21: #{model_forward.4} parent=11 // pred_check
          %p235 = pneg %p118
        $region22: #{model_forward.4} parent=11 // pred_check_branch
          %237 = sbr.rel (%p235) target = $region24
        $region23: #{model_forward.4} parent=11 // pred_region
          _
        $region24: #{model_forward.4} parent=11 // pred_fallthru
          _
        // Predicated region
        $region25: #{model_forward.4} parent=11 // pred_check
          %p238 = pneg %p144
        $region26: #{model_forward.4} parent=11 // pred_check_branch
          %240 = sbr.rel (%p238) target = $region28
        $region27: #{model_forward.4} parent=11 // pred_region
          %s241 = smul.u32 68, %s27
          %p242 = scmp.lt.s32.totalorder %s241, 67
          %s243 = scalar_select %p242, %s241, 67
          %s244 = smul.addr %s243, 4
          %s245 = scalar_lea.vmem %s4, %s244
          %s246 = smul.u32 68, %s27
        $region28: #{model_forward.4} parent=11 // pred_fallthru
          _
        // Predicated region
        $region29: #{model_forward.4} parent=11 // pred_check
          %p247 = pneg %p165
        $region30: #{model_forward.4} parent=11 // pred_check_branch
          %249 = sbr.rel (%p247) target = $region32
        $region31: #{model_forward.4} parent=11 // pred_region
          _
        $region32: #{model_forward.4} parent=11 // pred_fallthru
          _
        // Predicated region
        $region33: #{model_forward.4} parent=11 // pred_check
          %p250 = pneg %p186
        $region34: #{model_forward.4} parent=11 // pred_check_branch
          %252 = sbr.rel (%p250) target = $region36
        $region35: #{model_forward.4} parent=11 // pred_region
          _
        $region36: #{model_forward.4} parent=11 // pred_fallthru
          _
      $region12: #{model_forward.4} parent=5 // pred_fallthru
        _
      %p253 = scmp.lt.s32.totalorder %s17, 2
      // Predicated region
      $region37: #{model_forward.4} parent=5 // pred_check
        %p254 = pneg %p253
      $region38: #{model_forward.4} parent=5 // pred_check_branch
        %256 = sbr.rel (%p254) target = $region40
      $region39: #{model_forward.4} parent=5 // pred_region
        // Predicated region
        $region41: #{model_forward.4} parent=39 // pred_check
          %p257 = pneg %p49
        $region42: #{model_forward.4} parent=39 // pred_check_branch
          %259 = sbr.rel (%p257) target = $region44
        $region43: #{model_forward.4} parent=39 // pred_region
          %p260 = scmp.lt.s32.totalorder %s24, 1
          %s261 = scalar_select %p260, %s24, 1
          %s262 = smul.addr %s261, 64
          %s263 = smul.addr %s262, 8
          %s264 = scalar_lea.vmem %s0, %s263
        $region44: #{model_forward.4} parent=39 // pred_fallthru
          _
      $region40: #{model_forward.4} parent=5 // pred_fallthru
        _
      %p265 = scmp.le.s32.totalorder 1, %s17
      %p266 = scmp.lt.s32.totalorder %s17, 3
      %p267 = pnand %p265, %p266
      %p268 = pneg %p267
      // Predicated region
      $region45: #{model_forward.4} parent=5 // pred_check
        _
      $region46: #{model_forward.4} parent=5 // pred_check_branch
        %270 = sbr.rel (%p267) target = $region48
      $region47: #{model_forward.4} parent=5 // pred_region
        %s271 = ssub.s32 %s17, 1
        %p272 = scmp.lt.s32.totalorder %s26, 1
        %s273 = scalar_select %p272, %s26, 1
        %s274 = smul.addr %s273, 64
        %s275 = smul.addr %s274, 8
        %s276 = scalar_lea.vmem %s0, %s275
        %p277 = pneg %p55
        %p278 = pneg %p52
        %p279 = pneg %p76
        %p280 = pneg %p73
        %p281 = pneg %p97
        %p282 = pneg %p94
        %p283 = pneg %p118
        %p284 = pneg %p115
        %s285 = smul.u32 68, %s27
        %p286 = scmp.lt.s32.totalorder %s285, 67
        %s287 = scalar_select %p286, %s285, 67
        %s288 = smul.addr %s287, 4
        %s289 = scalar_lea.vmem %s4, %s288
        %p290 = pneg %p144
        %p291 = pneg %p141
        %p292 = pneg %p165
        %p293 = pneg %p162
        %p294 = pneg %p186
        %p295 = pneg %p183
        %p296 = pneg %p214
        %p297 = pneg %p211
        %s298 = sand.u32 %s201, 1
        %s299 = scalar_lea.sflag [#allocation4], %s298
        %s300 = sand.u32 %s201, 1
        %s301 = smul.addr %s300, 2720
        %s302 = scalar_lea.vmem [#allocation3], %s301
        %p303 = scmp.lt.s32.totalorder %s26, 1
        %s304 = scalar_select %p303, %s26, 1
        %s305 = smul.addr %s304, 64
        %s306 = smul.addr %s305, 8
        %s307 = scalar_lea.vmem %s0, %s306
        %s308 = smul.u32 68, %s27
        %p309 = scmp.lt.s32.totalorder %s308, 67
        %s310 = scalar_select %p309, %s308, 67
        %s311 = smul.addr %s310, 4
        %s312 = scalar_lea.vmem %s4, %s311
        %s313 = smul.u32 68, %s27
        %s314 = smul.u32 68, %s27
        %v316 = vld [vmem:[%s307] sm:$0xff]
        %v317 = vld [vmem:[%s307 + $0x8] sm:$0xff]
        %v318 = vld [vmem:[%s307 + $0x10] sm:$0xff]
        %v319 = vld [vmem:[%s307 + $0x18] sm:$0xff]
        %v320 = vld [vmem:[%s307 + $0x20] sm:$0xff]
        %v321 = vld [vmem:[%s307 + $0x28] sm:$0xff]
        %v322 = vld [vmem:[%s307 + $0x30] sm:$0xff]
        %v323 = vld [vmem:[%s307 + $0x38] sm:$0xff]
        %v324 = vld [vmem:[%s307 + $0x40] sm:$0xff]
        %v325 = vld [vmem:[%s307 + $0x48] sm:$0xff]
        %v326 = vld [vmem:[%s307 + $0x50] sm:$0xff]
        %v327 = vld [vmem:[%s307 + $0x58] sm:$0xff]
        %v328 = vld [vmem:[%s307 + $0x60] sm:$0xff]
        %v329 = vld [vmem:[%s307 + $0x68] sm:$0xff]
        %v330 = vld [vmem:[%s307 + $0x70] sm:$0xff]
        %v331 = vld [vmem:[%s307 + $0x78] sm:$0xff]
        %v332 = vld [vmem:[%s307 + $0x80] sm:$0xff]
        %v333 = vld [vmem:[%s307 + $0x88] sm:$0xff]
        %v334 = vld [vmem:[%s307 + $0x90] sm:$0xff]
        %v335 = vld [vmem:[%s307 + $0x98] sm:$0xff]
        %v336 = vld [vmem:[%s307 + $0xa0] sm:$0xff]
        %v337 = vld [vmem:[%s307 + $0xa8] sm:$0xff]
        %v338 = vld [vmem:[%s307 + $0xb0] sm:$0xff]
        %v339 = vld [vmem:[%s307 + $0xb8] sm:$0xff]
        %v340 = vld [vmem:[%s307 + $0xc0] sm:$0xff]
        %v341 = vld [vmem:[%s307 + $0xc8] sm:$0xff]
        %v342 = vld [vmem:[%s307 + $0xd0] sm:$0xff]
        %v343 = vld [vmem:[%s307 + $0xd8] sm:$0xff]
        %v344 = vld [vmem:[%s307 + $0xe0] sm:$0xff]
        %v345 = vld [vmem:[%s307 + $0xe8] sm:$0xff]
        %v346 = vld [vmem:[%s307 + $0xf0] sm:$0xff]
        %v347 = vld [vmem:[%s307 + $0xf8] sm:$0xff]
        %v348 = vld [vmem:[%s307 + $0x100] sm:$0xff]
        %v349 = vld [vmem:[%s307 + $0x108] sm:$0xff]
        %v350 = vld [vmem:[%s307 + $0x110] sm:$0xff]
        %v351 = vld [vmem:[%s307 + $0x118] sm:$0xff]
        %v352 = vld [vmem:[%s307 + $0x120] sm:$0xff]
        %v353 = vld [vmem:[%s307 + $0x128] sm:$0xff]
        %v354 = vld [vmem:[%s307 + $0x130] sm:$0xff]
        %v355 = vld [vmem:[%s307 + $0x138] sm:$0xff]
        %v356 = vld [vmem:[%s307 + $0x140] sm:$0xff]
        %v357 = vld [vmem:[%s307 + $0x148] sm:$0xff]
        %v358 = vld [vmem:[%s307 + $0x150] sm:$0xff]
        %v359 = vld [vmem:[%s307 + $0x158] sm:$0xff]
        %v360 = vld [vmem:[%s307 + $0x160] sm:$0xff]
        %v361 = vld [vmem:[%s307 + $0x168] sm:$0xff]
        %v362 = vld [vmem:[%s307 + $0x170] sm:$0xff]
        %v363 = vld [vmem:[%s307 + $0x178] sm:$0xff]
        %v364 = vld [vmem:[%s307 + $0x180] sm:$0xff]
        %v365 = vld [vmem:[%s307 + $0x188] sm:$0xff]
        %v366 = vld [vmem:[%s307 + $0x190] sm:$0xff]
        %v367 = vld [vmem:[%s307 + $0x198] sm:$0xff]
        %v368 = vld [vmem:[%s307 + $0x1a0] sm:$0xff]
        %v369 = vld [vmem:[%s307 + $0x1a8] sm:$0xff]
        %v370 = vld [vmem:[%s307 + $0x1b0] sm:$0xff]
        %v371 = vld [vmem:[%s307 + $0x1b8] sm:$0xff]
        %v372 = vld [vmem:[%s307 + $0x1c0] sm:$0xff]
        %v373 = vld [vmem:[%s307 + $0x1c8] sm:$0xff]
        %v374 = vld [vmem:[%s307 + $0x1d0] sm:$0xff]
        %v375 = vld [vmem:[%s307 + $0x1d8] sm:$0xff]
        %v376 = vld [vmem:[%s307 + $0x1e0] sm:$0xff]
        %v377 = vld [vmem:[%s307 + $0x1e8] sm:$0xff]
        %v378 = vld [vmem:[%s307 + $0x1f0] sm:$0xff]
        %v379 = vld [vmem:[%s307 + $0x1f8] sm:$0xff]
        %v380 = vpack.c.bf16 %v317, %v316
        %v381 = vpack.c.bf16 %v319, %v318
        %v382 = vpack.c.bf16 %v321, %v320
        %v383 = vpack.c.bf16 %v323, %v322
        %v384 = vpack.c.bf16 %v325, %v324
        %v385 = vpack.c.bf16 %v327, %v326
        %v386 = vpack.c.bf16 %v329, %v328
        %v387 = vpack.c.bf16 %v331, %v330
        %v388 = vpack.c.bf16 %v333, %v332
        %v389 = vpack.c.bf16 %v335, %v334
        %v390 = vpack.c.bf16 %v337, %v336
        %v391 = vpack.c.bf16 %v339, %v338
        %v392 = vpack.c.bf16 %v341, %v340
        %v393 = vpack.c.bf16 %v343, %v342
        %v394 = vpack.c.bf16 %v345, %v344
        %v395 = vpack.c.bf16 %v347, %v346
        %v396 = vpack.c.bf16 %v349, %v348
        %v397 = vpack.c.bf16 %v351, %v350
        %v398 = vpack.c.bf16 %v353, %v352
        %v399 = vpack.c.bf16 %v355, %v354
        %v400 = vpack.c.bf16 %v357, %v356
        %v401 = vpack.c.bf16 %v359, %v358
        %v402 = vpack.c.bf16 %v361, %v360
        %v403 = vpack.c.bf16 %v363, %v362
        %v404 = vpack.c.bf16 %v365, %v364
        %v405 = vpack.c.bf16 %v367, %v366
        %v406 = vpack.c.bf16 %v369, %v368
        %v407 = vpack.c.bf16 %v371, %v370
        %v408 = vpack.c.bf16 %v373, %v372
        %v409 = vpack.c.bf16 %v375, %v374
        %v410 = vpack.c.bf16 %v377, %v376
        %v411 = vpack.c.bf16 %v379, %v378
        %v412 = vld [vmem:[%s1] sm:$0xff]
        %v413 = vld [vmem:[%s1 + $0x8] sm:$0xff]
        %v414 = vld [vmem:[%s1 + $0x10] sm:$0xff]
        %v415 = vld [vmem:[%s1 + $0x18] sm:$0xff]
        %v416 = vld [vmem:[%s1 + $0x20] sm:$0xff]
        %v417 = vld [vmem:[%s1 + $0x28] sm:$0xff]
        %v418 = vld [vmem:[%s1 + $0x30] sm:$0xff]
        %v419 = vld [vmem:[%s1 + $0x38] sm:$0xff]
        %v420 = vld [vmem:[%s1 + $0x40] sm:$0xff]
        %v421 = vld [vmem:[%s1 + $0x48] sm:$0xff]
        %v422 = vld [vmem:[%s1 + $0x50] sm:$0xff]
        %v423 = vld [vmem:[%s1 + $0x58] sm:$0xff]
        %v424 = vld [vmem:[%s1 + $0x60] sm:$0xff]
        %v425 = vld [vmem:[%s1 + $0x68] sm:$0xff]
        %v426 = vld [vmem:[%s1 + $0x70] sm:$0xff]
        %v427 = vld [vmem:[%s1 + $0x78] sm:$0xff]
        %v428 = vld [vmem:[%s2] sm:$0xff]
        %v429 = vld [vmem:[%s2 + $0x8] sm:$0xff]
        %v430 = vld [vmem:[%s2 + $0x10] sm:$0xff]
        %v431 = vld [vmem:[%s2 + $0x18] sm:$0xff]
        %v432 = vld [vmem:[%s2 + $0x20] sm:$0xff]
        %v433 = vld [vmem:[%s2 + $0x28] sm:$0xff]
        %v434 = vld [vmem:[%s2 + $0x30] sm:$0xff]
        %v435 = vld [vmem:[%s2 + $0x38] sm:$0xff]
        %437 = vset.pattern.permute.xlu0 0
        %438 = vperm.xlu0 %437, %v428
        %v439 = vpop.permute.xlu0 %438
        %442 = vset.pattern.permute.xlu0 0
        %443 = vperm.xlu0 %442, %v429
        %v444 = vpop.permute.xlu0 %443
        %447 = vset.pattern.permute.xlu0 0
        %448 = vperm.xlu0 %447, %v430
        %v449 = vpop.permute.xlu0 %448
        %452 = vset.pattern.permute.xlu0 0
        %453 = vperm.xlu0 %452, %v431
        %v454 = vpop.permute.xlu0 %453
        %457 = vset.pattern.permute.xlu0 0
        %458 = vperm.xlu0 %457, %v432
        %v459 = vpop.permute.xlu0 %458
        %462 = vset.pattern.permute.xlu0 0
        %463 = vperm.xlu0 %462, %v433
        %v464 = vpop.permute.xlu0 %463
        %467 = vset.pattern.permute.xlu0 0
        %468 = vperm.xlu0 %467, %v434
        %v469 = vpop.permute.xlu0 %468
        %472 = vset.pattern.permute.xlu0 0
        %473 = vperm.xlu0 %472, %v435
        %v474 = vpop.permute.xlu0 %473
        %v492 = vunpack.c.l.b16 %v412
        %v493 = vunpack.c.h.b16 %v412
        %v494 = vunpack.c.l.b16 %v413
        %v495 = vunpack.c.h.b16 %v413
        %v496 = vunpack.c.l.b16 %v414
        %v497 = vunpack.c.h.b16 %v414
        %v498 = vunpack.c.l.b16 %v415
        %v499 = vunpack.c.h.b16 %v415
        %v500 = vunpack.c.l.b16 %v416
        %v501 = vunpack.c.h.b16 %v416
        %v502 = vunpack.c.l.b16 %v417
        %v503 = vunpack.c.h.b16 %v417
        %v504 = vunpack.c.l.b16 %v418
        %v505 = vunpack.c.h.b16 %v418
        %v506 = vunpack.c.l.b16 %v419
        %v507 = vunpack.c.h.b16 %v419
        %v508 = vunpack.c.l.b16 %v420
        %v509 = vunpack.c.h.b16 %v420
        %v510 = vunpack.c.l.b16 %v421
        %v511 = vunpack.c.h.b16 %v421
        %v512 = vunpack.c.l.b16 %v422
        %v513 = vunpack.c.h.b16 %v422
        %v514 = vunpack.c.l.b16 %v423
        %v515 = vunpack.c.h.b16 %v423
        %v516 = vunpack.c.l.b16 %v424
        %v517 = vunpack.c.h.b16 %v424
        %v518 = vunpack.c.l.b16 %v425
        %v519 = vunpack.c.h.b16 %v425
        %v520 = vunpack.c.l.b16 %v426
        %v521 = vunpack.c.h.b16 %v426
        %v522 = vunpack.c.l.b16 %v427
        %v523 = vunpack.c.h.b16 %v427
        %v524 = vpack.c.b16 %v496, %v492
        %v525 = vpack.c.b16 %v497, %v493
        %v526 = vpack.c.b16 %v498, %v494
        %v527 = vpack.c.b16 %v499, %v495
        %v528 = vpack.c.b16 %v504, %v500
        %v529 = vpack.c.b16 %v505, %v501
        %v530 = vpack.c.b16 %v506, %v502
        %v531 = vpack.c.b16 %v507, %v503
        %v532 = vpack.c.b16 %v512, %v508
        %v533 = vpack.c.b16 %v513, %v509
        %v534 = vpack.c.b16 %v514, %v510
        %v535 = vpack.c.b16 %v515, %v511
        %v536 = vpack.c.b16 %v520, %v516
        %v537 = vpack.c.b16 %v521, %v517
        %v538 = vpack.c.b16 %v522, %v518
        %v539 = vpack.c.b16 %v523, %v519
        %556 = vmatprep.subr.bf16.mxu0 0
        %557 = vmatpush1.bf16.msra.mxu0 %v387
        %558 = vmatprep.subr.bf16.mxu0 0
        %559 = vmatpush1.bf16.msra.mxu0 %v386
        %560 = vmatprep.subr.bf16.mxu0 0
        %561 = vmatpush1.bf16.msra.mxu0 %v385
        %562 = vmatprep.subr.bf16.mxu0 0
        %563 = vmatpush1.bf16.msra.mxu0 %v384
        %564 = vmatprep.subr.bf16.mxu0 0
        %565 = vmatpush1.bf16.msra.mxu0 %v383
        %566 = vmatprep.subr.bf16.mxu0 0
        %567 = vmatpush1.bf16.msra.mxu0 %v382
        %568 = vmatprep.subr.bf16.mxu0 0
        %569 = vmatpush1.bf16.msra.mxu0 %v381
        %570 = vmatprep.subr.bf16.mxu0 0
        %571 = vmatpush1.bf16.msra.mxu0 %v380
        %572 = vmatprep.subr.bf16.mxu0 0
        %573 = vmatpush2.bf16.msra.mxu0 %v395
        %574 = vmatprep.subr.bf16.mxu0 0
        %575 = vmatpush2.bf16.msra.mxu0 %v394
        %576 = vmatprep.subr.bf16.mxu0 0
        %577 = vmatpush2.bf16.msra.mxu0 %v393
        %578 = vmatprep.subr.bf16.mxu0 0
        %579 = vmatpush2.bf16.msra.mxu0 %v392
        %580 = vmatprep.subr.bf16.mxu0 0
        %581 = vmatpush2.bf16.msra.mxu0 %v391
        %582 = vmatprep.subr.bf16.mxu0 0
        %583 = vmatpush2.bf16.msra.mxu0 %v390
        %584 = vmatprep.subr.bf16.mxu0 0
        %585 = vmatpush2.bf16.msra.mxu0 %v389
        %586 = vmatprep.subr.bf16.mxu0 0
        %587 = vmatpush2.bf16.msra.mxu0 %v388
        %588 = vmatprep.mubr.bf16.mxu0 %v525
        %589 = vmatmul.mubr.bf16.gmra.mxu0 %v524
        %v590 = vpop.f32.mrf.mxu0
        %v591 = vadd.f32 %v439, %v590
        %v592 = vpop.f32.mrf.mxu0
        %v593 = vpop.f32.mrf.mxu0
        %v594 = vadd.f32 %v444, %v593
        %v595 = vpop.f32.mrf.mxu0
        %596 = vmatprep.mubr.bf16.mxu0 %v529
        %597 = vmatmul.mubr.bf16.gmra.mxu0 %v528
        %v598 = vpop.f32.mrf.mxu0
        %v599 = vadd.f32 %v449, %v598
        %v600 = vpop.f32.mrf.mxu0
        %v601 = vpop.f32.mrf.mxu0
        %v602 = vadd.f32 %v454, %v601
        %v603 = vpop.f32.mrf.mxu0
        %604 = vmatprep.mubr.bf16.mxu0 %v533
        %605 = vmatmul.mubr.bf16.gmra.mxu0 %v532
        %v606 = vpop.f32.mrf.mxu0
        %v607 = vadd.f32 %v459, %v606
        %v608 = vpop.f32.mrf.mxu0
        %v609 = vpop.f32.mrf.mxu0
        %v610 = vadd.f32 %v464, %v609
        %v611 = vpop.f32.mrf.mxu0
        %612 = vmatprep.mubr.bf16.mxu0 %v537
        %613 = vmatmul.mubr.bf16.gmra.mxu0 %v536
        %v614 = vpop.f32.mrf.mxu0
        %v615 = vadd.f32 %v469, %v614
        %v616 = vpop.f32.mrf.mxu0
        %v617 = vpop.f32.mrf.mxu0
        %v618 = vadd.f32 %v474, %v617
        %v619 = vpop.f32.mrf.mxu0
        %620 = vdwg.mxu0
        %621 = vmatprep.subr.bf16.mxu0 0
        %622 = vmatpush1.bf16.msra.mxu0 %v403
        %623 = vmatprep.subr.bf16.mxu0 0
        %624 = vmatpush1.bf16.msra.mxu0 %v402
        %625 = vmatprep.subr.bf16.mxu0 0
        %626 = vmatpush1.bf16.msra.mxu0 %v401
        %627 = vmatprep.subr.bf16.mxu0 0
        %628 = vmatpush1.bf16.msra.mxu0 %v400
        %629 = vmatprep.subr.bf16.mxu0 0
        %630 = vmatpush1.bf16.msra.mxu0 %v399
        %631 = vmatprep.subr.bf16.mxu0 0
        %632 = vmatpush1.bf16.msra.mxu0 %v398
        %633 = vmatprep.subr.bf16.mxu0 0
        %634 = vmatpush1.bf16.msra.mxu0 %v397
        %635 = vmatprep.subr.bf16.mxu0 0
        %636 = vmatpush1.bf16.msra.mxu0 %v396
        %637 = vmatprep.subr.bf16.mxu0 0
        %638 = vmatpush2.bf16.msra.mxu0 %v411
        %639 = vmatprep.subr.bf16.mxu0 0
        %640 = vmatpush2.bf16.msra.mxu0 %v410
        %641 = vmatprep.subr.bf16.mxu0 0
        %642 = vmatpush2.bf16.msra.mxu0 %v409
        %643 = vmatprep.subr.bf16.mxu0 0
        %644 = vmatpush2.bf16.msra.mxu0 %v408
        %645 = vmatprep.subr.bf16.mxu0 0
        %646 = vmatpush2.bf16.msra.mxu0 %v407
        %647 = vmatprep.subr.bf16.mxu0 0
        %648 = vmatpush2.bf16.msra.mxu0 %v406
        %649 = vmatprep.subr.bf16.mxu0 0
        %650 = vmatpush2.bf16.msra.mxu0 %v405
        %651 = vmatprep.subr.bf16.mxu0 0
        %652 = vmatpush2.bf16.msra.mxu0 %v404
        %653 = vmatprep.mubr.bf16.mxu0 %v527
        %654 = vmatmul.mubr.bf16.gmra.mxu0 %v526
        %v655 = vpop.f32.mrf.mxu0
        %v656 = vadd.f32 %v591, %v655
        %v657 = vpop.f32.mrf.mxu0
        %v658 = vpop.f32.mrf.mxu0
        %v659 = vadd.f32 %v594, %v658
        %v660 = vpop.f32.mrf.mxu0
        %661 = vmatprep.mubr.bf16.mxu0 %v531
        %662 = vmatmul.mubr.bf16.gmra.mxu0 %v530
        %v663 = vpop.f32.mrf.mxu0
        %v664 = vadd.f32 %v599, %v663
        %v665 = vpop.f32.mrf.mxu0
        %v666 = vpop.f32.mrf.mxu0
        %v667 = vadd.f32 %v602, %v666
        %v668 = vpop.f32.mrf.mxu0
        %669 = vmatprep.mubr.bf16.mxu0 %v535
        %670 = vmatmul.mubr.bf16.gmra.mxu0 %v534
        %v671 = vpop.f32.mrf.mxu0
        %v672 = vadd.f32 %v607, %v671
        %v673 = vpop.f32.mrf.mxu0
        %v674 = vpop.f32.mrf.mxu0
        %v675 = vadd.f32 %v610, %v674
        %v676 = vpop.f32.mrf.mxu0
        %677 = vmatprep.mubr.bf16.mxu0 %v539
        %678 = vmatmul.mubr.bf16.gmra.mxu0 %v538
        %v679 = vpop.f32.mrf.mxu0
        %v680 = vadd.f32 %v615, %v679
        %v681 = vpop.f32.mrf.mxu0
        %v682 = vpop.f32.mrf.mxu0
        %v683 = vadd.f32 %v618, %v682
        %v684 = vpop.f32.mrf.mxu0
        %685 = vdwg.mxu0
        %v686 = vmax.f32 %v656, 0.0
        %v687 = vmax.f32 %v659, 0.0
        %v688 = vmax.f32 %v664, 0.0
        %v689 = vmax.f32 %v667, 0.0
        %v690 = vmax.f32 %v672, 0.0
        %v691 = vmax.f32 %v675, 0.0
        %v692 = vmax.f32 %v680, 0.0
        %v693 = vmax.f32 %v683, 0.0
        %v694 = vld [vmem:[%s3] sm:$0xff]
        %v695 = vld [vmem:[%s3 + $0x8] sm:$0x1]
        %vm696 = vcmask 523264
        %v698 = vsel %vm696, %v694, 0
        %v701 = vsel %vm696, %v695, 0
        %703 = vmatprep.subr.mxu0 0.0
        %704 = vmatpush1.msra.mxu0 0.0
        %705 = vmatprep.subr.mxu0 0.0
        %706 = vmatpush1.msra.mxu0 0.0
        %707 = vmatprep.subr.mxu0 0.0
        %708 = vmatpush1.msra.mxu0 0.0
        %709 = vmatprep.subr.mxu0 0.0
        %710 = vmatpush1.msra.mxu0 0.0
        %711 = vmatprep.subr.mxu0 0.0
        %712 = vmatpush1.msra.mxu0 0.0
        %713 = vmatprep.subr.mxu0 0.0
        %714 = vmatpush1.msra.mxu0 0.0
        %715 = vmatprep.subr.mxu0 0.0
        %716 = vmatpush1.msra.mxu0 0.0
        %717 = vmatprep.subr.mxu0 0.0
        %718 = vmatpush1.msra.mxu0 0.0
        %719 = vmatprep.subr.mxu0 0.0
        %720 = vmatpush1.msra.mxu0 %v693
        %721 = vmatprep.subr.mxu0 0.0
        %722 = vmatpush1.msra.mxu0 %v692
        %723 = vmatprep.subr.mxu0 0.0
        %724 = vmatpush1.msra.mxu0 %v691
        %725 = vmatprep.subr.mxu0 0.0
        %726 = vmatpush1.msra.mxu0 %v690
        %727 = vmatprep.subr.mxu0 0.0
        %728 = vmatpush1.msra.mxu0 %v689
        %729 = vmatprep.subr.mxu0 0.0
        %730 = vmatpush1.msra.mxu0 %v688
        %731 = vmatprep.subr.mxu0 0.0
        %732 = vmatpush1.msra.mxu0 %v687
        %733 = vmatprep.subr.mxu0 0.0
        %734 = vmatpush1.msra.mxu0 %v686
        %735 = vmatprep.subr.mxu0 0.0
        %736 = vmatpush2.msra.mxu0 0.0
        %737 = vmatprep.subr.mxu0 0.0
        %738 = vmatpush2.msra.mxu0 0.0
        %739 = vmatprep.subr.mxu0 0.0
        %740 = vmatpush2.msra.mxu0 0.0
        %741 = vmatprep.subr.mxu0 0.0
        %742 = vmatpush2.msra.mxu0 0.0
        %743 = vmatprep.subr.mxu0 0.0
        %744 = vmatpush2.msra.mxu0 0.0
        %745 = vmatprep.subr.mxu0 0.0
        %746 = vmatpush2.msra.mxu0 0.0
        %747 = vmatprep.subr.mxu0 0.0
        %748 = vmatpush2.msra.mxu0 0.0
        %749 = vmatprep.subr.mxu0 0.0
        %750 = vmatpush2.msra.mxu0 0.0
        %751 = vmatprep.subr.mxu0 0.0
        %752 = vmatpush2.msra.mxu0 0.0
        %753 = vmatprep.subr.mxu0 0.0
        %754 = vmatpush2.msra.mxu0 0.0
        %755 = vmatprep.subr.mxu0 0.0
        %756 = vmatpush2.msra.mxu0 0.0
        %757 = vmatprep.subr.mxu0 0.0
        %758 = vmatpush2.msra.mxu0 0.0
        %759 = vmatprep.subr.mxu0 0.0
        %760 = vmatpush2.msra.mxu0 0.0
        %761 = vmatprep.subr.mxu0 0.0
        %762 = vmatpush2.msra.mxu0 0.0
        %763 = vmatprep.subr.mxu0 0.0
        %764 = vmatpush2.msra.mxu0 0.0
        %765 = vmatprep.subr.mxu0 0.0
        %766 = vmatpush2.msra.mxu0 0.0
        %767 = vmatprep.mubr.f32.mxu0 0.0
        %768 = vmatmul.mubr.f32.gmra.mxu0 %v698
        %v769 = vpop.f32.mrf.mxu0
        %v770 = vadd.f32 0.0, %v769
        %v771 = vpop.f32.mrf.mxu0
        %772 = vmatprep.mubr.f32.mxu0 0.0
        %773 = vmatmul.mubr.f32.gmra.mxu0 %v701
        %v774 = vpop.f32.mrf.mxu0
        %v775 = vadd.f32 0.0, %v774
        %v776 = vpop.f32.mrf.mxu0
        %777 = vdwg.mxu0
        %v778 = vlaneseq
        %v779 = vand.u32 %v778, 127
        %v780 = vand.u32 %v779, 7
        %vm781 = vcmp.ge.s32.totalorder %v779, 8
        %vm782 = vcmp.lt.s32.totalorder %v779, 56
        %vm783 = vcmp.ge.s32.totalorder %v780, 1
        %vm784 = vcmp.lt.s32.totalorder %v780, 7
        %vm785 = vcmask 1048064
        %786 = vrot.lane.b32.xlu0 %v770, 64
        %v787 = vpop.permute.xlu0 %786
        %v788 = vsel %vm785, %v787, %v770
        %789 = vrot.lane.b32.xlu0 %v788, 64
        %v790 = vpop.permute.xlu0 %789
        %v791 = vsel %vm785, %v790, %v770
        %vm792 = vmand %vm781, %vm783
        %794 = vrot.lane.b32.xlu0 %v791, 73
        %v795 = vpop.permute.xlu0 %794
        %v797 = vsel %vm792, %v795, 0.0
        %v798 = vadd.f32 %v797, 0.0
        %v800 = vrot.slane %v770, 1
        %802 = vrot.lane.b32.xlu0 %v800, 64
        %v803 = vpop.permute.xlu0 %802
        %v804 = vsel %vm785, %v803, %v800
        %805 = vrot.lane.b32.xlu0 %v804, 64
        %v806 = vpop.permute.xlu0 %805
        %v807 = vsel %vm785, %v806, %v800
        %809 = vrot.lane.b32.xlu0 %v807, 72
        %v810 = vpop.permute.xlu0 %809
        %v812 = vsel %vm781, %v810, 0.0
        %v813 = vadd.f32 %v798, %v812
        %v814 = vrot.slane %v770, 2
        %816 = vrot.lane.b32.xlu0 %v814, 64
        %v817 = vpop.permute.xlu0 %816
        %v818 = vsel %vm785, %v817, %v814
        %819 = vrot.lane.b32.xlu0 %v818, 64
        %v820 = vpop.permute.xlu0 %819
        %v821 = vsel %vm785, %v820, %v814
        %vm822 = vmand %vm781, %vm784
        %824 = vrot.lane.b32.xlu0 %v821, 71
        %v825 = vpop.permute.xlu0 %824
        %v827 = vsel %vm822, %v825, 0.0
        %v828 = vadd.f32 %v813, %v827
        %v829 = vrot.slane %v770, 3
        %831 = vrot.lane.b32.xlu0 %v829, 64
        %v832 = vpop.permute.xlu0 %831
        %v833 = vsel %vm785, %v832, %v829
        %834 = vrot.lane.b32.xlu0 %v833, 64
        %v835 = vpop.permute.xlu0 %834
        %v836 = vsel %vm785, %v835, %v829
        %838 = vrot.lane.b32.xlu0 %v836, 65
        %v839 = vpop.permute.xlu0 %838
        %v841 = vsel %vm783, %v839, 0.0
        %v842 = vadd.f32 %v828, %v841
        %v843 = vrot.slane %v770, 4
        %v845 = vadd.f32 %v842, %v843
        %v846 = vrot.slane %v770, 5
        %848 = vrot.lane.b32.xlu0 %v846, 64
        %v849 = vpop.permute.xlu0 %848
        %v850 = vsel %vm785, %v849, %v846
        %851 = vrot.lane.b32.xlu0 %v850, 64
        %v852 = vpop.permute.xlu0 %851
        %v853 = vsel %vm785, %v852, %v846
        %855 = vrot.lane.b32.xlu0 %v853, 127
        %v856 = vpop.permute.xlu0 %855
        %v858 = vsel %vm784, %v856, 0.0
        %v859 = vadd.f32 %v845, %v858
        %v860 = vrot.slane %v770, 6
        %862 = vrot.lane.b32.xlu0 %v860, 64
        %v863 = vpop.permute.xlu0 %862
        %v864 = vsel %vm785, %v863, %v860
        %865 = vrot.lane.b32.xlu0 %v864, 64
        %v866 = vpop.permute.xlu0 %865
        %v867 = vsel %vm785, %v866, %v860
        %vm868 = vmand %vm782, %vm783
        %870 = vrot.lane.b32.xlu0 %v867, 121
        %v871 = vpop.permute.xlu0 %870
        %v873 = vsel %vm868, %v871, 0.0
        %v874 = vadd.f32 %v859, %v873
        %v875 = vrot.slane %v770, 7
        %877 = vrot.lane.b32.xlu0 %v875, 64
        %v878 = vpop.permute.xlu0 %877
        %v879 = vsel %vm785, %v878, %v875
        %880 = vrot.lane.b32.xlu0 %v879, 64
        %v881 = vpop.permute.xlu0 %880
        %v882 = vsel %vm785, %v881, %v875
        %884 = vrot.lane.b32.xlu0 %v882, 120
        %v885 = vpop.permute.xlu0 %884
        %v887 = vsel %vm782, %v885, 0.0
        %v888 = vadd.f32 %v874, %v887
        %889 = vrot.lane.b32.xlu0 %v775, 64
        %v890 = vpop.permute.xlu0 %889
        %v891 = vsel %vm785, %v890, %v775
        %892 = vrot.lane.b32.xlu0 %v891, 64
        %v893 = vpop.permute.xlu0 %892
        %v894 = vsel %vm785, %v893, %v775
        %vm895 = vmand %vm782, %vm784
        %897 = vrot.lane.b32.xlu0 %v894, 119
        %v898 = vpop.permute.xlu0 %897
        %v900 = vsel %vm895, %v898, 0.0
        %v901 = vadd.f32 %v888, %v900
        %s902 = sld [smem:[#allocation2]]
        %v903 = vstv %s902
        %v904 = vadd.f32 %v901, %v903
        %v905 = vsub.f32 0.0, %v904
        %v906 = vmul.f32 %v905, 1.442695
        %v907 = vpow.pop %v906
        %v908 = vadd.f32 %v907, 1.0
        %v909 = vrcp.pop %v908
        %v910 = vld [vmem:[%s312] sm:$0xf]
        %v911 = vld [vmem:[%s312 + $0x4] sm:$0xf]
        %v912 = vld [vmem:[%s312 + $0x8] sm:$0xf]
        %v913 = vld [vmem:[%s312 + $0xc] sm:$0xf]
        %v914 = vld [vmem:[%s312 + $0x10] sm:$0xf]
        %v915 = vld [vmem:[%s312 + $0x14] sm:$0xf]
        %v916 = vld [vmem:[%s312 + $0x18] sm:$0xf]
        %v917 = vld [vmem:[%s312 + $0x1c] sm:$0xf]
        %v918 = vld [vmem:[%s312 + $0x20] sm:$0xf]
        %v919 = vld [vmem:[%s312 + $0x24] sm:$0xf]
        %v920 = vld [vmem:[%s312 + $0x28] sm:$0xf]
        %v921 = vld [vmem:[%s312 + $0x2c] sm:$0xf]
        %v922 = vld [vmem:[%s312 + $0x30] sm:$0xf]
        %v923 = vld [vmem:[%s312 + $0x34] sm:$0xf]
        %v924 = vld [vmem:[%s312 + $0x38] sm:$0xf]
        %v925 = vld [vmem:[%s312 + $0x3c] sm:$0xf]
        %v926 = vld [vmem:[%s312 + $0x40] sm:$0xf]
        %v927 = vld [vmem:[%s312 + $0x44] sm:$0xf]
        %v928 = vld [vmem:[%s312 + $0x48] sm:$0xf]
        %v929 = vld [vmem:[%s312 + $0x4c] sm:$0xf]
        %v930 = vld [vmem:[%s312 + $0x50] sm:$0xf]
        %v931 = vld [vmem:[%s312 + $0x54] sm:$0xf]
        %v932 = vld [vmem:[%s312 + $0x58] sm:$0xf]
        %v933 = vld [vmem:[%s312 + $0x5c] sm:$0xf]
        %v934 = vld [vmem:[%s312 + $0x60] sm:$0xf]
        %v935 = vld [vmem:[%s312 + $0x64] sm:$0xf]
        %v936 = vld [vmem:[%s312 + $0x68] sm:$0xf]
        %v937 = vld [vmem:[%s312 + $0x6c] sm:$0xf]
        %v938 = vld [vmem:[%s312 + $0x70] sm:$0xf]
        %v939 = vld [vmem:[%s312 + $0x74] sm:$0xf]
        %v940 = vld [vmem:[%s312 + $0x78] sm:$0xf]
        %v941 = vld [vmem:[%s312 + $0x7c] sm:$0xf]
        %v942 = vld [vmem:[%s312 + $0x80] sm:$0xf]
        %v943 = vld [vmem:[%s312 + $0x84] sm:$0xf]
        %v944 = vld [vmem:[%s312 + $0x88] sm:$0xf]
        %v945 = vld [vmem:[%s312 + $0x8c] sm:$0xf]
        %v946 = vld [vmem:[%s312 + $0x90] sm:$0xf]
        %v947 = vld [vmem:[%s312 + $0x94] sm:$0xf]
        %v948 = vld [vmem:[%s312 + $0x98] sm:$0xf]
        %v949 = vld [vmem:[%s312 + $0x9c] sm:$0xf]
        %v950 = vld [vmem:[%s312 + $0xa0] sm:$0xf]
        %v951 = vld [vmem:[%s312 + $0xa4] sm:$0xf]
        %v952 = vld [vmem:[%s312 + $0xa8] sm:$0xf]
        %v953 = vld [vmem:[%s312 + $0xac] sm:$0xf]
        %v954 = vld [vmem:[%s312 + $0xb0] sm:$0xf]
        %v955 = vld [vmem:[%s312 + $0xb4] sm:$0xf]
        %v956 = vld [vmem:[%s312 + $0xb8] sm:$0xf]
        %v957 = vld [vmem:[%s312 + $0xbc] sm:$0xf]
        %v958 = vld [vmem:[%s312 + $0xc0] sm:$0xf]
        %v959 = vld [vmem:[%s312 + $0xc4] sm:$0xf]
        %v960 = vld [vmem:[%s312 + $0xc8] sm:$0xf]
        %v961 = vld [vmem:[%s312 + $0xcc] sm:$0xf]
        %v962 = vld [vmem:[%s312 + $0xd0] sm:$0xf]
        %v963 = vld [vmem:[%s312 + $0xd4] sm:$0xf]
        %v964 = vld [vmem:[%s312 + $0xd8] sm:$0xf]
        %v965 = vld [vmem:[%s312 + $0xdc] sm:$0xf]
        %v966 = vld [vmem:[%s312 + $0xe0] sm:$0xf]
        %v967 = vld [vmem:[%s312 + $0xe4] sm:$0xf]
        %v968 = vld [vmem:[%s312 + $0xe8] sm:$0xf]
        %v969 = vld [vmem:[%s312 + $0xec] sm:$0xf]
        %v970 = vld [vmem:[%s312 + $0xf0] sm:$0xf]
        %v971 = vld [vmem:[%s312 + $0xf4] sm:$0xf]
        %v972 = vld [vmem:[%s312 + $0xf8] sm:$0xf]
        %v973 = vld [vmem:[%s312 + $0xfc] sm:$0xf]
        %v974 = vld [vmem:[%s312 + $0x100] sm:$0xf]
        %v975 = vld [vmem:[%s312 + $0x104] sm:$0xf]
        %v976 = vld [vmem:[%s312 + $0x108] sm:$0xf]
        %v977 = vld [vmem:[%s312 + $0x10c] sm:$0xf]
        %v978 = vpack.c.bf16 %v909, %v909
        %v980 = vpack.i.b16 %v978, %v978
        %v982 = vlaneseq
        %v983 = vshrl.u32 %v982, 7
        %v984 = vsub.s32 0, %v983
        %v985 = vrot.slane %v980, %v984
        %v987 = vunpack.c.l.b16 %v985
        %v988 = vpack.c.b16 %v987, %v987
        %v990 = vmul.bf16 %v910, %v988
        %v991 = vmul.bf16 %v911, %v988
        %v992 = vmul.bf16 %v912, %v988
        %v993 = vmul.bf16 %v913, %v988
        %v994 = vmul.bf16 %v914, %v988
        %v995 = vmul.bf16 %v915, %v988
        %v996 = vmul.bf16 %v916, %v988
        %v997 = vmul.bf16 %v917, %v988
        %v998 = vmul.bf16 %v918, %v988
        %v999 = vmul.bf16 %v919, %v988
        %v1000 = vmul.bf16 %v920, %v988
        %v1001 = vmul.bf16 %v921, %v988
        %v1002 = vmul.bf16 %v922, %v988
        %v1003 = vmul.bf16 %v923, %v988
        %v1004 = vmul.bf16 %v924, %v988
        %v1005 = vmul.bf16 %v925, %v988
        %v1006 = vmul.bf16 %v926, %v988
        %v1007 = vmul.bf16 %v927, %v988
        %v1008 = vmul.bf16 %v928, %v988
        %v1009 = vmul.bf16 %v929, %v988
        %v1010 = vmul.bf16 %v930, %v988
        %v1011 = vmul.bf16 %v931, %v988
        %v1012 = vmul.bf16 %v932, %v988
        %v1013 = vmul.bf16 %v933, %v988
        %v1014 = vmul.bf16 %v934, %v988
        %v1015 = vmul.bf16 %v935, %v988
        %v1016 = vmul.bf16 %v936, %v988
        %v1017 = vmul.bf16 %v937, %v988
        %v1018 = vmul.bf16 %v938, %v988
        %v1019 = vmul.bf16 %v939, %v988
        %v1020 = vmul.bf16 %v940, %v988
        %v1021 = vmul.bf16 %v941, %v988
        %v1022 = vmul.bf16 %v942, %v988
        %v1023 = vmul.bf16 %v943, %v988
        %v1024 = vmul.bf16 %v944, %v988
        %v1025 = vmul.bf16 %v945, %v988
        %v1026 = vmul.bf16 %v946, %v988
        %v1027 = vmul.bf16 %v947, %v988
        %v1028 = vmul.bf16 %v948, %v988
        %v1029 = vmul.bf16 %v949, %v988
        %v1030 = vmul.bf16 %v950, %v988
        %v1031 = vmul.bf16 %v951, %v988
        %v1032 = vmul.bf16 %v952, %v988
        %v1033 = vmul.bf16 %v953, %v988
        %v1034 = vmul.bf16 %v954, %v988
        %v1035 = vmul.bf16 %v955, %v988
        %v1036 = vmul.bf16 %v956, %v988
        %v1037 = vmul.bf16 %v957, %v988
        %v1038 = vmul.bf16 %v958, %v988
        %v1039 = vmul.bf16 %v959, %v988
        %v1040 = vmul.bf16 %v960, %v988
        %v1041 = vmul.bf16 %v961, %v988
        %v1042 = vmul.bf16 %v962, %v988
        %v1043 = vmul.bf16 %v963, %v988
        %v1044 = vmul.bf16 %v964, %v988
        %v1045 = vmul.bf16 %v965, %v988
        %v1046 = vmul.bf16 %v966, %v988
        %v1047 = vmul.bf16 %v967, %v988
        %v1048 = vmul.bf16 %v968, %v988
        %v1049 = vmul.bf16 %v969, %v988
        %v1050 = vmul.bf16 %v970, %v988
        %v1051 = vmul.bf16 %v971, %v988
        %v1052 = vmul.bf16 %v972, %v988
        %v1053 = vmul.bf16 %v973, %v988
        %v1054 = vmul.bf16 %v974, %v988
        %v1055 = vmul.bf16 %v975, %v988
        %v1056 = vmul.bf16 %v976, %v988
        %v1057 = vmul.bf16 %v977, %v988
        %v1058 = vld [vmem:[%s5] sm:$0xff]
        %v1059 = vld [vmem:[%s5 + $0x8] sm:$0xff]
        %v1060 = vld [vmem:[%s5 + $0x10] sm:$0xf]
        %v1061 = vld [vmem:[%s5 + $0x14] sm:$0xff]
        %v1062 = vld [vmem:[%s5 + $0x1c] sm:$0xff]
        %v1063 = vld [vmem:[%s5 + $0x24] sm:$0xf]
        %v1064 = vld [vmem:[%s5 + $0x28] sm:$0xff]
        %v1065 = vld [vmem:[%s5 + $0x30] sm:$0xff]
        %v1066 = vld [vmem:[%s5 + $0x38] sm:$0xf]
        %v1067 = vld [vmem:[%s5 + $0x3c] sm:$0xff]
        %v1068 = vld [vmem:[%s5 + $0x44] sm:$0xff]
        %v1069 = vld [vmem:[%s5 + $0x4c] sm:$0xf]
        %v1070 = vld [vmem:[%s5 + $0x50] sm:$0xff]
        %v1071 = vld [vmem:[%s5 + $0x58] sm:$0xff]
        %v1072 = vld [vmem:[%s5 + $0x60] sm:$0xf]
        %v1073 = vld [vmem:[%s5 + $0x64] sm:$0xff]
        %v1074 = vld [vmem:[%s5 + $0x6c] sm:$0xff]
        %v1075 = vld [vmem:[%s5 + $0x74] sm:$0xf]
        %v1076 = vld [vmem:[%s5 + $0x78] sm:$0xff]
        %v1077 = vld [vmem:[%s5 + $0x80] sm:$0xff]
        %v1078 = vld [vmem:[%s5 + $0x88] sm:$0xf]
        %v1079 = vld [vmem:[%s5 + $0x8c] sm:$0xff]
        %v1080 = vld [vmem:[%s5 + $0x94] sm:$0xff]
        %v1081 = vld [vmem:[%s5 + $0x9c] sm:$0xf]
        %v1150 = vunpack.c.l.b16 %v990
        %v1151 = vunpack.c.l.b16 %v991
        %v1152 = vunpack.c.l.b16 %v992
        %v1153 = vunpack.c.l.b16 %v993
        %v1154 = vunpack.c.l.b16 %v994
        %v1155 = vunpack.c.l.b16 %v995
        %v1156 = vunpack.c.l.b16 %v996
        %v1157 = vunpack.c.l.b16 %v997
        %v1158 = vunpack.c.l.b16 %v998
        %v1159 = vunpack.c.l.b16 %v999
        %v1160 = vunpack.c.l.b16 %v1000
        %v1161 = vunpack.c.l.b16 %v1001
        %v1162 = vunpack.c.l.b16 %v1002
        %v1163 = vunpack.c.l.b16 %v1003
        %v1164 = vunpack.c.l.b16 %v1004
        %v1165 = vunpack.c.l.b16 %v1005
        %v1166 = vunpack.c.l.b16 %v1006
        %v1167 = vunpack.c.l.b16 %v1007
        %v1168 = vunpack.c.l.b16 %v1008
        %v1169 = vunpack.c.l.b16 %v1009
        %v1170 = vunpack.c.l.b16 %v1010
        %v1171 = vunpack.c.l.b16 %v1011
        %v1172 = vunpack.c.l.b16 %v1012
        %v1173 = vunpack.c.l.b16 %v1013
        %v1174 = vunpack.c.l.b16 %v1014
        %v1175 = vunpack.c.l.b16 %v1015
        %v1176 = vunpack.c.l.b16 %v1016
        %v1177 = vunpack.c.l.b16 %v1017
        %v1178 = vunpack.c.l.b16 %v1018
        %v1179 = vunpack.c.l.b16 %v1019
        %v1180 = vunpack.c.l.b16 %v1020
        %v1181 = vunpack.c.l.b16 %v1021
        %v1182 = vunpack.c.l.b16 %v1022
        %v1183 = vunpack.c.l.b16 %v1023
        %v1184 = vunpack.c.l.b16 %v1024
        %v1185 = vunpack.c.l.b16 %v1025
        %v1186 = vunpack.c.l.b16 %v1026
        %v1187 = vunpack.c.l.b16 %v1027
        %v1188 = vunpack.c.l.b16 %v1028
        %v1189 = vunpack.c.l.b16 %v1029
        %v1190 = vunpack.c.l.b16 %v1030
        %v1191 = vunpack.c.l.b16 %v1031
        %v1192 = vunpack.c.l.b16 %v1032
        %v1193 = vunpack.c.l.b16 %v1033
        %v1194 = vunpack.c.l.b16 %v1034
        %v1195 = vunpack.c.l.b16 %v1035
        %v1196 = vunpack.c.l.b16 %v1036
        %v1197 = vunpack.c.l.b16 %v1037
        %v1198 = vunpack.c.l.b16 %v1038
        %v1199 = vunpack.c.l.b16 %v1039
        %v1200 = vunpack.c.l.b16 %v1040
        %v1201 = vunpack.c.l.b16 %v1041
        %v1202 = vunpack.c.l.b16 %v1042
        %v1203 = vunpack.c.l.b16 %v1043
        %v1204 = vunpack.c.l.b16 %v1044
        %v1205 = vunpack.c.l.b16 %v1045
        %v1206 = vunpack.c.l.b16 %v1046
        %v1207 = vunpack.c.l.b16 %v1047
        %v1208 = vunpack.c.l.b16 %v1048
        %v1209 = vunpack.c.l.b16 %v1049
        %v1210 = vunpack.c.l.b16 %v1050
        %v1211 = vunpack.c.l.b16 %v1051
        %v1212 = vunpack.c.l.b16 %v1052
        %v1213 = vunpack.c.l.b16 %v1053
        %v1214 = vunpack.c.l.b16 %v1054
        %v1215 = vunpack.c.l.b16 %v1055
        %v1216 = vunpack.c.l.b16 %v1056
        %v1217 = vunpack.c.l.b16 %v1057
        %v1218 = vpack.c.b16 %v1151, %v1150
        %v1219 = vpack.c.b16 %v1153, %v1152
        %v1220 = vpack.c.b16 %v1155, %v1154
        %v1221 = vpack.c.b16 %v1157, %v1156
        %v1222 = vpack.c.b16 %v1159, %v1158
        %v1223 = vpack.c.b16 %v1161, %v1160
        %v1224 = vpack.c.b16 %v1163, %v1162
        %v1225 = vpack.c.b16 %v1165, %v1164
        %v1226 = vpack.c.b16 %v1167, %v1166
        %v1227 = vpack.c.b16 %v1169, %v1168
        %v1228 = vpack.c.b16 %v1171, %v1170
        %v1229 = vpack.c.b16 %v1173, %v1172
        %v1230 = vpack.c.b16 %v1175, %v1174
        %v1231 = vpack.c.b16 %v1177, %v1176
        %v1232 = vpack.c.b16 %v1179, %v1178
        %v1233 = vpack.c.b16 %v1181, %v1180
        %v1234 = vpack.c.b16 %v1183, %v1182
        %v1235 = vpack.c.b16 %v1185, %v1184
        %v1236 = vpack.c.b16 %v1187, %v1186
        %v1237 = vpack.c.b16 %v1189, %v1188
        %v1238 = vpack.c.b16 %v1191, %v1190
        %v1239 = vpack.c.b16 %v1193, %v1192
        %v1240 = vpack.c.b16 %v1195, %v1194
        %v1241 = vpack.c.b16 %v1197, %v1196
        %v1242 = vpack.c.b16 %v1199, %v1198
        %v1243 = vpack.c.b16 %v1201, %v1200
        %v1244 = vpack.c.b16 %v1203, %v1202
        %v1245 = vpack.c.b16 %v1205, %v1204
        %v1246 = vpack.c.b16 %v1207, %v1206
        %v1247 = vpack.c.b16 %v1209, %v1208
        %v1248 = vpack.c.b16 %v1211, %v1210
        %v1249 = vpack.c.b16 %v1213, %v1212
        %v1250 = vpack.c.b16 %v1215, %v1214
        %v1251 = vpack.c.b16 %v1217, %v1216
        %v1276 = vunpack.c.l.b16 %v1058
        %v1277 = vunpack.c.h.b16 %v1058
        %v1278 = vunpack.c.l.b16 %v1059
        %v1279 = vunpack.c.h.b16 %v1059
        %v1280 = vunpack.c.l.b16 %v1060
        %v1281 = vunpack.c.l.b16 %v1061
        %v1282 = vunpack.c.h.b16 %v1061
        %v1283 = vunpack.c.l.b16 %v1062
        %v1284 = vunpack.c.h.b16 %v1062
        %v1285 = vunpack.c.l.b16 %v1063
        %v1286 = vunpack.c.l.b16 %v1064
        %v1287 = vunpack.c.h.b16 %v1064
        %v1288 = vunpack.c.l.b16 %v1065
        %v1289 = vunpack.c.h.b16 %v1065
        %v1290 = vunpack.c.l.b16 %v1066
        %v1291 = vunpack.c.l.b16 %v1067
        %v1292 = vunpack.c.h.b16 %v1067
        %v1293 = vunpack.c.l.b16 %v1068
        %v1294 = vunpack.c.h.b16 %v1068
        %v1295 = vunpack.c.l.b16 %v1069
        %v1296 = vunpack.c.l.b16 %v1070
        %v1297 = vunpack.c.h.b16 %v1070
        %v1298 = vunpack.c.l.b16 %v1071
        %v1299 = vunpack.c.h.b16 %v1071
        %v1300 = vunpack.c.l.b16 %v1072
        %v1301 = vunpack.c.l.b16 %v1073
        %v1302 = vunpack.c.h.b16 %v1073
        %v1303 = vunpack.c.l.b16 %v1074
        %v1304 = vunpack.c.h.b16 %v1074
        %v1305 = vunpack.c.l.b16 %v1075
        %v1306 = vunpack.c.l.b16 %v1076
        %v1307 = vunpack.c.h.b16 %v1076
        %v1308 = vunpack.c.l.b16 %v1077
        %v1309 = vunpack.c.h.b16 %v1077
        %v1310 = vunpack.c.l.b16 %v1078
        %v1311 = vunpack.c.l.b16 %v1079
        %v1312 = vunpack.c.h.b16 %v1079
        %v1313 = vunpack.c.l.b16 %v1080
        %v1314 = vunpack.c.h.b16 %v1080
        %v1315 = vunpack.c.l.b16 %v1081
        %v1316 = vpack.c.b16 %v1281, %v1276
        %v1317 = vpack.c.b16 %v1282, %v1277
        %v1318 = vpack.c.b16 %v1283, %v1278
        %v1319 = vpack.c.b16 %v1284, %v1279
        %v1320 = vpack.c.b16 %v1285, %v1280
        %v1321 = vpack.c.b16 %v1291, %v1286
        %v1322 = vpack.c.b16 %v1292, %v1287
        %v1323 = vpack.c.b16 %v1293, %v1288
        %v1324 = vpack.c.b16 %v1294, %v1289
        %v1325 = vpack.c.b16 %v1295, %v1290
        %v1326 = vpack.c.b16 %v1301, %v1296
        %v1327 = vpack.c.b16 %v1302, %v1297
        %v1328 = vpack.c.b16 %v1303, %v1298
        %v1329 = vpack.c.b16 %v1304, %v1299
        %v1330 = vpack.c.b16 %v1305, %v1300
        %v1331 = vpack.c.b16 %v1311, %v1306
        %v1332 = vpack.c.b16 %v1312, %v1307
        %v1333 = vpack.c.b16 %v1313, %v1308
        %v1334 = vpack.c.b16 %v1314, %v1309
        %v1335 = vpack.c.b16 %v1315, %v1310
        %v1357 = vsel %vm696, %v1218, 0
        %v1360 = vsel %vm696, %v1219, 0
        %v1363 = vsel %vm696, %v1220, 0
        %v1366 = vsel %vm696, %v1221, 0
        %v1369 = vsel %vm696, %v1222, 0
        %v1372 = vsel %vm696, %v1223, 0
        %v1375 = vsel %vm696, %v1224, 0
        %v1378 = vsel %vm696, %v1225, 0
        %v1381 = vsel %vm696, %v1226, 0
        %v1384 = vsel %vm696, %v1227, 0
        %v1387 = vsel %vm696, %v1228, 0
        %v1390 = vsel %vm696, %v1229, 0
        %v1393 = vsel %vm696, %v1230, 0
        %v1396 = vsel %vm696, %v1231, 0
        %v1399 = vsel %vm696, %v1232, 0
        %v1402 = vsel %vm696, %v1233, 0
        %v1405 = vsel %vm696, %v1234, 0
        %v1408 = vsel %vm696, %v1235, 0
        %v1411 = vsel %vm696, %v1236, 0
        %v1414 = vsel %vm696, %v1237, 0
        %v1417 = vsel %vm696, %v1238, 0
        %v1420 = vsel %vm696, %v1239, 0
        %v1423 = vsel %vm696, %v1240, 0
        %v1426 = vsel %vm696, %v1241, 0
        %v1429 = vsel %vm696, %v1242, 0
        %v1432 = vsel %vm696, %v1243, 0
        %v1435 = vsel %vm696, %v1244, 0
        %v1438 = vsel %vm696, %v1245, 0
        %v1441 = vsel %vm696, %v1246, 0
        %v1444 = vsel %vm696, %v1247, 0
        %v1447 = vsel %vm696, %v1248, 0
        %v1450 = vsel %vm696, %v1249, 0
        %v1453 = vsel %vm696, %v1250, 0
        %v1456 = vsel %vm696, %v1251, 0
        %1458 = vmatprep.subr.bf16.mxu0 0
        %1459 = vmatpush1.bf16.msra.mxu0 0
        %1460 = vmatprep.subr.bf16.mxu0 0
        %1461 = vmatpush1.bf16.msra.mxu0 0
        %1462 = vmatprep.subr.bf16.mxu0 0
        %1463 = vmatpush1.bf16.msra.mxu0 0
        %1464 = vmatprep.subr.bf16.mxu0 0
        %1465 = vmatpush1.bf16.msra.mxu0 0
        %1466 = vmatprep.subr.bf16.mxu0 %v1332
        %1467 = vmatpush1.bf16.msra.mxu0 %v1331
        %1468 = vmatprep.subr.bf16.mxu0 %v1327
        %1469 = vmatpush1.bf16.msra.mxu0 %v1326
        %1470 = vmatprep.subr.bf16.mxu0 %v1322
        %1471 = vmatpush1.bf16.msra.mxu0 %v1321
        %1472 = vmatprep.subr.bf16.mxu0 %v1317
        %1473 = vmatpush1.bf16.msra.mxu0 %v1316
        %1474 = vmatprep.subr.bf16.mxu0 0
        %1475 = vmatpush2.bf16.msra.mxu0 0
        %1476 = vmatprep.subr.bf16.mxu0 0
        %1477 = vmatpush2.bf16.msra.mxu0 0
        %1478 = vmatprep.subr.bf16.mxu0 0
        %1479 = vmatpush2.bf16.msra.mxu0 0
        %1480 = vmatprep.subr.bf16.mxu0 0
        %1481 = vmatpush2.bf16.msra.mxu0 0
        %1482 = vmatprep.subr.bf16.mxu0 0
        %1483 = vmatpush2.bf16.msra.mxu0 0
        %1484 = vmatprep.subr.bf16.mxu0 0
        %1485 = vmatpush2.bf16.msra.mxu0 0
        %1486 = vmatprep.subr.bf16.mxu0 0
        %1487 = vmatpush2.bf16.msra.mxu0 0
        %1488 = vmatprep.subr.bf16.mxu0 0
        %1489 = vmatpush2.bf16.msra.mxu0 0
        %1490 = vmatprep.mubr.bf16.mxu0 0
        %1491 = vmatmul.mubr.bf16.gmra.mxu0 %v1357
        %v1492 = vpop.f32.mrf.mxu0
        %v1493 = vadd.f32 0.0, %v1492
        %v1494 = vpop.f32.mrf.mxu0
        %v1495 = vadd.f32 0.0, %v1494
        %v1496 = vpop.f32.mrf.mxu0
        %v1497 = vadd.f32 0.0, %v1496
        %v1498 = vpop.f32.mrf.mxu0
        %v1499 = vadd.f32 0.0, %v1498
        %1500 = vmatprep.mubr.bf16.mxu0 0
        %1501 = vmatmul.mubr.bf16.gmra.mxu0 %v1360
        %v1502 = vpop.f32.mrf.mxu0
        %v1503 = vadd.f32 0.0, %v1502
        %v1504 = vpop.f32.mrf.mxu0
        %v1505 = vadd.f32 0.0, %v1504
        %v1506 = vpop.f32.mrf.mxu0
        %v1507 = vadd.f32 0.0, %v1506
        %v1508 = vpop.f32.mrf.mxu0
        %v1509 = vadd.f32 0.0, %v1508
        %1510 = vmatprep.mubr.bf16.mxu0 0
        %1511 = vmatmul.mubr.bf16.gmra.mxu0 %v1363
        %v1512 = vpop.f32.mrf.mxu0
        %v1513 = vadd.f32 0.0, %v1512
        %v1514 = vpop.f32.mrf.mxu0
        %v1515 = vadd.f32 0.0, %v1514
        %v1516 = vpop.f32.mrf.mxu0
        %v1517 = vadd.f32 0.0, %v1516
        %v1518 = vpop.f32.mrf.mxu0
        %v1519 = vadd.f32 0.0, %v1518
        %1520 = vmatprep.mubr.bf16.mxu0 0
        %1521 = vmatmul.mubr.bf16.gmra.mxu0 %v1366
        %v1522 = vpop.f32.mrf.mxu0
        %v1523 = vadd.f32 0.0, %v1522
        %v1524 = vpop.f32.mrf.mxu0
        %v1525 = vadd.f32 0.0, %v1524
        %v1526 = vpop.f32.mrf.mxu0
        %v1527 = vadd.f32 0.0, %v1526
        %v1528 = vpop.f32.mrf.mxu0
        %v1529 = vadd.f32 0.0, %v1528
        %1530 = vmatprep.mubr.bf16.mxu0 0
        %1531 = vmatmul.mubr.bf16.gmra.mxu0 %v1369
        %v1532 = vpop.f32.mrf.mxu0
        %v1533 = vadd.f32 0.0, %v1532
        %v1534 = vpop.f32.mrf.mxu0
        %v1535 = vadd.f32 0.0, %v1534
        %v1536 = vpop.f32.mrf.mxu0
        %v1537 = vadd.f32 0.0, %v1536
        %v1538 = vpop.f32.mrf.mxu0
        %v1539 = vadd.f32 0.0, %v1538
        %1540 = vmatprep.mubr.bf16.mxu0 0
        %1541 = vmatmul.mubr.bf16.gmra.mxu0 %v1372
        %v1542 = vpop.f32.mrf.mxu0
        %v1543 = vadd.f32 0.0, %v1542
        %v1544 = vpop.f32.mrf.mxu0
        %v1545 = vadd.f32 0.0, %v1544
        %v1546 = vpop.f32.mrf.mxu0
        %v1547 = vadd.f32 0.0, %v1546
        %v1548 = vpop.f32.mrf.mxu0
        %v1549 = vadd.f32 0.0, %v1548
        %1550 = vmatprep.mubr.bf16.mxu0 0
        %1551 = vmatmul.mubr.bf16.gmra.mxu0 %v1375
        %v1552 = vpop.f32.mrf.mxu0
        %v1553 = vadd.f32 0.0, %v1552
        %v1554 = vpop.f32.mrf.mxu0
        %v1555 = vadd.f32 0.0, %v1554
        %v1556 = vpop.f32.mrf.mxu0
        %v1557 = vadd.f32 0.0, %v1556
        %v1558 = vpop.f32.mrf.mxu0
        %v1559 = vadd.f32 0.0, %v1558
        %1560 = vmatprep.mubr.bf16.mxu0 0
        %1561 = vmatmul.mubr.bf16.gmra.mxu0 %v1378
        %v1562 = vpop.f32.mrf.mxu0
        %v1563 = vadd.f32 0.0, %v1562
        %v1564 = vpop.f32.mrf.mxu0
        %v1565 = vadd.f32 0.0, %v1564
        %v1566 = vpop.f32.mrf.mxu0
        %v1567 = vadd.f32 0.0, %v1566
        %v1568 = vpop.f32.mrf.mxu0
        %v1569 = vadd.f32 0.0, %v1568
        %1570 = vmatprep.mubr.bf16.mxu0 0
        %1571 = vmatmul.mubr.bf16.gmra.mxu0 %v1381
        %v1572 = vpop.f32.mrf.mxu0
        %v1573 = vadd.f32 0.0, %v1572
        %v1574 = vpop.f32.mrf.mxu0
        %v1575 = vadd.f32 0.0, %v1574
        %v1576 = vpop.f32.mrf.mxu0
        %v1577 = vadd.f32 0.0, %v1576
        %v1578 = vpop.f32.mrf.mxu0
        %v1579 = vadd.f32 0.0, %v1578
        %1580 = vmatprep.mubr.bf16.mxu0 0
        %1581 = vmatmul.mubr.bf16.gmra.mxu0 %v1384
        %v1582 = vpop.f32.mrf.mxu0
        %v1583 = vadd.f32 0.0, %v1582
        %v1584 = vpop.f32.mrf.mxu0
        %v1585 = vadd.f32 0.0, %v1584
        %v1586 = vpop.f32.mrf.mxu0
        %v1587 = vadd.f32 0.0, %v1586
        %v1588 = vpop.f32.mrf.mxu0
        %v1589 = vadd.f32 0.0, %v1588
        %1590 = vmatprep.mubr.bf16.mxu0 0
        %1591 = vmatmul.mubr.bf16.gmra.mxu0 %v1387
        %v1592 = vpop.f32.mrf.mxu0
        %v1593 = vadd.f32 0.0, %v1592
        %v1594 = vpop.f32.mrf.mxu0
        %v1595 = vadd.f32 0.0, %v1594
        %v1596 = vpop.f32.mrf.mxu0
        %v1597 = vadd.f32 0.0, %v1596
        %v1598 = vpop.f32.mrf.mxu0
        %v1599 = vadd.f32 0.0, %v1598
        %1600 = vmatprep.mubr.bf16.mxu0 0
        %1601 = vmatmul.mubr.bf16.gmra.mxu0 %v1390
        %v1602 = vpop.f32.mrf.mxu0
        %v1603 = vadd.f32 0.0, %v1602
        %v1604 = vpop.f32.mrf.mxu0
        %v1605 = vadd.f32 0.0, %v1604
        %v1606 = vpop.f32.mrf.mxu0
        %v1607 = vadd.f32 0.0, %v1606
        %v1608 = vpop.f32.mrf.mxu0
        %v1609 = vadd.f32 0.0, %v1608
        %1610 = vmatprep.mubr.bf16.mxu0 0
        %1611 = vmatmul.mubr.bf16.gmra.mxu0 %v1393
        %v1612 = vpop.f32.mrf.mxu0
        %v1613 = vadd.f32 0.0, %v1612
        %v1614 = vpop.f32.mrf.mxu0
        %v1615 = vadd.f32 0.0, %v1614
        %v1616 = vpop.f32.mrf.mxu0
        %v1617 = vadd.f32 0.0, %v1616
        %v1618 = vpop.f32.mrf.mxu0
        %v1619 = vadd.f32 0.0, %v1618
        %1620 = vmatprep.mubr.bf16.mxu0 0
        %1621 = vmatmul.mubr.bf16.gmra.mxu0 %v1396
        %v1622 = vpop.f32.mrf.mxu0
        %v1623 = vadd.f32 0.0, %v1622
        %v1624 = vpop.f32.mrf.mxu0
        %v1625 = vadd.f32 0.0, %v1624
        %v1626 = vpop.f32.mrf.mxu0
        %v1627 = vadd.f32 0.0, %v1626
        %v1628 = vpop.f32.mrf.mxu0
        %v1629 = vadd.f32 0.0, %v1628
        %1630 = vmatprep.mubr.bf16.mxu0 0
        %1631 = vmatmul.mubr.bf16.gmra.mxu0 %v1399
        %v1632 = vpop.f32.mrf.mxu0
        %v1633 = vadd.f32 0.0, %v1632
        %v1634 = vpop.f32.mrf.mxu0
        %v1635 = vadd.f32 0.0, %v1634
        %v1636 = vpop.f32.mrf.mxu0
        %v1637 = vadd.f32 0.0, %v1636
        %v1638 = vpop.f32.mrf.mxu0
        %v1639 = vadd.f32 0.0, %v1638
        %1640 = vmatprep.mubr.bf16.mxu0 0
        %1641 = vmatmul.mubr.bf16.gmra.mxu0 %v1402
        %v1642 = vpop.f32.mrf.mxu0
        %v1643 = vadd.f32 0.0, %v1642
        %v1644 = vpop.f32.mrf.mxu0
        %v1645 = vadd.f32 0.0, %v1644
        %v1646 = vpop.f32.mrf.mxu0
        %v1647 = vadd.f32 0.0, %v1646
        %v1648 = vpop.f32.mrf.mxu0
        %v1649 = vadd.f32 0.0, %v1648
        %1650 = vmatprep.mubr.bf16.mxu0 0
        %1651 = vmatmul.mubr.bf16.gmra.mxu0 %v1405
        %v1652 = vpop.f32.mrf.mxu0
        %v1653 = vadd.f32 0.0, %v1652
        %v1654 = vpop.f32.mrf.mxu0
        %v1655 = vadd.f32 0.0, %v1654
        %v1656 = vpop.f32.mrf.mxu0
        %v1657 = vadd.f32 0.0, %v1656
        %v1658 = vpop.f32.mrf.mxu0
        %v1659 = vadd.f32 0.0, %v1658
        %1660 = vmatprep.mubr.bf16.mxu0 0
        %1661 = vmatmul.mubr.bf16.gmra.mxu0 %v1408
        %v1662 = vpop.f32.mrf.mxu0
        %v1663 = vadd.f32 0.0, %v1662
        %v1664 = vpop.f32.mrf.mxu0
        %v1665 = vadd.f32 0.0, %v1664
        %v1666 = vpop.f32.mrf.mxu0
        %v1667 = vadd.f32 0.0, %v1666
        %v1668 = vpop.f32.mrf.mxu0
        %v1669 = vadd.f32 0.0, %v1668
        %1670 = vmatprep.mubr.bf16.mxu0 0
        %1671 = vmatmul.mubr.bf16.gmra.mxu0 %v1411
        %v1672 = vpop.f32.mrf.mxu0
        %v1673 = vadd.f32 0.0, %v1672
        %v1674 = vpop.f32.mrf.mxu0
        %v1675 = vadd.f32 0.0, %v1674
        %v1676 = vpop.f32.mrf.mxu0
        %v1677 = vadd.f32 0.0, %v1676
        %v1678 = vpop.f32.mrf.mxu0
        %v1679 = vadd.f32 0.0, %v1678
        %1680 = vmatprep.mubr.bf16.mxu0 0
        %1681 = vmatmul.mubr.bf16.gmra.mxu0 %v1414
        %v1682 = vpop.f32.mrf.mxu0
        %v1683 = vadd.f32 0.0, %v1682
        %v1684 = vpop.f32.mrf.mxu0
        %v1685 = vadd.f32 0.0, %v1684
        %v1686 = vpop.f32.mrf.mxu0
        %v1687 = vadd.f32 0.0, %v1686
        %v1688 = vpop.f32.mrf.mxu0
        %v1689 = vadd.f32 0.0, %v1688
        %1690 = vmatprep.mubr.bf16.mxu0 0
        %1691 = vmatmul.mubr.bf16.gmra.mxu0 %v1417
        %v1692 = vpop.f32.mrf.mxu0
        %v1693 = vadd.f32 0.0, %v1692
        %v1694 = vpop.f32.mrf.mxu0
        %v1695 = vadd.f32 0.0, %v1694
        %v1696 = vpop.f32.mrf.mxu0
        %v1697 = vadd.f32 0.0, %v1696
        %v1698 = vpop.f32.mrf.mxu0
        %v1699 = vadd.f32 0.0, %v1698
        %1700 = vmatprep.mubr.bf16.mxu0 0
        %1701 = vmatmul.mubr.bf16.gmra.mxu0 %v1420
        %v1702 = vpop.f32.mrf.mxu0
        %v1703 = vadd.f32 0.0, %v1702
        %v1704 = vpop.f32.mrf.mxu0
        %v1705 = vadd.f32 0.0, %v1704
        %v1706 = vpop.f32.mrf.mxu0
        %v1707 = vadd.f32 0.0, %v1706
        %v1708 = vpop.f32.mrf.mxu0
        %v1709 = vadd.f32 0.0, %v1708
        %1710 = vmatprep.mubr.bf16.mxu0 0
        %1711 = vmatmul.mubr.bf16.gmra.mxu0 %v1423
        %v1712 = vpop.f32.mrf.mxu0
        %v1713 = vadd.f32 0.0, %v1712
        %v1714 = vpop.f32.mrf.mxu0
        %v1715 = vadd.f32 0.0, %v1714
        %v1716 = vpop.f32.mrf.mxu0
        %v1717 = vadd.f32 0.0, %v1716
        %v1718 = vpop.f32.mrf.mxu0
        %v1719 = vadd.f32 0.0, %v1718
        %1720 = vmatprep.mubr.bf16.mxu0 0
        %1721 = vmatmul.mubr.bf16.gmra.mxu0 %v1426
        %v1722 = vpop.f32.mrf.mxu0
        %v1723 = vadd.f32 0.0, %v1722
        %v1724 = vpop.f32.mrf.mxu0
        %v1725 = vadd.f32 0.0, %v1724
        %v1726 = vpop.f32.mrf.mxu0
        %v1727 = vadd.f32 0.0, %v1726
        %v1728 = vpop.f32.mrf.mxu0
        %v1729 = vadd.f32 0.0, %v1728
        %1730 = vmatprep.mubr.bf16.mxu0 0
        %1731 = vmatmul.mubr.bf16.gmra.mxu0 %v1429
        %v1732 = vpop.f32.mrf.mxu0
        %v1733 = vadd.f32 0.0, %v1732
        %v1734 = vpop.f32.mrf.mxu0
        %v1735 = vadd.f32 0.0, %v1734
        %v1736 = vpop.f32.mrf.mxu0
        %v1737 = vadd.f32 0.0, %v1736
        %v1738 = vpop.f32.mrf.mxu0
        %v1739 = vadd.f32 0.0, %v1738
        %1740 = vmatprep.mubr.bf16.mxu0 0
        %1741 = vmatmul.mubr.bf16.gmra.mxu0 %v1432
        %v1742 = vpop.f32.mrf.mxu0
        %v1743 = vadd.f32 0.0, %v1742
        %v1744 = vpop.f32.mrf.mxu0
        %v1745 = vadd.f32 0.0, %v1744
        %v1746 = vpop.f32.mrf.mxu0
        %v1747 = vadd.f32 0.0, %v1746
        %v1748 = vpop.f32.mrf.mxu0
        %v1749 = vadd.f32 0.0, %v1748
        %1750 = vmatprep.mubr.bf16.mxu0 0
        %1751 = vmatmul.mubr.bf16.gmra.mxu0 %v1435
        %v1752 = vpop.f32.mrf.mxu0
        %v1753 = vadd.f32 0.0, %v1752
        %v1754 = vpop.f32.mrf.mxu0
        %v1755 = vadd.f32 0.0, %v1754
        %v1756 = vpop.f32.mrf.mxu0
        %v1757 = vadd.f32 0.0, %v1756
        %v1758 = vpop.f32.mrf.mxu0
        %v1759 = vadd.f32 0.0, %v1758
        %1760 = vmatprep.mubr.bf16.mxu0 0
        %1761 = vmatmul.mubr.bf16.gmra.mxu0 %v1438
        %v1762 = vpop.f32.mrf.mxu0
        %v1763 = vadd.f32 0.0, %v1762
        %v1764 = vpop.f32.mrf.mxu0
        %v1765 = vadd.f32 0.0, %v1764
        %v1766 = vpop.f32.mrf.mxu0
        %v1767 = vadd.f32 0.0, %v1766
        %v1768 = vpop.f32.mrf.mxu0
        %v1769 = vadd.f32 0.0, %v1768
        %1770 = vmatprep.mubr.bf16.mxu0 0
        %1771 = vmatmul.mubr.bf16.gmra.mxu0 %v1441
        %v1772 = vpop.f32.mrf.mxu0
        %v1773 = vadd.f32 0.0, %v1772
        %v1774 = vpop.f32.mrf.mxu0
        %v1775 = vadd.f32 0.0, %v1774
        %v1776 = vpop.f32.mrf.mxu0
        %v1777 = vadd.f32 0.0, %v1776
        %v1778 = vpop.f32.mrf.mxu0
        %v1779 = vadd.f32 0.0, %v1778
        %1780 = vmatprep.mubr.bf16.mxu0 0
        %1781 = vmatmul.mubr.bf16.gmra.mxu0 %v1444
        %v1782 = vpop.f32.mrf.mxu0
        %v1783 = vadd.f32 0.0, %v1782
        %v1784 = vpop.f32.mrf.mxu0
        %v1785 = vadd.f32 0.0, %v1784
        %v1786 = vpop.f32.mrf.mxu0
        %v1787 = vadd.f32 0.0, %v1786
        %v1788 = vpop.f32.mrf.mxu0
        %v1789 = vadd.f32 0.0, %v1788
        %1790 = vmatprep.mubr.bf16.mxu0 0
        %1791 = vmatmul.mubr.bf16.gmra.mxu0 %v1447
        %v1792 = vpop.f32.mrf.mxu0
        %v1793 = vadd.f32 0.0, %v1792
        %v1794 = vpop.f32.mrf.mxu0
        %v1795 = vadd.f32 0.0, %v1794
        %v1796 = vpop.f32.mrf.mxu0
        %v1797 = vadd.f32 0.0, %v1796
        %v1798 = vpop.f32.mrf.mxu0
        %v1799 = vadd.f32 0.0, %v1798
        %1800 = vmatprep.mubr.bf16.mxu0 0
        %1801 = vmatmul.mubr.bf16.gmra.mxu0 %v1450
        %v1802 = vpop.f32.mrf.mxu0
        %v1803 = vadd.f32 0.0, %v1802
        %v1804 = vpop.f32.mrf.mxu0
        %v1805 = vadd.f32 0.0, %v1804
        %v1806 = vpop.f32.mrf.mxu0
        %v1807 = vadd.f32 0.0, %v1806
        %v1808 = vpop.f32.mrf.mxu0
        %v1809 = vadd.f32 0.0, %v1808
        %1810 = vmatprep.mubr.bf16.mxu0 0
        %1811 = vmatmul.mubr.bf16.gmra.mxu0 %v1453
        %v1812 = vpop.f32.mrf.mxu0
        %v1813 = vadd.f32 0.0, %v1812
        %v1814 = vpop.f32.mrf.mxu0
        %v1815 = vadd.f32 0.0, %v1814
        %v1816 = vpop.f32.mrf.mxu0
        %v1817 = vadd.f32 0.0, %v1816
        %v1818 = vpop.f32.mrf.mxu0
        %v1819 = vadd.f32 0.0, %v1818
        %1820 = vmatprep.mubr.bf16.mxu0 0
        %1821 = vmatmul.mubr.bf16.gmra.mxu0 %v1456
        %v1822 = vpop.f32.mrf.mxu0
        %v1823 = vadd.f32 0.0, %v1822
        %v1824 = vpop.f32.mrf.mxu0
        %v1825 = vadd.f32 0.0, %v1824
        %v1826 = vpop.f32.mrf.mxu0
        %v1827 = vadd.f32 0.0, %v1826
        %v1828 = vpop.f32.mrf.mxu0
        %v1829 = vadd.f32 0.0, %v1828
        %1830 = vdwg.mxu0
        %1831 = vmatprep.subr.bf16.mxu0 0
        %1832 = vmatpush1.bf16.msra.mxu0 0
        %1833 = vmatprep.subr.bf16.mxu0 0
        %1834 = vmatpush1.bf16.msra.mxu0 0
        %1835 = vmatprep.subr.bf16.mxu0 0
        %1836 = vmatpush1.bf16.msra.mxu0 0
        %1837 = vmatprep.subr.bf16.mxu0 0
        %1838 = vmatpush1.bf16.msra.mxu0 0
        %1839 = vmatprep.subr.bf16.mxu0 %v1334
        %1840 = vmatpush1.bf16.msra.mxu0 %v1333
        %1841 = vmatprep.subr.bf16.mxu0 %v1329
        %1842 = vmatpush1.bf16.msra.mxu0 %v1328
        %1843 = vmatprep.subr.bf16.mxu0 %v1324
        %1844 = vmatpush1.bf16.msra.mxu0 %v1323
        %1845 = vmatprep.subr.bf16.mxu0 %v1319
        %1846 = vmatpush1.bf16.msra.mxu0 %v1318
        %1847 = vmatprep.subr.bf16.mxu0 0
        %1848 = vmatpush2.bf16.msra.mxu0 0
        %1849 = vmatprep.subr.bf16.mxu0 0
        %1850 = vmatpush2.bf16.msra.mxu0 0
        %1851 = vmatprep.subr.bf16.mxu0 0
        %1852 = vmatpush2.bf16.msra.mxu0 0
        %1853 = vmatprep.subr.bf16.mxu0 0
        %1854 = vmatpush2.bf16.msra.mxu0 0
        %1855 = vmatprep.subr.bf16.mxu0 0
        %1856 = vmatpush2.bf16.msra.mxu0 0
        %1857 = vmatprep.subr.bf16.mxu0 0
        %1858 = vmatpush2.bf16.msra.mxu0 0
        %1859 = vmatprep.subr.bf16.mxu0 0
        %1860 = vmatpush2.bf16.msra.mxu0 0
        %1861 = vmatprep.subr.bf16.mxu0 0
        %1862 = vmatpush2.bf16.msra.mxu0 0
        %1863 = vmatprep.mubr.bf16.mxu0 0
        %1864 = vmatmul.mubr.bf16.gmra.mxu0 %v1357
        %v1865 = vpop.f32.mrf.mxu0
        %v1866 = vadd.f32 0.0, %v1865
        %v1867 = vpop.f32.mrf.mxu0
        %v1868 = vadd.f32 0.0, %v1867
        %v1869 = vpop.f32.mrf.mxu0
        %v1870 = vadd.f32 0.0, %v1869
        %v1871 = vpop.f32.mrf.mxu0
        %v1872 = vadd.f32 0.0, %v1871
        %1873 = vmatprep.mubr.bf16.mxu0 0
        %1874 = vmatmul.mubr.bf16.gmra.mxu0 %v1360
        %v1875 = vpop.f32.mrf.mxu0
        %v1876 = vadd.f32 0.0, %v1875
        %v1877 = vpop.f32.mrf.mxu0
        %v1878 = vadd.f32 0.0, %v1877
        %v1879 = vpop.f32.mrf.mxu0
        %v1880 = vadd.f32 0.0, %v1879
        %v1881 = vpop.f32.mrf.mxu0
        %v1882 = vadd.f32 0.0, %v1881
        %1883 = vmatprep.mubr.bf16.mxu0 0
        %1884 = vmatmul.mubr.bf16.gmra.mxu0 %v1363
        %v1885 = vpop.f32.mrf.mxu0
        %v1886 = vadd.f32 0.0, %v1885
        %v1887 = vpop.f32.mrf.mxu0
        %v1888 = vadd.f32 0.0, %v1887
        %v1889 = vpop.f32.mrf.mxu0
        %v1890 = vadd.f32 0.0, %v1889
        %v1891 = vpop.f32.mrf.mxu0
        %v1892 = vadd.f32 0.0, %v1891
        %1893 = vmatprep.mubr.bf16.mxu0 0
        %1894 = vmatmul.mubr.bf16.gmra.mxu0 %v1366
        %v1895 = vpop.f32.mrf.mxu0
        %v1896 = vadd.f32 0.0, %v1895
        %v1897 = vpop.f32.mrf.mxu0
        %v1898 = vadd.f32 0.0, %v1897
        %v1899 = vpop.f32.mrf.mxu0
        %v1900 = vadd.f32 0.0, %v1899
        %v1901 = vpop.f32.mrf.mxu0
        %v1902 = vadd.f32 0.0, %v1901
        %1903 = vmatprep.mubr.bf16.mxu0 0
        %1904 = vmatmul.mubr.bf16.gmra.mxu0 %v1369
        %v1905 = vpop.f32.mrf.mxu0
        %v1906 = vadd.f32 0.0, %v1905
        %v1907 = vpop.f32.mrf.mxu0
        %v1908 = vadd.f32 0.0, %v1907
        %v1909 = vpop.f32.mrf.mxu0
        %v1910 = vadd.f32 0.0, %v1909
        %v1911 = vpop.f32.mrf.mxu0
        %v1912 = vadd.f32 0.0, %v1911
        %1913 = vmatprep.mubr.bf16.mxu0 0
        %1914 = vmatmul.mubr.bf16.gmra.mxu0 %v1372
        %v1915 = vpop.f32.mrf.mxu0
        %v1916 = vadd.f32 0.0, %v1915
        %v1917 = vpop.f32.mrf.mxu0
        %v1918 = vadd.f32 0.0, %v1917
        %v1919 = vpop.f32.mrf.mxu0
        %v1920 = vadd.f32 0.0, %v1919
        %v1921 = vpop.f32.mrf.mxu0
        %v1922 = vadd.f32 0.0, %v1921
        %1923 = vmatprep.mubr.bf16.mxu0 0
        %1924 = vmatmul.mubr.bf16.gmra.mxu0 %v1375
        %v1925 = vpop.f32.mrf.mxu0
        %v1926 = vadd.f32 0.0, %v1925
        %v1927 = vpop.f32.mrf.mxu0
        %v1928 = vadd.f32 0.0, %v1927
        %v1929 = vpop.f32.mrf.mxu0
        %v1930 = vadd.f32 0.0, %v1929
        %v1931 = vpop.f32.mrf.mxu0
        %v1932 = vadd.f32 0.0, %v1931
        %1933 = vmatprep.mubr.bf16.mxu0 0
        %1934 = vmatmul.mubr.bf16.gmra.mxu0 %v1378
        %v1935 = vpop.f32.mrf.mxu0
        %v1936 = vadd.f32 0.0, %v1935
        %v1937 = vpop.f32.mrf.mxu0
        %v1938 = vadd.f32 0.0, %v1937
        %v1939 = vpop.f32.mrf.mxu0
        %v1940 = vadd.f32 0.0, %v1939
        %v1941 = vpop.f32.mrf.mxu0
        %v1942 = vadd.f32 0.0, %v1941
        %1943 = vmatprep.mubr.bf16.mxu0 0
        %1944 = vmatmul.mubr.bf16.gmra.mxu0 %v1381
        %v1945 = vpop.f32.mrf.mxu0
        %v1946 = vadd.f32 0.0, %v1945
        %v1947 = vpop.f32.mrf.mxu0
        %v1948 = vadd.f32 0.0, %v1947
        %v1949 = vpop.f32.mrf.mxu0
        %v1950 = vadd.f32 0.0, %v1949
        %v1951 = vpop.f32.mrf.mxu0
        %v1952 = vadd.f32 0.0, %v1951
        %1953 = vmatprep.mubr.bf16.mxu0 0
        %1954 = vmatmul.mubr.bf16.gmra.mxu0 %v1384
        %v1955 = vpop.f32.mrf.mxu0
        %v1956 = vadd.f32 0.0, %v1955
        %v1957 = vpop.f32.mrf.mxu0
        %v1958 = vadd.f32 0.0, %v1957
        %v1959 = vpop.f32.mrf.mxu0
        %v1960 = vadd.f32 0.0, %v1959
        %v1961 = vpop.f32.mrf.mxu0
        %v1962 = vadd.f32 0.0, %v1961
        %1963 = vmatprep.mubr.bf16.mxu0 0
        %1964 = vmatmul.mubr.bf16.gmra.mxu0 %v1387
        %v1965 = vpop.f32.mrf.mxu0
        %v1966 = vadd.f32 0.0, %v1965
        %v1967 = vpop.f32.mrf.mxu0
        %v1968 = vadd.f32 0.0, %v1967
        %v1969 = vpop.f32.mrf.mxu0
        %v1970 = vadd.f32 0.0, %v1969
        %v1971 = vpop.f32.mrf.mxu0
        %v1972 = vadd.f32 0.0, %v1971
        %1973 = vmatprep.mubr.bf16.mxu0 0
        %1974 = vmatmul.mubr.bf16.gmra.mxu0 %v1390
        %v1975 = vpop.f32.mrf.mxu0
        %v1976 = vadd.f32 0.0, %v1975
        %v1977 = vpop.f32.mrf.mxu0
        %v1978 = vadd.f32 0.0, %v1977
        %v1979 = vpop.f32.mrf.mxu0
        %v1980 = vadd.f32 0.0, %v1979
        %v1981 = vpop.f32.mrf.mxu0
        %v1982 = vadd.f32 0.0, %v1981
        %1983 = vmatprep.mubr.bf16.mxu0 0
        %1984 = vmatmul.mubr.bf16.gmra.mxu0 %v1393
        %v1985 = vpop.f32.mrf.mxu0
        %v1986 = vadd.f32 0.0, %v1985
        %v1987 = vpop.f32.mrf.mxu0
        %v1988 = vadd.f32 0.0, %v1987
        %v1989 = vpop.f32.mrf.mxu0
        %v1990 = vadd.f32 0.0, %v1989
        %v1991 = vpop.f32.mrf.mxu0
        %v1992 = vadd.f32 0.0, %v1991
        %1993 = vmatprep.mubr.bf16.mxu0 0
        %1994 = vmatmul.mubr.bf16.gmra.mxu0 %v1396
        %v1995 = vpop.f32.mrf.mxu0
        %v1996 = vadd.f32 0.0, %v1995
        %v1997 = vpop.f32.mrf.mxu0
        %v1998 = vadd.f32 0.0, %v1997
        %v1999 = vpop.f32.mrf.mxu0
        %v2000 = vadd.f32 0.0, %v1999
        %v2001 = vpop.f32.mrf.mxu0
        %v2002 = vadd.f32 0.0, %v2001
        %2003 = vmatprep.mubr.bf16.mxu0 0
        %2004 = vmatmul.mubr.bf16.gmra.mxu0 %v1399
        %v2005 = vpop.f32.mrf.mxu0
        %v2006 = vadd.f32 0.0, %v2005
        %v2007 = vpop.f32.mrf.mxu0
        %v2008 = vadd.f32 0.0, %v2007
        %v2009 = vpop.f32.mrf.mxu0
        %v2010 = vadd.f32 0.0, %v2009
        %v2011 = vpop.f32.mrf.mxu0
        %v2012 = vadd.f32 0.0, %v2011
        %2013 = vmatprep.mubr.bf16.mxu0 0
        %2014 = vmatmul.mubr.bf16.gmra.mxu0 %v1402
        %v2015 = vpop.f32.mrf.mxu0
        %v2016 = vadd.f32 0.0, %v2015
        %v2017 = vpop.f32.mrf.mxu0
        %v2018 = vadd.f32 0.0, %v2017
        %v2019 = vpop.f32.mrf.mxu0
        %v2020 = vadd.f32 0.0, %v2019
        %v2021 = vpop.f32.mrf.mxu0
        %v2022 = vadd.f32 0.0, %v2021
        %2023 = vmatprep.mubr.bf16.mxu0 0
        %2024 = vmatmul.mubr.bf16.gmra.mxu0 %v1405
        %v2025 = vpop.f32.mrf.mxu0
        %v2026 = vadd.f32 0.0, %v2025
        %v2027 = vpop.f32.mrf.mxu0
        %v2028 = vadd.f32 0.0, %v2027
        %v2029 = vpop.f32.mrf.mxu0
        %v2030 = vadd.f32 0.0, %v2029
        %v2031 = vpop.f32.mrf.mxu0
        %v2032 = vadd.f32 0.0, %v2031
        %2033 = vmatprep.mubr.bf16.mxu0 0
        %2034 = vmatmul.mubr.bf16.gmra.mxu0 %v1408
        %v2035 = vpop.f32.mrf.mxu0
        %v2036 = vadd.f32 0.0, %v2035
        %v2037 = vpop.f32.mrf.mxu0
        %v2038 = vadd.f32 0.0, %v2037
        %v2039 = vpop.f32.mrf.mxu0
        %v2040 = vadd.f32 0.0, %v2039
        %v2041 = vpop.f32.mrf.mxu0
        %v2042 = vadd.f32 0.0, %v2041
        %2043 = vmatprep.mubr.bf16.mxu0 0
        %2044 = vmatmul.mubr.bf16.gmra.mxu0 %v1411
        %v2045 = vpop.f32.mrf.mxu0
        %v2046 = vadd.f32 0.0, %v2045
        %v2047 = vpop.f32.mrf.mxu0
        %v2048 = vadd.f32 0.0, %v2047
        %v2049 = vpop.f32.mrf.mxu0
        %v2050 = vadd.f32 0.0, %v2049
        %v2051 = vpop.f32.mrf.mxu0
        %v2052 = vadd.f32 0.0, %v2051
        %2053 = vmatprep.mubr.bf16.mxu0 0
        %2054 = vmatmul.mubr.bf16.gmra.mxu0 %v1414
        %v2055 = vpop.f32.mrf.mxu0
        %v2056 = vadd.f32 0.0, %v2055
        %v2057 = vpop.f32.mrf.mxu0
        %v2058 = vadd.f32 0.0, %v2057
        %v2059 = vpop.f32.mrf.mxu0
        %v2060 = vadd.f32 0.0, %v2059
        %v2061 = vpop.f32.mrf.mxu0
        %v2062 = vadd.f32 0.0, %v2061
        %2063 = vmatprep.mubr.bf16.mxu0 0
        %2064 = vmatmul.mubr.bf16.gmra.mxu0 %v1417
        %v2065 = vpop.f32.mrf.mxu0
        %v2066 = vadd.f32 0.0, %v2065
        %v2067 = vpop.f32.mrf.mxu0
        %v2068 = vadd.f32 0.0, %v2067
        %v2069 = vpop.f32.mrf.mxu0
        %v2070 = vadd.f32 0.0, %v2069
        %v2071 = vpop.f32.mrf.mxu0
        %v2072 = vadd.f32 0.0, %v2071
        %2073 = vmatprep.mubr.bf16.mxu0 0
        %2074 = vmatmul.mubr.bf16.gmra.mxu0 %v1420
        %v2075 = vpop.f32.mrf.mxu0
        %v2076 = vadd.f32 0.0, %v2075
        %v2077 = vpop.f32.mrf.mxu0
        %v2078 = vadd.f32 0.0, %v2077
        %v2079 = vpop.f32.mrf.mxu0
        %v2080 = vadd.f32 0.0, %v2079
        %v2081 = vpop.f32.mrf.mxu0
        %v2082 = vadd.f32 0.0, %v2081
        %2083 = vmatprep.mubr.bf16.mxu0 0
        %2084 = vmatmul.mubr.bf16.gmra.mxu0 %v1423
        %v2085 = vpop.f32.mrf.mxu0
        %v2086 = vadd.f32 0.0, %v2085
        %v2087 = vpop.f32.mrf.mxu0
        %v2088 = vadd.f32 0.0, %v2087
        %v2089 = vpop.f32.mrf.mxu0
        %v2090 = vadd.f32 0.0, %v2089
        %v2091 = vpop.f32.mrf.mxu0
        %v2092 = vadd.f32 0.0, %v2091
        %2093 = vmatprep.mubr.bf16.mxu0 0
        %2094 = vmatmul.mubr.bf16.gmra.mxu0 %v1426
        %v2095 = vpop.f32.mrf.mxu0
        %v2096 = vadd.f32 0.0, %v2095
        %v2097 = vpop.f32.mrf.mxu0
        %v2098 = vadd.f32 0.0, %v2097
        %v2099 = vpop.f32.mrf.mxu0
        %v2100 = vadd.f32 0.0, %v2099
        %v2101 = vpop.f32.mrf.mxu0
        %v2102 = vadd.f32 0.0, %v2101
        %2103 = vmatprep.mubr.bf16.mxu0 0
        %2104 = vmatmul.mubr.bf16.gmra.mxu0 %v1429
        %v2105 = vpop.f32.mrf.mxu0
        %v2106 = vadd.f32 0.0, %v2105
        %v2107 = vpop.f32.mrf.mxu0
        %v2108 = vadd.f32 0.0, %v2107
        %v2109 = vpop.f32.mrf.mxu0
        %v2110 = vadd.f32 0.0, %v2109
        %v2111 = vpop.f32.mrf.mxu0
        %v2112 = vadd.f32 0.0, %v2111
        %2113 = vmatprep.mubr.bf16.mxu0 0
        %2114 = vmatmul.mubr.bf16.gmra.mxu0 %v1432
        %v2115 = vpop.f32.mrf.mxu0
        %v2116 = vadd.f32 0.0, %v2115
        %v2117 = vpop.f32.mrf.mxu0
        %v2118 = vadd.f32 0.0, %v2117
        %v2119 = vpop.f32.mrf.mxu0
        %v2120 = vadd.f32 0.0, %v2119
        %v2121 = vpop.f32.mrf.mxu0
        %v2122 = vadd.f32 0.0, %v2121
        %2123 = vmatprep.mubr.bf16.mxu0 0
        %2124 = vmatmul.mubr.bf16.gmra.mxu0 %v1435
        %v2125 = vpop.f32.mrf.mxu0
        %v2126 = vadd.f32 0.0, %v2125
        %v2127 = vpop.f32.mrf.mxu0
        %v2128 = vadd.f32 0.0, %v2127
        %v2129 = vpop.f32.mrf.mxu0
        %v2130 = vadd.f32 0.0, %v2129
        %v2131 = vpop.f32.mrf.mxu0
        %v2132 = vadd.f32 0.0, %v2131
        %2133 = vmatprep.mubr.bf16.mxu0 0
        %2134 = vmatmul.mubr.bf16.gmra.mxu0 %v1438
        %v2135 = vpop.f32.mrf.mxu0
        %v2136 = vadd.f32 0.0, %v2135
        %v2137 = vpop.f32.mrf.mxu0
        %v2138 = vadd.f32 0.0, %v2137
        %v2139 = vpop.f32.mrf.mxu0
        %v2140 = vadd.f32 0.0, %v2139
        %v2141 = vpop.f32.mrf.mxu0
        %v2142 = vadd.f32 0.0, %v2141
        %2143 = vmatprep.mubr.bf16.mxu0 0
        %2144 = vmatmul.mubr.bf16.gmra.mxu0 %v1441
        %v2145 = vpop.f32.mrf.mxu0
        %v2146 = vadd.f32 0.0, %v2145
        %v2147 = vpop.f32.mrf.mxu0
        %v2148 = vadd.f32 0.0, %v2147
        %v2149 = vpop.f32.mrf.mxu0
        %v2150 = vadd.f32 0.0, %v2149
        %v2151 = vpop.f32.mrf.mxu0
        %v2152 = vadd.f32 0.0, %v2151
        %2153 = vmatprep.mubr.bf16.mxu0 0
        %2154 = vmatmul.mubr.bf16.gmra.mxu0 %v1444
        %v2155 = vpop.f32.mrf.mxu0
        %v2156 = vadd.f32 0.0, %v2155
        %v2157 = vpop.f32.mrf.mxu0
        %v2158 = vadd.f32 0.0, %v2157
        %v2159 = vpop.f32.mrf.mxu0
        %v2160 = vadd.f32 0.0, %v2159
        %v2161 = vpop.f32.mrf.mxu0
        %v2162 = vadd.f32 0.0, %v2161
        %2163 = vmatprep.mubr.bf16.mxu0 0
        %2164 = vmatmul.mubr.bf16.gmra.mxu0 %v1447
        %v2165 = vpop.f32.mrf.mxu0
        %v2166 = vadd.f32 0.0, %v2165
        %v2167 = vpop.f32.mrf.mxu0
        %v2168 = vadd.f32 0.0, %v2167
        %v2169 = vpop.f32.mrf.mxu0
        %v2170 = vadd.f32 0.0, %v2169
        %v2171 = vpop.f32.mrf.mxu0
        %v2172 = vadd.f32 0.0, %v2171
        %2173 = vmatprep.mubr.bf16.mxu0 0
        %2174 = vmatmul.mubr.bf16.gmra.mxu0 %v1450
        %v2175 = vpop.f32.mrf.mxu0
        %v2176 = vadd.f32 0.0, %v2175
        %v2177 = vpop.f32.mrf.mxu0
        %v2178 = vadd.f32 0.0, %v2177
        %v2179 = vpop.f32.mrf.mxu0
        %v2180 = vadd.f32 0.0, %v2179
        %v2181 = vpop.f32.mrf.mxu0
        %v2182 = vadd.f32 0.0, %v2181
        %2183 = vmatprep.mubr.bf16.mxu0 0
        %2184 = vmatmul.mubr.bf16.gmra.mxu0 %v1453
        %v2185 = vpop.f32.mrf.mxu0
        %v2186 = vadd.f32 0.0, %v2185
        %v2187 = vpop.f32.mrf.mxu0
        %v2188 = vadd.f32 0.0, %v2187
        %v2189 = vpop.f32.mrf.mxu0
        %v2190 = vadd.f32 0.0, %v2189
        %v2191 = vpop.f32.mrf.mxu0
        %v2192 = vadd.f32 0.0, %v2191
        %2193 = vmatprep.mubr.bf16.mxu0 0
        %2194 = vmatmul.mubr.bf16.gmra.mxu0 %v1456
        %v2195 = vpop.f32.mrf.mxu0
        %v2196 = vadd.f32 0.0, %v2195
        %v2197 = vpop.f32.mrf.mxu0
        %v2198 = vadd.f32 0.0, %v2197
        %v2199 = vpop.f32.mrf.mxu0
        %v2200 = vadd.f32 0.0, %v2199
        %v2201 = vpop.f32.mrf.mxu0
        %v2202 = vadd.f32 0.0, %v2201
        %2203 = vdwg.mxu0
        %2204 = vmatprep.subr.bf16.mxu0 0
        %2205 = vmatpush1.bf16.msra.mxu0 0
        %2206 = vmatprep.subr.bf16.mxu0 0
        %2207 = vmatpush1.bf16.msra.mxu0 0
        %2208 = vmatprep.subr.bf16.mxu0 0
        %2209 = vmatpush1.bf16.msra.mxu0 0
        %2210 = vmatprep.subr.bf16.mxu0 0
        %2211 = vmatpush1.bf16.msra.mxu0 0
        %2212 = vmatprep.subr.bf16.mxu0 0
        %2213 = vmatpush1.bf16.msra.mxu0 %v1335
        %2214 = vmatprep.subr.bf16.mxu0 0
        %2215 = vmatpush1.bf16.msra.mxu0 %v1330
        %2216 = vmatprep.subr.bf16.mxu0 0
        %2217 = vmatpush1.bf16.msra.mxu0 %v1325
        %2218 = vmatprep.subr.bf16.mxu0 0
        %2219 = vmatpush1.bf16.msra.mxu0 %v1320
        %2220 = vmatprep.subr.bf16.mxu0 0
        %2221 = vmatpush2.bf16.msra.mxu0 0
        %2222 = vmatprep.subr.bf16.mxu0 0
        %2223 = vmatpush2.bf16.msra.mxu0 0
        %2224 = vmatprep.subr.bf16.mxu0 0
        %2225 = vmatpush2.bf16.msra.mxu0 0
        %2226 = vmatprep.subr.bf16.mxu0 0
        %2227 = vmatpush2.bf16.msra.mxu0 0
        %2228 = vmatprep.subr.bf16.mxu0 0
        %2229 = vmatpush2.bf16.msra.mxu0 0
        %2230 = vmatprep.subr.bf16.mxu0 0
        %2231 = vmatpush2.bf16.msra.mxu0 0
        %2232 = vmatprep.subr.bf16.mxu0 0
        %2233 = vmatpush2.bf16.msra.mxu0 0
        %2234 = vmatprep.subr.bf16.mxu0 0
        %2235 = vmatpush2.bf16.msra.mxu0 0
        %2236 = vmatprep.mubr.bf16.mxu0 0
        %2237 = vmatmul.mubr.bf16.gmra.mxu0 %v1357
        %v2238 = vpop.f32.mrf.mxu0
        %v2239 = vadd.f32 0.0, %v2238
        %v2240 = vpop.f32.mrf.mxu0
        %v2241 = vpop.f32.mrf.mxu0
        %v2242 = vadd.f32 0.0, %v2241
        %v2243 = vpop.f32.mrf.mxu0
        %2244 = vmatprep.mubr.bf16.mxu0 0
        %2245 = vmatmul.mubr.bf16.gmra.mxu0 %v1360
        %v2246 = vpop.f32.mrf.mxu0
        %v2247 = vadd.f32 0.0, %v2246
        %v2248 = vpop.f32.mrf.mxu0
        %v2249 = vpop.f32.mrf.mxu0
        %v2250 = vadd.f32 0.0, %v2249
        %v2251 = vpop.f32.mrf.mxu0
        %2252 = vmatprep.mubr.bf16.mxu0 0
        %2253 = vmatmul.mubr.bf16.gmra.mxu0 %v1363
        %v2254 = vpop.f32.mrf.mxu0
        %v2255 = vadd.f32 0.0, %v2254
        %v2256 = vpop.f32.mrf.mxu0
        %v2257 = vpop.f32.mrf.mxu0
        %v2258 = vadd.f32 0.0, %v2257
        %v2259 = vpop.f32.mrf.mxu0
        %2260 = vmatprep.mubr.bf16.mxu0 0
        %2261 = vmatmul.mubr.bf16.gmra.mxu0 %v1366
        %v2262 = vpop.f32.mrf.mxu0
        %v2263 = vadd.f32 0.0, %v2262
        %v2264 = vpop.f32.mrf.mxu0
        %v2265 = vpop.f32.mrf.mxu0
        %v2266 = vadd.f32 0.0, %v2265
        %v2267 = vpop.f32.mrf.mxu0
        %2268 = vmatprep.mubr.bf16.mxu0 0
        %2269 = vmatmul.mubr.bf16.gmra.mxu0 %v1369
        %v2270 = vpop.f32.mrf.mxu0
        %v2271 = vadd.f32 0.0, %v2270
        %v2272 = vpop.f32.mrf.mxu0
        %v2273 = vpop.f32.mrf.mxu0
        %v2274 = vadd.f32 0.0, %v2273
        %v2275 = vpop.f32.mrf.mxu0
        %2276 = vmatprep.mubr.bf16.mxu0 0
        %2277 = vmatmul.mubr.bf16.gmra.mxu0 %v1372
        %v2278 = vpop.f32.mrf.mxu0
        %v2279 = vadd.f32 0.0, %v2278
        %v2280 = vpop.f32.mrf.mxu0
        %v2281 = vpop.f32.mrf.mxu0
        %v2282 = vadd.f32 0.0, %v2281
        %v2283 = vpop.f32.mrf.mxu0
        %2284 = vmatprep.mubr.bf16.mxu0 0
        %2285 = vmatmul.mubr.bf16.gmra.mxu0 %v1375
        %v2286 = vpop.f32.mrf.mxu0
        %v2287 = vadd.f32 0.0, %v2286
        %v2288 = vpop.f32.mrf.mxu0
        %v2289 = vpop.f32.mrf.mxu0
        %v2290 = vadd.f32 0.0, %v2289
        %v2291 = vpop.f32.mrf.mxu0
        %2292 = vmatprep.mubr.bf16.mxu0 0
        %2293 = vmatmul.mubr.bf16.gmra.mxu0 %v1378
        %v2294 = vpop.f32.mrf.mxu0
        %v2295 = vadd.f32 0.0, %v2294
        %v2296 = vpop.f32.mrf.mxu0
        %v2297 = vpop.f32.mrf.mxu0
        %v2298 = vadd.f32 0.0, %v2297
        %v2299 = vpop.f32.mrf.mxu0
        %2300 = vmatprep.mubr.bf16.mxu0 0
        %2301 = vmatmul.mubr.bf16.gmra.mxu0 %v1381
        %v2302 = vpop.f32.mrf.mxu0
        %v2303 = vadd.f32 0.0, %v2302
        %v2304 = vpop.f32.mrf.mxu0
        %v2305 = vpop.f32.mrf.mxu0
        %v2306 = vadd.f32 0.0, %v2305
        %v2307 = vpop.f32.mrf.mxu0
        %2308 = vmatprep.mubr.bf16.mxu0 0
        %2309 = vmatmul.mubr.bf16.gmra.mxu0 %v1384
        %v2310 = vpop.f32.mrf.mxu0
        %v2311 = vadd.f32 0.0, %v2310
        %v2312 = vpop.f32.mrf.mxu0
        %v2313 = vpop.f32.mrf.mxu0
        %v2314 = vadd.f32 0.0, %v2313
        %v2315 = vpop.f32.mrf.mxu0
        %2316 = vmatprep.mubr.bf16.mxu0 0
        %2317 = vmatmul.mubr.bf16.gmra.mxu0 %v1387
        %v2318 = vpop.f32.mrf.mxu0
        %v2319 = vadd.f32 0.0, %v2318
        %v2320 = vpop.f32.mrf.mxu0
        %v2321 = vpop.f32.mrf.mxu0
        %v2322 = vadd.f32 0.0, %v2321
        %v2323 = vpop.f32.mrf.mxu0
        %2324 = vmatprep.mubr.bf16.mxu0 0
        %2325 = vmatmul.mubr.bf16.gmra.mxu0 %v1390
        %v2326 = vpop.f32.mrf.mxu0
        %v2327 = vadd.f32 0.0, %v2326
        %v2328 = vpop.f32.mrf.mxu0
        %v2329 = vpop.f32.mrf.mxu0
        %v2330 = vadd.f32 0.0, %v2329
        %v2331 = vpop.f32.mrf.mxu0
        %2332 = vmatprep.mubr.bf16.mxu0 0
        %2333 = vmatmul.mubr.bf16.gmra.mxu0 %v1393
        %v2334 = vpop.f32.mrf.mxu0
        %v2335 = vadd.f32 0.0, %v2334
        %v2336 = vpop.f32.mrf.mxu0
        %v2337 = vpop.f32.mrf.mxu0
        %v2338 = vadd.f32 0.0, %v2337
        %v2339 = vpop.f32.mrf.mxu0
        %2340 = vmatprep.mubr.bf16.mxu0 0
        %2341 = vmatmul.mubr.bf16.gmra.mxu0 %v1396
        %v2342 = vpop.f32.mrf.mxu0
        %v2343 = vadd.f32 0.0, %v2342
        %v2344 = vpop.f32.mrf.mxu0
        %v2345 = vpop.f32.mrf.mxu0
        %v2346 = vadd.f32 0.0, %v2345
        %v2347 = vpop.f32.mrf.mxu0
        %2348 = vmatprep.mubr.bf16.mxu0 0
        %2349 = vmatmul.mubr.bf16.gmra.mxu0 %v1399
        %v2350 = vpop.f32.mrf.mxu0
        %v2351 = vadd.f32 0.0, %v2350
        %v2352 = vpop.f32.mrf.mxu0
        %v2353 = vpop.f32.mrf.mxu0
        %v2354 = vadd.f32 0.0, %v2353
        %v2355 = vpop.f32.mrf.mxu0
        %2356 = vmatprep.mubr.bf16.mxu0 0
        %2357 = vmatmul.mubr.bf16.gmra.mxu0 %v1402
        %v2358 = vpop.f32.mrf.mxu0
        %v2359 = vadd.f32 0.0, %v2358
        %v2360 = vpop.f32.mrf.mxu0
        %v2361 = vpop.f32.mrf.mxu0
        %v2362 = vadd.f32 0.0, %v2361
        %v2363 = vpop.f32.mrf.mxu0
        %2364 = vmatprep.mubr.bf16.mxu0 0
        %2365 = vmatmul.mubr.bf16.gmra.mxu0 %v1405
        %v2366 = vpop.f32.mrf.mxu0
        %v2367 = vadd.f32 0.0, %v2366
        %v2368 = vpop.f32.mrf.mxu0
        %v2369 = vpop.f32.mrf.mxu0
        %v2370 = vadd.f32 0.0, %v2369
        %v2371 = vpop.f32.mrf.mxu0
        %2372 = vmatprep.mubr.bf16.mxu0 0
        %2373 = vmatmul.mubr.bf16.gmra.mxu0 %v1408
        %v2374 = vpop.f32.mrf.mxu0
        %v2375 = vadd.f32 0.0, %v2374
        %v2376 = vpop.f32.mrf.mxu0
        %v2377 = vpop.f32.mrf.mxu0
        %v2378 = vadd.f32 0.0, %v2377
        %v2379 = vpop.f32.mrf.mxu0
        %2380 = vmatprep.mubr.bf16.mxu0 0
        %2381 = vmatmul.mubr.bf16.gmra.mxu0 %v1411
        %v2382 = vpop.f32.mrf.mxu0
        %v2383 = vadd.f32 0.0, %v2382
        %v2384 = vpop.f32.mrf.mxu0
        %v2385 = vpop.f32.mrf.mxu0
        %v2386 = vadd.f32 0.0, %v2385
        %v2387 = vpop.f32.mrf.mxu0
        %2388 = vmatprep.mubr.bf16.mxu0 0
        %2389 = vmatmul.mubr.bf16.gmra.mxu0 %v1414
        %v2390 = vpop.f32.mrf.mxu0
        %v2391 = vadd.f32 0.0, %v2390
        %v2392 = vpop.f32.mrf.mxu0
        %v2393 = vpop.f32.mrf.mxu0
        %v2394 = vadd.f32 0.0, %v2393
        %v2395 = vpop.f32.mrf.mxu0
        %2396 = vmatprep.mubr.bf16.mxu0 0
        %2397 = vmatmul.mubr.bf16.gmra.mxu0 %v1417
        %v2398 = vpop.f32.mrf.mxu0
        %v2399 = vadd.f32 0.0, %v2398
        %v2400 = vpop.f32.mrf.mxu0
        %v2401 = vpop.f32.mrf.mxu0
        %v2402 = vadd.f32 0.0, %v2401
        %v2403 = vpop.f32.mrf.mxu0
        %2404 = vmatprep.mubr.bf16.mxu0 0
        %2405 = vmatmul.mubr.bf16.gmra.mxu0 %v1420
        %v2406 = vpop.f32.mrf.mxu0
        %v2407 = vadd.f32 0.0, %v2406
        %v2408 = vpop.f32.mrf.mxu0
        %v2409 = vpop.f32.mrf.mxu0
        %v2410 = vadd.f32 0.0, %v2409
        %v2411 = vpop.f32.mrf.mxu0
        %2412 = vmatprep.mubr.bf16.mxu0 0
        %2413 = vmatmul.mubr.bf16.gmra.mxu0 %v1423
        %v2414 = vpop.f32.mrf.mxu0
        %v2415 = vadd.f32 0.0, %v2414
        %v2416 = vpop.f32.mrf.mxu0
        %v2417 = vpop.f32.mrf.mxu0
        %v2418 = vadd.f32 0.0, %v2417
        %v2419 = vpop.f32.mrf.mxu0
        %2420 = vmatprep.mubr.bf16.mxu0 0
        %2421 = vmatmul.mubr.bf16.gmra.mxu0 %v1426
        %v2422 = vpop.f32.mrf.mxu0
        %v2423 = vadd.f32 0.0, %v2422
        %v2424 = vpop.f32.mrf.mxu0
        %v2425 = vpop.f32.mrf.mxu0
        %v2426 = vadd.f32 0.0, %v2425
        %v2427 = vpop.f32.mrf.mxu0
        %2428 = vmatprep.mubr.bf16.mxu0 0
        %2429 = vmatmul.mubr.bf16.gmra.mxu0 %v1429
        %v2430 = vpop.f32.mrf.mxu0
        %v2431 = vadd.f32 0.0, %v2430
        %v2432 = vpop.f32.mrf.mxu0
        %v2433 = vpop.f32.mrf.mxu0
        %v2434 = vadd.f32 0.0, %v2433
        %v2435 = vpop.f32.mrf.mxu0
        %2436 = vmatprep.mubr.bf16.mxu0 0
        %2437 = vmatmul.mubr.bf16.gmra.mxu0 %v1432
        %v2438 = vpop.f32.mrf.mxu0
        %v2439 = vadd.f32 0.0, %v2438
        %v2440 = vpop.f32.mrf.mxu0
        %v2441 = vpop.f32.mrf.mxu0
        %v2442 = vadd.f32 0.0, %v2441
        %v2443 = vpop.f32.mrf.mxu0
        %2444 = vmatprep.mubr.bf16.mxu0 0
        %2445 = vmatmul.mubr.bf16.gmra.mxu0 %v1435
        %v2446 = vpop.f32.mrf.mxu0
        %v2447 = vadd.f32 0.0, %v2446
        %v2448 = vpop.f32.mrf.mxu0
        %v2449 = vpop.f32.mrf.mxu0
        %v2450 = vadd.f32 0.0, %v2449
        %v2451 = vpop.f32.mrf.mxu0
        %2452 = vmatprep.mubr.bf16.mxu0 0
        %2453 = vmatmul.mubr.bf16.gmra.mxu0 %v1438
        %v2454 = vpop.f32.mrf.mxu0
        %v2455 = vadd.f32 0.0, %v2454
        %v2456 = vpop.f32.mrf.mxu0
        %v2457 = vpop.f32.mrf.mxu0
        %v2458 = vadd.f32 0.0, %v2457
        %v2459 = vpop.f32.mrf.mxu0
        %2460 = vmatprep.mubr.bf16.mxu0 0
        %2461 = vmatmul.mubr.bf16.gmra.mxu0 %v1441
        %v2462 = vpop.f32.mrf.mxu0
        %v2463 = vadd.f32 0.0, %v2462
        %v2464 = vpop.f32.mrf.mxu0
        %v2465 = vpop.f32.mrf.mxu0
        %v2466 = vadd.f32 0.0, %v2465
        %v2467 = vpop.f32.mrf.mxu0
        %2468 = vmatprep.mubr.bf16.mxu0 0
        %2469 = vmatmul.mubr.bf16.gmra.mxu0 %v1444
        %v2470 = vpop.f32.mrf.mxu0
        %v2471 = vadd.f32 0.0, %v2470
        %v2472 = vpop.f32.mrf.mxu0
        %v2473 = vpop.f32.mrf.mxu0
        %v2474 = vadd.f32 0.0, %v2473
        %v2475 = vpop.f32.mrf.mxu0
        %2476 = vmatprep.mubr.bf16.mxu0 0
        %2477 = vmatmul.mubr.bf16.gmra.mxu0 %v1447
        %v2478 = vpop.f32.mrf.mxu0
        %v2479 = vadd.f32 0.0, %v2478
        %v2480 = vpop.f32.mrf.mxu0
        %v2481 = vpop.f32.mrf.mxu0
        %v2482 = vadd.f32 0.0, %v2481
        %v2483 = vpop.f32.mrf.mxu0
        %2484 = vmatprep.mubr.bf16.mxu0 0
        %2485 = vmatmul.mubr.bf16.gmra.mxu0 %v1450
        %v2486 = vpop.f32.mrf.mxu0
        %v2487 = vadd.f32 0.0, %v2486
        %v2488 = vpop.f32.mrf.mxu0
        %v2489 = vpop.f32.mrf.mxu0
        %v2490 = vadd.f32 0.0, %v2489
        %v2491 = vpop.f32.mrf.mxu0
        %2492 = vmatprep.mubr.bf16.mxu0 0
        %2493 = vmatmul.mubr.bf16.gmra.mxu0 %v1453
        %v2494 = vpop.f32.mrf.mxu0
        %v2495 = vadd.f32 0.0, %v2494
        %v2496 = vpop.f32.mrf.mxu0
        %v2497 = vpop.f32.mrf.mxu0
        %v2498 = vadd.f32 0.0, %v2497
        %v2499 = vpop.f32.mrf.mxu0
        %2500 = vmatprep.mubr.bf16.mxu0 0
        %2501 = vmatmul.mubr.bf16.gmra.mxu0 %v1456
        %v2502 = vpop.f32.mrf.mxu0
        %v2503 = vadd.f32 0.0, %v2502
        %v2504 = vpop.f32.mrf.mxu0
        %v2505 = vpop.f32.mrf.mxu0
        %v2506 = vadd.f32 0.0, %v2505
        %v2507 = vpop.f32.mrf.mxu0
        %2508 = vdwg.mxu0
        %2509 = vst [vmem:[%s302] sm:$0xff] %v1493
        %2510 = vst [vmem:[%s302 + $0x8] sm:$0xff] %v1495
        %2511 = vst [vmem:[%s302 + $0x10] sm:$0xff] %v1866
        %2512 = vst [vmem:[%s302 + $0x18] sm:$0xff] %v1868
        %vm2513 = vcmask 261120
        %2514 = vst.msk [vmem:[%s302 + $0x20] sm:$0xff] %vm2513, %v2239
        %2515 = vst [vmem:[%s302 + $0x28] sm:$0xff] %v1497
        %2516 = vst [vmem:[%s302 + $0x30] sm:$0xff] %v1499
        %2517 = vst [vmem:[%s302 + $0x38] sm:$0xff] %v1870
        %2518 = vst [vmem:[%s302 + $0x40] sm:$0xff] %v1872
        %2519 = vst.msk [vmem:[%s302 + $0x48] sm:$0xff] %vm2513, %v2242
        %2520 = vst [vmem:[%s302 + $0x50] sm:$0xff] %v1503
        %2521 = vst [vmem:[%s302 + $0x58] sm:$0xff] %v1505
        %2522 = vst [vmem:[%s302 + $0x60] sm:$0xff] %v1876
        %2523 = vst [vmem:[%s302 + $0x68] sm:$0xff] %v1878
        %2524 = vst.msk [vmem:[%s302 + $0x70] sm:$0xff] %vm2513, %v2247
        %2525 = vst [vmem:[%s302 + $0x78] sm:$0xff] %v1507
        %2526 = vst [vmem:[%s302 + $0x80] sm:$0xff] %v1509
        %2527 = vst [vmem:[%s302 + $0x88] sm:$0xff] %v1880
        %2528 = vst [vmem:[%s302 + $0x90] sm:$0xff] %v1882
        %2529 = vst.msk [vmem:[%s302 + $0x98] sm:$0xff] %vm2513, %v2250
        %2530 = vst [vmem:[%s302 + $0xa0] sm:$0xff] %v1513
        %2531 = vst [vmem:[%s302 + $0xa8] sm:$0xff] %v1515
        %2532 = vst [vmem:[%s302 + $0xb0] sm:$0xff] %v1886
        %2533 = vst [vmem:[%s302 + $0xb8] sm:$0xff] %v1888
        %2534 = vst.msk [vmem:[%s302 + $0xc0] sm:$0xff] %vm2513, %v2255
        %2535 = vst [vmem:[%s302 + $0xc8] sm:$0xff] %v1517
        %2536 = vst [vmem:[%s302 + $0xd0] sm:$0xff] %v1519
        %2537 = vst [vmem:[%s302 + $0xd8] sm:$0xff] %v1890
        %2538 = vst [vmem:[%s302 + $0xe0] sm:$0xff] %v1892
        %2539 = vst.msk [vmem:[%s302 + $0xe8] sm:$0xff] %vm2513, %v2258
        %2540 = vst [vmem:[%s302 + $0xf0] sm:$0xff] %v1523
        %2541 = vst [vmem:[%s302 + $0xf8] sm:$0xff] %v1525
        %2542 = vst [vmem:[%s302 + $0x100] sm:$0xff] %v1896
        %2543 = vst [vmem:[%s302 + $0x108] sm:$0xff] %v1898
        %2544 = vst.msk [vmem:[%s302 + $0x110] sm:$0xff] %vm2513, %v2263
        %2545 = vst [vmem:[%s302 + $0x118] sm:$0xff] %v1527
        %2546 = vst [vmem:[%s302 + $0x120] sm:$0xff] %v1529
        %2547 = vst [vmem:[%s302 + $0x128] sm:$0xff] %v1900
        %2548 = vst [vmem:[%s302 + $0x130] sm:$0xff] %v1902
        %2549 = vst.msk [vmem:[%s302 + $0x138] sm:$0xff] %vm2513, %v2266
        %2550 = vst [vmem:[%s302 + $0x140] sm:$0xff] %v1533
        %2551 = vst [vmem:[%s302 + $0x148] sm:$0xff] %v1535
        %2552 = vst [vmem:[%s302 + $0x150] sm:$0xff] %v1906
        %2553 = vst [vmem:[%s302 + $0x158] sm:$0xff] %v1908
        %2554 = vst.msk [vmem:[%s302 + $0x160] sm:$0xff] %vm2513, %v2271
        %2555 = vst [vmem:[%s302 + $0x168] sm:$0xff] %v1537
        %2556 = vst [vmem:[%s302 + $0x170] sm:$0xff] %v1539
        %2557 = vst [vmem:[%s302 + $0x178] sm:$0xff] %v1910
        %2558 = vst [vmem:[%s302 + $0x180] sm:$0xff] %v1912
        %2559 = vst.msk [vmem:[%s302 + $0x188] sm:$0xff] %vm2513, %v2274
        %2560 = vst [vmem:[%s302 + $0x190] sm:$0xff] %v1543
        %2561 = vst [vmem:[%s302 + $0x198] sm:$0xff] %v1545
        %2562 = vst [vmem:[%s302 + $0x1a0] sm:$0xff] %v1916
        %2563 = vst [vmem:[%s302 + $0x1a8] sm:$0xff] %v1918
        %2564 = vst.msk [vmem:[%s302 + $0x1b0] sm:$0xff] %vm2513, %v2279
        %2565 = vst [vmem:[%s302 + $0x1b8] sm:$0xff] %v1547
        %2566 = vst [vmem:[%s302 + $0x1c0] sm:$0xff] %v1549
        %2567 = vst [vmem:[%s302 + $0x1c8] sm:$0xff] %v1920
        %2568 = vst [vmem:[%s302 + $0x1d0] sm:$0xff] %v1922
        %2569 = vst.msk [vmem:[%s302 + $0x1d8] sm:$0xff] %vm2513, %v2282
        %2570 = vst [vmem:[%s302 + $0x1e0] sm:$0xff] %v1553
        %2571 = vst [vmem:[%s302 + $0x1e8] sm:$0xff] %v1555
        %2572 = vst [vmem:[%s302 + $0x1f0] sm:$0xff] %v1926
        %2573 = vst [vmem:[%s302 + $0x1f8] sm:$0xff] %v1928
        %2574 = vst.msk [vmem:[%s302 + $0x200] sm:$0xff] %vm2513, %v2287
        %2575 = vst [vmem:[%s302 + $0x208] sm:$0xff] %v1557
        %2576 = vst [vmem:[%s302 + $0x210] sm:$0xff] %v1559
        %2577 = vst [vmem:[%s302 + $0x218] sm:$0xff] %v1930
        %2578 = vst [vmem:[%s302 + $0x220] sm:$0xff] %v1932
        %2579 = vst.msk [vmem:[%s302 + $0x228] sm:$0xff] %vm2513, %v2290
        %2580 = vst [vmem:[%s302 + $0x230] sm:$0xff] %v1563
        %2581 = vst [vmem:[%s302 + $0x238] sm:$0xff] %v1565
        %2582 = vst [vmem:[%s302 + $0x240] sm:$0xff] %v1936
        %2583 = vst [vmem:[%s302 + $0x248] sm:$0xff] %v1938
        %2584 = vst.msk [vmem:[%s302 + $0x250] sm:$0xff] %vm2513, %v2295
        %2585 = vst [vmem:[%s302 + $0x258] sm:$0xff] %v1567
        %2586 = vst [vmem:[%s302 + $0x260] sm:$0xff] %v1569
        %2587 = vst [vmem:[%s302 + $0x268] sm:$0xff] %v1940
        %2588 = vst [vmem:[%s302 + $0x270] sm:$0xff] %v1942
        %2589 = vst.msk [vmem:[%s302 + $0x278] sm:$0xff] %vm2513, %v2298
        %2590 = vst [vmem:[%s302 + $0x280] sm:$0xff] %v1573
        %2591 = vst [vmem:[%s302 + $0x288] sm:$0xff] %v1575
        %2592 = vst [vmem:[%s302 + $0x290] sm:$0xff] %v1946
        %2593 = vst [vmem:[%s302 + $0x298] sm:$0xff] %v1948
        %2594 = vst.msk [vmem:[%s302 + $0x2a0] sm:$0xff] %vm2513, %v2303
        %2595 = vst [vmem:[%s302 + $0x2a8] sm:$0xff] %v1577
        %2596 = vst [vmem:[%s302 + $0x2b0] sm:$0xff] %v1579
        %2597 = vst [vmem:[%s302 + $0x2b8] sm:$0xff] %v1950
        %2598 = vst [vmem:[%s302 + $0x2c0] sm:$0xff] %v1952
        %2599 = vst.msk [vmem:[%s302 + $0x2c8] sm:$0xff] %vm2513, %v2306
        %2600 = vst [vmem:[%s302 + $0x2d0] sm:$0xff] %v1583
        %2601 = vst [vmem:[%s302 + $0x2d8] sm:$0xff] %v1585
        %2602 = vst [vmem:[%s302 + $0x2e0] sm:$0xff] %v1956
        %2603 = vst [vmem:[%s302 + $0x2e8] sm:$0xff] %v1958
        %2604 = vst.msk [vmem:[%s302 + $0x2f0] sm:$0xff] %vm2513, %v2311
        %2605 = vst [vmem:[%s302 + $0x2f8] sm:$0xff] %v1587
        %2606 = vst [vmem:[%s302 + $0x300] sm:$0xff] %v1589
        %2607 = vst [vmem:[%s302 + $0x308] sm:$0xff] %v1960
        %2608 = vst [vmem:[%s302 + $0x310] sm:$0xff] %v1962
        %2609 = vst.msk [vmem:[%s302 + $0x318] sm:$0xff] %vm2513, %v2314
        %2610 = vst [vmem:[%s302 + $0x320] sm:$0xff] %v1593
        %2611 = vst [vmem:[%s302 + $0x328] sm:$0xff] %v1595
        %2612 = vst [vmem:[%s302 + $0x330] sm:$0xff] %v1966
        %2613 = vst [vmem:[%s302 + $0x338] sm:$0xff] %v1968
        %2614 = vst.msk [vmem:[%s302 + $0x340] sm:$0xff] %vm2513, %v2319
        %2615 = vst [vmem:[%s302 + $0x348] sm:$0xff] %v1597
        %2616 = vst [vmem:[%s302 + $0x350] sm:$0xff] %v1599
        %2617 = vst [vmem:[%s302 + $0x358] sm:$0xff] %v1970
        %2618 = vst [vmem:[%s302 + $0x360] sm:$0xff] %v1972
        %2619 = vst.msk [vmem:[%s302 + $0x368] sm:$0xff] %vm2513, %v2322
        %2620 = vst [vmem:[%s302 + $0x370] sm:$0xff] %v1603
        %2621 = vst [vmem:[%s302 + $0x378] sm:$0xff] %v1605
        %2622 = vst [vmem:[%s302 + $0x380] sm:$0xff] %v1976
        %2623 = vst [vmem:[%s302 + $0x388] sm:$0xff] %v1978
        %2624 = vst.msk [vmem:[%s302 + $0x390] sm:$0xff] %vm2513, %v2327
        %2625 = vst [vmem:[%s302 + $0x398] sm:$0xff] %v1607
        %2626 = vst [vmem:[%s302 + $0x3a0] sm:$0xff] %v1609
        %2627 = vst [vmem:[%s302 + $0x3a8] sm:$0xff] %v1980
        %2628 = vst [vmem:[%s302 + $0x3b0] sm:$0xff] %v1982
        %2629 = vst.msk [vmem:[%s302 + $0x3b8] sm:$0xff] %vm2513, %v2330
        %2630 = vst [vmem:[%s302 + $0x3c0] sm:$0xff] %v1613
        %2631 = vst [vmem:[%s302 + $0x3c8] sm:$0xff] %v1615
        %2632 = vst [vmem:[%s302 + $0x3d0] sm:$0xff] %v1986
        %2633 = vst [vmem:[%s302 + $0x3d8] sm:$0xff] %v1988
        %2634 = vst.msk [vmem:[%s302 + $0x3e0] sm:$0xff] %vm2513, %v2335
        %2635 = vst [vmem:[%s302 + $0x3e8] sm:$0xff] %v1617
        %2636 = vst [vmem:[%s302 + $0x3f0] sm:$0xff] %v1619
        %2637 = vst [vmem:[%s302 + $0x3f8] sm:$0xff] %v1990
        %2638 = vst [vmem:[%s302 + $0x400] sm:$0xff] %v1992
        %2639 = vst.msk [vmem:[%s302 + $0x408] sm:$0xff] %vm2513, %v2338
        %2640 = vst [vmem:[%s302 + $0x410] sm:$0xff] %v1623
        %2641 = vst [vmem:[%s302 + $0x418] sm:$0xff] %v1625
        %2642 = vst [vmem:[%s302 + $0x420] sm:$0xff] %v1996
        %2643 = vst [vmem:[%s302 + $0x428] sm:$0xff] %v1998
        %2644 = vst.msk [vmem:[%s302 + $0x430] sm:$0xff] %vm2513, %v2343
        %2645 = vst [vmem:[%s302 + $0x438] sm:$0xff] %v1627
        %2646 = vst [vmem:[%s302 + $0x440] sm:$0xff] %v1629
        %2647 = vst [vmem:[%s302 + $0x448] sm:$0xff] %v2000
        %2648 = vst [vmem:[%s302 + $0x450] sm:$0xff] %v2002
        %2649 = vst.msk [vmem:[%s302 + $0x458] sm:$0xff] %vm2513, %v2346
        %2650 = vst [vmem:[%s302 + $0x460] sm:$0xff] %v1633
        %2651 = vst [vmem:[%s302 + $0x468] sm:$0xff] %v1635
        %2652 = vst [vmem:[%s302 + $0x470] sm:$0xff] %v2006
        %2653 = vst [vmem:[%s302 + $0x478] sm:$0xff] %v2008
        %2654 = vst.msk [vmem:[%s302 + $0x480] sm:$0xff] %vm2513, %v2351
        %2655 = vst [vmem:[%s302 + $0x488] sm:$0xff] %v1637
        %2656 = vst [vmem:[%s302 + $0x490] sm:$0xff] %v1639
        %2657 = vst [vmem:[%s302 + $0x498] sm:$0xff] %v2010
        %2658 = vst [vmem:[%s302 + $0x4a0] sm:$0xff] %v2012
        %2659 = vst.msk [vmem:[%s302 + $0x4a8] sm:$0xff] %vm2513, %v2354
        %2660 = vst [vmem:[%s302 + $0x4b0] sm:$0xff] %v1643
        %2661 = vst [vmem:[%s302 + $0x4b8] sm:$0xff] %v1645
        %2662 = vst [vmem:[%s302 + $0x4c0] sm:$0xff] %v2016
        %2663 = vst [vmem:[%s302 + $0x4c8] sm:$0xff] %v2018
        %2664 = vst.msk [vmem:[%s302 + $0x4d0] sm:$0xff] %vm2513, %v2359
        %2665 = vst [vmem:[%s302 + $0x4d8] sm:$0xff] %v1647
        %2666 = vst [vmem:[%s302 + $0x4e0] sm:$0xff] %v1649
        %2667 = vst [vmem:[%s302 + $0x4e8] sm:$0xff] %v2020
        %2668 = vst [vmem:[%s302 + $0x4f0] sm:$0xff] %v2022
        %2669 = vst.msk [vmem:[%s302 + $0x4f8] sm:$0xff] %vm2513, %v2362
        %2670 = vst [vmem:[%s302 + $0x500] sm:$0xff] %v1653
        %2671 = vst [vmem:[%s302 + $0x508] sm:$0xff] %v1655
        %2672 = vst [vmem:[%s302 + $0x510] sm:$0xff] %v2026
        %2673 = vst [vmem:[%s302 + $0x518] sm:$0xff] %v2028
        %2674 = vst.msk [vmem:[%s302 + $0x520] sm:$0xff] %vm2513, %v2367
        %2675 = vst [vmem:[%s302 + $0x528] sm:$0xff] %v1657
        %2676 = vst [vmem:[%s302 + $0x530] sm:$0xff] %v1659
        %2677 = vst [vmem:[%s302 + $0x538] sm:$0xff] %v2030
        %2678 = vst [vmem:[%s302 + $0x540] sm:$0xff] %v2032
        %2679 = vst.msk [vmem:[%s302 + $0x548] sm:$0xff] %vm2513, %v2370
        %2680 = vst [vmem:[%s302 + $0x550] sm:$0xff] %v1663
        %2681 = vst [vmem:[%s302 + $0x558] sm:$0xff] %v1665
        %2682 = vst [vmem:[%s302 + $0x560] sm:$0xff] %v2036
        %2683 = vst [vmem:[%s302 + $0x568] sm:$0xff] %v2038
        %2684 = vst.msk [vmem:[%s302 + $0x570] sm:$0xff] %vm2513, %v2375
        %2685 = vst [vmem:[%s302 + $0x578] sm:$0xff] %v1667
        %2686 = vst [vmem:[%s302 + $0x580] sm:$0xff] %v1669
        %2687 = vst [vmem:[%s302 + $0x588] sm:$0xff] %v2040
        %2688 = vst [vmem:[%s302 + $0x590] sm:$0xff] %v2042
        %2689 = vst.msk [vmem:[%s302 + $0x598] sm:$0xff] %vm2513, %v2378
        %2690 = vst [vmem:[%s302 + $0x5a0] sm:$0xff] %v1673
        %2691 = vst [vmem:[%s302 + $0x5a8] sm:$0xff] %v1675
        %2692 = vst [vmem:[%s302 + $0x5b0] sm:$0xff] %v2046
        %2693 = vst [vmem:[%s302 + $0x5b8] sm:$0xff] %v2048
        %2694 = vst.msk [vmem:[%s302 + $0x5c0] sm:$0xff] %vm2513, %v2383
        %2695 = vst [vmem:[%s302 + $0x5c8] sm:$0xff] %v1677
        %2696 = vst [vmem:[%s302 + $0x5d0] sm:$0xff] %v1679
        %2697 = vst [vmem:[%s302 + $0x5d8] sm:$0xff] %v2050
        %2698 = vst [vmem:[%s302 + $0x5e0] sm:$0xff] %v2052
        %2699 = vst.msk [vmem:[%s302 + $0x5e8] sm:$0xff] %vm2513, %v2386
        %2700 = vst [vmem:[%s302 + $0x5f0] sm:$0xff] %v1683
        %2701 = vst [vmem:[%s302 + $0x5f8] sm:$0xff] %v1685
        %2702 = vst [vmem:[%s302 + $0x600] sm:$0xff] %v2056
        %2703 = vst [vmem:[%s302 + $0x608] sm:$0xff] %v2058
        %2704 = vst.msk [vmem:[%s302 + $0x610] sm:$0xff] %vm2513, %v2391
        %2705 = vst [vmem:[%s302 + $0x618] sm:$0xff] %v1687
        %2706 = vst [vmem:[%s302 + $0x620] sm:$0xff] %v1689
        %2707 = vst [vmem:[%s302 + $0x628] sm:$0xff] %v2060
        %2708 = vst [vmem:[%s302 + $0x630] sm:$0xff] %v2062
        %2709 = vst.msk [vmem:[%s302 + $0x638] sm:$0xff] %vm2513, %v2394
        %2710 = vst [vmem:[%s302 + $0x640] sm:$0xff] %v1693
        %2711 = vst [vmem:[%s302 + $0x648] sm:$0xff] %v1695
        %2712 = vst [vmem:[%s302 + $0x650] sm:$0xff] %v2066
        %2713 = vst [vmem:[%s302 + $0x658] sm:$0xff] %v2068
        %2714 = vst.msk [vmem:[%s302 + $0x660] sm:$0xff] %vm2513, %v2399
        %2715 = vst [vmem:[%s302 + $0x668] sm:$0xff] %v1697
        %2716 = vst [vmem:[%s302 + $0x670] sm:$0xff] %v1699
        %2717 = vst [vmem:[%s302 + $0x678] sm:$0xff] %v2070
        %2718 = vst [vmem:[%s302 + $0x680] sm:$0xff] %v2072
        %2719 = vst.msk [vmem:[%s302 + $0x688] sm:$0xff] %vm2513, %v2402
        %2720 = vst [vmem:[%s302 + $0x690] sm:$0xff] %v1703
        %2721 = vst [vmem:[%s302 + $0x698] sm:$0xff] %v1705
        %2722 = vst [vmem:[%s302 + $0x6a0] sm:$0xff] %v2076
        %2723 = vst [vmem:[%s302 + $0x6a8] sm:$0xff] %v2078
        %2724 = vst.msk [vmem:[%s302 + $0x6b0] sm:$0xff] %vm2513, %v2407
        %2725 = vst [vmem:[%s302 + $0x6b8] sm:$0xff] %v1707
        %2726 = vst [vmem:[%s302 + $0x6c0] sm:$0xff] %v1709
        %2727 = vst [vmem:[%s302 + $0x6c8] sm:$0xff] %v2080
        %2728 = vst [vmem:[%s302 + $0x6d0] sm:$0xff] %v2082
        %2729 = vst.msk [vmem:[%s302 + $0x6d8] sm:$0xff] %vm2513, %v2410
        %2730 = vst [vmem:[%s302 + $0x6e0] sm:$0xff] %v1713
        %2731 = vst [vmem:[%s302 + $0x6e8] sm:$0xff] %v1715
        %2732 = vst [vmem:[%s302 + $0x6f0] sm:$0xff] %v2086
        %2733 = vst [vmem:[%s302 + $0x6f8] sm:$0xff] %v2088
        %2734 = vst.msk [vmem:[%s302 + $0x700] sm:$0xff] %vm2513, %v2415
        %2735 = vst [vmem:[%s302 + $0x708] sm:$0xff] %v1717
        %2736 = vst [vmem:[%s302 + $0x710] sm:$0xff] %v1719
        %2737 = vst [vmem:[%s302 + $0x718] sm:$0xff] %v2090
        %2738 = vst [vmem:[%s302 + $0x720] sm:$0xff] %v2092
        %2739 = vst.msk [vmem:[%s302 + $0x728] sm:$0xff] %vm2513, %v2418
        %2740 = vst [vmem:[%s302 + $0x730] sm:$0xff] %v1723
        %2741 = vst [vmem:[%s302 + $0x738] sm:$0xff] %v1725
        %2742 = vst [vmem:[%s302 + $0x740] sm:$0xff] %v2096
        %2743 = vst [vmem:[%s302 + $0x748] sm:$0xff] %v2098
        %2744 = vst.msk [vmem:[%s302 + $0x750] sm:$0xff] %vm2513, %v2423
        %2745 = vst [vmem:[%s302 + $0x758] sm:$0xff] %v1727
        %2746 = vst [vmem:[%s302 + $0x760] sm:$0xff] %v1729
        %2747 = vst [vmem:[%s302 + $0x768] sm:$0xff] %v2100
        %2748 = vst [vmem:[%s302 + $0x770] sm:$0xff] %v2102
        %2749 = vst.msk [vmem:[%s302 + $0x778] sm:$0xff] %vm2513, %v2426
        %2750 = vst [vmem:[%s302 + $0x780] sm:$0xff] %v1733
        %2751 = vst [vmem:[%s302 + $0x788] sm:$0xff] %v1735
        %2752 = vst [vmem:[%s302 + $0x790] sm:$0xff] %v2106
        %2753 = vst [vmem:[%s302 + $0x798] sm:$0xff] %v2108
        %2754 = vst.msk [vmem:[%s302 + $0x7a0] sm:$0xff] %vm2513, %v2431
        %2755 = vst [vmem:[%s302 + $0x7a8] sm:$0xff] %v1737
        %2756 = vst [vmem:[%s302 + $0x7b0] sm:$0xff] %v1739
        %2757 = vst [vmem:[%s302 + $0x7b8] sm:$0xff] %v2110
        %2758 = vst [vmem:[%s302 + $0x7c0] sm:$0xff] %v2112
        %2759 = vst.msk [vmem:[%s302 + $0x7c8] sm:$0xff] %vm2513, %v2434
        %2760 = vst [vmem:[%s302 + $0x7d0] sm:$0xff] %v1743
        %2761 = vst [vmem:[%s302 + $0x7d8] sm:$0xff] %v1745
        %2762 = vst [vmem:[%s302 + $0x7e0] sm:$0xff] %v2116
        %2763 = vst [vmem:[%s302 + $0x7e8] sm:$0xff] %v2118
        %2764 = vst.msk [vmem:[%s302 + $0x7f0] sm:$0xff] %vm2513, %v2439
        %2765 = vst [vmem:[%s302 + $0x7f8] sm:$0xff] %v1747
        %2766 = vst [vmem:[%s302 + $0x800] sm:$0xff] %v1749
        %2767 = vst [vmem:[%s302 + $0x808] sm:$0xff] %v2120
        %2768 = vst [vmem:[%s302 + $0x810] sm:$0xff] %v2122
        %2769 = vst.msk [vmem:[%s302 + $0x818] sm:$0xff] %vm2513, %v2442
        %2770 = vst [vmem:[%s302 + $0x820] sm:$0xff] %v1753
        %2771 = vst [vmem:[%s302 + $0x828] sm:$0xff] %v1755
        %2772 = vst [vmem:[%s302 + $0x830] sm:$0xff] %v2126
        %2773 = vst [vmem:[%s302 + $0x838] sm:$0xff] %v2128
        %2774 = vst.msk [vmem:[%s302 + $0x840] sm:$0xff] %vm2513, %v2447
        %2775 = vst [vmem:[%s302 + $0x848] sm:$0xff] %v1757
        %2776 = vst [vmem:[%s302 + $0x850] sm:$0xff] %v1759
        %2777 = vst [vmem:[%s302 + $0x858] sm:$0xff] %v2130
        %2778 = vst [vmem:[%s302 + $0x860] sm:$0xff] %v2132
        %2779 = vst.msk [vmem:[%s302 + $0x868] sm:$0xff] %vm2513, %v2450
        %2780 = vst [vmem:[%s302 + $0x870] sm:$0xff] %v1763
        %2781 = vst [vmem:[%s302 + $0x878] sm:$0xff] %v1765
        %2782 = vst [vmem:[%s302 + $0x880] sm:$0xff] %v2136
        %2783 = vst [vmem:[%s302 + $0x888] sm:$0xff] %v2138
        %2784 = vst.msk [vmem:[%s302 + $0x890] sm:$0xff] %vm2513, %v2455
        %2785 = vst [vmem:[%s302 + $0x898] sm:$0xff] %v1767
        %2786 = vst [vmem:[%s302 + $0x8a0] sm:$0xff] %v1769
        %2787 = vst [vmem:[%s302 + $0x8a8] sm:$0xff] %v2140
        %2788 = vst [vmem:[%s302 + $0x8b0] sm:$0xff] %v2142
        %2789 = vst.msk [vmem:[%s302 + $0x8b8] sm:$0xff] %vm2513, %v2458
        %2790 = vst [vmem:[%s302 + $0x8c0] sm:$0xff] %v1773
        %2791 = vst [vmem:[%s302 + $0x8c8] sm:$0xff] %v1775
        %2792 = vst [vmem:[%s302 + $0x8d0] sm:$0xff] %v2146
        %2793 = vst [vmem:[%s302 + $0x8d8] sm:$0xff] %v2148
        %2794 = vst.msk [vmem:[%s302 + $0x8e0] sm:$0xff] %vm2513, %v2463
        %2795 = vst [vmem:[%s302 + $0x8e8] sm:$0xff] %v1777
        %2796 = vst [vmem:[%s302 + $0x8f0] sm:$0xff] %v1779
        %2797 = vst [vmem:[%s302 + $0x8f8] sm:$0xff] %v2150
        %2798 = vst [vmem:[%s302 + $0x900] sm:$0xff] %v2152
        %2799 = vst.msk [vmem:[%s302 + $0x908] sm:$0xff] %vm2513, %v2466
        %2800 = vst [vmem:[%s302 + $0x910] sm:$0xff] %v1783
        %2801 = vst [vmem:[%s302 + $0x918] sm:$0xff] %v1785
        %2802 = vst [vmem:[%s302 + $0x920] sm:$0xff] %v2156
        %2803 = vst [vmem:[%s302 + $0x928] sm:$0xff] %v2158
        %2804 = vst.msk [vmem:[%s302 + $0x930] sm:$0xff] %vm2513, %v2471
        %2805 = vst [vmem:[%s302 + $0x938] sm:$0xff] %v1787
        %2806 = vst [vmem:[%s302 + $0x940] sm:$0xff] %v1789
        %2807 = vst [vmem:[%s302 + $0x948] sm:$0xff] %v2160
        %2808 = vst [vmem:[%s302 + $0x950] sm:$0xff] %v2162
        %2809 = vst.msk [vmem:[%s302 + $0x958] sm:$0xff] %vm2513, %v2474
        %2810 = vst [vmem:[%s302 + $0x960] sm:$0xff] %v1793
        %2811 = vst [vmem:[%s302 + $0x968] sm:$0xff] %v1795
        %2812 = vst [vmem:[%s302 + $0x970] sm:$0xff] %v2166
        %2813 = vst [vmem:[%s302 + $0x978] sm:$0xff] %v2168
        %2814 = vst.msk [vmem:[%s302 + $0x980] sm:$0xff] %vm2513, %v2479
        %2815 = vst [vmem:[%s302 + $0x988] sm:$0xff] %v1797
        %2816 = vst [vmem:[%s302 + $0x990] sm:$0xff] %v1799
        %2817 = vst [vmem:[%s302 + $0x998] sm:$0xff] %v2170
        %2818 = vst [vmem:[%s302 + $0x9a0] sm:$0xff] %v2172
        %2819 = vst.msk [vmem:[%s302 + $0x9a8] sm:$0xff] %vm2513, %v2482
        %2820 = vst [vmem:[%s302 + $0x9b0] sm:$0xff] %v1803
        %2821 = vst [vmem:[%s302 + $0x9b8] sm:$0xff] %v1805
        %2822 = vst [vmem:[%s302 + $0x9c0] sm:$0xff] %v2176
        %2823 = vst [vmem:[%s302 + $0x9c8] sm:$0xff] %v2178
        %2824 = vst.msk [vmem:[%s302 + $0x9d0] sm:$0xff] %vm2513, %v2487
        %2825 = vst [vmem:[%s302 + $0x9d8] sm:$0xff] %v1807
        %2826 = vst [vmem:[%s302 + $0x9e0] sm:$0xff] %v1809
        %2827 = vst [vmem:[%s302 + $0x9e8] sm:$0xff] %v2180
        %2828 = vst [vmem:[%s302 + $0x9f0] sm:$0xff] %v2182
        %2829 = vst.msk [vmem:[%s302 + $0x9f8] sm:$0xff] %vm2513, %v2490
        %2830 = vst [vmem:[%s302 + $0xa00] sm:$0xff] %v1813
        %2831 = vst [vmem:[%s302 + $0xa08] sm:$0xff] %v1815
        %2832 = vst [vmem:[%s302 + $0xa10] sm:$0xff] %v2186
        %2833 = vst [vmem:[%s302 + $0xa18] sm:$0xff] %v2188
        %2834 = vst.msk [vmem:[%s302 + $0xa20] sm:$0xff] %vm2513, %v2495
        %2835 = vst [vmem:[%s302 + $0xa28] sm:$0xff] %v1817
        %2836 = vst [vmem:[%s302 + $0xa30] sm:$0xff] %v1819
        %2837 = vst [vmem:[%s302 + $0xa38] sm:$0xff] %v2190
        %2838 = vst [vmem:[%s302 + $0xa40] sm:$0xff] %v2192
        %2839 = vst.msk [vmem:[%s302 + $0xa48] sm:$0xff] %vm2513, %v2498
        %2840 = vst [vmem:[%s302 + $0xa50] sm:$0xff] %v1823
        %2841 = vst [vmem:[%s302 + $0xa58] sm:$0xff] %v1825
        %2842 = vst [vmem:[%s302 + $0xa60] sm:$0xff] %v2196
        %2843 = vst [vmem:[%s302 + $0xa68] sm:$0xff] %v2198
        %2844 = vst.msk [vmem:[%s302 + $0xa70] sm:$0xff] %vm2513, %v2503
        %2845 = vst [vmem:[%s302 + $0xa78] sm:$0xff] %v1827
        %2846 = vst [vmem:[%s302 + $0xa80] sm:$0xff] %v1829
        %2847 = vst [vmem:[%s302 + $0xa88] sm:$0xff] %v2200
        %2848 = vst [vmem:[%s302 + $0xa90] sm:$0xff] %v2202
        %2849 = vst.msk [vmem:[%s302 + $0xa98] sm:$0xff] %vm2513, %v2506
        %s2850 = sand.u32 %s201, 1
        %s2851 = scalar_lea.sflag [#allocation4], %s2850
        %s2852 = sand.u32 %s201, 1
        %s2853 = smul.addr %s2852, 2720
        %s2854 = scalar_lea.vmem [#allocation3], %s2853
        // Predicated region
        $region49: #{model_forward.4} parent=47 // pred_check
          %p2855 = pneg %p211
        $region50: #{model_forward.4} parent=47 // pred_check_branch
          %2857 = sbr.rel (%p2855) target = $region52
        $region51: #{model_forward.4} parent=47 // pred_region
          %s2858 = smul.u32 68, %s27
          %s2860 = ssub.s32 43520, 43520
          %2861 = vsyncadd %s2851, %s2860
          %s2862 = smul.addr %s2858, 5
          %s2863 = smul.addr %s26, 340
          %s2864 = sadd.s32 %s2862, %s2863
          %s2865 = smul.addr %s2864, 128
          %s2866 = scalar_lea.hbm %s7, %s2865
          %s2867 = sshll.u32 %s2854, 4
          %s2868 = int_to_ptr.vmem [resolvable:$true] %s2867
          %2873 = dma.vmem_to_hbm [thread:$0]  %s2868, 43520, %s2866, %s2851, 640, 640, 40
        $region52: #{model_forward.4} parent=47 // pred_fallthru
          _
      $region48: #{model_forward.4} parent=5 // pred_fallthru
        _
      %p2874 = scmp.le.s32.totalorder 2, %s17
      // Predicated region
      $region53: #{model_forward.4} parent=5 // pred_check
        %p2875 = pneg %p2874
      $region54: #{model_forward.4} parent=5 // pred_check_branch
        %2877 = sbr.rel (%p2875) target = $region56
      $region55: #{model_forward.4} parent=5 // pred_region
        %s2878 = ssub.s32 %s17, 2
        // Predicated region
        $region57: #{model_forward.4} parent=55 // pred_check
          %p2879 = pneg %p217
        $region58: #{model_forward.4} parent=55 // pred_check_branch
          %2881 = sbr.rel (%p2879) target = $region60
        $region59: #{model_forward.4} parent=55 // pred_region
          %s2882 = sand.u32 %s202, 1
          %s2883 = scalar_lea.sflag [#allocation4], %s2882
          %s2884 = sand.u32 %s202, 1
          %s2885 = smul.addr %s2884, 2720
          %s2886 = scalar_lea.vmem [#allocation3], %s2885
          %2887 = dma.done %s2883, 43520
        $region60: #{model_forward.4} parent=55 // pred_fallthru
          _
      $region56: #{model_forward.4} parent=5 // pred_fallthru
        _
    $region6: #{model_forward.4} parent=1 // loop_footer
      %s21 = sadd.s32 1, %s17
    $region7: #{model_forward.4} parent=1 // loop_footer_branch
      %16 = sbr.rel target = $region3
    $region8: #{model_forward.4} parent=1 // loop_exit
      _
    %2888 = vsyncpa [#allocation4], 1
    %s2889 = scalar_lea.sflag [#allocation4], 1
    %2890 = vsyncpa %s2889, 1

// kernel: model_forward.5
$region0: #{model_forward.5}
  #allocation0 [shape = 'u32[]', space=smem, size = 0x4, offset = 0x4, fixed_abs, tag = 'smem constant byte address 0x4 - core index']
  #allocation1 [shape = 'u32[144,128]{1,0:T(1,128)}', space=vmem, size = 0x12000, scoped, tag = 'internal scratch']
  #allocation2 [shape = 'f32[1]{0:T(128)S(6)}', space=smem, size = 0x200, scoped, tag = 'scoped memory for model_forward.5']
  %s0 = inlined_call_operand.vmem [shape: f32[2,1024,64], index: 0, kind: input, shape index: {}]
  %s1 = inlined_call_operand.vmem [shape: bf16[64,1024], index: 1, kind: input, shape index: {}]
  %s2 = inlined_call_operand.vmem [shape: f32[64,1], index: 2, kind: input, shape index: {}]
  %s3 = inlined_call_operand.vmem [shape: f32[9,64], index: 3, kind: input, shape index: {}]
  %s4 = inlined_call_operand.vmem [shape: bf16[544,64], index: 4, kind: input, shape index: {}]
  %s5 = inlined_call_operand.vmem [shape: bf16[64,544], index: 5, kind: input, shape index: {}]
  %s6 = inlined_call_operand.<no memory space> [shape: f32[1], index: 6, kind: input, shape index: {}]
  %s7 = inlined_call_operand.hbm [shape: f32[2,544,544], index: 7, kind: output, shape index: {}]
  %s8 = sld [smem:[#allocation0]]
  $region61: #{model_forward.5} parent=0
    _
  %s10 = ssub.s32 1, %s8
  %s11 = scalar_select 0, %s10, %s8
  %12 = sst [smem:[#allocation2]] %s6
  $region1: #{model_forward.5} parent=0
    #allocation3 [shape = 'u8[2785280]{0}', space=vmem, size = 0x2a8000, scoped, tag = 'output window, operand 0']
    #allocation4 [shape = 's32[2]{0}', space=sflag, size = 0x8, scoped, tag = 'scoped memory for model_forward.5']
    %13 = vsyncpa [#allocation4], 0
    %s14 = scalar_lea.sflag [#allocation4], 1
    %15 = vsyncpa %s14, 0
    loop: start=0, step=1, limit=4
    $region2: #{model_forward.5} parent=1 // loop_pre_header
      _
    $region3: #{model_forward.5} parent=1 // loop_header
      %s17 = sphi 0, %s21
      %p18 = scmp.ge.s32.totalorder %s17, 4
      %s24 = sphi 0, %s36
      %s25 = sphi 0, %s32
      %s26 = sphi 0, %s24
      %s27 = sphi 0, %s25
      %s28 = sphi 0, %s26
      %s29 = sphi 0, %s27
      %s39 = sphi 0, %s41
      %s42 = sphi 0, %s39
      %s43 = sphi 0, %s42
      %s59 = sphi 0, %s43
      %s63 = sphi 0, %s63
      %s65 = sphi 0, %s63
      %s66 = sphi 0, %s65
      %s80 = sphi 0, %s66
      %s84 = sphi 0, %s84
      %s86 = sphi 0, %s84
      %s87 = sphi 0, %s86
      %s101 = sphi 0, %s87
      %s105 = sphi 0, %s105
      %s107 = sphi 0, %s105
      %s108 = sphi 0, %s107
      %s122 = sphi 0, %s108
      %s128 = sphi 0, %s130
      %s131 = sphi 0, %s128
      %s132 = sphi 0, %s131
      %s148 = sphi 0, %s132
      %s152 = sphi 0, %s152
      %s154 = sphi 0, %s152
      %s155 = sphi 0, %s154
      %s169 = sphi 0, %s155
      %s173 = sphi 0, %s173
      %s175 = sphi 0, %s173
      %s176 = sphi 0, %s175
      %s190 = sphi 0, %s176
      %s198 = sphi 0, %s200
      %s201 = sphi 0, %s198
      %s202 = sphi 0, %s201
      %s218 = sphi 0, %s202
    $region4: #{model_forward.5} parent=1 // loop_header_branch
      %20 = sbr.rel (%p18) target = $region8
    $region5: #{model_forward.5} parent=1 // loop_body
      %s22 = ssub.s32 %s17, 1
      %s23 = ssub.s32 %s17, 2
      %s30 = sadd.s32 1, %s25
      %p31 = scmp.ge.s32.totalorder %s30, 1
      %s32 = scalar_select %p31, 0, %s30
      %s33 = sadd.s32 1, %s24
      %s34 = scalar_select %p31, %s33, %s24
      %p35 = scmp.ge.s32.totalorder %s34, 2
      %s36 = scalar_select %p35, 0, %s34
      %s37 = ssub.s32 %s24, %s36
      %p38 = scmp.eq.s32.totalorder %s37, 0
      %s40 = sadd.s32 %s39, 1
      %s41 = scalar_select %p38, %s39, %s40
      %p44 = pneg %p38
      %p45 = scmp.eq.s32.totalorder %s17, 1
      %p46 = por %p44, %p45
      %p47 = scmp.ne.s32.totalorder %s39, %s42
      %p48 = scmp.eq.s32.totalorder %s17, 0
      %p49 = por %p47, %p48
      %p50 = scmp.ne.s32.totalorder %s39, %s42
      %p51 = scmp.eq.s32.totalorder %s22, 1
      %p52 = por %p50, %p51
      %p53 = scmp.ne.s32.totalorder %s42, %s43
      %p54 = scmp.eq.s32.totalorder %s22, 0
      %p55 = por %p53, %p54
      %p56 = scmp.ne.s32.totalorder %s42, %s43
      %p57 = scmp.eq.s32.totalorder %s23, 1
      %p58 = por %p56, %p57
      %p60 = scmp.ne.s32.totalorder %s43, %s59
      %p61 = scmp.eq.s32.totalorder %s23, 0
      %p62 = por %p60, %p61
      %s64 = sadd.s32 %s63, 1
      %p67 = scmp.eq.s32.totalorder %s17, 1
      %p68 = scmp.ne.s32.totalorder %s63, %s65
      %p69 = scmp.eq.s32.totalorder %s17, 0
      %p70 = por %p68, %p69
      %p71 = scmp.ne.s32.totalorder %s63, %s65
      %p72 = scmp.eq.s32.totalorder %s22, 1
      %p73 = por %p71, %p72
      %p74 = scmp.ne.s32.totalorder %s65, %s66
      %p75 = scmp.eq.s32.totalorder %s22, 0
      %p76 = por %p74, %p75
      %p77 = scmp.ne.s32.totalorder %s65, %s66
      %p78 = scmp.eq.s32.totalorder %s23, 1
      %p79 = por %p77, %p78
      %p81 = scmp.ne.s32.totalorder %s66, %s80
      %p82 = scmp.eq.s32.totalorder %s23, 0
      %p83 = por %p81, %p82
      %s85 = sadd.s32 %s84, 1
      %p88 = scmp.eq.s32.totalorder %s17, 1
      %p89 = scmp.ne.s32.totalorder %s84, %s86
      %p90 = scmp.eq.s32.totalorder %s17, 0
      %p91 = por %p89, %p90
      %p92 = scmp.ne.s32.totalorder %s84, %s86
      %p93 = scmp.eq.s32.totalorder %s22, 1
      %p94 = por %p92, %p93
      %p95 = scmp.ne.s32.totalorder %s86, %s87
      %p96 = scmp.eq.s32.totalorder %s22, 0
      %p97 = por %p95, %p96
      %p98 = scmp.ne.s32.totalorder %s86, %s87
      %p99 = scmp.eq.s32.totalorder %s23, 1
      %p100 = por %p98, %p99
      %p102 = scmp.ne.s32.totalorder %s87, %s101
      %p103 = scmp.eq.s32.totalorder %s23, 0
      %p104 = por %p102, %p103
      %s106 = sadd.s32 %s105, 1
      %p109 = scmp.eq.s32.totalorder %s17, 1
      %p110 = scmp.ne.s32.totalorder %s105, %s107
      %p111 = scmp.eq.s32.totalorder %s17, 0
      %p112 = por %p110, %p111
      %p113 = scmp.ne.s32.totalorder %s105, %s107
      %p114 = scmp.eq.s32.totalorder %s22, 1
      %p115 = por %p113, %p114
      %p116 = scmp.ne.s32.totalorder %s107, %s108
      %p117 = scmp.eq.s32.totalorder %s22, 0
      %p118 = por %p116, %p117
      %p119 = scmp.ne.s32.totalorder %s107, %s108
      %p120 = scmp.eq.s32.totalorder %s23, 1
      %p121 = por %p119, %p120
      %p123 = scmp.ne.s32.totalorder %s108, %s122
      %p124 = scmp.eq.s32.totalorder %s23, 0
      %p125 = por %p123, %p124
      %s126 = ssub.s32 %s25, %s32
      %p127 = scmp.eq.s32.totalorder %s126, 0
      %s129 = sadd.s32 %s128, 1
      %s130 = scalar_select %p127, %s128, %s129
      %p133 = pneg %p127
      %p134 = scmp.eq.s32.totalorder %s17, 1
      %p135 = por %p133, %p134
      %p136 = scmp.ne.s32.totalorder %s128, %s131
      %p137 = scmp.eq.s32.totalorder %s17, 0
      %p138 = por %p136, %p137
      %p139 = scmp.ne.s32.totalorder %s128, %s131
      %p140 = scmp.eq.s32.totalorder %s22, 1
      %p141 = por %p139, %p140
      %p142 = scmp.ne.s32.totalorder %s131, %s132
      %p143 = scmp.eq.s32.totalorder %s22, 0
      %p144 = por %p142, %p143
      %p145 = scmp.ne.s32.totalorder %s131, %s132
      %p146 = scmp.eq.s32.totalorder %s23, 1
      %p147 = por %p145, %p146
      %p149 = scmp.ne.s32.totalorder %s132, %s148
      %p150 = scmp.eq.s32.totalorder %s23, 0
      %p151 = por %p149, %p150
      %s153 = sadd.s32 %s152, 1
      %p156 = scmp.eq.s32.totalorder %s17, 1
      %p157 = scmp.ne.s32.totalorder %s152, %s154
      %p158 = scmp.eq.s32.totalorder %s17, 0
      %p159 = por %p157, %p158
      %p160 = scmp.ne.s32.totalorder %s152, %s154
      %p161 = scmp.eq.s32.totalorder %s22, 1
      %p162 = por %p160, %p161
      %p163 = scmp.ne.s32.totalorder %s154, %s155
      %p164 = scmp.eq.s32.totalorder %s22, 0
      %p165 = por %p163, %p164
      %p166 = scmp.ne.s32.totalorder %s154, %s155
      %p167 = scmp.eq.s32.totalorder %s23, 1
      %p168 = por %p166, %p167
      %p170 = scmp.ne.s32.totalorder %s155, %s169
      %p171 = scmp.eq.s32.totalorder %s23, 0
      %p172 = por %p170, %p171
      %s174 = sadd.s32 %s173, 1
      %p177 = scmp.eq.s32.totalorder %s17, 1
      %p178 = scmp.ne.s32.totalorder %s173, %s175
      %p179 = scmp.eq.s32.totalorder %s17, 0
      %p180 = por %p178, %p179
      %p181 = scmp.ne.s32.totalorder %s173, %s175
      %p182 = scmp.eq.s32.totalorder %s22, 1
      %p183 = por %p181, %p182
      %p184 = scmp.ne.s32.totalorder %s175, %s176
      %p185 = scmp.eq.s32.totalorder %s22, 0
      %p186 = por %p184, %p185
      %p187 = scmp.ne.s32.totalorder %s175, %s176
      %p188 = scmp.eq.s32.totalorder %s23, 1
      %p189 = por %p187, %p188
      %p191 = scmp.ne.s32.totalorder %s176, %s190
      %p192 = scmp.eq.s32.totalorder %s23, 0
      %p193 = por %p191, %p192
      %s194 = ssub.s32 %s24, %s36
      %s195 = ssub.s32 %s25, %s32
      %s196 = sor.u32 %s194, %s195
      %p197 = scmp.eq.s32.totalorder %s196, 0
      %s199 = sadd.s32 %s198, 1
      %s200 = scalar_select %p197, %s198, %s199
      %p203 = pneg %p197
      %p204 = scmp.eq.s32.totalorder %s17, 1
      %p205 = por %p203, %p204
      %p206 = scmp.ne.s32.totalorder %s198, %s201
      %p207 = scmp.eq.s32.totalorder %s17, 0
      %p208 = por %p206, %p207
      %p209 = scmp.ne.s32.totalorder %s198, %s201
      %p210 = scmp.eq.s32.totalorder %s22, 1
      %p211 = por %p209, %p210
      %p212 = scmp.ne.s32.totalorder %s201, %s202
      %p213 = scmp.eq.s32.totalorder %s22, 0
      %p214 = por %p212, %p213
      %p215 = scmp.ne.s32.totalorder %s201, %s202
      %p216 = scmp.eq.s32.totalorder %s23, 1
      %p217 = por %p215, %p216
      %p219 = scmp.ne.s32.totalorder %s202, %s218
      %p220 = scmp.eq.s32.totalorder %s23, 0
      %p221 = por %p219, %p220
      %p222 = scmp.le.s32.totalorder 1, %s17
      %p223 = scmp.lt.s32.totalorder %s17, 3
      %p224 = pnand %p222, %p223
      %p225 = pneg %p224
      // Predicated region
      $region9: #{model_forward.5} parent=5 // pred_check
        _
      $region10: #{model_forward.5} parent=5 // pred_check_branch
        %227 = sbr.rel (%p224) target = $region12
      $region11: #{model_forward.5} parent=5 // pred_region
        %s228 = ssub.s32 %s17, 1
        // Predicated region
        $region13: #{model_forward.5} parent=11 // pred_check
          %p229 = pneg %p76
        $region14: #{model_forward.5} parent=11 // pred_check_branch
          %231 = sbr.rel (%p229) target = $region16
        $region15: #{model_forward.5} parent=11 // pred_region
          _
        $region16: #{model_forward.5} parent=11 // pred_fallthru
          _
        // Predicated region
        $region17: #{model_forward.5} parent=11 // pred_check
          %p232 = pneg %p97
        $region18: #{model_forward.5} parent=11 // pred_check_branch
          %234 = sbr.rel (%p232) target = $region20
        $region19: #{model_forward.5} parent=11 // pred_region
          _
        $region20: #{model_forward.5} parent=11 // pred_fallthru
          _
        // Predicated region
        $region21: #{model_forward.5} parent=11 // pred_check
          %p235 = pneg %p118
        $region22: #{model_forward.5} parent=11 // pred_check_branch
          %237 = sbr.rel (%p235) target = $region24
        $region23: #{model_forward.5} parent=11 // pred_region
          _
        $region24: #{model_forward.5} parent=11 // pred_fallthru
          _
        // Predicated region
        $region25: #{model_forward.5} parent=11 // pred_check
          %p238 = pneg %p144
        $region26: #{model_forward.5} parent=11 // pred_check_branch
          %240 = sbr.rel (%p238) target = $region28
        $region27: #{model_forward.5} parent=11 // pred_region
          %s241 = smul.u32 68, %s27
          %p242 = scmp.lt.s32.totalorder %s241, 67
          %s243 = scalar_select %p242, %s241, 67
          %s244 = smul.addr %s243, 4
          %s245 = scalar_lea.vmem %s4, %s244
          %s246 = smul.u32 68, %s27
        $region28: #{model_forward.5} parent=11 // pred_fallthru
          _
        // Predicated region
        $region29: #{model_forward.5} parent=11 // pred_check
          %p247 = pneg %p165
        $region30: #{model_forward.5} parent=11 // pred_check_branch
          %249 = sbr.rel (%p247) target = $region32
        $region31: #{model_forward.5} parent=11 // pred_region
          _
        $region32: #{model_forward.5} parent=11 // pred_fallthru
          _
        // Predicated region
        $region33: #{model_forward.5} parent=11 // pred_check
          %p250 = pneg %p186
        $region34: #{model_forward.5} parent=11 // pred_check_branch
          %252 = sbr.rel (%p250) target = $region36
        $region35: #{model_forward.5} parent=11 // pred_region
          _
        $region36: #{model_forward.5} parent=11 // pred_fallthru
          _
      $region12: #{model_forward.5} parent=5 // pred_fallthru
        _
      %p253 = scmp.lt.s32.totalorder %s17, 2
      // Predicated region
      $region37: #{model_forward.5} parent=5 // pred_check
        %p254 = pneg %p253
      $region38: #{model_forward.5} parent=5 // pred_check_branch
        %256 = sbr.rel (%p254) target = $region40
      $region39: #{model_forward.5} parent=5 // pred_region
        // Predicated region
        $region41: #{model_forward.5} parent=39 // pred_check
          %p257 = pneg %p49
        $region42: #{model_forward.5} parent=39 // pred_check_branch
          %259 = sbr.rel (%p257) target = $region44
        $region43: #{model_forward.5} parent=39 // pred_region
          %p260 = scmp.lt.s32.totalorder %s24, 1
          %s261 = scalar_select %p260, %s24, 1
          %s262 = smul.addr %s261, 128
          %s263 = smul.addr %s262, 8
          %s264 = scalar_lea.vmem %s0, %s263
        $region44: #{model_forward.5} parent=39 // pred_fallthru
          _
      $region40: #{model_forward.5} parent=5 // pred_fallthru
        _
      %p265 = scmp.le.s32.totalorder 1, %s17
      %p266 = scmp.lt.s32.totalorder %s17, 3
      %p267 = pnand %p265, %p266
      %p268 = pneg %p267
      // Predicated region
      $region45: #{model_forward.5} parent=5 // pred_check
        _
      $region46: #{model_forward.5} parent=5 // pred_check_branch
        %270 = sbr.rel (%p267) target = $region48
      $region47: #{model_forward.5} parent=5 // pred_region
        %s271 = ssub.s32 %s17, 1
        %p272 = scmp.lt.s32.totalorder %s26, 1
        %s273 = scalar_select %p272, %s26, 1
        %s274 = smul.addr %s273, 128
        %s275 = smul.addr %s274, 8
        %s276 = scalar_lea.vmem %s0, %s275
        %p277 = pneg %p55
        %p278 = pneg %p52
        %p279 = pneg %p76
        %p280 = pneg %p73
        %p281 = pneg %p97
        %p282 = pneg %p94
        %p283 = pneg %p118
        %p284 = pneg %p115
        %s285 = smul.u32 68, %s27
        %p286 = scmp.lt.s32.totalorder %s285, 67
        %s287 = scalar_select %p286, %s285, 67
        %s288 = smul.addr %s287, 4
        %s289 = scalar_lea.vmem %s4, %s288
        %p290 = pneg %p144
        %p291 = pneg %p141
        %p292 = pneg %p165
        %p293 = pneg %p162
        %p294 = pneg %p186
        %p295 = pneg %p183
        %p296 = pneg %p214
        %p297 = pneg %p211
        %s298 = sand.u32 %s201, 1
        %s299 = scalar_lea.sflag [#allocation4], %s298
        %s300 = sand.u32 %s201, 1
        %s301 = smul.addr %s300, 2720
        %s302 = scalar_lea.vmem [#allocation3], %s301
        %p303 = scmp.lt.s32.totalorder %s26, 1
        %s304 = scalar_select %p303, %s26, 1
        %s305 = smul.addr %s304, 128
        %s306 = smul.addr %s305, 8
        %s307 = scalar_lea.vmem %s0, %s306
        %s308 = smul.u32 68, %s27
        %p309 = scmp.lt.s32.totalorder %s308, 67
        %s310 = scalar_select %p309, %s308, 67
        %s311 = smul.addr %s310, 4
        %s312 = scalar_lea.vmem %s4, %s311
        %s313 = smul.u32 68, %s27
        %s314 = smul.u32 68, %s27
        %v316 = vld [vmem:[%s307] sm:$0xff]
        %v317 = vld [vmem:[%s307 + $0x8] sm:$0xff]
        %v318 = vld [vmem:[%s307 + $0x10] sm:$0xff]
        %v319 = vld [vmem:[%s307 + $0x18] sm:$0xff]
        %v320 = vld [vmem:[%s307 + $0x20] sm:$0xff]
        %v321 = vld [vmem:[%s307 + $0x28] sm:$0xff]
        %v322 = vld [vmem:[%s307 + $0x30] sm:$0xff]
        %v323 = vld [vmem:[%s307 + $0x38] sm:$0xff]
        %v324 = vld [vmem:[%s307 + $0x40] sm:$0xff]
        %v325 = vld [vmem:[%s307 + $0x48] sm:$0xff]
        %v326 = vld [vmem:[%s307 + $0x50] sm:$0xff]
        %v327 = vld [vmem:[%s307 + $0x58] sm:$0xff]
        %v328 = vld [vmem:[%s307 + $0x60] sm:$0xff]
        %v329 = vld [vmem:[%s307 + $0x68] sm:$0xff]
        %v330 = vld [vmem:[%s307 + $0x70] sm:$0xff]
        %v331 = vld [vmem:[%s307 + $0x78] sm:$0xff]
        %v332 = vld [vmem:[%s307 + $0x80] sm:$0xff]
        %v333 = vld [vmem:[%s307 + $0x88] sm:$0xff]
        %v334 = vld [vmem:[%s307 + $0x90] sm:$0xff]
        %v335 = vld [vmem:[%s307 + $0x98] sm:$0xff]
        %v336 = vld [vmem:[%s307 + $0xa0] sm:$0xff]
        %v337 = vld [vmem:[%s307 + $0xa8] sm:$0xff]
        %v338 = vld [vmem:[%s307 + $0xb0] sm:$0xff]
        %v339 = vld [vmem:[%s307 + $0xb8] sm:$0xff]
        %v340 = vld [vmem:[%s307 + $0xc0] sm:$0xff]
        %v341 = vld [vmem:[%s307 + $0xc8] sm:$0xff]
        %v342 = vld [vmem:[%s307 + $0xd0] sm:$0xff]
        %v343 = vld [vmem:[%s307 + $0xd8] sm:$0xff]
        %v344 = vld [vmem:[%s307 + $0xe0] sm:$0xff]
        %v345 = vld [vmem:[%s307 + $0xe8] sm:$0xff]
        %v346 = vld [vmem:[%s307 + $0xf0] sm:$0xff]
        %v347 = vld [vmem:[%s307 + $0xf8] sm:$0xff]
        %v348 = vld [vmem:[%s307 + $0x100] sm:$0xff]
        %v349 = vld [vmem:[%s307 + $0x108] sm:$0xff]
        %v350 = vld [vmem:[%s307 + $0x110] sm:$0xff]
        %v351 = vld [vmem:[%s307 + $0x118] sm:$0xff]
        %v352 = vld [vmem:[%s307 + $0x120] sm:$0xff]
        %v353 = vld [vmem:[%s307 + $0x128] sm:$0xff]
        %v354 = vld [vmem:[%s307 + $0x130] sm:$0xff]
        %v355 = vld [vmem:[%s307 + $0x138] sm:$0xff]
        %v356 = vld [vmem:[%s307 + $0x140] sm:$0xff]
        %v357 = vld [vmem:[%s307 + $0x148] sm:$0xff]
        %v358 = vld [vmem:[%s307 + $0x150] sm:$0xff]
        %v359 = vld [vmem:[%s307 + $0x158] sm:$0xff]
        %v360 = vld [vmem:[%s307 + $0x160] sm:$0xff]
        %v361 = vld [vmem:[%s307 + $0x168] sm:$0xff]
        %v362 = vld [vmem:[%s307 + $0x170] sm:$0xff]
        %v363 = vld [vmem:[%s307 + $0x178] sm:$0xff]
        %v364 = vld [vmem:[%s307 + $0x180] sm:$0xff]
        %v365 = vld [vmem:[%s307 + $0x188] sm:$0xff]
        %v366 = vld [vmem:[%s307 + $0x190] sm:$0xff]
        %v367 = vld [vmem:[%s307 + $0x198] sm:$0xff]
        %v368 = vld [vmem:[%s307 + $0x1a0] sm:$0xff]
        %v369 = vld [vmem:[%s307 + $0x1a8] sm:$0xff]
        %v370 = vld [vmem:[%s307 + $0x1b0] sm:$0xff]
        %v371 = vld [vmem:[%s307 + $0x1b8] sm:$0xff]
        %v372 = vld [vmem:[%s307 + $0x1c0] sm:$0xff]
        %v373 = vld [vmem:[%s307 + $0x1c8] sm:$0xff]
        %v374 = vld [vmem:[%s307 + $0x1d0] sm:$0xff]
        %v375 = vld [vmem:[%s307 + $0x1d8] sm:$0xff]
        %v376 = vld [vmem:[%s307 + $0x1e0] sm:$0xff]
        %v377 = vld [vmem:[%s307 + $0x1e8] sm:$0xff]
        %v378 = vld [vmem:[%s307 + $0x1f0] sm:$0xff]
        %v379 = vld [vmem:[%s307 + $0x1f8] sm:$0xff]
        %v380 = vld [vmem:[%s307 + $0x200] sm:$0xff]
        %v381 = vld [vmem:[%s307 + $0x208] sm:$0xff]
        %v382 = vld [vmem:[%s307 + $0x210] sm:$0xff]
        %v383 = vld [vmem:[%s307 + $0x218] sm:$0xff]
        %v384 = vld [vmem:[%s307 + $0x220] sm:$0xff]
        %v385 = vld [vmem:[%s307 + $0x228] sm:$0xff]
        %v386 = vld [vmem:[%s307 + $0x230] sm:$0xff]
        %v387 = vld [vmem:[%s307 + $0x238] sm:$0xff]
        %v388 = vld [vmem:[%s307 + $0x240] sm:$0xff]
        %v389 = vld [vmem:[%s307 + $0x248] sm:$0xff]
        %v390 = vld [vmem:[%s307 + $0x250] sm:$0xff]
        %v391 = vld [vmem:[%s307 + $0x258] sm:$0xff]
        %v392 = vld [vmem:[%s307 + $0x260] sm:$0xff]
        %v393 = vld [vmem:[%s307 + $0x268] sm:$0xff]
        %v394 = vld [vmem:[%s307 + $0x270] sm:$0xff]
        %v395 = vld [vmem:[%s307 + $0x278] sm:$0xff]
        %v396 = vld [vmem:[%s307 + $0x280] sm:$0xff]
        %v397 = vld [vmem:[%s307 + $0x288] sm:$0xff]
        %v398 = vld [vmem:[%s307 + $0x290] sm:$0xff]
        %v399 = vld [vmem:[%s307 + $0x298] sm:$0xff]
        %v400 = vld [vmem:[%s307 + $0x2a0] sm:$0xff]
        %v401 = vld [vmem:[%s307 + $0x2a8] sm:$0xff]
        %v402 = vld [vmem:[%s307 + $0x2b0] sm:$0xff]
        %v403 = vld [vmem:[%s307 + $0x2b8] sm:$0xff]
        %v404 = vld [vmem:[%s307 + $0x2c0] sm:$0xff]
        %v405 = vld [vmem:[%s307 + $0x2c8] sm:$0xff]
        %v406 = vld [vmem:[%s307 + $0x2d0] sm:$0xff]
        %v407 = vld [vmem:[%s307 + $0x2d8] sm:$0xff]
        %v408 = vld [vmem:[%s307 + $0x2e0] sm:$0xff]
        %v409 = vld [vmem:[%s307 + $0x2e8] sm:$0xff]
        %v410 = vld [vmem:[%s307 + $0x2f0] sm:$0xff]
        %v411 = vld [vmem:[%s307 + $0x2f8] sm:$0xff]
        %v412 = vld [vmem:[%s307 + $0x300] sm:$0xff]
        %v413 = vld [vmem:[%s307 + $0x308] sm:$0xff]
        %v414 = vld [vmem:[%s307 + $0x310] sm:$0xff]
        %v415 = vld [vmem:[%s307 + $0x318] sm:$0xff]
        %v416 = vld [vmem:[%s307 + $0x320] sm:$0xff]
        %v417 = vld [vmem:[%s307 + $0x328] sm:$0xff]
        %v418 = vld [vmem:[%s307 + $0x330] sm:$0xff]
        %v419 = vld [vmem:[%s307 + $0x338] sm:$0xff]
        %v420 = vld [vmem:[%s307 + $0x340] sm:$0xff]
        %v421 = vld [vmem:[%s307 + $0x348] sm:$0xff]
        %v422 = vld [vmem:[%s307 + $0x350] sm:$0xff]
        %v423 = vld [vmem:[%s307 + $0x358] sm:$0xff]
        %v424 = vld [vmem:[%s307 + $0x360] sm:$0xff]
        %v425 = vld [vmem:[%s307 + $0x368] sm:$0xff]
        %v426 = vld [vmem:[%s307 + $0x370] sm:$0xff]
        %v427 = vld [vmem:[%s307 + $0x378] sm:$0xff]
        %v428 = vld [vmem:[%s307 + $0x380] sm:$0xff]
        %v429 = vld [vmem:[%s307 + $0x388] sm:$0xff]
        %v430 = vld [vmem:[%s307 + $0x390] sm:$0xff]
        %v431 = vld [vmem:[%s307 + $0x398] sm:$0xff]
        %v432 = vld [vmem:[%s307 + $0x3a0] sm:$0xff]
        %v433 = vld [vmem:[%s307 + $0x3a8] sm:$0xff]
        %v434 = vld [vmem:[%s307 + $0x3b0] sm:$0xff]
        %v435 = vld [vmem:[%s307 + $0x3b8] sm:$0xff]
        %v436 = vld [vmem:[%s307 + $0x3c0] sm:$0xff]
        %v437 = vld [vmem:[%s307 + $0x3c8] sm:$0xff]
        %v438 = vld [vmem:[%s307 + $0x3d0] sm:$0xff]
        %v439 = vld [vmem:[%s307 + $0x3d8] sm:$0xff]
        %v440 = vld [vmem:[%s307 + $0x3e0] sm:$0xff]
        %v441 = vld [vmem:[%s307 + $0x3e8] sm:$0xff]
        %v442 = vld [vmem:[%s307 + $0x3f0] sm:$0xff]
        %v443 = vld [vmem:[%s307 + $0x3f8] sm:$0xff]
        %v444 = vpack.c.bf16 %v317, %v316
        %v445 = vpack.c.bf16 %v319, %v318
        %v446 = vpack.c.bf16 %v321, %v320
        %v447 = vpack.c.bf16 %v323, %v322
        %v448 = vpack.c.bf16 %v325, %v324
        %v449 = vpack.c.bf16 %v327, %v326
        %v450 = vpack.c.bf16 %v329, %v328
        %v451 = vpack.c.bf16 %v331, %v330
        %v452 = vpack.c.bf16 %v333, %v332
        %v453 = vpack.c.bf16 %v335, %v334
        %v454 = vpack.c.bf16 %v337, %v336
        %v455 = vpack.c.bf16 %v339, %v338
        %v456 = vpack.c.bf16 %v341, %v340
        %v457 = vpack.c.bf16 %v343, %v342
        %v458 = vpack.c.bf16 %v345, %v344
        %v459 = vpack.c.bf16 %v347, %v346
        %v460 = vpack.c.bf16 %v349, %v348
        %v461 = vpack.c.bf16 %v351, %v350
        %v462 = vpack.c.bf16 %v353, %v352
        %v463 = vpack.c.bf16 %v355, %v354
        %v464 = vpack.c.bf16 %v357, %v356
        %v465 = vpack.c.bf16 %v359, %v358
        %v466 = vpack.c.bf16 %v361, %v360
        %v467 = vpack.c.bf16 %v363, %v362
        %v468 = vpack.c.bf16 %v365, %v364
        %v469 = vpack.c.bf16 %v367, %v366
        %v470 = vpack.c.bf16 %v369, %v368
        %v471 = vpack.c.bf16 %v371, %v370
        %v472 = vpack.c.bf16 %v373, %v372
        %v473 = vpack.c.bf16 %v375, %v374
        %v474 = vpack.c.bf16 %v377, %v376
        %v475 = vpack.c.bf16 %v379, %v378
        %v476 = vpack.c.bf16 %v381, %v380
        %v477 = vpack.c.bf16 %v383, %v382
        %v478 = vpack.c.bf16 %v385, %v384
        %v479 = vpack.c.bf16 %v387, %v386
        %v480 = vpack.c.bf16 %v389, %v388
        %v481 = vpack.c.bf16 %v391, %v390
        %v482 = vpack.c.bf16 %v393, %v392
        %v483 = vpack.c.bf16 %v395, %v394
        %v484 = vpack.c.bf16 %v397, %v396
        %v485 = vpack.c.bf16 %v399, %v398
        %v486 = vpack.c.bf16 %v401, %v400
        %v487 = vpack.c.bf16 %v403, %v402
        %v488 = vpack.c.bf16 %v405, %v404
        %v489 = vpack.c.bf16 %v407, %v406
        %v490 = vpack.c.bf16 %v409, %v408
        %v491 = vpack.c.bf16 %v411, %v410
        %v492 = vpack.c.bf16 %v413, %v412
        %v493 = vpack.c.bf16 %v415, %v414
        %v494 = vpack.c.bf16 %v417, %v416
        %v495 = vpack.c.bf16 %v419, %v418
        %v496 = vpack.c.bf16 %v421, %v420
        %v497 = vpack.c.bf16 %v423, %v422
        %v498 = vpack.c.bf16 %v425, %v424
        %v499 = vpack.c.bf16 %v427, %v426
        %v500 = vpack.c.bf16 %v429, %v428
        %v501 = vpack.c.bf16 %v431, %v430
        %v502 = vpack.c.bf16 %v433, %v432
        %v503 = vpack.c.bf16 %v435, %v434
        %v504 = vpack.c.bf16 %v437, %v436
        %v505 = vpack.c.bf16 %v439, %v438
        %v506 = vpack.c.bf16 %v441, %v440
        %v507 = vpack.c.bf16 %v443, %v442
        %v508 = vld [vmem:[%s1] sm:$0xff]
        %v509 = vld [vmem:[%s1 + $0x8] sm:$0xff]
        %v510 = vld [vmem:[%s1 + $0x10] sm:$0xff]
        %v511 = vld [vmem:[%s1 + $0x18] sm:$0xff]
        %v512 = vld [vmem:[%s1 + $0x20] sm:$0xff]
        %v513 = vld [vmem:[%s1 + $0x28] sm:$0xff]
        %v514 = vld [vmem:[%s1 + $0x30] sm:$0xff]
        %v515 = vld [vmem:[%s1 + $0x38] sm:$0xff]
        %v516 = vld [vmem:[%s1 + $0x40] sm:$0xff]
        %v517 = vld [vmem:[%s1 + $0x48] sm:$0xff]
        %v518 = vld [vmem:[%s1 + $0x50] sm:$0xff]
        %v519 = vld [vmem:[%s1 + $0x58] sm:$0xff]
        %v520 = vld [vmem:[%s1 + $0x60] sm:$0xff]
        %v521 = vld [vmem:[%s1 + $0x68] sm:$0xff]
        %v522 = vld [vmem:[%s1 + $0x70] sm:$0xff]
        %v523 = vld [vmem:[%s1 + $0x78] sm:$0xff]
        %v524 = vld [vmem:[%s1 + $0x80] sm:$0xff]
        %v525 = vld [vmem:[%s1 + $0x88] sm:$0xff]
        %v526 = vld [vmem:[%s1 + $0x90] sm:$0xff]
        %v527 = vld [vmem:[%s1 + $0x98] sm:$0xff]
        %v528 = vld [vmem:[%s1 + $0xa0] sm:$0xff]
        %v529 = vld [vmem:[%s1 + $0xa8] sm:$0xff]
        %v530 = vld [vmem:[%s1 + $0xb0] sm:$0xff]
        %v531 = vld [vmem:[%s1 + $0xb8] sm:$0xff]
        %v532 = vld [vmem:[%s1 + $0xc0] sm:$0xff]
        %v533 = vld [vmem:[%s1 + $0xc8] sm:$0xff]
        %v534 = vld [vmem:[%s1 + $0xd0] sm:$0xff]
        %v535 = vld [vmem:[%s1 + $0xd8] sm:$0xff]
        %v536 = vld [vmem:[%s1 + $0xe0] sm:$0xff]
        %v537 = vld [vmem:[%s1 + $0xe8] sm:$0xff]
        %v538 = vld [vmem:[%s1 + $0xf0] sm:$0xff]
        %v539 = vld [vmem:[%s1 + $0xf8] sm:$0xff]
        %v540 = vld [vmem:[%s2] sm:$0xff]
        %v541 = vld [vmem:[%s2 + $0x8] sm:$0xff]
        %v542 = vld [vmem:[%s2 + $0x10] sm:$0xff]
        %v543 = vld [vmem:[%s2 + $0x18] sm:$0xff]
        %v544 = vld [vmem:[%s2 + $0x20] sm:$0xff]
        %v545 = vld [vmem:[%s2 + $0x28] sm:$0xff]
        %v546 = vld [vmem:[%s2 + $0x30] sm:$0xff]
        %v547 = vld [vmem:[%s2 + $0x38] sm:$0xff]
        %549 = vset.pattern.permute.xlu0 0
        %550 = vperm.xlu0 %549, %v540
        %v551 = vpop.permute.xlu0 %550
        %554 = vset.pattern.permute.xlu0 0
        %555 = vperm.xlu0 %554, %v541
        %v556 = vpop.permute.xlu0 %555
        %559 = vset.pattern.permute.xlu0 0
        %560 = vperm.xlu0 %559, %v542
        %v561 = vpop.permute.xlu0 %560
        %564 = vset.pattern.permute.xlu0 0
        %565 = vperm.xlu0 %564, %v543
        %v566 = vpop.permute.xlu0 %565
        %569 = vset.pattern.permute.xlu0 0
        %570 = vperm.xlu0 %569, %v544
        %v571 = vpop.permute.xlu0 %570
        %574 = vset.pattern.permute.xlu0 0
        %575 = vperm.xlu0 %574, %v545
        %v576 = vpop.permute.xlu0 %575
        %579 = vset.pattern.permute.xlu0 0
        %580 = vperm.xlu0 %579, %v546
        %v581 = vpop.permute.xlu0 %580
        %584 = vset.pattern.permute.xlu0 0
        %585 = vperm.xlu0 %584, %v547
        %v586 = vpop.permute.xlu0 %585
        %v620 = vunpack.c.l.b16 %v508
        %v621 = vunpack.c.h.b16 %v508
        %v622 = vunpack.c.l.b16 %v509
        %v623 = vunpack.c.h.b16 %v509
        %v624 = vunpack.c.l.b16 %v510
        %v625 = vunpack.c.h.b16 %v510
        %v626 = vunpack.c.l.b16 %v511
        %v627 = vunpack.c.h.b16 %v511
        %v628 = vunpack.c.l.b16 %v512
        %v629 = vunpack.c.h.b16 %v512
        %v630 = vunpack.c.l.b16 %v513
        %v631 = vunpack.c.h.b16 %v513
        %v632 = vunpack.c.l.b16 %v514
        %v633 = vunpack.c.h.b16 %v514
        %v634 = vunpack.c.l.b16 %v515
        %v635 = vunpack.c.h.b16 %v515
        %v636 = vunpack.c.l.b16 %v516
        %v637 = vunpack.c.h.b16 %v516
        %v638 = vunpack.c.l.b16 %v517
        %v639 = vunpack.c.h.b16 %v517
        %v640 = vunpack.c.l.b16 %v518
        %v641 = vunpack.c.h.b16 %v518
        %v642 = vunpack.c.l.b16 %v519
        %v643 = vunpack.c.h.b16 %v519
        %v644 = vunpack.c.l.b16 %v520
        %v645 = vunpack.c.h.b16 %v520
        %v646 = vunpack.c.l.b16 %v521
        %v647 = vunpack.c.h.b16 %v521
        %v648 = vunpack.c.l.b16 %v522
        %v649 = vunpack.c.h.b16 %v522
        %v650 = vunpack.c.l.b16 %v523
        %v651 = vunpack.c.h.b16 %v523
        %v652 = vunpack.c.l.b16 %v524
        %v653 = vunpack.c.h.b16 %v524
        %v654 = vunpack.c.l.b16 %v525
        %v655 = vunpack.c.h.b16 %v525
        %v656 = vunpack.c.l.b16 %v526
        %v657 = vunpack.c.h.b16 %v526
        %v658 = vunpack.c.l.b16 %v527
        %v659 = vunpack.c.h.b16 %v527
        %v660 = vunpack.c.l.b16 %v528
        %v661 = vunpack.c.h.b16 %v528
        %v662 = vunpack.c.l.b16 %v529
        %v663 = vunpack.c.h.b16 %v529
        %v664 = vunpack.c.l.b16 %v530
        %v665 = vunpack.c.h.b16 %v530
        %v666 = vunpack.c.l.b16 %v531
        %v667 = vunpack.c.h.b16 %v531
        %v668 = vunpack.c.l.b16 %v532
        %v669 = vunpack.c.h.b16 %v532
        %v670 = vunpack.c.l.b16 %v533
        %v671 = vunpack.c.h.b16 %v533
        %v672 = vunpack.c.l.b16 %v534
        %v673 = vunpack.c.h.b16 %v534
        %v674 = vunpack.c.l.b16 %v535
        %v675 = vunpack.c.h.b16 %v535
        %v676 = vunpack.c.l.b16 %v536
        %v677 = vunpack.c.h.b16 %v536
        %v678 = vunpack.c.l.b16 %v537
        %v679 = vunpack.c.h.b16 %v537
        %v680 = vunpack.c.l.b16 %v538
        %v681 = vunpack.c.h.b16 %v538
        %v682 = vunpack.c.l.b16 %v539
        %v683 = vunpack.c.h.b16 %v539
        %v684 = vpack.c.b16 %v628, %v620
        %v685 = vpack.c.b16 %v629, %v621
        %v686 = vpack.c.b16 %v630, %v622
        %v687 = vpack.c.b16 %v631, %v623
        %v688 = vpack.c.b16 %v632, %v624
        %v689 = vpack.c.b16 %v633, %v625
        %v690 = vpack.c.b16 %v634, %v626
        %v691 = vpack.c.b16 %v635, %v627
        %v692 = vpack.c.b16 %v644, %v636
        %v693 = vpack.c.b16 %v645, %v637
        %v694 = vpack.c.b16 %v646, %v638
        %v695 = vpack.c.b16 %v647, %v639
        %v696 = vpack.c.b16 %v648, %v640
        %v697 = vpack.c.b16 %v649, %v641
        %v698 = vpack.c.b16 %v650, %v642
        %v699 = vpack.c.b16 %v651, %v643
        %v700 = vpack.c.b16 %v660, %v652
        %v701 = vpack.c.b16 %v661, %v653
        %v702 = vpack.c.b16 %v662, %v654
        %v703 = vpack.c.b16 %v663, %v655
        %v704 = vpack.c.b16 %v664, %v656
        %v705 = vpack.c.b16 %v665, %v657
        %v706 = vpack.c.b16 %v666, %v658
        %v707 = vpack.c.b16 %v667, %v659
        %v708 = vpack.c.b16 %v676, %v668
        %v709 = vpack.c.b16 %v677, %v669
        %v710 = vpack.c.b16 %v678, %v670
        %v711 = vpack.c.b16 %v679, %v671
        %v712 = vpack.c.b16 %v680, %v672
        %v713 = vpack.c.b16 %v681, %v673
        %v714 = vpack.c.b16 %v682, %v674
        %v715 = vpack.c.b16 %v683, %v675
        %748 = vmatprep.subr.bf16.mxu0 0
        %749 = vmatpush1.bf16.msra.mxu0 %v451
        %750 = vmatprep.subr.bf16.mxu0 0
        %751 = vmatpush1.bf16.msra.mxu0 %v450
        %752 = vmatprep.subr.bf16.mxu0 0
        %753 = vmatpush1.bf16.msra.mxu0 %v449
        %754 = vmatprep.subr.bf16.mxu0 0
        %755 = vmatpush1.bf16.msra.mxu0 %v448
        %756 = vmatprep.subr.bf16.mxu0 0
        %757 = vmatpush1.bf16.msra.mxu0 %v447
        %758 = vmatprep.subr.bf16.mxu0 0
        %759 = vmatpush1.bf16.msra.mxu0 %v446
        %760 = vmatprep.subr.bf16.mxu0 0
        %761 = vmatpush1.bf16.msra.mxu0 %v445
        %762 = vmatprep.subr.bf16.mxu0 0
        %763 = vmatpush1.bf16.msra.mxu0 %v444
        %764 = vmatprep.subr.bf16.mxu0 0
        %765 = vmatpush2.bf16.msra.mxu0 %v459
        %766 = vmatprep.subr.bf16.mxu0 0
        %767 = vmatpush2.bf16.msra.mxu0 %v458
        %768 = vmatprep.subr.bf16.mxu0 0
        %769 = vmatpush2.bf16.msra.mxu0 %v457
        %770 = vmatprep.subr.bf16.mxu0 0
        %771 = vmatpush2.bf16.msra.mxu0 %v456
        %772 = vmatprep.subr.bf16.mxu0 0
        %773 = vmatpush2.bf16.msra.mxu0 %v455
        %774 = vmatprep.subr.bf16.mxu0 0
        %775 = vmatpush2.bf16.msra.mxu0 %v454
        %776 = vmatprep.subr.bf16.mxu0 0
        %777 = vmatpush2.bf16.msra.mxu0 %v453
        %778 = vmatprep.subr.bf16.mxu0 0
        %779 = vmatpush2.bf16.msra.mxu0 %v452
        %780 = vmatprep.mubr.bf16.mxu0 %v685
        %781 = vmatmul.mubr.bf16.gmra.mxu0 %v684
        %v782 = vpop.f32.mrf.mxu0
        %v783 = vadd.f32 %v551, %v782
        %v784 = vpop.f32.mrf.mxu0
        %v785 = vpop.f32.mrf.mxu0
        %v786 = vadd.f32 %v556, %v785
        %v787 = vpop.f32.mrf.mxu0
        %788 = vmatprep.mubr.bf16.mxu0 %v693
        %789 = vmatmul.mubr.bf16.gmra.mxu0 %v692
        %v790 = vpop.f32.mrf.mxu0
        %v791 = vadd.f32 %v561, %v790
        %v792 = vpop.f32.mrf.mxu0
        %v793 = vpop.f32.mrf.mxu0
        %v794 = vadd.f32 %v566, %v793
        %v795 = vpop.f32.mrf.mxu0
        %796 = vmatprep.mubr.bf16.mxu0 %v701
        %797 = vmatmul.mubr.bf16.gmra.mxu0 %v700
        %v798 = vpop.f32.mrf.mxu0
        %v799 = vadd.f32 %v571, %v798
        %v800 = vpop.f32.mrf.mxu0
        %v801 = vpop.f32.mrf.mxu0
        %v802 = vadd.f32 %v576, %v801
        %v803 = vpop.f32.mrf.mxu0
        %804 = vmatprep.mubr.bf16.mxu0 %v709
        %805 = vmatmul.mubr.bf16.gmra.mxu0 %v708
        %v806 = vpop.f32.mrf.mxu0
        %v807 = vadd.f32 %v581, %v806
        %v808 = vpop.f32.mrf.mxu0
        %v809 = vpop.f32.mrf.mxu0
        %v810 = vadd.f32 %v586, %v809
        %v811 = vpop.f32.mrf.mxu0
        %812 = vdwg.mxu0
        %813 = vmatprep.subr.bf16.mxu0 0
        %814 = vmatpush1.bf16.msra.mxu0 %v467
        %815 = vmatprep.subr.bf16.mxu0 0
        %816 = vmatpush1.bf16.msra.mxu0 %v466
        %817 = vmatprep.subr.bf16.mxu0 0
        %818 = vmatpush1.bf16.msra.mxu0 %v465
        %819 = vmatprep.subr.bf16.mxu0 0
        %820 = vmatpush1.bf16.msra.mxu0 %v464
        %821 = vmatprep.subr.bf16.mxu0 0
        %822 = vmatpush1.bf16.msra.mxu0 %v463
        %823 = vmatprep.subr.bf16.mxu0 0
        %824 = vmatpush1.bf16.msra.mxu0 %v462
        %825 = vmatprep.subr.bf16.mxu0 0
        %826 = vmatpush1.bf16.msra.mxu0 %v461
        %827 = vmatprep.subr.bf16.mxu0 0
        %828 = vmatpush1.bf16.msra.mxu0 %v460
        %829 = vmatprep.subr.bf16.mxu0 0
        %830 = vmatpush2.bf16.msra.mxu0 %v475
        %831 = vmatprep.subr.bf16.mxu0 0
        %832 = vmatpush2.bf16.msra.mxu0 %v474
        %833 = vmatprep.subr.bf16.mxu0 0
        %834 = vmatpush2.bf16.msra.mxu0 %v473
        %835 = vmatprep.subr.bf16.mxu0 0
        %836 = vmatpush2.bf16.msra.mxu0 %v472
        %837 = vmatprep.subr.bf16.mxu0 0
        %838 = vmatpush2.bf16.msra.mxu0 %v471
        %839 = vmatprep.subr.bf16.mxu0 0
        %840 = vmatpush2.bf16.msra.mxu0 %v470
        %841 = vmatprep.subr.bf16.mxu0 0
        %842 = vmatpush2.bf16.msra.mxu0 %v469
        %843 = vmatprep.subr.bf16.mxu0 0
        %844 = vmatpush2.bf16.msra.mxu0 %v468
        %845 = vmatprep.mubr.bf16.mxu0 %v687
        %846 = vmatmul.mubr.bf16.gmra.mxu0 %v686
        %v847 = vpop.f32.mrf.mxu0
        %v848 = vadd.f32 %v783, %v847
        %v849 = vpop.f32.mrf.mxu0
        %v850 = vpop.f32.mrf.mxu0
        %v851 = vadd.f32 %v786, %v850
        %v852 = vpop.f32.mrf.mxu0
        %853 = vmatprep.mubr.bf16.mxu0 %v695
        %854 = vmatmul.mubr.bf16.gmra.mxu0 %v694
        %v855 = vpop.f32.mrf.mxu0
        %v856 = vadd.f32 %v791, %v855
        %v857 = vpop.f32.mrf.mxu0
        %v858 = vpop.f32.mrf.mxu0
        %v859 = vadd.f32 %v794, %v858
        %v860 = vpop.f32.mrf.mxu0
        %861 = vmatprep.mubr.bf16.mxu0 %v703
        %862 = vmatmul.mubr.bf16.gmra.mxu0 %v702
        %v863 = vpop.f32.mrf.mxu0
        %v864 = vadd.f32 %v799, %v863
        %v865 = vpop.f32.mrf.mxu0
        %v866 = vpop.f32.mrf.mxu0
        %v867 = vadd.f32 %v802, %v866
        %v868 = vpop.f32.mrf.mxu0
        %869 = vmatprep.mubr.bf16.mxu0 %v711
        %870 = vmatmul.mubr.bf16.gmra.mxu0 %v710
        %v871 = vpop.f32.mrf.mxu0
        %v872 = vadd.f32 %v807, %v871
        %v873 = vpop.f32.mrf.mxu0
        %v874 = vpop.f32.mrf.mxu0
        %v875 = vadd.f32 %v810, %v874
        %v876 = vpop.f32.mrf.mxu0
        %877 = vdwg.mxu0
        %878 = vmatprep.subr.bf16.mxu0 0
        %879 = vmatpush1.bf16.msra.mxu0 %v483
        %880 = vmatprep.subr.bf16.mxu0 0
        %881 = vmatpush1.bf16.msra.mxu0 %v482
        %882 = vmatprep.subr.bf16.mxu0 0
        %883 = vmatpush1.bf16.msra.mxu0 %v481
        %884 = vmatprep.subr.bf16.mxu0 0
        %885 = vmatpush1.bf16.msra.mxu0 %v480
        %886 = vmatprep.subr.bf16.mxu0 0
        %887 = vmatpush1.bf16.msra.mxu0 %v479
        %888 = vmatprep.subr.bf16.mxu0 0
        %889 = vmatpush1.bf16.msra.mxu0 %v478
        %890 = vmatprep.subr.bf16.mxu0 0
        %891 = vmatpush1.bf16.msra.mxu0 %v477
        %892 = vmatprep.subr.bf16.mxu0 0
        %893 = vmatpush1.bf16.msra.mxu0 %v476
        %894 = vmatprep.subr.bf16.mxu0 0
        %895 = vmatpush2.bf16.msra.mxu0 %v491
        %896 = vmatprep.subr.bf16.mxu0 0
        %897 = vmatpush2.bf16.msra.mxu0 %v490
        %898 = vmatprep.subr.bf16.mxu0 0
        %899 = vmatpush2.bf16.msra.mxu0 %v489
        %900 = vmatprep.subr.bf16.mxu0 0
        %901 = vmatpush2.bf16.msra.mxu0 %v488
        %902 = vmatprep.subr.bf16.mxu0 0
        %903 = vmatpush2.bf16.msra.mxu0 %v487
        %904 = vmatprep.subr.bf16.mxu0 0
        %905 = vmatpush2.bf16.msra.mxu0 %v486
        %906 = vmatprep.subr.bf16.mxu0 0
        %907 = vmatpush2.bf16.msra.mxu0 %v485
        %908 = vmatprep.subr.bf16.mxu0 0
        %909 = vmatpush2.bf16.msra.mxu0 %v484
        %910 = vmatprep.mubr.bf16.mxu0 %v689
        %911 = vmatmul.mubr.bf16.gmra.mxu0 %v688
        %v912 = vpop.f32.mrf.mxu0
        %v913 = vadd.f32 %v848, %v912
        %v914 = vpop.f32.mrf.mxu0
        %v915 = vpop.f32.mrf.mxu0
        %v916 = vadd.f32 %v851, %v915
        %v917 = vpop.f32.mrf.mxu0
        %918 = vmatprep.mubr.bf16.mxu0 %v697
        %919 = vmatmul.mubr.bf16.gmra.mxu0 %v696
        %v920 = vpop.f32.mrf.mxu0
        %v921 = vadd.f32 %v856, %v920
        %v922 = vpop.f32.mrf.mxu0
        %v923 = vpop.f32.mrf.mxu0
        %v924 = vadd.f32 %v859, %v923
        %v925 = vpop.f32.mrf.mxu0
        %926 = vmatprep.mubr.bf16.mxu0 %v705
        %927 = vmatmul.mubr.bf16.gmra.mxu0 %v704
        %v928 = vpop.f32.mrf.mxu0
        %v929 = vadd.f32 %v864, %v928
        %v930 = vpop.f32.mrf.mxu0
        %v931 = vpop.f32.mrf.mxu0
        %v932 = vadd.f32 %v867, %v931
        %v933 = vpop.f32.mrf.mxu0
        %934 = vmatprep.mubr.bf16.mxu0 %v713
        %935 = vmatmul.mubr.bf16.gmra.mxu0 %v712
        %v936 = vpop.f32.mrf.mxu0
        %v937 = vadd.f32 %v872, %v936
        %v938 = vpop.f32.mrf.mxu0
        %v939 = vpop.f32.mrf.mxu0
        %v940 = vadd.f32 %v875, %v939
        %v941 = vpop.f32.mrf.mxu0
        %942 = vdwg.mxu0
        %943 = vmatprep.subr.bf16.mxu0 0
        %944 = vmatpush1.bf16.msra.mxu0 %v499
        %945 = vmatprep.subr.bf16.mxu0 0
        %946 = vmatpush1.bf16.msra.mxu0 %v498
        %947 = vmatprep.subr.bf16.mxu0 0
        %948 = vmatpush1.bf16.msra.mxu0 %v497
        %949 = vmatprep.subr.bf16.mxu0 0
        %950 = vmatpush1.bf16.msra.mxu0 %v496
        %951 = vmatprep.subr.bf16.mxu0 0
        %952 = vmatpush1.bf16.msra.mxu0 %v495
        %953 = vmatprep.subr.bf16.mxu0 0
        %954 = vmatpush1.bf16.msra.mxu0 %v494
        %955 = vmatprep.subr.bf16.mxu0 0
        %956 = vmatpush1.bf16.msra.mxu0 %v493
        %957 = vmatprep.subr.bf16.mxu0 0
        %958 = vmatpush1.bf16.msra.mxu0 %v492
        %959 = vmatprep.subr.bf16.mxu0 0
        %960 = vmatpush2.bf16.msra.mxu0 %v507
        %961 = vmatprep.subr.bf16.mxu0 0
        %962 = vmatpush2.bf16.msra.mxu0 %v506
        %963 = vmatprep.subr.bf16.mxu0 0
        %964 = vmatpush2.bf16.msra.mxu0 %v505
        %965 = vmatprep.subr.bf16.mxu0 0
        %966 = vmatpush2.bf16.msra.mxu0 %v504
        %967 = vmatprep.subr.bf16.mxu0 0
        %968 = vmatpush2.bf16.msra.mxu0 %v503
        %969 = vmatprep.subr.bf16.mxu0 0
        %970 = vmatpush2.bf16.msra.mxu0 %v502
        %971 = vmatprep.subr.bf16.mxu0 0
        %972 = vmatpush2.bf16.msra.mxu0 %v501
        %973 = vmatprep.subr.bf16.mxu0 0
        %974 = vmatpush2.bf16.msra.mxu0 %v500
        %975 = vmatprep.mubr.bf16.mxu0 %v691
        %976 = vmatmul.mubr.bf16.gmra.mxu0 %v690
        %v977 = vpop.f32.mrf.mxu0
        %v978 = vadd.f32 %v913, %v977
        %v979 = vpop.f32.mrf.mxu0
        %v980 = vpop.f32.mrf.mxu0
        %v981 = vadd.f32 %v916, %v980
        %v982 = vpop.f32.mrf.mxu0
        %983 = vmatprep.mubr.bf16.mxu0 %v699
        %984 = vmatmul.mubr.bf16.gmra.mxu0 %v698
        %v985 = vpop.f32.mrf.mxu0
        %v986 = vadd.f32 %v921, %v985
        %v987 = vpop.f32.mrf.mxu0
        %v988 = vpop.f32.mrf.mxu0
        %v989 = vadd.f32 %v924, %v988
        %v990 = vpop.f32.mrf.mxu0
        %991 = vmatprep.mubr.bf16.mxu0 %v707
        %992 = vmatmul.mubr.bf16.gmra.mxu0 %v706
        %v993 = vpop.f32.mrf.mxu0
        %v994 = vadd.f32 %v929, %v993
        %v995 = vpop.f32.mrf.mxu0
        %v996 = vpop.f32.mrf.mxu0
        %v997 = vadd.f32 %v932, %v996
        %v998 = vpop.f32.mrf.mxu0
        %999 = vmatprep.mubr.bf16.mxu0 %v715
        %1000 = vmatmul.mubr.bf16.gmra.mxu0 %v714
        %v1001 = vpop.f32.mrf.mxu0
        %v1002 = vadd.f32 %v937, %v1001
        %v1003 = vpop.f32.mrf.mxu0
        %v1004 = vpop.f32.mrf.mxu0
        %v1005 = vadd.f32 %v940, %v1004
        %v1006 = vpop.f32.mrf.mxu0
        %1007 = vdwg.mxu0
        %v1008 = vmax.f32 %v978, 0.0
        %v1009 = vmax.f32 %v981, 0.0
        %v1010 = vmax.f32 %v986, 0.0
        %v1011 = vmax.f32 %v989, 0.0
        %v1012 = vmax.f32 %v994, 0.0
        %v1013 = vmax.f32 %v997, 0.0
        %v1014 = vmax.f32 %v1002, 0.0
        %v1015 = vmax.f32 %v1005, 0.0
        %v1016 = vld [vmem:[%s3] sm:$0xff]
        %v1017 = vld [vmem:[%s3 + $0x8] sm:$0x1]
        %vm1018 = vcmask 523264
        %v1020 = vsel %vm1018, %v1016, 0
        %v1023 = vsel %vm1018, %v1017, 0
        %1025 = vmatprep.subr.mxu0 0.0
        %1026 = vmatpush1.msra.mxu0 0.0
        %1027 = vmatprep.subr.mxu0 0.0
        %1028 = vmatpush1.msra.mxu0 0.0
        %1029 = vmatprep.subr.mxu0 0.0
        %1030 = vmatpush1.msra.mxu0 0.0
        %1031 = vmatprep.subr.mxu0 0.0
        %1032 = vmatpush1.msra.mxu0 0.0
        %1033 = vmatprep.subr.mxu0 0.0
        %1034 = vmatpush1.msra.mxu0 0.0
        %1035 = vmatprep.subr.mxu0 0.0
        %1036 = vmatpush1.msra.mxu0 0.0
        %1037 = vmatprep.subr.mxu0 0.0
        %1038 = vmatpush1.msra.mxu0 0.0
        %1039 = vmatprep.subr.mxu0 0.0
        %1040 = vmatpush1.msra.mxu0 0.0
        %1041 = vmatprep.subr.mxu0 0.0
        %1042 = vmatpush1.msra.mxu0 %v1015
        %1043 = vmatprep.subr.mxu0 0.0
        %1044 = vmatpush1.msra.mxu0 %v1014
        %1045 = vmatprep.subr.mxu0 0.0
        %1046 = vmatpush1.msra.mxu0 %v1013
        %1047 = vmatprep.subr.mxu0 0.0
        %1048 = vmatpush1.msra.mxu0 %v1012
        %1049 = vmatprep.subr.mxu0 0.0
        %1050 = vmatpush1.msra.mxu0 %v1011
        %1051 = vmatprep.subr.mxu0 0.0
        %1052 = vmatpush1.msra.mxu0 %v1010
        %1053 = vmatprep.subr.mxu0 0.0
        %1054 = vmatpush1.msra.mxu0 %v1009
        %1055 = vmatprep.subr.mxu0 0.0
        %1056 = vmatpush1.msra.mxu0 %v1008
        %1057 = vmatprep.subr.mxu0 0.0
        %1058 = vmatpush2.msra.mxu0 0.0
        %1059 = vmatprep.subr.mxu0 0.0
        %1060 = vmatpush2.msra.mxu0 0.0
        %1061 = vmatprep.subr.mxu0 0.0
        %1062 = vmatpush2.msra.mxu0 0.0
        %1063 = vmatprep.subr.mxu0 0.0
        %1064 = vmatpush2.msra.mxu0 0.0
        %1065 = vmatprep.subr.mxu0 0.0
        %1066 = vmatpush2.msra.mxu0 0.0
        %1067 = vmatprep.subr.mxu0 0.0
        %1068 = vmatpush2.msra.mxu0 0.0
        %1069 = vmatprep.subr.mxu0 0.0
        %1070 = vmatpush2.msra.mxu0 0.0
        %1071 = vmatprep.subr.mxu0 0.0
        %1072 = vmatpush2.msra.mxu0 0.0
        %1073 = vmatprep.subr.mxu0 0.0
        %1074 = vmatpush2.msra.mxu0 0.0
        %1075 = vmatprep.subr.mxu0 0.0
        %1076 = vmatpush2.msra.mxu0 0.0
        %1077 = vmatprep.subr.mxu0 0.0
        %1078 = vmatpush2.msra.mxu0 0.0
        %1079 = vmatprep.subr.mxu0 0.0
        %1080 = vmatpush2.msra.mxu0 0.0
        %1081 = vmatprep.subr.mxu0 0.0
        %1082 = vmatpush2.msra.mxu0 0.0
        %1083 = vmatprep.subr.mxu0 0.0
        %1084 = vmatpush2.msra.mxu0 0.0
        %1085 = vmatprep.subr.mxu0 0.0
        %1086 = vmatpush2.msra.mxu0 0.0
        %1087 = vmatprep.subr.mxu0 0.0
        %1088 = vmatpush2.msra.mxu0 0.0
        %1089 = vmatprep.mubr.f32.mxu0 0.0
        %1090 = vmatmul.mubr.f32.gmra.mxu0 %v1020
        %v1091 = vpop.f32.mrf.mxu0
        %v1092 = vadd.f32 0.0, %v1091
        %v1093 = vpop.f32.mrf.mxu0
        %1094 = vmatprep.mubr.f32.mxu0 0.0
        %1095 = vmatmul.mubr.f32.gmra.mxu0 %v1023
        %v1096 = vpop.f32.mrf.mxu0
        %v1097 = vadd.f32 0.0, %v1096
        %v1098 = vpop.f32.mrf.mxu0
        %1099 = vdwg.mxu0
        %v1100 = vlaneseq
        %v1101 = vand.u32 %v1100, 127
        %v1102 = vand.u32 %v1101, 7
        %vm1103 = vcmp.ge.s32.totalorder %v1101, 8
        %vm1104 = vcmp.lt.s32.totalorder %v1101, 56
        %vm1105 = vcmp.ge.s32.totalorder %v1102, 1
        %vm1106 = vcmp.lt.s32.totalorder %v1102, 7
        %vm1107 = vcmask 1048064
        %1108 = vrot.lane.b32.xlu0 %v1092, 64
        %v1109 = vpop.permute.xlu0 %1108
        %v1110 = vsel %vm1107, %v1109, %v1092
        %1111 = vrot.lane.b32.xlu0 %v1110, 64
        %v1112 = vpop.permute.xlu0 %1111
        %v1113 = vsel %vm1107, %v1112, %v1092
        %vm1114 = vmand %vm1103, %vm1105
        %1116 = vrot.lane.b32.xlu0 %v1113, 73
        %v1117 = vpop.permute.xlu0 %1116
        %v1119 = vsel %vm1114, %v1117, 0.0
        %v1120 = vadd.f32 %v1119, 0.0
        %v1122 = vrot.slane %v1092, 1
        %1124 = vrot.lane.b32.xlu0 %v1122, 64
        %v1125 = vpop.permute.xlu0 %1124
        %v1126 = vsel %vm1107, %v1125, %v1122
        %1127 = vrot.lane.b32.xlu0 %v1126, 64
        %v1128 = vpop.permute.xlu0 %1127
        %v1129 = vsel %vm1107, %v1128, %v1122
        %1131 = vrot.lane.b32.xlu0 %v1129, 72
        %v1132 = vpop.permute.xlu0 %1131
        %v1134 = vsel %vm1103, %v1132, 0.0
        %v1135 = vadd.f32 %v1120, %v1134
        %v1136 = vrot.slane %v1092, 2
        %1138 = vrot.lane.b32.xlu0 %v1136, 64
        %v1139 = vpop.permute.xlu0 %1138
        %v1140 = vsel %vm1107, %v1139, %v1136
        %1141 = vrot.lane.b32.xlu0 %v1140, 64
        %v1142 = vpop.permute.xlu0 %1141
        %v1143 = vsel %vm1107, %v1142, %v1136
        %vm1144 = vmand %vm1103, %vm1106
        %1146 = vrot.lane.b32.xlu0 %v1143, 71
        %v1147 = vpop.permute.xlu0 %1146
        %v1149 = vsel %vm1144, %v1147, 0.0
        %v1150 = vadd.f32 %v1135, %v1149
        %v1151 = vrot.slane %v1092, 3
        %1153 = vrot.lane.b32.xlu0 %v1151, 64
        %v1154 = vpop.permute.xlu0 %1153
        %v1155 = vsel %vm1107, %v1154, %v1151
        %1156 = vrot.lane.b32.xlu0 %v1155, 64
        %v1157 = vpop.permute.xlu0 %1156
        %v1158 = vsel %vm1107, %v1157, %v1151
        %1160 = vrot.lane.b32.xlu0 %v1158, 65
        %v1161 = vpop.permute.xlu0 %1160
        %v1163 = vsel %vm1105, %v1161, 0.0
        %v1164 = vadd.f32 %v1150, %v1163
        %v1165 = vrot.slane %v1092, 4
        %v1167 = vadd.f32 %v1164, %v1165
        %v1168 = vrot.slane %v1092, 5
        %1170 = vrot.lane.b32.xlu0 %v1168, 64
        %v1171 = vpop.permute.xlu0 %1170
        %v1172 = vsel %vm1107, %v1171, %v1168
        %1173 = vrot.lane.b32.xlu0 %v1172, 64
        %v1174 = vpop.permute.xlu0 %1173
        %v1175 = vsel %vm1107, %v1174, %v1168
        %1177 = vrot.lane.b32.xlu0 %v1175, 127
        %v1178 = vpop.permute.xlu0 %1177
        %v1180 = vsel %vm1106, %v1178, 0.0
        %v1181 = vadd.f32 %v1167, %v1180
        %v1182 = vrot.slane %v1092, 6
        %1184 = vrot.lane.b32.xlu0 %v1182, 64
        %v1185 = vpop.permute.xlu0 %1184
        %v1186 = vsel %vm1107, %v1185, %v1182
        %1187 = vrot.lane.b32.xlu0 %v1186, 64
        %v1188 = vpop.permute.xlu0 %1187
        %v1189 = vsel %vm1107, %v1188, %v1182
        %vm1190 = vmand %vm1104, %vm1105
        %1192 = vrot.lane.b32.xlu0 %v1189, 121
        %v1193 = vpop.permute.xlu0 %1192
        %v1195 = vsel %vm1190, %v1193, 0.0
        %v1196 = vadd.f32 %v1181, %v1195
        %v1197 = vrot.slane %v1092, 7
        %1199 = vrot.lane.b32.xlu0 %v1197, 64
        %v1200 = vpop.permute.xlu0 %1199
        %v1201 = vsel %vm1107, %v1200, %v1197
        %1202 = vrot.lane.b32.xlu0 %v1201, 64
        %v1203 = vpop.permute.xlu0 %1202
        %v1204 = vsel %vm1107, %v1203, %v1197
        %1206 = vrot.lane.b32.xlu0 %v1204, 120
        %v1207 = vpop.permute.xlu0 %1206
        %v1209 = vsel %vm1104, %v1207, 0.0
        %v1210 = vadd.f32 %v1196, %v1209
        %1211 = vrot.lane.b32.xlu0 %v1097, 64
        %v1212 = vpop.permute.xlu0 %1211
        %v1213 = vsel %vm1107, %v1212, %v1097
        %1214 = vrot.lane.b32.xlu0 %v1213, 64
        %v1215 = vpop.permute.xlu0 %1214
        %v1216 = vsel %vm1107, %v1215, %v1097
        %vm1217 = vmand %vm1104, %vm1106
        %1219 = vrot.lane.b32.xlu0 %v1216, 119
        %v1220 = vpop.permute.xlu0 %1219
        %v1222 = vsel %vm1217, %v1220, 0.0
        %v1223 = vadd.f32 %v1210, %v1222
        %s1224 = sld [smem:[#allocation2]]
        %v1225 = vstv %s1224
        %v1226 = vadd.f32 %v1223, %v1225
        %v1227 = vsub.f32 0.0, %v1226
        %v1228 = vmul.f32 %v1227, 1.442695
        %v1229 = vpow.pop %v1228
        %v1230 = vadd.f32 %v1229, 1.0
        %v1231 = vrcp.pop %v1230
        %v1232 = vld [vmem:[%s312] sm:$0xf]
        %v1233 = vld [vmem:[%s312 + $0x4] sm:$0xf]
        %v1234 = vld [vmem:[%s312 + $0x8] sm:$0xf]
        %v1235 = vld [vmem:[%s312 + $0xc] sm:$0xf]
        %v1236 = vld [vmem:[%s312 + $0x10] sm:$0xf]
        %v1237 = vld [vmem:[%s312 + $0x14] sm:$0xf]
        %v1238 = vld [vmem:[%s312 + $0x18] sm:$0xf]
        %v1239 = vld [vmem:[%s312 + $0x1c] sm:$0xf]
        %v1240 = vld [vmem:[%s312 + $0x20] sm:$0xf]
        %v1241 = vld [vmem:[%s312 + $0x24] sm:$0xf]
        %v1242 = vld [vmem:[%s312 + $0x28] sm:$0xf]
        %v1243 = vld [vmem:[%s312 + $0x2c] sm:$0xf]
        %v1244 = vld [vmem:[%s312 + $0x30] sm:$0xf]
        %v1245 = vld [vmem:[%s312 + $0x34] sm:$0xf]
        %v1246 = vld [vmem:[%s312 + $0x38] sm:$0xf]
        %v1247 = vld [vmem:[%s312 + $0x3c] sm:$0xf]
        %v1248 = vld [vmem:[%s312 + $0x40] sm:$0xf]
        %v1249 = vld [vmem:[%s312 + $0x44] sm:$0xf]
        %v1250 = vld [vmem:[%s312 + $0x48] sm:$0xf]
        %v1251 = vld [vmem:[%s312 + $0x4c] sm:$0xf]
        %v1252 = vld [vmem:[%s312 + $0x50] sm:$0xf]
        %v1253 = vld [vmem:[%s312 + $0x54] sm:$0xf]
        %v1254 = vld [vmem:[%s312 + $0x58] sm:$0xf]
        %v1255 = vld [vmem:[%s312 + $0x5c] sm:$0xf]
        %v1256 = vld [vmem:[%s312 + $0x60] sm:$0xf]
        %v1257 = vld [vmem:[%s312 + $0x64] sm:$0xf]
        %v1258 = vld [vmem:[%s312 + $0x68] sm:$0xf]
        %v1259 = vld [vmem:[%s312 + $0x6c] sm:$0xf]
        %v1260 = vld [vmem:[%s312 + $0x70] sm:$0xf]
        %v1261 = vld [vmem:[%s312 + $0x74] sm:$0xf]
        %v1262 = vld [vmem:[%s312 + $0x78] sm:$0xf]
        %v1263 = vld [vmem:[%s312 + $0x7c] sm:$0xf]
        %v1264 = vld [vmem:[%s312 + $0x80] sm:$0xf]
        %v1265 = vld [vmem:[%s312 + $0x84] sm:$0xf]
        %v1266 = vld [vmem:[%s312 + $0x88] sm:$0xf]
        %v1267 = vld [vmem:[%s312 + $0x8c] sm:$0xf]
        %v1268 = vld [vmem:[%s312 + $0x90] sm:$0xf]
        %v1269 = vld [vmem:[%s312 + $0x94] sm:$0xf]
        %v1270 = vld [vmem:[%s312 + $0x98] sm:$0xf]
        %v1271 = vld [vmem:[%s312 + $0x9c] sm:$0xf]
        %v1272 = vld [vmem:[%s312 + $0xa0] sm:$0xf]
        %v1273 = vld [vmem:[%s312 + $0xa4] sm:$0xf]
        %v1274 = vld [vmem:[%s312 + $0xa8] sm:$0xf]
        %v1275 = vld [vmem:[%s312 + $0xac] sm:$0xf]
        %v1276 = vld [vmem:[%s312 + $0xb0] sm:$0xf]
        %v1277 = vld [vmem:[%s312 + $0xb4] sm:$0xf]
        %v1278 = vld [vmem:[%s312 + $0xb8] sm:$0xf]
        %v1279 = vld [vmem:[%s312 + $0xbc] sm:$0xf]
        %v1280 = vld [vmem:[%s312 + $0xc0] sm:$0xf]
        %v1281 = vld [vmem:[%s312 + $0xc4] sm:$0xf]
        %v1282 = vld [vmem:[%s312 + $0xc8] sm:$0xf]
        %v1283 = vld [vmem:[%s312 + $0xcc] sm:$0xf]
        %v1284 = vld [vmem:[%s312 + $0xd0] sm:$0xf]
        %v1285 = vld [vmem:[%s312 + $0xd4] sm:$0xf]
        %v1286 = vld [vmem:[%s312 + $0xd8] sm:$0xf]
        %v1287 = vld [vmem:[%s312 + $0xdc] sm:$0xf]
        %v1288 = vld [vmem:[%s312 + $0xe0] sm:$0xf]
        %v1289 = vld [vmem:[%s312 + $0xe4] sm:$0xf]
        %v1290 = vld [vmem:[%s312 + $0xe8] sm:$0xf]
        %v1291 = vld [vmem:[%s312 + $0xec] sm:$0xf]
        %v1292 = vld [vmem:[%s312 + $0xf0] sm:$0xf]
        %v1293 = vld [vmem:[%s312 + $0xf4] sm:$0xf]
        %v1294 = vld [vmem:[%s312 + $0xf8] sm:$0xf]
        %v1295 = vld [vmem:[%s312 + $0xfc] sm:$0xf]
        %v1296 = vld [vmem:[%s312 + $0x100] sm:$0xf]
        %v1297 = vld [vmem:[%s312 + $0x104] sm:$0xf]
        %v1298 = vld [vmem:[%s312 + $0x108] sm:$0xf]
        %v1299 = vld [vmem:[%s312 + $0x10c] sm:$0xf]
        %v1300 = vpack.c.bf16 %v1231, %v1231
        %v1302 = vpack.i.b16 %v1300, %v1300
        %v1304 = vlaneseq
        %v1305 = vshrl.u32 %v1304, 7
        %v1306 = vsub.s32 0, %v1305
        %v1307 = vrot.slane %v1302, %v1306
        %v1309 = vunpack.c.l.b16 %v1307
        %v1310 = vpack.c.b16 %v1309, %v1309
        %v1312 = vmul.bf16 %v1232, %v1310
        %v1313 = vmul.bf16 %v1233, %v1310
        %v1314 = vmul.bf16 %v1234, %v1310
        %v1315 = vmul.bf16 %v1235, %v1310
        %v1316 = vmul.bf16 %v1236, %v1310
        %v1317 = vmul.bf16 %v1237, %v1310
        %v1318 = vmul.bf16 %v1238, %v1310
        %v1319 = vmul.bf16 %v1239, %v1310
        %v1320 = vmul.bf16 %v1240, %v1310
        %v1321 = vmul.bf16 %v1241, %v1310
        %v1322 = vmul.bf16 %v1242, %v1310
        %v1323 = vmul.bf16 %v1243, %v1310
        %v1324 = vmul.bf16 %v1244, %v1310
        %v1325 = vmul.bf16 %v1245, %v1310
        %v1326 = vmul.bf16 %v1246, %v1310
        %v1327 = vmul.bf16 %v1247, %v1310
        %v1328 = vmul.bf16 %v1248, %v1310
        %v1329 = vmul.bf16 %v1249, %v1310
        %v1330 = vmul.bf16 %v1250, %v1310
        %v1331 = vmul.bf16 %v1251, %v1310
        %v1332 = vmul.bf16 %v1252, %v1310
        %v1333 = vmul.bf16 %v1253, %v1310
        %v1334 = vmul.bf16 %v1254, %v1310
        %v1335 = vmul.bf16 %v1255, %v1310
        %v1336 = vmul.bf16 %v1256, %v1310
        %v1337 = vmul.bf16 %v1257, %v1310
        %v1338 = vmul.bf16 %v1258, %v1310
        %v1339 = vmul.bf16 %v1259, %v1310
        %v1340 = vmul.bf16 %v1260, %v1310
        %v1341 = vmul.bf16 %v1261, %v1310
        %v1342 = vmul.bf16 %v1262, %v1310
        %v1343 = vmul.bf16 %v1263, %v1310
        %v1344 = vmul.bf16 %v1264, %v1310
        %v1345 = vmul.bf16 %v1265, %v1310
        %v1346 = vmul.bf16 %v1266, %v1310
        %v1347 = vmul.bf16 %v1267, %v1310
        %v1348 = vmul.bf16 %v1268, %v1310
        %v1349 = vmul.bf16 %v1269, %v1310
        %v1350 = vmul.bf16 %v1270, %v1310
        %v1351 = vmul.bf16 %v1271, %v1310
        %v1352 = vmul.bf16 %v1272, %v1310
        %v1353 = vmul.bf16 %v1273, %v1310
        %v1354 = vmul.bf16 %v1274, %v1310
        %v1355 = vmul.bf16 %v1275, %v1310
        %v1356 = vmul.bf16 %v1276, %v1310
        %v1357 = vmul.bf16 %v1277, %v1310
        %v1358 = vmul.bf16 %v1278, %v1310
        %v1359 = vmul.bf16 %v1279, %v1310
        %v1360 = vmul.bf16 %v1280, %v1310
        %v1361 = vmul.bf16 %v1281, %v1310
        %v1362 = vmul.bf16 %v1282, %v1310
        %v1363 = vmul.bf16 %v1283, %v1310
        %v1364 = vmul.bf16 %v1284, %v1310
        %v1365 = vmul.bf16 %v1285, %v1310
        %v1366 = vmul.bf16 %v1286, %v1310
        %v1367 = vmul.bf16 %v1287, %v1310
        %v1368 = vmul.bf16 %v1288, %v1310
        %v1369 = vmul.bf16 %v1289, %v1310
        %v1370 = vmul.bf16 %v1290, %v1310
        %v1371 = vmul.bf16 %v1291, %v1310
        %v1372 = vmul.bf16 %v1292, %v1310
        %v1373 = vmul.bf16 %v1293, %v1310
        %v1374 = vmul.bf16 %v1294, %v1310
        %v1375 = vmul.bf16 %v1295, %v1310
        %v1376 = vmul.bf16 %v1296, %v1310
        %v1377 = vmul.bf16 %v1297, %v1310
        %v1378 = vmul.bf16 %v1298, %v1310
        %v1379 = vmul.bf16 %v1299, %v1310
        %v1380 = vld [vmem:[%s5] sm:$0xff]
        %v1381 = vld [vmem:[%s5 + $0x8] sm:$0xff]
        %v1382 = vld [vmem:[%s5 + $0x10] sm:$0xf]
        %v1383 = vld [vmem:[%s5 + $0x14] sm:$0xff]
        %v1384 = vld [vmem:[%s5 + $0x1c] sm:$0xff]
        %v1385 = vld [vmem:[%s5 + $0x24] sm:$0xf]
        %v1386 = vld [vmem:[%s5 + $0x28] sm:$0xff]
        %v1387 = vld [vmem:[%s5 + $0x30] sm:$0xff]
        %v1388 = vld [vmem:[%s5 + $0x38] sm:$0xf]
        %v1389 = vld [vmem:[%s5 + $0x3c] sm:$0xff]
        %v1390 = vld [vmem:[%s5 + $0x44] sm:$0xff]
        %v1391 = vld [vmem:[%s5 + $0x4c] sm:$0xf]
        %v1392 = vld [vmem:[%s5 + $0x50] sm:$0xff]
        %v1393 = vld [vmem:[%s5 + $0x58] sm:$0xff]
        %v1394 = vld [vmem:[%s5 + $0x60] sm:$0xf]
        %v1395 = vld [vmem:[%s5 + $0x64] sm:$0xff]
        %v1396 = vld [vmem:[%s5 + $0x6c] sm:$0xff]
        %v1397 = vld [vmem:[%s5 + $0x74] sm:$0xf]
        %v1398 = vld [vmem:[%s5 + $0x78] sm:$0xff]
        %v1399 = vld [vmem:[%s5 + $0x80] sm:$0xff]
        %v1400 = vld [vmem:[%s5 + $0x88] sm:$0xf]
        %v1401 = vld [vmem:[%s5 + $0x8c] sm:$0xff]
        %v1402 = vld [vmem:[%s5 + $0x94] sm:$0xff]
        %v1403 = vld [vmem:[%s5 + $0x9c] sm:$0xf]
        %v1472 = vunpack.c.l.b16 %v1312
        %v1473 = vunpack.c.l.b16 %v1313
        %v1474 = vunpack.c.l.b16 %v1314
        %v1475 = vunpack.c.l.b16 %v1315
        %v1476 = vunpack.c.l.b16 %v1316
        %v1477 = vunpack.c.l.b16 %v1317
        %v1478 = vunpack.c.l.b16 %v1318
        %v1479 = vunpack.c.l.b16 %v1319
        %v1480 = vunpack.c.l.b16 %v1320
        %v1481 = vunpack.c.l.b16 %v1321
        %v1482 = vunpack.c.l.b16 %v1322
        %v1483 = vunpack.c.l.b16 %v1323
        %v1484 = vunpack.c.l.b16 %v1324
        %v1485 = vunpack.c.l.b16 %v1325
        %v1486 = vunpack.c.l.b16 %v1326
        %v1487 = vunpack.c.l.b16 %v1327
        %v1488 = vunpack.c.l.b16 %v1328
        %v1489 = vunpack.c.l.b16 %v1329
        %v1490 = vunpack.c.l.b16 %v1330
        %v1491 = vunpack.c.l.b16 %v1331
        %v1492 = vunpack.c.l.b16 %v1332
        %v1493 = vunpack.c.l.b16 %v1333
        %v1494 = vunpack.c.l.b16 %v1334
        %v1495 = vunpack.c.l.b16 %v1335
        %v1496 = vunpack.c.l.b16 %v1336
        %v1497 = vunpack.c.l.b16 %v1337
        %v1498 = vunpack.c.l.b16 %v1338
        %v1499 = vunpack.c.l.b16 %v1339
        %v1500 = vunpack.c.l.b16 %v1340
        %v1501 = vunpack.c.l.b16 %v1341
        %v1502 = vunpack.c.l.b16 %v1342
        %v1503 = vunpack.c.l.b16 %v1343
        %v1504 = vunpack.c.l.b16 %v1344
        %v1505 = vunpack.c.l.b16 %v1345
        %v1506 = vunpack.c.l.b16 %v1346
        %v1507 = vunpack.c.l.b16 %v1347
        %v1508 = vunpack.c.l.b16 %v1348
        %v1509 = vunpack.c.l.b16 %v1349
        %v1510 = vunpack.c.l.b16 %v1350
        %v1511 = vunpack.c.l.b16 %v1351
        %v1512 = vunpack.c.l.b16 %v1352
        %v1513 = vunpack.c.l.b16 %v1353
        %v1514 = vunpack.c.l.b16 %v1354
        %v1515 = vunpack.c.l.b16 %v1355
        %v1516 = vunpack.c.l.b16 %v1356
        %v1517 = vunpack.c.l.b16 %v1357
        %v1518 = vunpack.c.l.b16 %v1358
        %v1519 = vunpack.c.l.b16 %v1359
        %v1520 = vunpack.c.l.b16 %v1360
        %v1521 = vunpack.c.l.b16 %v1361
        %v1522 = vunpack.c.l.b16 %v1362
        %v1523 = vunpack.c.l.b16 %v1363
        %v1524 = vunpack.c.l.b16 %v1364
        %v1525 = vunpack.c.l.b16 %v1365
        %v1526 = vunpack.c.l.b16 %v1366
        %v1527 = vunpack.c.l.b16 %v1367
        %v1528 = vunpack.c.l.b16 %v1368
        %v1529 = vunpack.c.l.b16 %v1369
        %v1530 = vunpack.c.l.b16 %v1370
        %v1531 = vunpack.c.l.b16 %v1371
        %v1532 = vunpack.c.l.b16 %v1372
        %v1533 = vunpack.c.l.b16 %v1373
        %v1534 = vunpack.c.l.b16 %v1374
        %v1535 = vunpack.c.l.b16 %v1375
        %v1536 = vunpack.c.l.b16 %v1376
        %v1537 = vunpack.c.l.b16 %v1377
        %v1538 = vunpack.c.l.b16 %v1378
        %v1539 = vunpack.c.l.b16 %v1379
        %v1540 = vpack.c.b16 %v1473, %v1472
        %v1541 = vpack.c.b16 %v1475, %v1474
        %v1542 = vpack.c.b16 %v1477, %v1476
        %v1543 = vpack.c.b16 %v1479, %v1478
        %v1544 = vpack.c.b16 %v1481, %v1480
        %v1545 = vpack.c.b16 %v1483, %v1482
        %v1546 = vpack.c.b16 %v1485, %v1484
        %v1547 = vpack.c.b16 %v1487, %v1486
        %v1548 = vpack.c.b16 %v1489, %v1488
        %v1549 = vpack.c.b16 %v1491, %v1490
        %v1550 = vpack.c.b16 %v1493, %v1492
        %v1551 = vpack.c.b16 %v1495, %v1494
        %v1552 = vpack.c.b16 %v1497, %v1496
        %v1553 = vpack.c.b16 %v1499, %v1498
        %v1554 = vpack.c.b16 %v1501, %v1500
        %v1555 = vpack.c.b16 %v1503, %v1502
        %v1556 = vpack.c.b16 %v1505, %v1504
        %v1557 = vpack.c.b16 %v1507, %v1506
        %v1558 = vpack.c.b16 %v1509, %v1508
        %v1559 = vpack.c.b16 %v1511, %v1510
        %v1560 = vpack.c.b16 %v1513, %v1512
        %v1561 = vpack.c.b16 %v1515, %v1514
        %v1562 = vpack.c.b16 %v1517, %v1516
        %v1563 = vpack.c.b16 %v1519, %v1518
        %v1564 = vpack.c.b16 %v1521, %v1520
        %v1565 = vpack.c.b16 %v1523, %v1522
        %v1566 = vpack.c.b16 %v1525, %v1524
        %v1567 = vpack.c.b16 %v1527, %v1526
        %v1568 = vpack.c.b16 %v1529, %v1528
        %v1569 = vpack.c.b16 %v1531, %v1530
        %v1570 = vpack.c.b16 %v1533, %v1532
        %v1571 = vpack.c.b16 %v1535, %v1534
        %v1572 = vpack.c.b16 %v1537, %v1536
        %v1573 = vpack.c.b16 %v1539, %v1538
        %v1598 = vunpack.c.l.b16 %v1380
        %v1599 = vunpack.c.h.b16 %v1380
        %v1600 = vunpack.c.l.b16 %v1381
        %v1601 = vunpack.c.h.b16 %v1381
        %v1602 = vunpack.c.l.b16 %v1382
        %v1603 = vunpack.c.l.b16 %v1383
        %v1604 = vunpack.c.h.b16 %v1383
        %v1605 = vunpack.c.l.b16 %v1384
        %v1606 = vunpack.c.h.b16 %v1384
        %v1607 = vunpack.c.l.b16 %v1385
        %v1608 = vunpack.c.l.b16 %v1386
        %v1609 = vunpack.c.h.b16 %v1386
        %v1610 = vunpack.c.l.b16 %v1387
        %v1611 = vunpack.c.h.b16 %v1387
        %v1612 = vunpack.c.l.b16 %v1388
        %v1613 = vunpack.c.l.b16 %v1389
        %v1614 = vunpack.c.h.b16 %v1389
        %v1615 = vunpack.c.l.b16 %v1390
        %v1616 = vunpack.c.h.b16 %v1390
        %v1617 = vunpack.c.l.b16 %v1391
        %v1618 = vunpack.c.l.b16 %v1392
        %v1619 = vunpack.c.h.b16 %v1392
        %v1620 = vunpack.c.l.b16 %v1393
        %v1621 = vunpack.c.h.b16 %v1393
        %v1622 = vunpack.c.l.b16 %v1394
        %v1623 = vunpack.c.l.b16 %v1395
        %v1624 = vunpack.c.h.b16 %v1395
        %v1625 = vunpack.c.l.b16 %v1396
        %v1626 = vunpack.c.h.b16 %v1396
        %v1627 = vunpack.c.l.b16 %v1397
        %v1628 = vunpack.c.l.b16 %v1398
        %v1629 = vunpack.c.h.b16 %v1398
        %v1630 = vunpack.c.l.b16 %v1399
        %v1631 = vunpack.c.h.b16 %v1399
        %v1632 = vunpack.c.l.b16 %v1400
        %v1633 = vunpack.c.l.b16 %v1401
        %v1634 = vunpack.c.h.b16 %v1401
        %v1635 = vunpack.c.l.b16 %v1402
        %v1636 = vunpack.c.h.b16 %v1402
        %v1637 = vunpack.c.l.b16 %v1403
        %v1638 = vpack.c.b16 %v1603, %v1598
        %v1639 = vpack.c.b16 %v1604, %v1599
        %v1640 = vpack.c.b16 %v1605, %v1600
        %v1641 = vpack.c.b16 %v1606, %v1601
        %v1642 = vpack.c.b16 %v1607, %v1602
        %v1643 = vpack.c.b16 %v1613, %v1608
        %v1644 = vpack.c.b16 %v1614, %v1609
        %v1645 = vpack.c.b16 %v1615, %v1610
        %v1646 = vpack.c.b16 %v1616, %v1611
        %v1647 = vpack.c.b16 %v1617, %v1612
        %v1648 = vpack.c.b16 %v1623, %v1618
        %v1649 = vpack.c.b16 %v1624, %v1619
        %v1650 = vpack.c.b16 %v1625, %v1620
        %v1651 = vpack.c.b16 %v1626, %v1621
        %v1652 = vpack.c.b16 %v1627, %v1622
        %v1653 = vpack.c.b16 %v1633, %v1628
        %v1654 = vpack.c.b16 %v1634, %v1629
        %v1655 = vpack.c.b16 %v1635, %v1630
        %v1656 = vpack.c.b16 %v1636, %v1631
        %v1657 = vpack.c.b16 %v1637, %v1632
        %v1679 = vsel %vm1018, %v1540, 0
        %v1682 = vsel %vm1018, %v1541, 0
        %v1685 = vsel %vm1018, %v1542, 0
        %v1688 = vsel %vm1018, %v1543, 0
        %v1691 = vsel %vm1018, %v1544, 0
        %v1694 = vsel %vm1018, %v1545, 0
        %v1697 = vsel %vm1018, %v1546, 0
        %v1700 = vsel %vm1018, %v1547, 0
        %v1703 = vsel %vm1018, %v1548, 0
        %v1706 = vsel %vm1018, %v1549, 0
        %v1709 = vsel %vm1018, %v1550, 0
        %v1712 = vsel %vm1018, %v1551, 0
        %v1715 = vsel %vm1018, %v1552, 0
        %v1718 = vsel %vm1018, %v1553, 0
        %v1721 = vsel %vm1018, %v1554, 0
        %v1724 = vsel %vm1018, %v1555, 0
        %v1727 = vsel %vm1018, %v1556, 0
        %v1730 = vsel %vm1018, %v1557, 0
        %v1733 = vsel %vm1018, %v1558, 0
        %v1736 = vsel %vm1018, %v1559, 0
        %v1739 = vsel %vm1018, %v1560, 0
        %v1742 = vsel %vm1018, %v1561, 0
        %v1745 = vsel %vm1018, %v1562, 0
        %v1748 = vsel %vm1018, %v1563, 0
        %v1751 = vsel %vm1018, %v1564, 0
        %v1754 = vsel %vm1018, %v1565, 0
        %v1757 = vsel %vm1018, %v1566, 0
        %v1760 = vsel %vm1018, %v1567, 0
        %v1763 = vsel %vm1018, %v1568, 0
        %v1766 = vsel %vm1018, %v1569, 0
        %v1769 = vsel %vm1018, %v1570, 0
        %v1772 = vsel %vm1018, %v1571, 0
        %v1775 = vsel %vm1018, %v1572, 0
        %v1778 = vsel %vm1018, %v1573, 0
        %1780 = vmatprep.subr.bf16.mxu0 0
        %1781 = vmatpush1.bf16.msra.mxu0 0
        %1782 = vmatprep.subr.bf16.mxu0 0
        %1783 = vmatpush1.bf16.msra.mxu0 0
        %1784 = vmatprep.subr.bf16.mxu0 0
        %1785 = vmatpush1.bf16.msra.mxu0 0
        %1786 = vmatprep.subr.bf16.mxu0 0
        %1787 = vmatpush1.bf16.msra.mxu0 0
        %1788 = vmatprep.subr.bf16.mxu0 %v1654
        %1789 = vmatpush1.bf16.msra.mxu0 %v1653
        %1790 = vmatprep.subr.bf16.mxu0 %v1649
        %1791 = vmatpush1.bf16.msra.mxu0 %v1648
        %1792 = vmatprep.subr.bf16.mxu0 %v1644
        %1793 = vmatpush1.bf16.msra.mxu0 %v1643
        %1794 = vmatprep.subr.bf16.mxu0 %v1639
        %1795 = vmatpush1.bf16.msra.mxu0 %v1638
        %1796 = vmatprep.subr.bf16.mxu0 0
        %1797 = vmatpush2.bf16.msra.mxu0 0
        %1798 = vmatprep.subr.bf16.mxu0 0
        %1799 = vmatpush2.bf16.msra.mxu0 0
        %1800 = vmatprep.subr.bf16.mxu0 0
        %1801 = vmatpush2.bf16.msra.mxu0 0
        %1802 = vmatprep.subr.bf16.mxu0 0
        %1803 = vmatpush2.bf16.msra.mxu0 0
        %1804 = vmatprep.subr.bf16.mxu0 0
        %1805 = vmatpush2.bf16.msra.mxu0 0
        %1806 = vmatprep.subr.bf16.mxu0 0
        %1807 = vmatpush2.bf16.msra.mxu0 0
        %1808 = vmatprep.subr.bf16.mxu0 0
        %1809 = vmatpush2.bf16.msra.mxu0 0
        %1810 = vmatprep.subr.bf16.mxu0 0
        %1811 = vmatpush2.bf16.msra.mxu0 0
        %1812 = vmatprep.mubr.bf16.mxu0 0
        %1813 = vmatmul.mubr.bf16.gmra.mxu0 %v1679
        %v1814 = vpop.f32.mrf.mxu0
        %v1815 = vadd.f32 0.0, %v1814
        %v1816 = vpop.f32.mrf.mxu0
        %v1817 = vadd.f32 0.0, %v1816
        %v1818 = vpop.f32.mrf.mxu0
        %v1819 = vadd.f32 0.0, %v1818
        %v1820 = vpop.f32.mrf.mxu0
        %v1821 = vadd.f32 0.0, %v1820
        %1822 = vmatprep.mubr.bf16.mxu0 0
        %1823 = vmatmul.mubr.bf16.gmra.mxu0 %v1682
        %v1824 = vpop.f32.mrf.mxu0
        %v1825 = vadd.f32 0.0, %v1824
        %v1826 = vpop.f32.mrf.mxu0
        %v1827 = vadd.f32 0.0, %v1826
        %v1828 = vpop.f32.mrf.mxu0
        %v1829 = vadd.f32 0.0, %v1828
        %v1830 = vpop.f32.mrf.mxu0
        %v1831 = vadd.f32 0.0, %v1830
        %1832 = vmatprep.mubr.bf16.mxu0 0
        %1833 = vmatmul.mubr.bf16.gmra.mxu0 %v1685
        %v1834 = vpop.f32.mrf.mxu0
        %v1835 = vadd.f32 0.0, %v1834
        %v1836 = vpop.f32.mrf.mxu0
        %v1837 = vadd.f32 0.0, %v1836
        %v1838 = vpop.f32.mrf.mxu0
        %v1839 = vadd.f32 0.0, %v1838
        %v1840 = vpop.f32.mrf.mxu0
        %v1841 = vadd.f32 0.0, %v1840
        %1842 = vmatprep.mubr.bf16.mxu0 0
        %1843 = vmatmul.mubr.bf16.gmra.mxu0 %v1688
        %v1844 = vpop.f32.mrf.mxu0
        %v1845 = vadd.f32 0.0, %v1844
        %v1846 = vpop.f32.mrf.mxu0
        %v1847 = vadd.f32 0.0, %v1846
        %v1848 = vpop.f32.mrf.mxu0
        %v1849 = vadd.f32 0.0, %v1848
        %v1850 = vpop.f32.mrf.mxu0
        %v1851 = vadd.f32 0.0, %v1850
        %1852 = vmatprep.mubr.bf16.mxu0 0
        %1853 = vmatmul.mubr.bf16.gmra.mxu0 %v1691
        %v1854 = vpop.f32.mrf.mxu0
        %v1855 = vadd.f32 0.0, %v1854
        %v1856 = vpop.f32.mrf.mxu0
        %v1857 = vadd.f32 0.0, %v1856
        %v1858 = vpop.f32.mrf.mxu0
        %v1859 = vadd.f32 0.0, %v1858
        %v1860 = vpop.f32.mrf.mxu0
        %v1861 = vadd.f32 0.0, %v1860
        %1862 = vmatprep.mubr.bf16.mxu0 0
        %1863 = vmatmul.mubr.bf16.gmra.mxu0 %v1694
        %v1864 = vpop.f32.mrf.mxu0
        %v1865 = vadd.f32 0.0, %v1864
        %v1866 = vpop.f32.mrf.mxu0
        %v1867 = vadd.f32 0.0, %v1866
        %v1868 = vpop.f32.mrf.mxu0
        %v1869 = vadd.f32 0.0, %v1868
        %v1870 = vpop.f32.mrf.mxu0
        %v1871 = vadd.f32 0.0, %v1870
        %1872 = vmatprep.mubr.bf16.mxu0 0
        %1873 = vmatmul.mubr.bf16.gmra.mxu0 %v1697
        %v1874 = vpop.f32.mrf.mxu0
        %v1875 = vadd.f32 0.0, %v1874
        %v1876 = vpop.f32.mrf.mxu0
        %v1877 = vadd.f32 0.0, %v1876
        %v1878 = vpop.f32.mrf.mxu0
        %v1879 = vadd.f32 0.0, %v1878
        %v1880 = vpop.f32.mrf.mxu0
        %v1881 = vadd.f32 0.0, %v1880
        %1882 = vmatprep.mubr.bf16.mxu0 0
        %1883 = vmatmul.mubr.bf16.gmra.mxu0 %v1700
        %v1884 = vpop.f32.mrf.mxu0
        %v1885 = vadd.f32 0.0, %v1884
        %v1886 = vpop.f32.mrf.mxu0
        %v1887 = vadd.f32 0.0, %v1886
        %v1888 = vpop.f32.mrf.mxu0
        %v1889 = vadd.f32 0.0, %v1888
        %v1890 = vpop.f32.mrf.mxu0
        %v1891 = vadd.f32 0.0, %v1890
        %1892 = vmatprep.mubr.bf16.mxu0 0
        %1893 = vmatmul.mubr.bf16.gmra.mxu0 %v1703
        %v1894 = vpop.f32.mrf.mxu0
        %v1895 = vadd.f32 0.0, %v1894
        %v1896 = vpop.f32.mrf.mxu0
        %v1897 = vadd.f32 0.0, %v1896
        %v1898 = vpop.f32.mrf.mxu0
        %v1899 = vadd.f32 0.0, %v1898
        %v1900 = vpop.f32.mrf.mxu0
        %v1901 = vadd.f32 0.0, %v1900
        %1902 = vmatprep.mubr.bf16.mxu0 0
        %1903 = vmatmul.mubr.bf16.gmra.mxu0 %v1706
        %v1904 = vpop.f32.mrf.mxu0
        %v1905 = vadd.f32 0.0, %v1904
        %v1906 = vpop.f32.mrf.mxu0
        %v1907 = vadd.f32 0.0, %v1906
        %v1908 = vpop.f32.mrf.mxu0
        %v1909 = vadd.f32 0.0, %v1908
        %v1910 = vpop.f32.mrf.mxu0
        %v1911 = vadd.f32 0.0, %v1910
        %1912 = vmatprep.mubr.bf16.mxu0 0
        %1913 = vmatmul.mubr.bf16.gmra.mxu0 %v1709
        %v1914 = vpop.f32.mrf.mxu0
        %v1915 = vadd.f32 0.0, %v1914
        %v1916 = vpop.f32.mrf.mxu0
        %v1917 = vadd.f32 0.0, %v1916
        %v1918 = vpop.f32.mrf.mxu0
        %v1919 = vadd.f32 0.0, %v1918
        %v1920 = vpop.f32.mrf.mxu0
        %v1921 = vadd.f32 0.0, %v1920
        %1922 = vmatprep.mubr.bf16.mxu0 0
        %1923 = vmatmul.mubr.bf16.gmra.mxu0 %v1712
        %v1924 = vpop.f32.mrf.mxu0
        %v1925 = vadd.f32 0.0, %v1924
        %v1926 = vpop.f32.mrf.mxu0
        %v1927 = vadd.f32 0.0, %v1926
        %v1928 = vpop.f32.mrf.mxu0
        %v1929 = vadd.f32 0.0, %v1928
        %v1930 = vpop.f32.mrf.mxu0
        %v1931 = vadd.f32 0.0, %v1930
        %1932 = vmatprep.mubr.bf16.mxu0 0
        %1933 = vmatmul.mubr.bf16.gmra.mxu0 %v1715
        %v1934 = vpop.f32.mrf.mxu0
        %v1935 = vadd.f32 0.0, %v1934
        %v1936 = vpop.f32.mrf.mxu0
        %v1937 = vadd.f32 0.0, %v1936
        %v1938 = vpop.f32.mrf.mxu0
        %v1939 = vadd.f32 0.0, %v1938
        %v1940 = vpop.f32.mrf.mxu0
        %v1941 = vadd.f32 0.0, %v1940
        %1942 = vmatprep.mubr.bf16.mxu0 0
        %1943 = vmatmul.mubr.bf16.gmra.mxu0 %v1718
        %v1944 = vpop.f32.mrf.mxu0
        %v1945 = vadd.f32 0.0, %v1944
        %v1946 = vpop.f32.mrf.mxu0
        %v1947 = vadd.f32 0.0, %v1946
        %v1948 = vpop.f32.mrf.mxu0
        %v1949 = vadd.f32 0.0, %v1948
        %v1950 = vpop.f32.mrf.mxu0
        %v1951 = vadd.f32 0.0, %v1950
        %1952 = vmatprep.mubr.bf16.mxu0 0
        %1953 = vmatmul.mubr.bf16.gmra.mxu0 %v1721
        %v1954 = vpop.f32.mrf.mxu0
        %v1955 = vadd.f32 0.0, %v1954
        %v1956 = vpop.f32.mrf.mxu0
        %v1957 = vadd.f32 0.0, %v1956
        %v1958 = vpop.f32.mrf.mxu0
        %v1959 = vadd.f32 0.0, %v1958
        %v1960 = vpop.f32.mrf.mxu0
        %v1961 = vadd.f32 0.0, %v1960
        %1962 = vmatprep.mubr.bf16.mxu0 0
        %1963 = vmatmul.mubr.bf16.gmra.mxu0 %v1724
        %v1964 = vpop.f32.mrf.mxu0
        %v1965 = vadd.f32 0.0, %v1964
        %v1966 = vpop.f32.mrf.mxu0
        %v1967 = vadd.f32 0.0, %v1966
        %v1968 = vpop.f32.mrf.mxu0
        %v1969 = vadd.f32 0.0, %v1968
        %v1970 = vpop.f32.mrf.mxu0
        %v1971 = vadd.f32 0.0, %v1970
        %1972 = vmatprep.mubr.bf16.mxu0 0
        %1973 = vmatmul.mubr.bf16.gmra.mxu0 %v1727
        %v1974 = vpop.f32.mrf.mxu0
        %v1975 = vadd.f32 0.0, %v1974
        %v1976 = vpop.f32.mrf.mxu0
        %v1977 = vadd.f32 0.0, %v1976
        %v1978 = vpop.f32.mrf.mxu0
        %v1979 = vadd.f32 0.0, %v1978
        %v1980 = vpop.f32.mrf.mxu0
        %v1981 = vadd.f32 0.0, %v1980
        %1982 = vmatprep.mubr.bf16.mxu0 0
        %1983 = vmatmul.mubr.bf16.gmra.mxu0 %v1730
        %v1984 = vpop.f32.mrf.mxu0
        %v1985 = vadd.f32 0.0, %v1984
        %v1986 = vpop.f32.mrf.mxu0
        %v1987 = vadd.f32 0.0, %v1986
        %v1988 = vpop.f32.mrf.mxu0
        %v1989 = vadd.f32 0.0, %v1988
        %v1990 = vpop.f32.mrf.mxu0
        %v1991 = vadd.f32 0.0, %v1990
        %1992 = vmatprep.mubr.bf16.mxu0 0
        %1993 = vmatmul.mubr.bf16.gmra.mxu0 %v1733
        %v1994 = vpop.f32.mrf.mxu0
        %v1995 = vadd.f32 0.0, %v1994
        %v1996 = vpop.f32.mrf.mxu0
        %v1997 = vadd.f32 0.0, %v1996
        %v1998 = vpop.f32.mrf.mxu0
        %v1999 = vadd.f32 0.0, %v1998
        %v2000 = vpop.f32.mrf.mxu0
        %v2001 = vadd.f32 0.0, %v2000
        %2002 = vmatprep.mubr.bf16.mxu0 0
        %2003 = vmatmul.mubr.bf16.gmra.mxu0 %v1736
        %v2004 = vpop.f32.mrf.mxu0
        %v2005 = vadd.f32 0.0, %v2004
        %v2006 = vpop.f32.mrf.mxu0
        %v2007 = vadd.f32 0.0, %v2006
        %v2008 = vpop.f32.mrf.mxu0
        %v2009 = vadd.f32 0.0, %v2008
        %v2010 = vpop.f32.mrf.mxu0
        %v2011 = vadd.f32 0.0, %v2010
        %2012 = vmatprep.mubr.bf16.mxu0 0
        %2013 = vmatmul.mubr.bf16.gmra.mxu0 %v1739
        %v2014 = vpop.f32.mrf.mxu0
        %v2015 = vadd.f32 0.0, %v2014
        %v2016 = vpop.f32.mrf.mxu0
        %v2017 = vadd.f32 0.0, %v2016
        %v2018 = vpop.f32.mrf.mxu0
        %v2019 = vadd.f32 0.0, %v2018
        %v2020 = vpop.f32.mrf.mxu0
        %v2021 = vadd.f32 0.0, %v2020
        %2022 = vmatprep.mubr.bf16.mxu0 0
        %2023 = vmatmul.mubr.bf16.gmra.mxu0 %v1742
        %v2024 = vpop.f32.mrf.mxu0
        %v2025 = vadd.f32 0.0, %v2024
        %v2026 = vpop.f32.mrf.mxu0
        %v2027 = vadd.f32 0.0, %v2026
        %v2028 = vpop.f32.mrf.mxu0
        %v2029 = vadd.f32 0.0, %v2028
        %v2030 = vpop.f32.mrf.mxu0
        %v2031 = vadd.f32 0.0, %v2030
        %2032 = vmatprep.mubr.bf16.mxu0 0
        %2033 = vmatmul.mubr.bf16.gmra.mxu0 %v1745
        %v2034 = vpop.f32.mrf.mxu0
        %v2035 = vadd.f32 0.0, %v2034
        %v2036 = vpop.f32.mrf.mxu0
        %v2037 = vadd.f32 0.0, %v2036
        %v2038 = vpop.f32.mrf.mxu0
        %v2039 = vadd.f32 0.0, %v2038
        %v2040 = vpop.f32.mrf.mxu0
        %v2041 = vadd.f32 0.0, %v2040
        %2042 = vmatprep.mubr.bf16.mxu0 0
        %2043 = vmatmul.mubr.bf16.gmra.mxu0 %v1748
        %v2044 = vpop.f32.mrf.mxu0
        %v2045 = vadd.f32 0.0, %v2044
        %v2046 = vpop.f32.mrf.mxu0
        %v2047 = vadd.f32 0.0, %v2046
        %v2048 = vpop.f32.mrf.mxu0
        %v2049 = vadd.f32 0.0, %v2048
        %v2050 = vpop.f32.mrf.mxu0
        %v2051 = vadd.f32 0.0, %v2050
        %2052 = vmatprep.mubr.bf16.mxu0 0
        %2053 = vmatmul.mubr.bf16.gmra.mxu0 %v1751
        %v2054 = vpop.f32.mrf.mxu0
        %v2055 = vadd.f32 0.0, %v2054
        %v2056 = vpop.f32.mrf.mxu0
        %v2057 = vadd.f32 0.0, %v2056
        %v2058 = vpop.f32.mrf.mxu0
        %v2059 = vadd.f32 0.0, %v2058
        %v2060 = vpop.f32.mrf.mxu0
        %v2061 = vadd.f32 0.0, %v2060
        %2062 = vmatprep.mubr.bf16.mxu0 0
        %2063 = vmatmul.mubr.bf16.gmra.mxu0 %v1754
        %v2064 = vpop.f32.mrf.mxu0
        %v2065 = vadd.f32 0.0, %v2064
        %v2066 = vpop.f32.mrf.mxu0
        %v2067 = vadd.f32 0.0, %v2066
        %v2068 = vpop.f32.mrf.mxu0
        %v2069 = vadd.f32 0.0, %v2068
        %v2070 = vpop.f32.mrf.mxu0
        %v2071 = vadd.f32 0.0, %v2070
        %2072 = vmatprep.mubr.bf16.mxu0 0
        %2073 = vmatmul.mubr.bf16.gmra.mxu0 %v1757
        %v2074 = vpop.f32.mrf.mxu0
        %v2075 = vadd.f32 0.0, %v2074
        %v2076 = vpop.f32.mrf.mxu0
        %v2077 = vadd.f32 0.0, %v2076
        %v2078 = vpop.f32.mrf.mxu0
        %v2079 = vadd.f32 0.0, %v2078
        %v2080 = vpop.f32.mrf.mxu0
        %v2081 = vadd.f32 0.0, %v2080
        %2082 = vmatprep.mubr.bf16.mxu0 0
        %2083 = vmatmul.mubr.bf16.gmra.mxu0 %v1760
        %v2084 = vpop.f32.mrf.mxu0
        %v2085 = vadd.f32 0.0, %v2084
        %v2086 = vpop.f32.mrf.mxu0
        %v2087 = vadd.f32 0.0, %v2086
        %v2088 = vpop.f32.mrf.mxu0
        %v2089 = vadd.f32 0.0, %v2088
        %v2090 = vpop.f32.mrf.mxu0
        %v2091 = vadd.f32 0.0, %v2090
        %2092 = vmatprep.mubr.bf16.mxu0 0
        %2093 = vmatmul.mubr.bf16.gmra.mxu0 %v1763
        %v2094 = vpop.f32.mrf.mxu0
        %v2095 = vadd.f32 0.0, %v2094
        %v2096 = vpop.f32.mrf.mxu0
        %v2097 = vadd.f32 0.0, %v2096
        %v2098 = vpop.f32.mrf.mxu0
        %v2099 = vadd.f32 0.0, %v2098
        %v2100 = vpop.f32.mrf.mxu0
        %v2101 = vadd.f32 0.0, %v2100
        %2102 = vmatprep.mubr.bf16.mxu0 0
        %2103 = vmatmul.mubr.bf16.gmra.mxu0 %v1766
        %v2104 = vpop.f32.mrf.mxu0
        %v2105 = vadd.f32 0.0, %v2104
        %v2106 = vpop.f32.mrf.mxu0
        %v2107 = vadd.f32 0.0, %v2106
        %v2108 = vpop.f32.mrf.mxu0
        %v2109 = vadd.f32 0.0, %v2108
        %v2110 = vpop.f32.mrf.mxu0
        %v2111 = vadd.f32 0.0, %v2110
        %2112 = vmatprep.mubr.bf16.mxu0 0
        %2113 = vmatmul.mubr.bf16.gmra.mxu0 %v1769
        %v2114 = vpop.f32.mrf.mxu0
        %v2115 = vadd.f32 0.0, %v2114
        %v2116 = vpop.f32.mrf.mxu0
        %v2117 = vadd.f32 0.0, %v2116
        %v2118 = vpop.f32.mrf.mxu0
        %v2119 = vadd.f32 0.0, %v2118
        %v2120 = vpop.f32.mrf.mxu0
        %v2121 = vadd.f32 0.0, %v2120
        %2122 = vmatprep.mubr.bf16.mxu0 0
        %2123 = vmatmul.mubr.bf16.gmra.mxu0 %v1772
        %v2124 = vpop.f32.mrf.mxu0
        %v2125 = vadd.f32 0.0, %v2124
        %v2126 = vpop.f32.mrf.mxu0
        %v2127 = vadd.f32 0.0, %v2126
        %v2128 = vpop.f32.mrf.mxu0
        %v2129 = vadd.f32 0.0, %v2128
        %v2130 = vpop.f32.mrf.mxu0
        %v2131 = vadd.f32 0.0, %v2130
        %2132 = vmatprep.mubr.bf16.mxu0 0
        %2133 = vmatmul.mubr.bf16.gmra.mxu0 %v1775
        %v2134 = vpop.f32.mrf.mxu0
        %v2135 = vadd.f32 0.0, %v2134
        %v2136 = vpop.f32.mrf.mxu0
        %v2137 = vadd.f32 0.0, %v2136
        %v2138 = vpop.f32.mrf.mxu0
        %v2139 = vadd.f32 0.0, %v2138
        %v2140 = vpop.f32.mrf.mxu0
        %v2141 = vadd.f32 0.0, %v2140
        %2142 = vmatprep.mubr.bf16.mxu0 0
        %2143 = vmatmul.mubr.bf16.gmra.mxu0 %v1778
        %v2144 = vpop.f32.mrf.mxu0
        %v2145 = vadd.f32 0.0, %v2144
        %v2146 = vpop.f32.mrf.mxu0
        %v2147 = vadd.f32 0.0, %v2146
        %v2148 = vpop.f32.mrf.mxu0
        %v2149 = vadd.f32 0.0, %v2148
        %v2150 = vpop.f32.mrf.mxu0
        %v2151 = vadd.f32 0.0, %v2150
        %2152 = vdwg.mxu0
        %2153 = vmatprep.subr.bf16.mxu0 0
        %2154 = vmatpush1.bf16.msra.mxu0 0
        %2155 = vmatprep.subr.bf16.mxu0 0
        %2156 = vmatpush1.bf16.msra.mxu0 0
        %2157 = vmatprep.subr.bf16.mxu0 0
        %2158 = vmatpush1.bf16.msra.mxu0 0
        %2159 = vmatprep.subr.bf16.mxu0 0
        %2160 = vmatpush1.bf16.msra.mxu0 0
        %2161 = vmatprep.subr.bf16.mxu0 %v1656
        %2162 = vmatpush1.bf16.msra.mxu0 %v1655
        %2163 = vmatprep.subr.bf16.mxu0 %v1651
        %2164 = vmatpush1.bf16.msra.mxu0 %v1650
        %2165 = vmatprep.subr.bf16.mxu0 %v1646
        %2166 = vmatpush1.bf16.msra.mxu0 %v1645
        %2167 = vmatprep.subr.bf16.mxu0 %v1641
        %2168 = vmatpush1.bf16.msra.mxu0 %v1640
        %2169 = vmatprep.subr.bf16.mxu0 0
        %2170 = vmatpush2.bf16.msra.mxu0 0
        %2171 = vmatprep.subr.bf16.mxu0 0
        %2172 = vmatpush2.bf16.msra.mxu0 0
        %2173 = vmatprep.subr.bf16.mxu0 0
        %2174 = vmatpush2.bf16.msra.mxu0 0
        %2175 = vmatprep.subr.bf16.mxu0 0
        %2176 = vmatpush2.bf16.msra.mxu0 0
        %2177 = vmatprep.subr.bf16.mxu0 0
        %2178 = vmatpush2.bf16.msra.mxu0 0
        %2179 = vmatprep.subr.bf16.mxu0 0
        %2180 = vmatpush2.bf16.msra.mxu0 0
        %2181 = vmatprep.subr.bf16.mxu0 0
        %2182 = vmatpush2.bf16.msra.mxu0 0
        %2183 = vmatprep.subr.bf16.mxu0 0
        %2184 = vmatpush2.bf16.msra.mxu0 0
        %2185 = vmatprep.mubr.bf16.mxu0 0
        %2186 = vmatmul.mubr.bf16.gmra.mxu0 %v1679
        %v2187 = vpop.f32.mrf.mxu0
        %v2188 = vadd.f32 0.0, %v2187
        %v2189 = vpop.f32.mrf.mxu0
        %v2190 = vadd.f32 0.0, %v2189
        %v2191 = vpop.f32.mrf.mxu0
        %v2192 = vadd.f32 0.0, %v2191
        %v2193 = vpop.f32.mrf.mxu0
        %v2194 = vadd.f32 0.0, %v2193
        %2195 = vmatprep.mubr.bf16.mxu0 0
        %2196 = vmatmul.mubr.bf16.gmra.mxu0 %v1682
        %v2197 = vpop.f32.mrf.mxu0
        %v2198 = vadd.f32 0.0, %v2197
        %v2199 = vpop.f32.mrf.mxu0
        %v2200 = vadd.f32 0.0, %v2199
        %v2201 = vpop.f32.mrf.mxu0
        %v2202 = vadd.f32 0.0, %v2201
        %v2203 = vpop.f32.mrf.mxu0
        %v2204 = vadd.f32 0.0, %v2203
        %2205 = vmatprep.mubr.bf16.mxu0 0
        %2206 = vmatmul.mubr.bf16.gmra.mxu0 %v1685
        %v2207 = vpop.f32.mrf.mxu0
        %v2208 = vadd.f32 0.0, %v2207
        %v2209 = vpop.f32.mrf.mxu0
        %v2210 = vadd.f32 0.0, %v2209
        %v2211 = vpop.f32.mrf.mxu0
        %v2212 = vadd.f32 0.0, %v2211
        %v2213 = vpop.f32.mrf.mxu0
        %v2214 = vadd.f32 0.0, %v2213
        %2215 = vmatprep.mubr.bf16.mxu0 0
        %2216 = vmatmul.mubr.bf16.gmra.mxu0 %v1688
        %v2217 = vpop.f32.mrf.mxu0
        %v2218 = vadd.f32 0.0, %v2217
        %v2219 = vpop.f32.mrf.mxu0
        %v2220 = vadd.f32 0.0, %v2219
        %v2221 = vpop.f32.mrf.mxu0
        %v2222 = vadd.f32 0.0, %v2221
        %v2223 = vpop.f32.mrf.mxu0
        %v2224 = vadd.f32 0.0, %v2223
        %2225 = vmatprep.mubr.bf16.mxu0 0
        %2226 = vmatmul.mubr.bf16.gmra.mxu0 %v1691
        %v2227 = vpop.f32.mrf.mxu0
        %v2228 = vadd.f32 0.0, %v2227
        %v2229 = vpop.f32.mrf.mxu0
        %v2230 = vadd.f32 0.0, %v2229
        %v2231 = vpop.f32.mrf.mxu0
        %v2232 = vadd.f32 0.0, %v2231
        %v2233 = vpop.f32.mrf.mxu0
        %v2234 = vadd.f32 0.0, %v2233
        %2235 = vmatprep.mubr.bf16.mxu0 0
        %2236 = vmatmul.mubr.bf16.gmra.mxu0 %v1694
        %v2237 = vpop.f32.mrf.mxu0
        %v2238 = vadd.f32 0.0, %v2237
        %v2239 = vpop.f32.mrf.mxu0
        %v2240 = vadd.f32 0.0, %v2239
        %v2241 = vpop.f32.mrf.mxu0
        %v2242 = vadd.f32 0.0, %v2241
        %v2243 = vpop.f32.mrf.mxu0
        %v2244 = vadd.f32 0.0, %v2243
        %2245 = vmatprep.mubr.bf16.mxu0 0
        %2246 = vmatmul.mubr.bf16.gmra.mxu0 %v1697
        %v2247 = vpop.f32.mrf.mxu0
        %v2248 = vadd.f32 0.0, %v2247
        %v2249 = vpop.f32.mrf.mxu0
        %v2250 = vadd.f32 0.0, %v2249
        %v2251 = vpop.f32.mrf.mxu0
        %v2252 = vadd.f32 0.0, %v2251
        %v2253 = vpop.f32.mrf.mxu0
        %v2254 = vadd.f32 0.0, %v2253
        %2255 = vmatprep.mubr.bf16.mxu0 0
        %2256 = vmatmul.mubr.bf16.gmra.mxu0 %v1700
        %v2257 = vpop.f32.mrf.mxu0
        %v2258 = vadd.f32 0.0, %v2257
        %v2259 = vpop.f32.mrf.mxu0
        %v2260 = vadd.f32 0.0, %v2259
        %v2261 = vpop.f32.mrf.mxu0
        %v2262 = vadd.f32 0.0, %v2261
        %v2263 = vpop.f32.mrf.mxu0
        %v2264 = vadd.f32 0.0, %v2263
        %2265 = vmatprep.mubr.bf16.mxu0 0
        %2266 = vmatmul.mubr.bf16.gmra.mxu0 %v1703
        %v2267 = vpop.f32.mrf.mxu0
        %v2268 = vadd.f32 0.0, %v2267
        %v2269 = vpop.f32.mrf.mxu0
        %v2270 = vadd.f32 0.0, %v2269
        %v2271 = vpop.f32.mrf.mxu0
        %v2272 = vadd.f32 0.0, %v2271
        %v2273 = vpop.f32.mrf.mxu0
        %v2274 = vadd.f32 0.0, %v2273
        %2275 = vmatprep.mubr.bf16.mxu0 0
        %2276 = vmatmul.mubr.bf16.gmra.mxu0 %v1706
        %v2277 = vpop.f32.mrf.mxu0
        %v2278 = vadd.f32 0.0, %v2277
        %v2279 = vpop.f32.mrf.mxu0
        %v2280 = vadd.f32 0.0, %v2279
        %v2281 = vpop.f32.mrf.mxu0
        %v2282 = vadd.f32 0.0, %v2281
        %v2283 = vpop.f32.mrf.mxu0
        %v2284 = vadd.f32 0.0, %v2283
        %2285 = vmatprep.mubr.bf16.mxu0 0
        %2286 = vmatmul.mubr.bf16.gmra.mxu0 %v1709
        %v2287 = vpop.f32.mrf.mxu0
        %v2288 = vadd.f32 0.0, %v2287
        %v2289 = vpop.f32.mrf.mxu0
        %v2290 = vadd.f32 0.0, %v2289
        %v2291 = vpop.f32.mrf.mxu0
        %v2292 = vadd.f32 0.0, %v2291
        %v2293 = vpop.f32.mrf.mxu0
        %v2294 = vadd.f32 0.0, %v2293
        %2295 = vmatprep.mubr.bf16.mxu0 0
        %2296 = vmatmul.mubr.bf16.gmra.mxu0 %v1712
        %v2297 = vpop.f32.mrf.mxu0
        %v2298 = vadd.f32 0.0, %v2297
        %v2299 = vpop.f32.mrf.mxu0
        %v2300 = vadd.f32 0.0, %v2299
        %v2301 = vpop.f32.mrf.mxu0
        %v2302 = vadd.f32 0.0, %v2301
        %v2303 = vpop.f32.mrf.mxu0
        %v2304 = vadd.f32 0.0, %v2303
        %2305 = vmatprep.mubr.bf16.mxu0 0
        %2306 = vmatmul.mubr.bf16.gmra.mxu0 %v1715
        %v2307 = vpop.f32.mrf.mxu0
        %v2308 = vadd.f32 0.0, %v2307
        %v2309 = vpop.f32.mrf.mxu0
        %v2310 = vadd.f32 0.0, %v2309
        %v2311 = vpop.f32.mrf.mxu0
        %v2312 = vadd.f32 0.0, %v2311
        %v2313 = vpop.f32.mrf.mxu0
        %v2314 = vadd.f32 0.0, %v2313
        %2315 = vmatprep.mubr.bf16.mxu0 0
        %2316 = vmatmul.mubr.bf16.gmra.mxu0 %v1718
        %v2317 = vpop.f32.mrf.mxu0
        %v2318 = vadd.f32 0.0, %v2317
        %v2319 = vpop.f32.mrf.mxu0
        %v2320 = vadd.f32 0.0, %v2319
        %v2321 = vpop.f32.mrf.mxu0
        %v2322 = vadd.f32 0.0, %v2321
        %v2323 = vpop.f32.mrf.mxu0
        %v2324 = vadd.f32 0.0, %v2323
        %2325 = vmatprep.mubr.bf16.mxu0 0
        %2326 = vmatmul.mubr.bf16.gmra.mxu0 %v1721
        %v2327 = vpop.f32.mrf.mxu0
        %v2328 = vadd.f32 0.0, %v2327
        %v2329 = vpop.f32.mrf.mxu0
        %v2330 = vadd.f32 0.0, %v2329
        %v2331 = vpop.f32.mrf.mxu0
        %v2332 = vadd.f32 0.0, %v2331
        %v2333 = vpop.f32.mrf.mxu0
        %v2334 = vadd.f32 0.0, %v2333
        %2335 = vmatprep.mubr.bf16.mxu0 0
        %2336 = vmatmul.mubr.bf16.gmra.mxu0 %v1724
        %v2337 = vpop.f32.mrf.mxu0
        %v2338 = vadd.f32 0.0, %v2337
        %v2339 = vpop.f32.mrf.mxu0
        %v2340 = vadd.f32 0.0, %v2339
        %v2341 = vpop.f32.mrf.mxu0
        %v2342 = vadd.f32 0.0, %v2341
        %v2343 = vpop.f32.mrf.mxu0
        %v2344 = vadd.f32 0.0, %v2343
        %2345 = vmatprep.mubr.bf16.mxu0 0
        %2346 = vmatmul.mubr.bf16.gmra.mxu0 %v1727
        %v2347 = vpop.f32.mrf.mxu0
        %v2348 = vadd.f32 0.0, %v2347
        %v2349 = vpop.f32.mrf.mxu0
        %v2350 = vadd.f32 0.0, %v2349
        %v2351 = vpop.f32.mrf.mxu0
        %v2352 = vadd.f32 0.0, %v2351
        %v2353 = vpop.f32.mrf.mxu0
        %v2354 = vadd.f32 0.0, %v2353
        %2355 = vmatprep.mubr.bf16.mxu0 0
        %2356 = vmatmul.mubr.bf16.gmra.mxu0 %v1730
        %v2357 = vpop.f32.mrf.mxu0
        %v2358 = vadd.f32 0.0, %v2357
        %v2359 = vpop.f32.mrf.mxu0
        %v2360 = vadd.f32 0.0, %v2359
        %v2361 = vpop.f32.mrf.mxu0
        %v2362 = vadd.f32 0.0, %v2361
        %v2363 = vpop.f32.mrf.mxu0
        %v2364 = vadd.f32 0.0, %v2363
        %2365 = vmatprep.mubr.bf16.mxu0 0
        %2366 = vmatmul.mubr.bf16.gmra.mxu0 %v1733
        %v2367 = vpop.f32.mrf.mxu0
        %v2368 = vadd.f32 0.0, %v2367
        %v2369 = vpop.f32.mrf.mxu0
        %v2370 = vadd.f32 0.0, %v2369
        %v2371 = vpop.f32.mrf.mxu0
        %v2372 = vadd.f32 0.0, %v2371
        %v2373 = vpop.f32.mrf.mxu0
        %v2374 = vadd.f32 0.0, %v2373
        %2375 = vmatprep.mubr.bf16.mxu0 0
        %2376 = vmatmul.mubr.bf16.gmra.mxu0 %v1736
        %v2377 = vpop.f32.mrf.mxu0
        %v2378 = vadd.f32 0.0, %v2377
        %v2379 = vpop.f32.mrf.mxu0
        %v2380 = vadd.f32 0.0, %v2379
        %v2381 = vpop.f32.mrf.mxu0
        %v2382 = vadd.f32 0.0, %v2381
        %v2383 = vpop.f32.mrf.mxu0
        %v2384 = vadd.f32 0.0, %v2383
        %2385 = vmatprep.mubr.bf16.mxu0 0
        %2386 = vmatmul.mubr.bf16.gmra.mxu0 %v1739
        %v2387 = vpop.f32.mrf.mxu0
        %v2388 = vadd.f32 0.0, %v2387
        %v2389 = vpop.f32.mrf.mxu0
        %v2390 = vadd.f32 0.0, %v2389
        %v2391 = vpop.f32.mrf.mxu0
        %v2392 = vadd.f32 0.0, %v2391
        %v2393 = vpop.f32.mrf.mxu0
        %v2394 = vadd.f32 0.0, %v2393
        %2395 = vmatprep.mubr.bf16.mxu0 0
        %2396 = vmatmul.mubr.bf16.gmra.mxu0 %v1742
        %v2397 = vpop.f32.mrf.mxu0
        %v2398 = vadd.f32 0.0, %v2397
        %v2399 = vpop.f32.mrf.mxu0
        %v2400 = vadd.f32 0.0, %v2399
        %v2401 = vpop.f32.mrf.mxu0
        %v2402 = vadd.f32 0.0, %v2401
        %v2403 = vpop.f32.mrf.mxu0
        %v2404 = vadd.f32 0.0, %v2403
        %2405 = vmatprep.mubr.bf16.mxu0 0
        %2406 = vmatmul.mubr.bf16.gmra.mxu0 %v1745
        %v2407 = vpop.f32.mrf.mxu0
        %v2408 = vadd.f32 0.0, %v2407
        %v2409 = vpop.f32.mrf.mxu0
        %v2410 = vadd.f32 0.0, %v2409
        %v2411 = vpop.f32.mrf.mxu0
        %v2412 = vadd.f32 0.0, %v2411
        %v2413 = vpop.f32.mrf.mxu0
        %v2414 = vadd.f32 0.0, %v2413
        %2415 = vmatprep.mubr.bf16.mxu0 0
        %2416 = vmatmul.mubr.bf16.gmra.mxu0 %v1748
        %v2417 = vpop.f32.mrf.mxu0
        %v2418 = vadd.f32 0.0, %v2417
        %v2419 = vpop.f32.mrf.mxu0
        %v2420 = vadd.f32 0.0, %v2419
        %v2421 = vpop.f32.mrf.mxu0
        %v2422 = vadd.f32 0.0, %v2421
        %v2423 = vpop.f32.mrf.mxu0
        %v2424 = vadd.f32 0.0, %v2423
        %2425 = vmatprep.mubr.bf16.mxu0 0
        %2426 = vmatmul.mubr.bf16.gmra.mxu0 %v1751
        %v2427 = vpop.f32.mrf.mxu0
        %v2428 = vadd.f32 0.0, %v2427
        %v2429 = vpop.f32.mrf.mxu0
        %v2430 = vadd.f32 0.0, %v2429
        %v2431 = vpop.f32.mrf.mxu0
        %v2432 = vadd.f32 0.0, %v2431
        %v2433 = vpop.f32.mrf.mxu0
        %v2434 = vadd.f32 0.0, %v2433
        %2435 = vmatprep.mubr.bf16.mxu0 0
        %2436 = vmatmul.mubr.bf16.gmra.mxu0 %v1754
        %v2437 = vpop.f32.mrf.mxu0
        %v2438 = vadd.f32 0.0, %v2437
        %v2439 = vpop.f32.mrf.mxu0
        %v2440 = vadd.f32 0.0, %v2439
        %v2441 = vpop.f32.mrf.mxu0
        %v2442 = vadd.f32 0.0, %v2441
        %v2443 = vpop.f32.mrf.mxu0
        %v2444 = vadd.f32 0.0, %v2443
        %2445 = vmatprep.mubr.bf16.mxu0 0
        %2446 = vmatmul.mubr.bf16.gmra.mxu0 %v1757
        %v2447 = vpop.f32.mrf.mxu0
        %v2448 = vadd.f32 0.0, %v2447
        %v2449 = vpop.f32.mrf.mxu0
        %v2450 = vadd.f32 0.0, %v2449
        %v2451 = vpop.f32.mrf.mxu0
        %v2452 = vadd.f32 0.0, %v2451
        %v2453 = vpop.f32.mrf.mxu0
        %v2454 = vadd.f32 0.0, %v2453
        %2455 = vmatprep.mubr.bf16.mxu0 0
        %2456 = vmatmul.mubr.bf16.gmra.mxu0 %v1760
        %v2457 = vpop.f32.mrf.mxu0
        %v2458 = vadd.f32 0.0, %v2457
        %v2459 = vpop.f32.mrf.mxu0
        %v2460 = vadd.f32 0.0, %v2459
        %v2461 = vpop.f32.mrf.mxu0
        %v2462 = vadd.f32 0.0, %v2461
        %v2463 = vpop.f32.mrf.mxu0
        %v2464 = vadd.f32 0.0, %v2463
        %2465 = vmatprep.mubr.bf16.mxu0 0
        %2466 = vmatmul.mubr.bf16.gmra.mxu0 %v1763
        %v2467 = vpop.f32.mrf.mxu0
        %v2468 = vadd.f32 0.0, %v2467
        %v2469 = vpop.f32.mrf.mxu0
        %v2470 = vadd.f32 0.0, %v2469
        %v2471 = vpop.f32.mrf.mxu0
        %v2472 = vadd.f32 0.0, %v2471
        %v2473 = vpop.f32.mrf.mxu0
        %v2474 = vadd.f32 0.0, %v2473
        %2475 = vmatprep.mubr.bf16.mxu0 0
        %2476 = vmatmul.mubr.bf16.gmra.mxu0 %v1766
        %v2477 = vpop.f32.mrf.mxu0
        %v2478 = vadd.f32 0.0, %v2477
        %v2479 = vpop.f32.mrf.mxu0
        %v2480 = vadd.f32 0.0, %v2479
        %v2481 = vpop.f32.mrf.mxu0
        %v2482 = vadd.f32 0.0, %v2481
        %v2483 = vpop.f32.mrf.mxu0
        %v2484 = vadd.f32 0.0, %v2483
        %2485 = vmatprep.mubr.bf16.mxu0 0
        %2486 = vmatmul.mubr.bf16.gmra.mxu0 %v1769
        %v2487 = vpop.f32.mrf.mxu0
        %v2488 = vadd.f32 0.0, %v2487
        %v2489 = vpop.f32.mrf.mxu0
        %v2490 = vadd.f32 0.0, %v2489
        %v2491 = vpop.f32.mrf.mxu0
        %v2492 = vadd.f32 0.0, %v2491
        %v2493 = vpop.f32.mrf.mxu0
        %v2494 = vadd.f32 0.0, %v2493
        %2495 = vmatprep.mubr.bf16.mxu0 0
        %2496 = vmatmul.mubr.bf16.gmra.mxu0 %v1772
        %v2497 = vpop.f32.mrf.mxu0
        %v2498 = vadd.f32 0.0, %v2497
        %v2499 = vpop.f32.mrf.mxu0
        %v2500 = vadd.f32 0.0, %v2499
        %v2501 = vpop.f32.mrf.mxu0
        %v2502 = vadd.f32 0.0, %v2501
        %v2503 = vpop.f32.mrf.mxu0
        %v2504 = vadd.f32 0.0, %v2503
        %2505 = vmatprep.mubr.bf16.mxu0 0
        %2506 = vmatmul.mubr.bf16.gmra.mxu0 %v1775
        %v2507 = vpop.f32.mrf.mxu0
        %v2508 = vadd.f32 0.0, %v2507
        %v2509 = vpop.f32.mrf.mxu0
        %v2510 = vadd.f32 0.0, %v2509
        %v2511 = vpop.f32.mrf.mxu0
        %v2512 = vadd.f32 0.0, %v2511
        %v2513 = vpop.f32.mrf.mxu0
        %v2514 = vadd.f32 0.0, %v2513
        %2515 = vmatprep.mubr.bf16.mxu0 0
        %2516 = vmatmul.mubr.bf16.gmra.mxu0 %v1778
        %v2517 = vpop.f32.mrf.mxu0
        %v2518 = vadd.f32 0.0, %v2517
        %v2519 = vpop.f32.mrf.mxu0
        %v2520 = vadd.f32 0.0, %v2519
        %v2521 = vpop.f32.mrf.mxu0
        %v2522 = vadd.f32 0.0, %v2521
        %v2523 = vpop.f32.mrf.mxu0
        %v2524 = vadd.f32 0.0, %v2523
        %2525 = vdwg.mxu0
        %2526 = vmatprep.subr.bf16.mxu0 0
        %2527 = vmatpush1.bf16.msra.mxu0 0
        %2528 = vmatprep.subr.bf16.mxu0 0
        %2529 = vmatpush1.bf16.msra.mxu0 0
        %2530 = vmatprep.subr.bf16.mxu0 0
        %2531 = vmatpush1.bf16.msra.mxu0 0
        %2532 = vmatprep.subr.bf16.mxu0 0
        %2533 = vmatpush1.bf16.msra.mxu0 0
        %2534 = vmatprep.subr.bf16.mxu0 0
        %2535 = vmatpush1.bf16.msra.mxu0 %v1657
        %2536 = vmatprep.subr.bf16.mxu0 0
        %2537 = vmatpush1.bf16.msra.mxu0 %v1652
        %2538 = vmatprep.subr.bf16.mxu0 0
        %2539 = vmatpush1.bf16.msra.mxu0 %v1647
        %2540 = vmatprep.subr.bf16.mxu0 0
        %2541 = vmatpush1.bf16.msra.mxu0 %v1642
        %2542 = vmatprep.subr.bf16.mxu0 0
        %2543 = vmatpush2.bf16.msra.mxu0 0
        %2544 = vmatprep.subr.bf16.mxu0 0
        %2545 = vmatpush2.bf16.msra.mxu0 0
        %2546 = vmatprep.subr.bf16.mxu0 0
        %2547 = vmatpush2.bf16.msra.mxu0 0
        %2548 = vmatprep.subr.bf16.mxu0 0
        %2549 = vmatpush2.bf16.msra.mxu0 0
        %2550 = vmatprep.subr.bf16.mxu0 0
        %2551 = vmatpush2.bf16.msra.mxu0 0
        %2552 = vmatprep.subr.bf16.mxu0 0
        %2553 = vmatpush2.bf16.msra.mxu0 0
        %2554 = vmatprep.subr.bf16.mxu0 0
        %2555 = vmatpush2.bf16.msra.mxu0 0
        %2556 = vmatprep.subr.bf16.mxu0 0
        %2557 = vmatpush2.bf16.msra.mxu0 0
        %2558 = vmatprep.mubr.bf16.mxu0 0
        %2559 = vmatmul.mubr.bf16.gmra.mxu0 %v1679
        %v2560 = vpop.f32.mrf.mxu0
        %v2561 = vadd.f32 0.0, %v2560
        %v2562 = vpop.f32.mrf.mxu0
        %v2563 = vpop.f32.mrf.mxu0
        %v2564 = vadd.f32 0.0, %v2563
        %v2565 = vpop.f32.mrf.mxu0
        %2566 = vmatprep.mubr.bf16.mxu0 0
        %2567 = vmatmul.mubr.bf16.gmra.mxu0 %v1682
        %v2568 = vpop.f32.mrf.mxu0
        %v2569 = vadd.f32 0.0, %v2568
        %v2570 = vpop.f32.mrf.mxu0
        %v2571 = vpop.f32.mrf.mxu0
        %v2572 = vadd.f32 0.0, %v2571
        %v2573 = vpop.f32.mrf.mxu0
        %2574 = vmatprep.mubr.bf16.mxu0 0
        %2575 = vmatmul.mubr.bf16.gmra.mxu0 %v1685
        %v2576 = vpop.f32.mrf.mxu0
        %v2577 = vadd.f32 0.0, %v2576
        %v2578 = vpop.f32.mrf.mxu0
        %v2579 = vpop.f32.mrf.mxu0
        %v2580 = vadd.f32 0.0, %v2579
        %v2581 = vpop.f32.mrf.mxu0
        %2582 = vmatprep.mubr.bf16.mxu0 0
        %2583 = vmatmul.mubr.bf16.gmra.mxu0 %v1688
        %v2584 = vpop.f32.mrf.mxu0
        %v2585 = vadd.f32 0.0, %v2584
        %v2586 = vpop.f32.mrf.mxu0
        %v2587 = vpop.f32.mrf.mxu0
        %v2588 = vadd.f32 0.0, %v2587
        %v2589 = vpop.f32.mrf.mxu0
        %2590 = vmatprep.mubr.bf16.mxu0 0
        %2591 = vmatmul.mubr.bf16.gmra.mxu0 %v1691
        %v2592 = vpop.f32.mrf.mxu0
        %v2593 = vadd.f32 0.0, %v2592
        %v2594 = vpop.f32.mrf.mxu0
        %v2595 = vpop.f32.mrf.mxu0
        %v2596 = vadd.f32 0.0, %v2595
        %v2597 = vpop.f32.mrf.mxu0
        %2598 = vmatprep.mubr.bf16.mxu0 0
        %2599 = vmatmul.mubr.bf16.gmra.mxu0 %v1694
        %v2600 = vpop.f32.mrf.mxu0
        %v2601 = vadd.f32 0.0, %v2600
        %v2602 = vpop.f32.mrf.mxu0
        %v2603 = vpop.f32.mrf.mxu0
        %v2604 = vadd.f32 0.0, %v2603
        %v2605 = vpop.f32.mrf.mxu0
        %2606 = vmatprep.mubr.bf16.mxu0 0
        %2607 = vmatmul.mubr.bf16.gmra.mxu0 %v1697
        %v2608 = vpop.f32.mrf.mxu0
        %v2609 = vadd.f32 0.0, %v2608
        %v2610 = vpop.f32.mrf.mxu0
        %v2611 = vpop.f32.mrf.mxu0
        %v2612 = vadd.f32 0.0, %v2611
        %v2613 = vpop.f32.mrf.mxu0
        %2614 = vmatprep.mubr.bf16.mxu0 0
        %2615 = vmatmul.mubr.bf16.gmra.mxu0 %v1700
        %v2616 = vpop.f32.mrf.mxu0
        %v2617 = vadd.f32 0.0, %v2616
        %v2618 = vpop.f32.mrf.mxu0
        %v2619 = vpop.f32.mrf.mxu0
        %v2620 = vadd.f32 0.0, %v2619
        %v2621 = vpop.f32.mrf.mxu0
        %2622 = vmatprep.mubr.bf16.mxu0 0
        %2623 = vmatmul.mubr.bf16.gmra.mxu0 %v1703
        %v2624 = vpop.f32.mrf.mxu0
        %v2625 = vadd.f32 0.0, %v2624
        %v2626 = vpop.f32.mrf.mxu0
        %v2627 = vpop.f32.mrf.mxu0
        %v2628 = vadd.f32 0.0, %v2627
        %v2629 = vpop.f32.mrf.mxu0
        %2630 = vmatprep.mubr.bf16.mxu0 0
        %2631 = vmatmul.mubr.bf16.gmra.mxu0 %v1706
        %v2632 = vpop.f32.mrf.mxu0
        %v2633 = vadd.f32 0.0, %v2632
        %v2634 = vpop.f32.mrf.mxu0
        %v2635 = vpop.f32.mrf.mxu0
        %v2636 = vadd.f32 0.0, %v2635
        %v2637 = vpop.f32.mrf.mxu0
        %2638 = vmatprep.mubr.bf16.mxu0 0
        %2639 = vmatmul.mubr.bf16.gmra.mxu0 %v1709
        %v2640 = vpop.f32.mrf.mxu0
        %v2641 = vadd.f32 0.0, %v2640
        %v2642 = vpop.f32.mrf.mxu0
        %v2643 = vpop.f32.mrf.mxu0
        %v2644 = vadd.f32 0.0, %v2643
        %v2645 = vpop.f32.mrf.mxu0
        %2646 = vmatprep.mubr.bf16.mxu0 0
        %2647 = vmatmul.mubr.bf16.gmra.mxu0 %v1712
        %v2648 = vpop.f32.mrf.mxu0
        %v2649 = vadd.f32 0.0, %v2648
        %v2650 = vpop.f32.mrf.mxu0
        %v2651 = vpop.f32.mrf.mxu0
        %v2652 = vadd.f32 0.0, %v2651
        %v2653 = vpop.f32.mrf.mxu0
        %2654 = vmatprep.mubr.bf16.mxu0 0
        %2655 = vmatmul.mubr.bf16.gmra.mxu0 %v1715
        %v2656 = vpop.f32.mrf.mxu0
        %v2657 = vadd.f32 0.0, %v2656
        %v2658 = vpop.f32.mrf.mxu0
        %v2659 = vpop.f32.mrf.mxu0
        %v2660 = vadd.f32 0.0, %v2659
        %v2661 = vpop.f32.mrf.mxu0
        %2662 = vmatprep.mubr.bf16.mxu0 0
        %2663 = vmatmul.mubr.bf16.gmra.mxu0 %v1718
        %v2664 = vpop.f32.mrf.mxu0
        %v2665 = vadd.f32 0.0, %v2664
        %v2666 = vpop.f32.mrf.mxu0
        %v2667 = vpop.f32.mrf.mxu0
        %v2668 = vadd.f32 0.0, %v2667
        %v2669 = vpop.f32.mrf.mxu0
        %2670 = vmatprep.mubr.bf16.mxu0 0
        %2671 = vmatmul.mubr.bf16.gmra.mxu0 %v1721
        %v2672 = vpop.f32.mrf.mxu0
        %v2673 = vadd.f32 0.0, %v2672
        %v2674 = vpop.f32.mrf.mxu0
        %v2675 = vpop.f32.mrf.mxu0
        %v2676 = vadd.f32 0.0, %v2675
        %v2677 = vpop.f32.mrf.mxu0
        %2678 = vmatprep.mubr.bf16.mxu0 0
        %2679 = vmatmul.mubr.bf16.gmra.mxu0 %v1724
        %v2680 = vpop.f32.mrf.mxu0
        %v2681 = vadd.f32 0.0, %v2680
        %v2682 = vpop.f32.mrf.mxu0
        %v2683 = vpop.f32.mrf.mxu0
        %v2684 = vadd.f32 0.0, %v2683
        %v2685 = vpop.f32.mrf.mxu0
        %2686 = vmatprep.mubr.bf16.mxu0 0
        %2687 = vmatmul.mubr.bf16.gmra.mxu0 %v1727
        %v2688 = vpop.f32.mrf.mxu0
        %v2689 = vadd.f32 0.0, %v2688
        %v2690 = vpop.f32.mrf.mxu0
        %v2691 = vpop.f32.mrf.mxu0
        %v2692 = vadd.f32 0.0, %v2691
        %v2693 = vpop.f32.mrf.mxu0
        %2694 = vmatprep.mubr.bf16.mxu0 0
        %2695 = vmatmul.mubr.bf16.gmra.mxu0 %v1730
        %v2696 = vpop.f32.mrf.mxu0
        %v2697 = vadd.f32 0.0, %v2696
        %v2698 = vpop.f32.mrf.mxu0
        %v2699 = vpop.f32.mrf.mxu0
        %v2700 = vadd.f32 0.0, %v2699
        %v2701 = vpop.f32.mrf.mxu0
        %2702 = vmatprep.mubr.bf16.mxu0 0
        %2703 = vmatmul.mubr.bf16.gmra.mxu0 %v1733
        %v2704 = vpop.f32.mrf.mxu0
        %v2705 = vadd.f32 0.0, %v2704
        %v2706 = vpop.f32.mrf.mxu0
        %v2707 = vpop.f32.mrf.mxu0
        %v2708 = vadd.f32 0.0, %v2707
        %v2709 = vpop.f32.mrf.mxu0
        %2710 = vmatprep.mubr.bf16.mxu0 0
        %2711 = vmatmul.mubr.bf16.gmra.mxu0 %v1736
        %v2712 = vpop.f32.mrf.mxu0
        %v2713 = vadd.f32 0.0, %v2712
        %v2714 = vpop.f32.mrf.mxu0
        %v2715 = vpop.f32.mrf.mxu0
        %v2716 = vadd.f32 0.0, %v2715
        %v2717 = vpop.f32.mrf.mxu0
        %2718 = vmatprep.mubr.bf16.mxu0 0
        %2719 = vmatmul.mubr.bf16.gmra.mxu0 %v1739
        %v2720 = vpop.f32.mrf.mxu0
        %v2721 = vadd.f32 0.0, %v2720
        %v2722 = vpop.f32.mrf.mxu0
        %v2723 = vpop.f32.mrf.mxu0
        %v2724 = vadd.f32 0.0, %v2723
        %v2725 = vpop.f32.mrf.mxu0
        %2726 = vmatprep.mubr.bf16.mxu0 0
        %2727 = vmatmul.mubr.bf16.gmra.mxu0 %v1742
        %v2728 = vpop.f32.mrf.mxu0
        %v2729 = vadd.f32 0.0, %v2728
        %v2730 = vpop.f32.mrf.mxu0
        %v2731 = vpop.f32.mrf.mxu0
        %v2732 = vadd.f32 0.0, %v2731
        %v2733 = vpop.f32.mrf.mxu0
        %2734 = vmatprep.mubr.bf16.mxu0 0
        %2735 = vmatmul.mubr.bf16.gmra.mxu0 %v1745
        %v2736 = vpop.f32.mrf.mxu0
        %v2737 = vadd.f32 0.0, %v2736
        %v2738 = vpop.f32.mrf.mxu0
        %v2739 = vpop.f32.mrf.mxu0
        %v2740 = vadd.f32 0.0, %v2739
        %v2741 = vpop.f32.mrf.mxu0
        %2742 = vmatprep.mubr.bf16.mxu0 0
        %2743 = vmatmul.mubr.bf16.gmra.mxu0 %v1748
        %v2744 = vpop.f32.mrf.mxu0
        %v2745 = vadd.f32 0.0, %v2744
        %v2746 = vpop.f32.mrf.mxu0
        %v2747 = vpop.f32.mrf.mxu0
        %v2748 = vadd.f32 0.0, %v2747
        %v2749 = vpop.f32.mrf.mxu0
        %2750 = vmatprep.mubr.bf16.mxu0 0
        %2751 = vmatmul.mubr.bf16.gmra.mxu0 %v1751
        %v2752 = vpop.f32.mrf.mxu0
        %v2753 = vadd.f32 0.0, %v2752
        %v2754 = vpop.f32.mrf.mxu0
        %v2755 = vpop.f32.mrf.mxu0
        %v2756 = vadd.f32 0.0, %v2755
        %v2757 = vpop.f32.mrf.mxu0
        %2758 = vmatprep.mubr.bf16.mxu0 0
        %2759 = vmatmul.mubr.bf16.gmra.mxu0 %v1754
        %v2760 = vpop.f32.mrf.mxu0
        %v2761 = vadd.f32 0.0, %v2760
        %v2762 = vpop.f32.mrf.mxu0
        %v2763 = vpop.f32.mrf.mxu0
        %v2764 = vadd.f32 0.0, %v2763
        %v2765 = vpop.f32.mrf.mxu0
        %2766 = vmatprep.mubr.bf16.mxu0 0
        %2767 = vmatmul.mubr.bf16.gmra.mxu0 %v1757
        %v2768 = vpop.f32.mrf.mxu0
        %v2769 = vadd.f32 0.0, %v2768
        %v2770 = vpop.f32.mrf.mxu0
        %v2771 = vpop.f32.mrf.mxu0
        %v2772 = vadd.f32 0.0, %v2771
        %v2773 = vpop.f32.mrf.mxu0
        %2774 = vmatprep.mubr.bf16.mxu0 0
        %2775 = vmatmul.mubr.bf16.gmra.mxu0 %v1760
        %v2776 = vpop.f32.mrf.mxu0
        %v2777 = vadd.f32 0.0, %v2776
        %v2778 = vpop.f32.mrf.mxu0
        %v2779 = vpop.f32.mrf.mxu0
        %v2780 = vadd.f32 0.0, %v2779
        %v2781 = vpop.f32.mrf.mxu0
        %2782 = vmatprep.mubr.bf16.mxu0 0
        %2783 = vmatmul.mubr.bf16.gmra.mxu0 %v1763
        %v2784 = vpop.f32.mrf.mxu0
        %v2785 = vadd.f32 0.0, %v2784
        %v2786 = vpop.f32.mrf.mxu0
        %v2787 = vpop.f32.mrf.mxu0
        %v2788 = vadd.f32 0.0, %v2787
        %v2789 = vpop.f32.mrf.mxu0
        %2790 = vmatprep.mubr.bf16.mxu0 0
        %2791 = vmatmul.mubr.bf16.gmra.mxu0 %v1766
        %v2792 = vpop.f32.mrf.mxu0
        %v2793 = vadd.f32 0.0, %v2792
        %v2794 = vpop.f32.mrf.mxu0
        %v2795 = vpop.f32.mrf.mxu0
        %v2796 = vadd.f32 0.0, %v2795
        %v2797 = vpop.f32.mrf.mxu0
        %2798 = vmatprep.mubr.bf16.mxu0 0
        %2799 = vmatmul.mubr.bf16.gmra.mxu0 %v1769
        %v2800 = vpop.f32.mrf.mxu0
        %v2801 = vadd.f32 0.0, %v2800
        %v2802 = vpop.f32.mrf.mxu0
        %v2803 = vpop.f32.mrf.mxu0
        %v2804 = vadd.f32 0.0, %v2803
        %v2805 = vpop.f32.mrf.mxu0
        %2806 = vmatprep.mubr.bf16.mxu0 0
        %2807 = vmatmul.mubr.bf16.gmra.mxu0 %v1772
        %v2808 = vpop.f32.mrf.mxu0
        %v2809 = vadd.f32 0.0, %v2808
        %v2810 = vpop.f32.mrf.mxu0
        %v2811 = vpop.f32.mrf.mxu0
        %v2812 = vadd.f32 0.0, %v2811
        %v2813 = vpop.f32.mrf.mxu0
        %2814 = vmatprep.mubr.bf16.mxu0 0
        %2815 = vmatmul.mubr.bf16.gmra.mxu0 %v1775
        %v2816 = vpop.f32.mrf.mxu0
        %v2817 = vadd.f32 0.0, %v2816
        %v2818 = vpop.f32.mrf.mxu0
        %v2819 = vpop.f32.mrf.mxu0
        %v2820 = vadd.f32 0.0, %v2819
        %v2821 = vpop.f32.mrf.mxu0
        %2822 = vmatprep.mubr.bf16.mxu0 0
        %2823 = vmatmul.mubr.bf16.gmra.mxu0 %v1778
        %v2824 = vpop.f32.mrf.mxu0
        %v2825 = vadd.f32 0.0, %v2824
        %v2826 = vpop.f32.mrf.mxu0
        %v2827 = vpop.f32.mrf.mxu0
        %v2828 = vadd.f32 0.0, %v2827
        %v2829 = vpop.f32.mrf.mxu0
        %2830 = vdwg.mxu0
        %2831 = vst [vmem:[%s302] sm:$0xff] %v1815
        %2832 = vst [vmem:[%s302 + $0x8] sm:$0xff] %v1817
        %2833 = vst [vmem:[%s302 + $0x10] sm:$0xff] %v2188
        %2834 = vst [vmem:[%s302 + $0x18] sm:$0xff] %v2190
        %vm2835 = vcmask 261120
        %2836 = vst.msk [vmem:[%s302 + $0x20] sm:$0xff] %vm2835, %v2561
        %2837 = vst [vmem:[%s302 + $0x28] sm:$0xff] %v1819
        %2838 = vst [vmem:[%s302 + $0x30] sm:$0xff] %v1821
        %2839 = vst [vmem:[%s302 + $0x38] sm:$0xff] %v2192
        %2840 = vst [vmem:[%s302 + $0x40] sm:$0xff] %v2194
        %2841 = vst.msk [vmem:[%s302 + $0x48] sm:$0xff] %vm2835, %v2564
        %2842 = vst [vmem:[%s302 + $0x50] sm:$0xff] %v1825
        %2843 = vst [vmem:[%s302 + $0x58] sm:$0xff] %v1827
        %2844 = vst [vmem:[%s302 + $0x60] sm:$0xff] %v2198
        %2845 = vst [vmem:[%s302 + $0x68] sm:$0xff] %v2200
        %2846 = vst.msk [vmem:[%s302 + $0x70] sm:$0xff] %vm2835, %v2569
        %2847 = vst [vmem:[%s302 + $0x78] sm:$0xff] %v1829
        %2848 = vst [vmem:[%s302 + $0x80] sm:$0xff] %v1831
        %2849 = vst [vmem:[%s302 + $0x88] sm:$0xff] %v2202
        %2850 = vst [vmem:[%s302 + $0x90] sm:$0xff] %v2204
        %2851 = vst.msk [vmem:[%s302 + $0x98] sm:$0xff] %vm2835, %v2572
        %2852 = vst [vmem:[%s302 + $0xa0] sm:$0xff] %v1835
        %2853 = vst [vmem:[%s302 + $0xa8] sm:$0xff] %v1837
        %2854 = vst [vmem:[%s302 + $0xb0] sm:$0xff] %v2208
        %2855 = vst [vmem:[%s302 + $0xb8] sm:$0xff] %v2210
        %2856 = vst.msk [vmem:[%s302 + $0xc0] sm:$0xff] %vm2835, %v2577
        %2857 = vst [vmem:[%s302 + $0xc8] sm:$0xff] %v1839
        %2858 = vst [vmem:[%s302 + $0xd0] sm:$0xff] %v1841
        %2859 = vst [vmem:[%s302 + $0xd8] sm:$0xff] %v2212
        %2860 = vst [vmem:[%s302 + $0xe0] sm:$0xff] %v2214
        %2861 = vst.msk [vmem:[%s302 + $0xe8] sm:$0xff] %vm2835, %v2580
        %2862 = vst [vmem:[%s302 + $0xf0] sm:$0xff] %v1845
        %2863 = vst [vmem:[%s302 + $0xf8] sm:$0xff] %v1847
        %2864 = vst [vmem:[%s302 + $0x100] sm:$0xff] %v2218
        %2865 = vst [vmem:[%s302 + $0x108] sm:$0xff] %v2220
        %2866 = vst.msk [vmem:[%s302 + $0x110] sm:$0xff] %vm2835, %v2585
        %2867 = vst [vmem:[%s302 + $0x118] sm:$0xff] %v1849
        %2868 = vst [vmem:[%s302 + $0x120] sm:$0xff] %v1851
        %2869 = vst [vmem:[%s302 + $0x128] sm:$0xff] %v2222
        %2870 = vst [vmem:[%s302 + $0x130] sm:$0xff] %v2224
        %2871 = vst.msk [vmem:[%s302 + $0x138] sm:$0xff] %vm2835, %v2588
        %2872 = vst [vmem:[%s302 + $0x140] sm:$0xff] %v1855
        %2873 = vst [vmem:[%s302 + $0x148] sm:$0xff] %v1857
        %2874 = vst [vmem:[%s302 + $0x150] sm:$0xff] %v2228
        %2875 = vst [vmem:[%s302 + $0x158] sm:$0xff] %v2230
        %2876 = vst.msk [vmem:[%s302 + $0x160] sm:$0xff] %vm2835, %v2593
        %2877 = vst [vmem:[%s302 + $0x168] sm:$0xff] %v1859
        %2878 = vst [vmem:[%s302 + $0x170] sm:$0xff] %v1861
        %2879 = vst [vmem:[%s302 + $0x178] sm:$0xff] %v2232
        %2880 = vst [vmem:[%s302 + $0x180] sm:$0xff] %v2234
        %2881 = vst.msk [vmem:[%s302 + $0x188] sm:$0xff] %vm2835, %v2596
        %2882 = vst [vmem:[%s302 + $0x190] sm:$0xff] %v1865
        %2883 = vst [vmem:[%s302 + $0x198] sm:$0xff] %v1867
        %2884 = vst [vmem:[%s302 + $0x1a0] sm:$0xff] %v2238
        %2885 = vst [vmem:[%s302 + $0x1a8] sm:$0xff] %v2240
        %2886 = vst.msk [vmem:[%s302 + $0x1b0] sm:$0xff] %vm2835, %v2601
        %2887 = vst [vmem:[%s302 + $0x1b8] sm:$0xff] %v1869
        %2888 = vst [vmem:[%s302 + $0x1c0] sm:$0xff] %v1871
        %2889 = vst [vmem:[%s302 + $0x1c8] sm:$0xff] %v2242
        %2890 = vst [vmem:[%s302 + $0x1d0] sm:$0xff] %v2244
        %2891 = vst.msk [vmem:[%s302 + $0x1d8] sm:$0xff] %vm2835, %v2604
        %2892 = vst [vmem:[%s302 + $0x1e0] sm:$0xff] %v1875
        %2893 = vst [vmem:[%s302 + $0x1e8] sm:$0xff] %v1877
        %2894 = vst [vmem:[%s302 + $0x1f0] sm:$0xff] %v2248
        %2895 = vst [vmem:[%s302 + $0x1f8] sm:$0xff] %v2250
        %2896 = vst.msk [vmem:[%s302 + $0x200] sm:$0xff] %vm2835, %v2609
        %2897 = vst [vmem:[%s302 + $0x208] sm:$0xff] %v1879
        %2898 = vst [vmem:[%s302 + $0x210] sm:$0xff] %v1881
        %2899 = vst [vmem:[%s302 + $0x218] sm:$0xff] %v2252
        %2900 = vst [vmem:[%s302 + $0x220] sm:$0xff] %v2254
        %2901 = vst.msk [vmem:[%s302 + $0x228] sm:$0xff] %vm2835, %v2612
        %2902 = vst [vmem:[%s302 + $0x230] sm:$0xff] %v1885
        %2903 = vst [vmem:[%s302 + $0x238] sm:$0xff] %v1887
        %2904 = vst [vmem:[%s302 + $0x240] sm:$0xff] %v2258
        %2905 = vst [vmem:[%s302 + $0x248] sm:$0xff] %v2260
        %2906 = vst.msk [vmem:[%s302 + $0x250] sm:$0xff] %vm2835, %v2617
        %2907 = vst [vmem:[%s302 + $0x258] sm:$0xff] %v1889
        %2908 = vst [vmem:[%s302 + $0x260] sm:$0xff] %v1891
        %2909 = vst [vmem:[%s302 + $0x268] sm:$0xff] %v2262
        %2910 = vst [vmem:[%s302 + $0x270] sm:$0xff] %v2264
        %2911 = vst.msk [vmem:[%s302 + $0x278] sm:$0xff] %vm2835, %v2620
        %2912 = vst [vmem:[%s302 + $0x280] sm:$0xff] %v1895
        %2913 = vst [vmem:[%s302 + $0x288] sm:$0xff] %v1897
        %2914 = vst [vmem:[%s302 + $0x290] sm:$0xff] %v2268
        %2915 = vst [vmem:[%s302 + $0x298] sm:$0xff] %v2270
        %2916 = vst.msk [vmem:[%s302 + $0x2a0] sm:$0xff] %vm2835, %v2625
        %2917 = vst [vmem:[%s302 + $0x2a8] sm:$0xff] %v1899
        %2918 = vst [vmem:[%s302 + $0x2b0] sm:$0xff] %v1901
        %2919 = vst [vmem:[%s302 + $0x2b8] sm:$0xff] %v2272
        %2920 = vst [vmem:[%s302 + $0x2c0] sm:$0xff] %v2274
        %2921 = vst.msk [vmem:[%s302 + $0x2c8] sm:$0xff] %vm2835, %v2628
        %2922 = vst [vmem:[%s302 + $0x2d0] sm:$0xff] %v1905
        %2923 = vst [vmem:[%s302 + $0x2d8] sm:$0xff] %v1907
        %2924 = vst [vmem:[%s302 + $0x2e0] sm:$0xff] %v2278
        %2925 = vst [vmem:[%s302 + $0x2e8] sm:$0xff] %v2280
        %2926 = vst.msk [vmem:[%s302 + $0x2f0] sm:$0xff] %vm2835, %v2633
        %2927 = vst [vmem:[%s302 + $0x2f8] sm:$0xff] %v1909
        %2928 = vst [vmem:[%s302 + $0x300] sm:$0xff] %v1911
        %2929 = vst [vmem:[%s302 + $0x308] sm:$0xff] %v2282
        %2930 = vst [vmem:[%s302 + $0x310] sm:$0xff] %v2284
        %2931 = vst.msk [vmem:[%s302 + $0x318] sm:$0xff] %vm2835, %v2636
        %2932 = vst [vmem:[%s302 + $0x320] sm:$0xff] %v1915
        %2933 = vst [vmem:[%s302 + $0x328] sm:$0xff] %v1917
        %2934 = vst [vmem:[%s302 + $0x330] sm:$0xff] %v2288
        %2935 = vst [vmem:[%s302 + $0x338] sm:$0xff] %v2290
        %2936 = vst.msk [vmem:[%s302 + $0x340] sm:$0xff] %vm2835, %v2641
        %2937 = vst [vmem:[%s302 + $0x348] sm:$0xff] %v1919
        %2938 = vst [vmem:[%s302 + $0x350] sm:$0xff] %v1921
        %2939 = vst [vmem:[%s302 + $0x358] sm:$0xff] %v2292
        %2940 = vst [vmem:[%s302 + $0x360] sm:$0xff] %v2294
        %2941 = vst.msk [vmem:[%s302 + $0x368] sm:$0xff] %vm2835, %v2644
        %2942 = vst [vmem:[%s302 + $0x370] sm:$0xff] %v1925
        %2943 = vst [vmem:[%s302 + $0x378] sm:$0xff] %v1927
        %2944 = vst [vmem:[%s302 + $0x380] sm:$0xff] %v2298
        %2945 = vst [vmem:[%s302 + $0x388] sm:$0xff] %v2300
        %2946 = vst.msk [vmem:[%s302 + $0x390] sm:$0xff] %vm2835, %v2649
        %2947 = vst [vmem:[%s302 + $0x398] sm:$0xff] %v1929
        %2948 = vst [vmem:[%s302 + $0x3a0] sm:$0xff] %v1931
        %2949 = vst [vmem:[%s302 + $0x3a8] sm:$0xff] %v2302
        %2950 = vst [vmem:[%s302 + $0x3b0] sm:$0xff] %v2304
        %2951 = vst.msk [vmem:[%s302 + $0x3b8] sm:$0xff] %vm2835, %v2652
        %2952 = vst [vmem:[%s302 + $0x3c0] sm:$0xff] %v1935
        %2953 = vst [vmem:[%s302 + $0x3c8] sm:$0xff] %v1937
        %2954 = vst [vmem:[%s302 + $0x3d0] sm:$0xff] %v2308
        %2955 = vst [vmem:[%s302 + $0x3d8] sm:$0xff] %v2310
        %2956 = vst.msk [vmem:[%s302 + $0x3e0] sm:$0xff] %vm2835, %v2657
        %2957 = vst [vmem:[%s302 + $0x3e8] sm:$0xff] %v1939
        %2958 = vst [vmem:[%s302 + $0x3f0] sm:$0xff] %v1941
        %2959 = vst [vmem:[%s302 + $0x3f8] sm:$0xff] %v2312
        %2960 = vst [vmem:[%s302 + $0x400] sm:$0xff] %v2314
        %2961 = vst.msk [vmem:[%s302 + $0x408] sm:$0xff] %vm2835, %v2660
        %2962 = vst [vmem:[%s302 + $0x410] sm:$0xff] %v1945
        %2963 = vst [vmem:[%s302 + $0x418] sm:$0xff] %v1947
        %2964 = vst [vmem:[%s302 + $0x420] sm:$0xff] %v2318
        %2965 = vst [vmem:[%s302 + $0x428] sm:$0xff] %v2320
        %2966 = vst.msk [vmem:[%s302 + $0x430] sm:$0xff] %vm2835, %v2665
        %2967 = vst [vmem:[%s302 + $0x438] sm:$0xff] %v1949
        %2968 = vst [vmem:[%s302 + $0x440] sm:$0xff] %v1951
        %2969 = vst [vmem:[%s302 + $0x448] sm:$0xff] %v2322
        %2970 = vst [vmem:[%s302 + $0x450] sm:$0xff] %v2324
        %2971 = vst.msk [vmem:[%s302 + $0x458] sm:$0xff] %vm2835, %v2668
        %2972 = vst [vmem:[%s302 + $0x460] sm:$0xff] %v1955
        %2973 = vst [vmem:[%s302 + $0x468] sm:$0xff] %v1957
        %2974 = vst [vmem:[%s302 + $0x470] sm:$0xff] %v2328
        %2975 = vst [vmem:[%s302 + $0x478] sm:$0xff] %v2330
        %2976 = vst.msk [vmem:[%s302 + $0x480] sm:$0xff] %vm2835, %v2673
        %2977 = vst [vmem:[%s302 + $0x488] sm:$0xff] %v1959
        %2978 = vst [vmem:[%s302 + $0x490] sm:$0xff] %v1961
        %2979 = vst [vmem:[%s302 + $0x498] sm:$0xff] %v2332
        %2980 = vst [vmem:[%s302 + $0x4a0] sm:$0xff] %v2334
        %2981 = vst.msk [vmem:[%s302 + $0x4a8] sm:$0xff] %vm2835, %v2676
        %2982 = vst [vmem:[%s302 + $0x4b0] sm:$0xff] %v1965
        %2983 = vst [vmem:[%s302 + $0x4b8] sm:$0xff] %v1967
        %2984 = vst [vmem:[%s302 + $0x4c0] sm:$0xff] %v2338
        %2985 = vst [vmem:[%s302 + $0x4c8] sm:$0xff] %v2340
        %2986 = vst.msk [vmem:[%s302 + $0x4d0] sm:$0xff] %vm2835, %v2681
        %2987 = vst [vmem:[%s302 + $0x4d8] sm:$0xff] %v1969
        %2988 = vst [vmem:[%s302 + $0x4e0] sm:$0xff] %v1971
        %2989 = vst [vmem:[%s302 + $0x4e8] sm:$0xff] %v2342
        %2990 = vst [vmem:[%s302 + $0x4f0] sm:$0xff] %v2344
        %2991 = vst.msk [vmem:[%s302 + $0x4f8] sm:$0xff] %vm2835, %v2684
        %2992 = vst [vmem:[%s302 + $0x500] sm:$0xff] %v1975
        %2993 = vst [vmem:[%s302 + $0x508] sm:$0xff] %v1977
        %2994 = vst [vmem:[%s302 + $0x510] sm:$0xff] %v2348
        %2995 = vst [vmem:[%s302 + $0x518] sm:$0xff] %v2350
        %2996 = vst.msk [vmem:[%s302 + $0x520] sm:$0xff] %vm2835, %v2689
        %2997 = vst [vmem:[%s302 + $0x528] sm:$0xff] %v1979
        %2998 = vst [vmem:[%s302 + $0x530] sm:$0xff] %v1981
        %2999 = vst [vmem:[%s302 + $0x538] sm:$0xff] %v2352
        %3000 = vst [vmem:[%s302 + $0x540] sm:$0xff] %v2354
        %3001 = vst.msk [vmem:[%s302 + $0x548] sm:$0xff] %vm2835, %v2692
        %3002 = vst [vmem:[%s302 + $0x550] sm:$0xff] %v1985
        %3003 = vst [vmem:[%s302 + $0x558] sm:$0xff] %v1987
        %3004 = vst [vmem:[%s302 + $0x560] sm:$0xff] %v2358
        %3005 = vst [vmem:[%s302 + $0x568] sm:$0xff] %v2360
        %3006 = vst.msk [vmem:[%s302 + $0x570] sm:$0xff] %vm2835, %v2697
        %3007 = vst [vmem:[%s302 + $0x578] sm:$0xff] %v1989
        %3008 = vst [vmem:[%s302 + $0x580] sm:$0xff] %v1991
        %3009 = vst [vmem:[%s302 + $0x588] sm:$0xff] %v2362
        %3010 = vst [vmem:[%s302 + $0x590] sm:$0xff] %v2364
        %3011 = vst.msk [vmem:[%s302 + $0x598] sm:$0xff] %vm2835, %v2700
        %3012 = vst [vmem:[%s302 + $0x5a0] sm:$0xff] %v1995
        %3013 = vst [vmem:[%s302 + $0x5a8] sm:$0xff] %v1997
        %3014 = vst [vmem:[%s302 + $0x5b0] sm:$0xff] %v2368
        %3015 = vst [vmem:[%s302 + $0x5b8] sm:$0xff] %v2370
        %3016 = vst.msk [vmem:[%s302 + $0x5c0] sm:$0xff] %vm2835, %v2705
        %3017 = vst [vmem:[%s302 + $0x5c8] sm:$0xff] %v1999
        %3018 = vst [vmem:[%s302 + $0x5d0] sm:$0xff] %v2001
        %3019 = vst [vmem:[%s302 + $0x5d8] sm:$0xff] %v2372
        %3020 = vst [vmem:[%s302 + $0x5e0] sm:$0xff] %v2374
        %3021 = vst.msk [vmem:[%s302 + $0x5e8] sm:$0xff] %vm2835, %v2708
        %3022 = vst [vmem:[%s302 + $0x5f0] sm:$0xff] %v2005
        %3023 = vst [vmem:[%s302 + $0x5f8] sm:$0xff] %v2007
        %3024 = vst [vmem:[%s302 + $0x600] sm:$0xff] %v2378
        %3025 = vst [vmem:[%s302 + $0x608] sm:$0xff] %v2380
        %3026 = vst.msk [vmem:[%s302 + $0x610] sm:$0xff] %vm2835, %v2713
        %3027 = vst [vmem:[%s302 + $0x618] sm:$0xff] %v2009
        %3028 = vst [vmem:[%s302 + $0x620] sm:$0xff] %v2011
        %3029 = vst [vmem:[%s302 + $0x628] sm:$0xff] %v2382
        %3030 = vst [vmem:[%s302 + $0x630] sm:$0xff] %v2384
        %3031 = vst.msk [vmem:[%s302 + $0x638] sm:$0xff] %vm2835, %v2716
        %3032 = vst [vmem:[%s302 + $0x640] sm:$0xff] %v2015
        %3033 = vst [vmem:[%s302 + $0x648] sm:$0xff] %v2017
        %3034 = vst [vmem:[%s302 + $0x650] sm:$0xff] %v2388
        %3035 = vst [vmem:[%s302 + $0x658] sm:$0xff] %v2390
        %3036 = vst.msk [vmem:[%s302 + $0x660] sm:$0xff] %vm2835, %v2721
        %3037 = vst [vmem:[%s302 + $0x668] sm:$0xff] %v2019
        %3038 = vst [vmem:[%s302 + $0x670] sm:$0xff] %v2021
        %3039 = vst [vmem:[%s302 + $0x678] sm:$0xff] %v2392
        %3040 = vst [vmem:[%s302 + $0x680] sm:$0xff] %v2394
        %3041 = vst.msk [vmem:[%s302 + $0x688] sm:$0xff] %vm2835, %v2724
        %3042 = vst [vmem:[%s302 + $0x690] sm:$0xff] %v2025
        %3043 = vst [vmem:[%s302 + $0x698] sm:$0xff] %v2027
        %3044 = vst [vmem:[%s302 + $0x6a0] sm:$0xff] %v2398
        %3045 = vst [vmem:[%s302 + $0x6a8] sm:$0xff] %v2400
        %3046 = vst.msk [vmem:[%s302 + $0x6b0] sm:$0xff] %vm2835, %v2729
        %3047 = vst [vmem:[%s302 + $0x6b8] sm:$0xff] %v2029
        %3048 = vst [vmem:[%s302 + $0x6c0] sm:$0xff] %v2031
        %3049 = vst [vmem:[%s302 + $0x6c8] sm:$0xff] %v2402
        %3050 = vst [vmem:[%s302 + $0x6d0] sm:$0xff] %v2404
        %3051 = vst.msk [vmem:[%s302 + $0x6d8] sm:$0xff] %vm2835, %v2732
        %3052 = vst [vmem:[%s302 + $0x6e0] sm:$0xff] %v2035
        %3053 = vst [vmem:[%s302 + $0x6e8] sm:$0xff] %v2037
        %3054 = vst [vmem:[%s302 + $0x6f0] sm:$0xff] %v2408
        %3055 = vst [vmem:[%s302 + $0x6f8] sm:$0xff] %v2410
        %3056 = vst.msk [vmem:[%s302 + $0x700] sm:$0xff] %vm2835, %v2737
        %3057 = vst [vmem:[%s302 + $0x708] sm:$0xff] %v2039
        %3058 = vst [vmem:[%s302 + $0x710] sm:$0xff] %v2041
        %3059 = vst [vmem:[%s302 + $0x718] sm:$0xff] %v2412
        %3060 = vst [vmem:[%s302 + $0x720] sm:$0xff] %v2414
        %3061 = vst.msk [vmem:[%s302 + $0x728] sm:$0xff] %vm2835, %v2740
        %3062 = vst [vmem:[%s302 + $0x730] sm:$0xff] %v2045
        %3063 = vst [vmem:[%s302 + $0x738] sm:$0xff] %v2047
        %3064 = vst [vmem:[%s302 + $0x740] sm:$0xff] %v2418
        %3065 = vst [vmem:[%s302 + $0x748] sm:$0xff] %v2420
        %3066 = vst.msk [vmem:[%s302 + $0x750] sm:$0xff] %vm2835, %v2745
        %3067 = vst [vmem:[%s302 + $0x758] sm:$0xff] %v2049
        %3068 = vst [vmem:[%s302 + $0x760] sm:$0xff] %v2051
        %3069 = vst [vmem:[%s302 + $0x768] sm:$0xff] %v2422
        %3070 = vst [vmem:[%s302 + $0x770] sm:$0xff] %v2424
        %3071 = vst.msk [vmem:[%s302 + $0x778] sm:$0xff] %vm2835, %v2748
        %3072 = vst [vmem:[%s302 + $0x780] sm:$0xff] %v2055
        %3073 = vst [vmem:[%s302 + $0x788] sm:$0xff] %v2057
        %3074 = vst [vmem:[%s302 + $0x790] sm:$0xff] %v2428
        %3075 = vst [vmem:[%s302 + $0x798] sm:$0xff] %v2430
        %3076 = vst.msk [vmem:[%s302 + $0x7a0] sm:$0xff] %vm2835, %v2753
        %3077 = vst [vmem:[%s302 + $0x7a8] sm:$0xff] %v2059
        %3078 = vst [vmem:[%s302 + $0x7b0] sm:$0xff] %v2061
        %3079 = vst [vmem:[%s302 + $0x7b8] sm:$0xff] %v2432
        %3080 = vst [vmem:[%s302 + $0x7c0] sm:$0xff] %v2434
        %3081 = vst.msk [vmem:[%s302 + $0x7c8] sm:$0xff] %vm2835, %v2756
        %3082 = vst [vmem:[%s302 + $0x7d0] sm:$0xff] %v2065
        %3083 = vst [vmem:[%s302 + $0x7d8] sm:$0xff] %v2067
        %3084 = vst [vmem:[%s302 + $0x7e0] sm:$0xff] %v2438
        %3085 = vst [vmem:[%s302 + $0x7e8] sm:$0xff] %v2440
        %3086 = vst.msk [vmem:[%s302 + $0x7f0] sm:$0xff] %vm2835, %v2761
        %3087 = vst [vmem:[%s302 + $0x7f8] sm:$0xff] %v2069
        %3088 = vst [vmem:[%s302 + $0x800] sm:$0xff] %v2071
        %3089 = vst [vmem:[%s302 + $0x808] sm:$0xff] %v2442
        %3090 = vst [vmem:[%s302 + $0x810] sm:$0xff] %v2444
        %3091 = vst.msk [vmem:[%s302 + $0x818] sm:$0xff] %vm2835, %v2764
        %3092 = vst [vmem:[%s302 + $0x820] sm:$0xff] %v2075
        %3093 = vst [vmem:[%s302 + $0x828] sm:$0xff] %v2077
        %3094 = vst [vmem:[%s302 + $0x830] sm:$0xff] %v2448
        %3095 = vst [vmem:[%s302 + $0x838] sm:$0xff] %v2450
        %3096 = vst.msk [vmem:[%s302 + $0x840] sm:$0xff] %vm2835, %v2769
        %3097 = vst [vmem:[%s302 + $0x848] sm:$0xff] %v2079
        %3098 = vst [vmem:[%s302 + $0x850] sm:$0xff] %v2081
        %3099 = vst [vmem:[%s302 + $0x858] sm:$0xff] %v2452
        %3100 = vst [vmem:[%s302 + $0x860] sm:$0xff] %v2454
        %3101 = vst.msk [vmem:[%s302 + $0x868] sm:$0xff] %vm2835, %v2772
        %3102 = vst [vmem:[%s302 + $0x870] sm:$0xff] %v2085
        %3103 = vst [vmem:[%s302 + $0x878] sm:$0xff] %v2087
        %3104 = vst [vmem:[%s302 + $0x880] sm:$0xff] %v2458
        %3105 = vst [vmem:[%s302 + $0x888] sm:$0xff] %v2460
        %3106 = vst.msk [vmem:[%s302 + $0x890] sm:$0xff] %vm2835, %v2777
        %3107 = vst [vmem:[%s302 + $0x898] sm:$0xff] %v2089
        %3108 = vst [vmem:[%s302 + $0x8a0] sm:$0xff] %v2091
        %3109 = vst [vmem:[%s302 + $0x8a8] sm:$0xff] %v2462
        %3110 = vst [vmem:[%s302 + $0x8b0] sm:$0xff] %v2464
        %3111 = vst.msk [vmem:[%s302 + $0x8b8] sm:$0xff] %vm2835, %v2780
        %3112 = vst [vmem:[%s302 + $0x8c0] sm:$0xff] %v2095
        %3113 = vst [vmem:[%s302 + $0x8c8] sm:$0xff] %v2097
        %3114 = vst [vmem:[%s302 + $0x8d0] sm:$0xff] %v2468
        %3115 = vst [vmem:[%s302 + $0x8d8] sm:$0xff] %v2470
        %3116 = vst.msk [vmem:[%s302 + $0x8e0] sm:$0xff] %vm2835, %v2785
        %3117 = vst [vmem:[%s302 + $0x8e8] sm:$0xff] %v2099
        %3118 = vst [vmem:[%s302 + $0x8f0] sm:$0xff] %v2101
        %3119 = vst [vmem:[%s302 + $0x8f8] sm:$0xff] %v2472
        %3120 = vst [vmem:[%s302 + $0x900] sm:$0xff] %v2474
        %3121 = vst.msk [vmem:[%s302 + $0x908] sm:$0xff] %vm2835, %v2788
        %3122 = vst [vmem:[%s302 + $0x910] sm:$0xff] %v2105
        %3123 = vst [vmem:[%s302 + $0x918] sm:$0xff] %v2107
        %3124 = vst [vmem:[%s302 + $0x920] sm:$0xff] %v2478
        %3125 = vst [vmem:[%s302 + $0x928] sm:$0xff] %v2480
        %3126 = vst.msk [vmem:[%s302 + $0x930] sm:$0xff] %vm2835, %v2793
        %3127 = vst [vmem:[%s302 + $0x938] sm:$0xff] %v2109
        %3128 = vst [vmem:[%s302 + $0x940] sm:$0xff] %v2111
        %3129 = vst [vmem:[%s302 + $0x948] sm:$0xff] %v2482
        %3130 = vst [vmem:[%s302 + $0x950] sm:$0xff] %v2484
        %3131 = vst.msk [vmem:[%s302 + $0x958] sm:$0xff] %vm2835, %v2796
        %3132 = vst [vmem:[%s302 + $0x960] sm:$0xff] %v2115
        %3133 = vst [vmem:[%s302 + $0x968] sm:$0xff] %v2117
        %3134 = vst [vmem:[%s302 + $0x970] sm:$0xff] %v2488
        %3135 = vst [vmem:[%s302 + $0x978] sm:$0xff] %v2490
        %3136 = vst.msk [vmem:[%s302 + $0x980] sm:$0xff] %vm2835, %v2801
        %3137 = vst [vmem:[%s302 + $0x988] sm:$0xff] %v2119
        %3138 = vst [vmem:[%s302 + $0x990] sm:$0xff] %v2121
        %3139 = vst [vmem:[%s302 + $0x998] sm:$0xff] %v2492
        %3140 = vst [vmem:[%s302 + $0x9a0] sm:$0xff] %v2494
        %3141 = vst.msk [vmem:[%s302 + $0x9a8] sm:$0xff] %vm2835, %v2804
        %3142 = vst [vmem:[%s302 + $0x9b0] sm:$0xff] %v2125
        %3143 = vst [vmem:[%s302 + $0x9b8] sm:$0xff] %v2127
        %3144 = vst [vmem:[%s302 + $0x9c0] sm:$0xff] %v2498
        %3145 = vst [vmem:[%s302 + $0x9c8] sm:$0xff] %v2500
        %3146 = vst.msk [vmem:[%s302 + $0x9d0] sm:$0xff] %vm2835, %v2809
        %3147 = vst [vmem:[%s302 + $0x9d8] sm:$0xff] %v2129
        %3148 = vst [vmem:[%s302 + $0x9e0] sm:$0xff] %v2131
        %3149 = vst [vmem:[%s302 + $0x9e8] sm:$0xff] %v2502
        %3150 = vst [vmem:[%s302 + $0x9f0] sm:$0xff] %v2504
        %3151 = vst.msk [vmem:[%s302 + $0x9f8] sm:$0xff] %vm2835, %v2812
        %3152 = vst [vmem:[%s302 + $0xa00] sm:$0xff] %v2135
        %3153 = vst [vmem:[%s302 + $0xa08] sm:$0xff] %v2137
        %3154 = vst [vmem:[%s302 + $0xa10] sm:$0xff] %v2508
        %3155 = vst [vmem:[%s302 + $0xa18] sm:$0xff] %v2510
        %3156 = vst.msk [vmem:[%s302 + $0xa20] sm:$0xff] %vm2835, %v2817
        %3157 = vst [vmem:[%s302 + $0xa28] sm:$0xff] %v2139
        %3158 = vst [vmem:[%s302 + $0xa30] sm:$0xff] %v2141
        %3159 = vst [vmem:[%s302 + $0xa38] sm:$0xff] %v2512
        %3160 = vst [vmem:[%s302 + $0xa40] sm:$0xff] %v2514
        %3161 = vst.msk [vmem:[%s302 + $0xa48] sm:$0xff] %vm2835, %v2820
        %3162 = vst [vmem:[%s302 + $0xa50] sm:$0xff] %v2145
        %3163 = vst [vmem:[%s302 + $0xa58] sm:$0xff] %v2147
        %3164 = vst [vmem:[%s302 + $0xa60] sm:$0xff] %v2518
        %3165 = vst [vmem:[%s302 + $0xa68] sm:$0xff] %v2520
        %3166 = vst.msk [vmem:[%s302 + $0xa70] sm:$0xff] %vm2835, %v2825
        %3167 = vst [vmem:[%s302 + $0xa78] sm:$0xff] %v2149
        %3168 = vst [vmem:[%s302 + $0xa80] sm:$0xff] %v2151
        %3169 = vst [vmem:[%s302 + $0xa88] sm:$0xff] %v2522
        %3170 = vst [vmem:[%s302 + $0xa90] sm:$0xff] %v2524
        %3171 = vst.msk [vmem:[%s302 + $0xa98] sm:$0xff] %vm2835, %v2828
        %s3172 = sand.u32 %s201, 1
        %s3173 = scalar_lea.sflag [#allocation4], %s3172
        %s3174 = sand.u32 %s201, 1
        %s3175 = smul.addr %s3174, 2720
        %s3176 = scalar_lea.vmem [#allocation3], %s3175
        // Predicated region
        $region49: #{model_forward.5} parent=47 // pred_check
          %p3177 = pneg %p211
        $region50: #{model_forward.5} parent=47 // pred_check_branch
          %3179 = sbr.rel (%p3177) target = $region52
        $region51: #{model_forward.5} parent=47 // pred_region
          %s3180 = smul.u32 68, %s27
          %s3182 = ssub.s32 43520, 43520
          %3183 = vsyncadd %s3173, %s3182
          %s3184 = smul.addr %s3180, 5
          %s3185 = smul.addr %s26, 340
          %s3186 = sadd.s32 %s3184, %s3185
          %s3187 = smul.addr %s3186, 128
          %s3188 = scalar_lea.hbm %s7, %s3187
          %s3189 = sshll.u32 %s3176, 4
          %s3190 = int_to_ptr.vmem [resolvable:$true] %s3189
          %3195 = dma.vmem_to_hbm [thread:$0]  %s3190, 43520, %s3188, %s3173, 640, 640, 40
        $region52: #{model_forward.5} parent=47 // pred_fallthru
          _
      $region48: #{model_forward.5} parent=5 // pred_fallthru
        _
      %p3196 = scmp.le.s32.totalorder 2, %s17
      // Predicated region
      $region53: #{model_forward.5} parent=5 // pred_check
        %p3197 = pneg %p3196
      $region54: #{model_forward.5} parent=5 // pred_check_branch
        %3199 = sbr.rel (%p3197) target = $region56
      $region55: #{model_forward.5} parent=5 // pred_region
        %s3200 = ssub.s32 %s17, 2
        // Predicated region
        $region57: #{model_forward.5} parent=55 // pred_check
          %p3201 = pneg %p217
        $region58: #{model_forward.5} parent=55 // pred_check_branch
          %3203 = sbr.rel (%p3201) target = $region60
        $region59: #{model_forward.5} parent=55 // pred_region
          %s3204 = sand.u32 %s202, 1
          %s3205 = scalar_lea.sflag [#allocation4], %s3204
          %s3206 = sand.u32 %s202, 1
          %s3207 = smul.addr %s3206, 2720
          %s3208 = scalar_lea.vmem [#allocation3], %s3207
          %3209 = dma.done %s3205, 43520
        $region60: #{model_forward.5} parent=55 // pred_fallthru
          _
      $region56: #{model_forward.5} parent=5 // pred_fallthru
        _
    $region6: #{model_forward.5} parent=1 // loop_footer
      %s21 = sadd.s32 1, %s17
    $region7: #{model_forward.5} parent=1 // loop_footer_branch
      %16 = sbr.rel target = $region3
    $region8: #{model_forward.5} parent=1 // loop_exit
      _
    %3210 = vsyncpa [#allocation4], 1
    %s3211 = scalar_lea.sflag [#allocation4], 1
    %3212 = vsyncpa %s3211, 1

// kernel: model_forward.3
$region0: #{model_forward.3}
  #allocation0 [shape = 'u32[]', space=smem, size = 0x4, offset = 0x4, fixed_abs, tag = 'smem constant byte address 0x4 - core index']
  #allocation1 [shape = 'u32[144,128]{1,0:T(1,128)}', space=vmem, size = 0x12000, scoped, tag = 'internal scratch']
  #allocation2 [shape = 'f32[1]{0:T(128)S(6)}', space=smem, size = 0x200, scoped, tag = 'scoped memory for model_forward.3']
  %s0 = inlined_call_operand.vmem [shape: f32[2,256,256], index: 0, kind: input, shape index: {}]
  %s1 = inlined_call_operand.vmem [shape: bf16[64,256], index: 1, kind: input, shape index: {}]
  %s2 = inlined_call_operand.vmem [shape: f32[64,1], index: 2, kind: input, shape index: {}]
  %s3 = inlined_call_operand.vmem [shape: f32[9,64], index: 3, kind: input, shape index: {}]
  %s4 = inlined_call_operand.vmem [shape: bf16[544,256], index: 4, kind: input, shape index: {}]
  %s5 = inlined_call_operand.vmem [shape: bf16[256,544], index: 5, kind: input, shape index: {}]
  %s6 = inlined_call_operand.<no memory space> [shape: f32[1], index: 6, kind: input, shape index: {}]
  %s7 = inlined_call_operand.hbm [shape: f32[2,544,544], index: 7, kind: output, shape index: {}]
  %s8 = sld [smem:[#allocation0]]
  $region61: #{model_forward.3} parent=0
    _
  %s10 = ssub.s32 1, %s8
  %s11 = scalar_select 0, %s10, %s8
  %12 = sst [smem:[#allocation2]] %s6
  $region1: #{model_forward.3} parent=0
    #allocation3 [shape = 'u8[2785280]{0}', space=vmem, size = 0x2a8000, scoped, tag = 'output window, operand 0']
    #allocation4 [shape = 's32[2]{0}', space=sflag, size = 0x8, scoped, tag = 'scoped memory for model_forward.3']
    %13 = vsyncpa [#allocation4], 0
    %s14 = scalar_lea.sflag [#allocation4], 1
    %15 = vsyncpa %s14, 0
    loop: start=0, step=1, limit=4
    $region2: #{model_forward.3} parent=1 // loop_pre_header
      _
    $region3: #{model_forward.3} parent=1 // loop_header
      %s17 = sphi 0, %s21
      %p18 = scmp.ge.s32.totalorder %s17, 4
      %s24 = sphi 0, %s36
      %s25 = sphi 0, %s32
      %s26 = sphi 0, %s24
      %s27 = sphi 0, %s25
      %s28 = sphi 0, %s26
      %s29 = sphi 0, %s27
      %s39 = sphi 0, %s41
      %s42 = sphi 0, %s39
      %s43 = sphi 0, %s42
      %s59 = sphi 0, %s43
      %s63 = sphi 0, %s63
      %s65 = sphi 0, %s63
      %s66 = sphi 0, %s65
      %s80 = sphi 0, %s66
      %s84 = sphi 0, %s84
      %s86 = sphi 0, %s84
      %s87 = sphi 0, %s86
      %s101 = sphi 0, %s87
      %s105 = sphi 0, %s105
      %s107 = sphi 0, %s105
      %s108 = sphi 0, %s107
      %s122 = sphi 0, %s108
      %s128 = sphi 0, %s130
      %s131 = sphi 0, %s128
      %s132 = sphi 0, %s131
      %s148 = sphi 0, %s132
      %s152 = sphi 0, %s152
      %s154 = sphi 0, %s152
      %s155 = sphi 0, %s154
      %s169 = sphi 0, %s155
      %s173 = sphi 0, %s173
      %s175 = sphi 0, %s173
      %s176 = sphi 0, %s175
      %s190 = sphi 0, %s176
      %s198 = sphi 0, %s200
      %s201 = sphi 0, %s198
      %s202 = sphi 0, %s201
      %s218 = sphi 0, %s202
    $region4: #{model_forward.3} parent=1 // loop_header_branch
      %20 = sbr.rel (%p18) target = $region8
    $region5: #{model_forward.3} parent=1 // loop_body
      %s22 = ssub.s32 %s17, 1
      %s23 = ssub.s32 %s17, 2
      %s30 = sadd.s32 1, %s25
      %p31 = scmp.ge.s32.totalorder %s30, 1
      %s32 = scalar_select %p31, 0, %s30
      %s33 = sadd.s32 1, %s24
      %s34 = scalar_select %p31, %s33, %s24
      %p35 = scmp.ge.s32.totalorder %s34, 2
      %s36 = scalar_select %p35, 0, %s34
      %s37 = ssub.s32 %s24, %s36
      %p38 = scmp.eq.s32.totalorder %s37, 0
      %s40 = sadd.s32 %s39, 1
      %s41 = scalar_select %p38, %s39, %s40
      %p44 = pneg %p38
      %p45 = scmp.eq.s32.totalorder %s17, 1
      %p46 = por %p44, %p45
      %p47 = scmp.ne.s32.totalorder %s39, %s42
      %p48 = scmp.eq.s32.totalorder %s17, 0
      %p49 = por %p47, %p48
      %p50 = scmp.ne.s32.totalorder %s39, %s42
      %p51 = scmp.eq.s32.totalorder %s22, 1
      %p52 = por %p50, %p51
      %p53 = scmp.ne.s32.totalorder %s42, %s43
      %p54 = scmp.eq.s32.totalorder %s22, 0
      %p55 = por %p53, %p54
      %p56 = scmp.ne.s32.totalorder %s42, %s43
      %p57 = scmp.eq.s32.totalorder %s23, 1
      %p58 = por %p56, %p57
      %p60 = scmp.ne.s32.totalorder %s43, %s59
      %p61 = scmp.eq.s32.totalorder %s23, 0
      %p62 = por %p60, %p61
      %s64 = sadd.s32 %s63, 1
      %p67 = scmp.eq.s32.totalorder %s17, 1
      %p68 = scmp.ne.s32.totalorder %s63, %s65
      %p69 = scmp.eq.s32.totalorder %s17, 0
      %p70 = por %p68, %p69
      %p71 = scmp.ne.s32.totalorder %s63, %s65
      %p72 = scmp.eq.s32.totalorder %s22, 1
      %p73 = por %p71, %p72
      %p74 = scmp.ne.s32.totalorder %s65, %s66
      %p75 = scmp.eq.s32.totalorder %s22, 0
      %p76 = por %p74, %p75
      %p77 = scmp.ne.s32.totalorder %s65, %s66
      %p78 = scmp.eq.s32.totalorder %s23, 1
      %p79 = por %p77, %p78
      %p81 = scmp.ne.s32.totalorder %s66, %s80
      %p82 = scmp.eq.s32.totalorder %s23, 0
      %p83 = por %p81, %p82
      %s85 = sadd.s32 %s84, 1
      %p88 = scmp.eq.s32.totalorder %s17, 1
      %p89 = scmp.ne.s32.totalorder %s84, %s86
      %p90 = scmp.eq.s32.totalorder %s17, 0
      %p91 = por %p89, %p90
      %p92 = scmp.ne.s32.totalorder %s84, %s86
      %p93 = scmp.eq.s32.totalorder %s22, 1
      %p94 = por %p92, %p93
      %p95 = scmp.ne.s32.totalorder %s86, %s87
      %p96 = scmp.eq.s32.totalorder %s22, 0
      %p97 = por %p95, %p96
      %p98 = scmp.ne.s32.totalorder %s86, %s87
      %p99 = scmp.eq.s32.totalorder %s23, 1
      %p100 = por %p98, %p99
      %p102 = scmp.ne.s32.totalorder %s87, %s101
      %p103 = scmp.eq.s32.totalorder %s23, 0
      %p104 = por %p102, %p103
      %s106 = sadd.s32 %s105, 1
      %p109 = scmp.eq.s32.totalorder %s17, 1
      %p110 = scmp.ne.s32.totalorder %s105, %s107
      %p111 = scmp.eq.s32.totalorder %s17, 0
      %p112 = por %p110, %p111
      %p113 = scmp.ne.s32.totalorder %s105, %s107
      %p114 = scmp.eq.s32.totalorder %s22, 1
      %p115 = por %p113, %p114
      %p116 = scmp.ne.s32.totalorder %s107, %s108
      %p117 = scmp.eq.s32.totalorder %s22, 0
      %p118 = por %p116, %p117
      %p119 = scmp.ne.s32.totalorder %s107, %s108
      %p120 = scmp.eq.s32.totalorder %s23, 1
      %p121 = por %p119, %p120
      %p123 = scmp.ne.s32.totalorder %s108, %s122
      %p124 = scmp.eq.s32.totalorder %s23, 0
      %p125 = por %p123, %p124
      %s126 = ssub.s32 %s25, %s32
      %p127 = scmp.eq.s32.totalorder %s126, 0
      %s129 = sadd.s32 %s128, 1
      %s130 = scalar_select %p127, %s128, %s129
      %p133 = pneg %p127
      %p134 = scmp.eq.s32.totalorder %s17, 1
      %p135 = por %p133, %p134
      %p136 = scmp.ne.s32.totalorder %s128, %s131
      %p137 = scmp.eq.s32.totalorder %s17, 0
      %p138 = por %p136, %p137
      %p139 = scmp.ne.s32.totalorder %s128, %s131
      %p140 = scmp.eq.s32.totalorder %s22, 1
      %p141 = por %p139, %p140
      %p142 = scmp.ne.s32.totalorder %s131, %s132
      %p143 = scmp.eq.s32.totalorder %s22, 0
      %p144 = por %p142, %p143
      %p145 = scmp.ne.s32.totalorder %s131, %s132
      %p146 = scmp.eq.s32.totalorder %s23, 1
      %p147 = por %p145, %p146
      %p149 = scmp.ne.s32.totalorder %s132, %s148
      %p150 = scmp.eq.s32.totalorder %s23, 0
      %p151 = por %p149, %p150
      %s153 = sadd.s32 %s152, 1
      %p156 = scmp.eq.s32.totalorder %s17, 1
      %p157 = scmp.ne.s32.totalorder %s152, %s154
      %p158 = scmp.eq.s32.totalorder %s17, 0
      %p159 = por %p157, %p158
      %p160 = scmp.ne.s32.totalorder %s152, %s154
      %p161 = scmp.eq.s32.totalorder %s22, 1
      %p162 = por %p160, %p161
      %p163 = scmp.ne.s32.totalorder %s154, %s155
      %p164 = scmp.eq.s32.totalorder %s22, 0
      %p165 = por %p163, %p164
      %p166 = scmp.ne.s32.totalorder %s154, %s155
      %p167 = scmp.eq.s32.totalorder %s23, 1
      %p168 = por %p166, %p167
      %p170 = scmp.ne.s32.totalorder %s155, %s169
      %p171 = scmp.eq.s32.totalorder %s23, 0
      %p172 = por %p170, %p171
      %s174 = sadd.s32 %s173, 1
      %p177 = scmp.eq.s32.totalorder %s17, 1
      %p178 = scmp.ne.s32.totalorder %s173, %s175
      %p179 = scmp.eq.s32.totalorder %s17, 0
      %p180 = por %p178, %p179
      %p181 = scmp.ne.s32.totalorder %s173, %s175
      %p182 = scmp.eq.s32.totalorder %s22, 1
      %p183 = por %p181, %p182
      %p184 = scmp.ne.s32.totalorder %s175, %s176
      %p185 = scmp.eq.s32.totalorder %s22, 0
      %p186 = por %p184, %p185
      %p187 = scmp.ne.s32.totalorder %s175, %s176
      %p188 = scmp.eq.s32.totalorder %s23, 1
      %p189 = por %p187, %p188
      %p191 = scmp.ne.s32.totalorder %s176, %s190
      %p192 = scmp.eq.s32.totalorder %s23, 0
      %p193 = por %p191, %p192
      %s194 = ssub.s32 %s24, %s36
      %s195 = ssub.s32 %s25, %s32
      %s196 = sor.u32 %s194, %s195
      %p197 = scmp.eq.s32.totalorder %s196, 0
      %s199 = sadd.s32 %s198, 1
      %s200 = scalar_select %p197, %s198, %s199
      %p203 = pneg %p197
      %p204 = scmp.eq.s32.totalorder %s17, 1
      %p205 = por %p203, %p204
      %p206 = scmp.ne.s32.totalorder %s198, %s201
      %p207 = scmp.eq.s32.totalorder %s17, 0
      %p208 = por %p206, %p207
      %p209 = scmp.ne.s32.totalorder %s198, %s201
      %p210 = scmp.eq.s32.totalorder %s22, 1
      %p211 = por %p209, %p210
      %p212 = scmp.ne.s32.totalorder %s201, %s202
      %p213 = scmp.eq.s32.totalorder %s22, 0
      %p214 = por %p212, %p213
      %p215 = scmp.ne.s32.totalorder %s201, %s202
      %p216 = scmp.eq.s32.totalorder %s23, 1
      %p217 = por %p215, %p216
      %p219 = scmp.ne.s32.totalorder %s202, %s218
      %p220 = scmp.eq.s32.totalorder %s23, 0
      %p221 = por %p219, %p220
      %p222 = scmp.le.s32.totalorder 1, %s17
      %p223 = scmp.lt.s32.totalorder %s17, 3
      %p224 = pnand %p222, %p223
      %p225 = pneg %p224
      // Predicated region
      $region9: #{model_forward.3} parent=5 // pred_check
        _
      $region10: #{model_forward.3} parent=5 // pred_check_branch
        %227 = sbr.rel (%p224) target = $region12
      $region11: #{model_forward.3} parent=5 // pred_region
        %s228 = ssub.s32 %s17, 1
        // Predicated region
        $region13: #{model_forward.3} parent=11 // pred_check
          %p229 = pneg %p76
        $region14: #{model_forward.3} parent=11 // pred_check_branch
          %231 = sbr.rel (%p229) target = $region16
        $region15: #{model_forward.3} parent=11 // pred_region
          _
        $region16: #{model_forward.3} parent=11 // pred_fallthru
          _
        // Predicated region
        $region17: #{model_forward.3} parent=11 // pred_check
          %p232 = pneg %p97
        $region18: #{model_forward.3} parent=11 // pred_check_branch
          %234 = sbr.rel (%p232) target = $region20
        $region19: #{model_forward.3} parent=11 // pred_region
          _
        $region20: #{model_forward.3} parent=11 // pred_fallthru
          _
        // Predicated region
        $region21: #{model_forward.3} parent=11 // pred_check
          %p235 = pneg %p118
        $region22: #{model_forward.3} parent=11 // pred_check_branch
          %237 = sbr.rel (%p235) target = $region24
        $region23: #{model_forward.3} parent=11 // pred_region
          _
        $region24: #{model_forward.3} parent=11 // pred_fallthru
          _
        // Predicated region
        $region25: #{model_forward.3} parent=11 // pred_check
          %p238 = pneg %p144
        $region26: #{model_forward.3} parent=11 // pred_check_branch
          %240 = sbr.rel (%p238) target = $region28
        $region27: #{model_forward.3} parent=11 // pred_region
          %s241 = smul.u32 68, %s27
          %p242 = scmp.lt.s32.totalorder %s241, 67
          %s243 = scalar_select %p242, %s241, 67
          %s244 = smul.addr %s243, 2
          %s245 = smul.addr %s244, 4
          %s246 = scalar_lea.vmem %s4, %s245
          %s247 = smul.u32 68, %s27
        $region28: #{model_forward.3} parent=11 // pred_fallthru
          _
        // Predicated region
        $region29: #{model_forward.3} parent=11 // pred_check
          %p248 = pneg %p165
        $region30: #{model_forward.3} parent=11 // pred_check_branch
          %250 = sbr.rel (%p248) target = $region32
        $region31: #{model_forward.3} parent=11 // pred_region
          _
        $region32: #{model_forward.3} parent=11 // pred_fallthru
          _
        // Predicated region
        $region33: #{model_forward.3} parent=11 // pred_check
          %p251 = pneg %p186
        $region34: #{model_forward.3} parent=11 // pred_check_branch
          %253 = sbr.rel (%p251) target = $region36
        $region35: #{model_forward.3} parent=11 // pred_region
          _
        $region36: #{model_forward.3} parent=11 // pred_fallthru
          _
      $region12: #{model_forward.3} parent=5 // pred_fallthru
        _
      %p254 = scmp.lt.s32.totalorder %s17, 2
      // Predicated region
      $region37: #{model_forward.3} parent=5 // pred_check
        %p255 = pneg %p254
      $region38: #{model_forward.3} parent=5 // pred_check_branch
        %257 = sbr.rel (%p255) target = $region40
      $region39: #{model_forward.3} parent=5 // pred_region
        // Predicated region
        $region41: #{model_forward.3} parent=39 // pred_check
          %p258 = pneg %p49
        $region42: #{model_forward.3} parent=39 // pred_check_branch
          %260 = sbr.rel (%p258) target = $region44
        $region43: #{model_forward.3} parent=39 // pred_region
          %p261 = scmp.lt.s32.totalorder %s24, 1
          %s262 = scalar_select %p261, %s24, 1
          %s263 = smul.addr %s262, 64
          %s264 = smul.addr %s263, 8
          %s265 = scalar_lea.vmem %s0, %s264
        $region44: #{model_forward.3} parent=39 // pred_fallthru
          _
      $region40: #{model_forward.3} parent=5 // pred_fallthru
        _
      %p266 = scmp.le.s32.totalorder 1, %s17
      %p267 = scmp.lt.s32.totalorder %s17, 3
      %p268 = pnand %p266, %p267
      %p269 = pneg %p268
      // Predicated region
      $region45: #{model_forward.3} parent=5 // pred_check
        _
      $region46: #{model_forward.3} parent=5 // pred_check_branch
        %271 = sbr.rel (%p268) target = $region48
      $region47: #{model_forward.3} parent=5 // pred_region
        %s272 = ssub.s32 %s17, 1
        %p273 = scmp.lt.s32.totalorder %s26, 1
        %s274 = scalar_select %p273, %s26, 1
        %s275 = smul.addr %s274, 64
        %s276 = smul.addr %s275, 8
        %s277 = scalar_lea.vmem %s0, %s276
        %p278 = pneg %p55
        %p279 = pneg %p52
        %p280 = pneg %p76
        %p281 = pneg %p73
        %p282 = pneg %p97
        %p283 = pneg %p94
        %p284 = pneg %p118
        %p285 = pneg %p115
        %s286 = smul.u32 68, %s27
        %p287 = scmp.lt.s32.totalorder %s286, 67
        %s288 = scalar_select %p287, %s286, 67
        %s289 = smul.addr %s288, 2
        %s290 = smul.addr %s289, 4
        %s291 = scalar_lea.vmem %s4, %s290
        %p292 = pneg %p144
        %p293 = pneg %p141
        %p294 = pneg %p165
        %p295 = pneg %p162
        %p296 = pneg %p186
        %p297 = pneg %p183
        %p298 = pneg %p214
        %p299 = pneg %p211
        %s300 = sand.u32 %s201, 1
        %s301 = scalar_lea.sflag [#allocation4], %s300
        %s302 = sand.u32 %s201, 1
        %s303 = smul.addr %s302, 2720
        %s304 = scalar_lea.vmem [#allocation3], %s303
        %p305 = scmp.lt.s32.totalorder %s26, 1
        %s306 = scalar_select %p305, %s26, 1
        %s307 = smul.addr %s306, 64
        %s308 = smul.addr %s307, 8
        %s309 = scalar_lea.vmem %s0, %s308
        %s310 = smul.u32 68, %s27
        %p311 = scmp.lt.s32.totalorder %s310, 67
        %s312 = scalar_select %p311, %s310, 67
        %s313 = smul.addr %s312, 2
        %s314 = smul.addr %s313, 4
        %s315 = scalar_lea.vmem %s4, %s314
        %s316 = smul.u32 68, %s27
        %s317 = smul.u32 68, %s27
        %v319 = vld [vmem:[%s309] sm:$0xff]
        %v320 = vld [vmem:[%s309 + $0x8] sm:$0xff]
        %v321 = vld [vmem:[%s309 + $0x10] sm:$0xff]
        %v322 = vld [vmem:[%s309 + $0x18] sm:$0xff]
        %v323 = vld [vmem:[%s309 + $0x20] sm:$0xff]
        %v324 = vld [vmem:[%s309 + $0x28] sm:$0xff]
        %v325 = vld [vmem:[%s309 + $0x30] sm:$0xff]
        %v326 = vld [vmem:[%s309 + $0x38] sm:$0xff]
        %v327 = vld [vmem:[%s309 + $0x40] sm:$0xff]
        %v328 = vld [vmem:[%s309 + $0x48] sm:$0xff]
        %v329 = vld [vmem:[%s309 + $0x50] sm:$0xff]
        %v330 = vld [vmem:[%s309 + $0x58] sm:$0xff]
        %v331 = vld [vmem:[%s309 + $0x60] sm:$0xff]
        %v332 = vld [vmem:[%s309 + $0x68] sm:$0xff]
        %v333 = vld [vmem:[%s309 + $0x70] sm:$0xff]
        %v334 = vld [vmem:[%s309 + $0x78] sm:$0xff]
        %v335 = vld [vmem:[%s309 + $0x80] sm:$0xff]
        %v336 = vld [vmem:[%s309 + $0x88] sm:$0xff]
        %v337 = vld [vmem:[%s309 + $0x90] sm:$0xff]
        %v338 = vld [vmem:[%s309 + $0x98] sm:$0xff]
        %v339 = vld [vmem:[%s309 + $0xa0] sm:$0xff]
        %v340 = vld [vmem:[%s309 + $0xa8] sm:$0xff]
        %v341 = vld [vmem:[%s309 + $0xb0] sm:$0xff]
        %v342 = vld [vmem:[%s309 + $0xb8] sm:$0xff]
        %v343 = vld [vmem:[%s309 + $0xc0] sm:$0xff]
        %v344 = vld [vmem:[%s309 + $0xc8] sm:$0xff]
        %v345 = vld [vmem:[%s309 + $0xd0] sm:$0xff]
        %v346 = vld [vmem:[%s309 + $0xd8] sm:$0xff]
        %v347 = vld [vmem:[%s309 + $0xe0] sm:$0xff]
        %v348 = vld [vmem:[%s309 + $0xe8] sm:$0xff]
        %v349 = vld [vmem:[%s309 + $0xf0] sm:$0xff]
        %v350 = vld [vmem:[%s309 + $0xf8] sm:$0xff]
        %v351 = vld [vmem:[%s309 + $0x100] sm:$0xff]
        %v352 = vld [vmem:[%s309 + $0x108] sm:$0xff]
        %v353 = vld [vmem:[%s309 + $0x110] sm:$0xff]
        %v354 = vld [vmem:[%s309 + $0x118] sm:$0xff]
        %v355 = vld [vmem:[%s309 + $0x120] sm:$0xff]
        %v356 = vld [vmem:[%s309 + $0x128] sm:$0xff]
        %v357 = vld [vmem:[%s309 + $0x130] sm:$0xff]
        %v358 = vld [vmem:[%s309 + $0x138] sm:$0xff]
        %v359 = vld [vmem:[%s309 + $0x140] sm:$0xff]
        %v360 = vld [vmem:[%s309 + $0x148] sm:$0xff]
        %v361 = vld [vmem:[%s309 + $0x150] sm:$0xff]
        %v362 = vld [vmem:[%s309 + $0x158] sm:$0xff]
        %v363 = vld [vmem:[%s309 + $0x160] sm:$0xff]
        %v364 = vld [vmem:[%s309 + $0x168] sm:$0xff]
        %v365 = vld [vmem:[%s309 + $0x170] sm:$0xff]
        %v366 = vld [vmem:[%s309 + $0x178] sm:$0xff]
        %v367 = vld [vmem:[%s309 + $0x180] sm:$0xff]
        %v368 = vld [vmem:[%s309 + $0x188] sm:$0xff]
        %v369 = vld [vmem:[%s309 + $0x190] sm:$0xff]
        %v370 = vld [vmem:[%s309 + $0x198] sm:$0xff]
        %v371 = vld [vmem:[%s309 + $0x1a0] sm:$0xff]
        %v372 = vld [vmem:[%s309 + $0x1a8] sm:$0xff]
        %v373 = vld [vmem:[%s309 + $0x1b0] sm:$0xff]
        %v374 = vld [vmem:[%s309 + $0x1b8] sm:$0xff]
        %v375 = vld [vmem:[%s309 + $0x1c0] sm:$0xff]
        %v376 = vld [vmem:[%s309 + $0x1c8] sm:$0xff]
        %v377 = vld [vmem:[%s309 + $0x1d0] sm:$0xff]
        %v378 = vld [vmem:[%s309 + $0x1d8] sm:$0xff]
        %v379 = vld [vmem:[%s309 + $0x1e0] sm:$0xff]
        %v380 = vld [vmem:[%s309 + $0x1e8] sm:$0xff]
        %v381 = vld [vmem:[%s309 + $0x1f0] sm:$0xff]
        %v382 = vld [vmem:[%s309 + $0x1f8] sm:$0xff]
        %v383 = vpack.c.bf16 %v321, %v319
        %v384 = vpack.c.bf16 %v322, %v320
        %v385 = vpack.c.bf16 %v325, %v323
        %v386 = vpack.c.bf16 %v326, %v324
        %v387 = vpack.c.bf16 %v329, %v327
        %v388 = vpack.c.bf16 %v330, %v328
        %v389 = vpack.c.bf16 %v333, %v331
        %v390 = vpack.c.bf16 %v334, %v332
        %v391 = vpack.c.bf16 %v337, %v335
        %v392 = vpack.c.bf16 %v338, %v336
        %v393 = vpack.c.bf16 %v341, %v339
        %v394 = vpack.c.bf16 %v342, %v340
        %v395 = vpack.c.bf16 %v345, %v343
        %v396 = vpack.c.bf16 %v346, %v344
        %v397 = vpack.c.bf16 %v349, %v347
        %v398 = vpack.c.bf16 %v350, %v348
        %v399 = vpack.c.bf16 %v353, %v351
        %v400 = vpack.c.bf16 %v354, %v352
        %v401 = vpack.c.bf16 %v357, %v355
        %v402 = vpack.c.bf16 %v358, %v356
        %v403 = vpack.c.bf16 %v361, %v359
        %v404 = vpack.c.bf16 %v362, %v360
        %v405 = vpack.c.bf16 %v365, %v363
        %v406 = vpack.c.bf16 %v366, %v364
        %v407 = vpack.c.bf16 %v369, %v367
        %v408 = vpack.c.bf16 %v370, %v368
        %v409 = vpack.c.bf16 %v373, %v371
        %v410 = vpack.c.bf16 %v374, %v372
        %v411 = vpack.c.bf16 %v377, %v375
        %v412 = vpack.c.bf16 %v378, %v376
        %v413 = vpack.c.bf16 %v381, %v379
        %v414 = vpack.c.bf16 %v382, %v380
        %v415 = vld [vmem:[%s1] sm:$0xff]
        %v416 = vld [vmem:[%s1 + $0x8] sm:$0xff]
        %v417 = vld [vmem:[%s1 + $0x10] sm:$0xff]
        %v418 = vld [vmem:[%s1 + $0x18] sm:$0xff]
        %v419 = vld [vmem:[%s1 + $0x20] sm:$0xff]
        %v420 = vld [vmem:[%s1 + $0x28] sm:$0xff]
        %v421 = vld [vmem:[%s1 + $0x30] sm:$0xff]
        %v422 = vld [vmem:[%s1 + $0x38] sm:$0xff]
        %v423 = vld [vmem:[%s2] sm:$0xff]
        %v424 = vld [vmem:[%s2 + $0x8] sm:$0xff]
        %v425 = vld [vmem:[%s2 + $0x10] sm:$0xff]
        %v426 = vld [vmem:[%s2 + $0x18] sm:$0xff]
        %v427 = vld [vmem:[%s2 + $0x20] sm:$0xff]
        %v428 = vld [vmem:[%s2 + $0x28] sm:$0xff]
        %v429 = vld [vmem:[%s2 + $0x30] sm:$0xff]
        %v430 = vld [vmem:[%s2 + $0x38] sm:$0xff]
        %432 = vset.pattern.permute.xlu0 0
        %433 = vperm.xlu0 %432, %v423
        %v434 = vpop.permute.xlu0 %433
        %437 = vset.pattern.permute.xlu0 0
        %438 = vperm.xlu0 %437, %v424
        %v439 = vpop.permute.xlu0 %438
        %442 = vset.pattern.permute.xlu0 0
        %443 = vperm.xlu0 %442, %v425
        %v444 = vpop.permute.xlu0 %443
        %447 = vset.pattern.permute.xlu0 0
        %448 = vperm.xlu0 %447, %v426
        %v449 = vpop.permute.xlu0 %448
        %452 = vset.pattern.permute.xlu0 0
        %453 = vperm.xlu0 %452, %v427
        %v454 = vpop.permute.xlu0 %453
        %457 = vset.pattern.permute.xlu0 0
        %458 = vperm.xlu0 %457, %v428
        %v459 = vpop.permute.xlu0 %458
        %462 = vset.pattern.permute.xlu0 0
        %463 = vperm.xlu0 %462, %v429
        %v464 = vpop.permute.xlu0 %463
        %467 = vset.pattern.permute.xlu0 0
        %468 = vperm.xlu0 %467, %v430
        %v469 = vpop.permute.xlu0 %468
        %v479 = vunpack.c.l.b16 %v415
        %v480 = vunpack.c.h.b16 %v415
        %v481 = vunpack.c.l.b16 %v416
        %v482 = vunpack.c.h.b16 %v416
        %v483 = vunpack.c.l.b16 %v417
        %v484 = vunpack.c.h.b16 %v417
        %v485 = vunpack.c.l.b16 %v418
        %v486 = vunpack.c.h.b16 %v418
        %v487 = vunpack.c.l.b16 %v419
        %v488 = vunpack.c.h.b16 %v419
        %v489 = vunpack.c.l.b16 %v420
        %v490 = vunpack.c.h.b16 %v420
        %v491 = vunpack.c.l.b16 %v421
        %v492 = vunpack.c.h.b16 %v421
        %v493 = vunpack.c.l.b16 %v422
        %v494 = vunpack.c.h.b16 %v422
        %v495 = vpack.c.b16 %v481, %v479
        %v496 = vpack.c.b16 %v482, %v480
        %v497 = vpack.c.b16 %v485, %v483
        %v498 = vpack.c.b16 %v486, %v484
        %v499 = vpack.c.b16 %v489, %v487
        %v500 = vpack.c.b16 %v490, %v488
        %v501 = vpack.c.b16 %v493, %v491
        %v502 = vpack.c.b16 %v494, %v492
        %511 = vmatprep.subr.bf16.mxu0 %v398
        %512 = vmatpush1.bf16.msra.mxu0 %v397
        %513 = vmatprep.subr.bf16.mxu0 %v396
        %514 = vmatpush1.bf16.msra.mxu0 %v395
        %515 = vmatprep.subr.bf16.mxu0 %v394
        %516 = vmatpush1.bf16.msra.mxu0 %v393
        %517 = vmatprep.subr.bf16.mxu0 %v392
        %518 = vmatpush1.bf16.msra.mxu0 %v391
        %519 = vmatprep.subr.bf16.mxu0 %v390
        %520 = vmatpush1.bf16.msra.mxu0 %v389
        %521 = vmatprep.subr.bf16.mxu0 %v388
        %522 = vmatpush1.bf16.msra.mxu0 %v387
        %523 = vmatprep.subr.bf16.mxu0 %v386
        %524 = vmatpush1.bf16.msra.mxu0 %v385
        %525 = vmatprep.subr.bf16.mxu0 %v384
        %526 = vmatpush1.bf16.msra.mxu0 %v383
        %527 = vmatprep.subr.bf16.mxu0 %v414
        %528 = vmatpush2.bf16.msra.mxu0 %v413
        %529 = vmatprep.subr.bf16.mxu0 %v412
        %530 = vmatpush2.bf16.msra.mxu0 %v411
        %531 = vmatprep.subr.bf16.mxu0 %v410
        %532 = vmatpush2.bf16.msra.mxu0 %v409
        %533 = vmatprep.subr.bf16.mxu0 %v408
        %534 = vmatpush2.bf16.msra.mxu0 %v407
        %535 = vmatprep.subr.bf16.mxu0 %v406
        %536 = vmatpush2.bf16.msra.mxu0 %v405
        %537 = vmatprep.subr.bf16.mxu0 %v404
        %538 = vmatpush2.bf16.msra.mxu0 %v403
        %539 = vmatprep.subr.bf16.mxu0 %v402
        %540 = vmatpush2.bf16.msra.mxu0 %v401
        %541 = vmatprep.subr.bf16.mxu0 %v400
        %542 = vmatpush2.bf16.msra.mxu0 %v399
        %543 = vmatprep.mubr.bf16.mxu0 %v496
        %544 = vmatmul.mubr.bf16.gmra.mxu0 %v495
        %v545 = vpop.f32.mrf.mxu0
        %v546 = vadd.f32 %v434, %v545
        %v547 = vpop.f32.mrf.mxu0
        %v548 = vadd.f32 %v434, %v547
        %v549 = vpop.f32.mrf.mxu0
        %v550 = vadd.f32 %v439, %v549
        %v551 = vpop.f32.mrf.mxu0
        %v552 = vadd.f32 %v439, %v551
        %553 = vmatprep.mubr.bf16.mxu0 %v498
        %554 = vmatmul.mubr.bf16.gmra.mxu0 %v497
        %v555 = vpop.f32.mrf.mxu0
        %v556 = vadd.f32 %v444, %v555
        %v557 = vpop.f32.mrf.mxu0
        %v558 = vadd.f32 %v444, %v557
        %v559 = vpop.f32.mrf.mxu0
        %v560 = vadd.f32 %v449, %v559
        %v561 = vpop.f32.mrf.mxu0
        %v562 = vadd.f32 %v449, %v561
        %563 = vmatprep.mubr.bf16.mxu0 %v500
        %564 = vmatmul.mubr.bf16.gmra.mxu0 %v499
        %v565 = vpop.f32.mrf.mxu0
        %v566 = vadd.f32 %v454, %v565
        %v567 = vpop.f32.mrf.mxu0
        %v568 = vadd.f32 %v454, %v567
        %v569 = vpop.f32.mrf.mxu0
        %v570 = vadd.f32 %v459, %v569
        %v571 = vpop.f32.mrf.mxu0
        %v572 = vadd.f32 %v459, %v571
        %573 = vmatprep.mubr.bf16.mxu0 %v502
        %574 = vmatmul.mubr.bf16.gmra.mxu0 %v501
        %v575 = vpop.f32.mrf.mxu0
        %v576 = vadd.f32 %v464, %v575
        %v577 = vpop.f32.mrf.mxu0
        %v578 = vadd.f32 %v464, %v577
        %v579 = vpop.f32.mrf.mxu0
        %v580 = vadd.f32 %v469, %v579
        %v581 = vpop.f32.mrf.mxu0
        %v582 = vadd.f32 %v469, %v581
        %583 = vdwg.mxu0
        %v584 = vmax.f32 %v546, 0.0
        %v585 = vmax.f32 %v548, 0.0
        %v586 = vmax.f32 %v550, 0.0
        %v587 = vmax.f32 %v552, 0.0
        %v588 = vmax.f32 %v556, 0.0
        %v589 = vmax.f32 %v558, 0.0
        %v590 = vmax.f32 %v560, 0.0
        %v591 = vmax.f32 %v562, 0.0
        %v592 = vmax.f32 %v566, 0.0
        %v593 = vmax.f32 %v568, 0.0
        %v594 = vmax.f32 %v570, 0.0
        %v595 = vmax.f32 %v572, 0.0
        %v596 = vmax.f32 %v576, 0.0
        %v597 = vmax.f32 %v578, 0.0
        %v598 = vmax.f32 %v580, 0.0
        %v599 = vmax.f32 %v582, 0.0
        %v600 = vld [vmem:[%s3] sm:$0xff]
        %v601 = vld [vmem:[%s3 + $0x8] sm:$0x1]
        %vm602 = vcmask 523264
        %v604 = vsel %vm602, %v600, 0
        %v607 = vsel %vm602, %v601, 0
        %609 = vmatprep.subr.mxu0 0.0
        %610 = vmatpush1.msra.mxu0 0.0
        %611 = vmatprep.subr.mxu0 0.0
        %612 = vmatpush1.msra.mxu0 0.0
        %613 = vmatprep.subr.mxu0 0.0
        %614 = vmatpush1.msra.mxu0 0.0
        %615 = vmatprep.subr.mxu0 0.0
        %616 = vmatpush1.msra.mxu0 0.0
        %617 = vmatprep.subr.mxu0 0.0
        %618 = vmatpush1.msra.mxu0 0.0
        %619 = vmatprep.subr.mxu0 0.0
        %620 = vmatpush1.msra.mxu0 0.0
        %621 = vmatprep.subr.mxu0 0.0
        %622 = vmatpush1.msra.mxu0 0.0
        %623 = vmatprep.subr.mxu0 0.0
        %624 = vmatpush1.msra.mxu0 0.0
        %625 = vmatprep.subr.mxu0 %v599
        %626 = vmatpush1.msra.mxu0 %v598
        %627 = vmatprep.subr.mxu0 %v597
        %628 = vmatpush1.msra.mxu0 %v596
        %629 = vmatprep.subr.mxu0 %v595
        %630 = vmatpush1.msra.mxu0 %v594
        %631 = vmatprep.subr.mxu0 %v593
        %632 = vmatpush1.msra.mxu0 %v592
        %633 = vmatprep.subr.mxu0 %v591
        %634 = vmatpush1.msra.mxu0 %v590
        %635 = vmatprep.subr.mxu0 %v589
        %636 = vmatpush1.msra.mxu0 %v588
        %637 = vmatprep.subr.mxu0 %v587
        %638 = vmatpush1.msra.mxu0 %v586
        %639 = vmatprep.subr.mxu0 %v585
        %640 = vmatpush1.msra.mxu0 %v584
        %641 = vmatprep.subr.mxu0 0.0
        %642 = vmatpush2.msra.mxu0 0.0
        %643 = vmatprep.subr.mxu0 0.0
        %644 = vmatpush2.msra.mxu0 0.0
        %645 = vmatprep.subr.mxu0 0.0
        %646 = vmatpush2.msra.mxu0 0.0
        %647 = vmatprep.subr.mxu0 0.0
        %648 = vmatpush2.msra.mxu0 0.0
        %649 = vmatprep.subr.mxu0 0.0
        %650 = vmatpush2.msra.mxu0 0.0
        %651 = vmatprep.subr.mxu0 0.0
        %652 = vmatpush2.msra.mxu0 0.0
        %653 = vmatprep.subr.mxu0 0.0
        %654 = vmatpush2.msra.mxu0 0.0
        %655 = vmatprep.subr.mxu0 0.0
        %656 = vmatpush2.msra.mxu0 0.0
        %657 = vmatprep.subr.mxu0 0.0
        %658 = vmatpush2.msra.mxu0 0.0
        %659 = vmatprep.subr.mxu0 0.0
        %660 = vmatpush2.msra.mxu0 0.0
        %661 = vmatprep.subr.mxu0 0.0
        %662 = vmatpush2.msra.mxu0 0.0
        %663 = vmatprep.subr.mxu0 0.0
        %664 = vmatpush2.msra.mxu0 0.0
        %665 = vmatprep.subr.mxu0 0.0
        %666 = vmatpush2.msra.mxu0 0.0
        %667 = vmatprep.subr.mxu0 0.0
        %668 = vmatpush2.msra.mxu0 0.0
        %669 = vmatprep.subr.mxu0 0.0
        %670 = vmatpush2.msra.mxu0 0.0
        %671 = vmatprep.subr.mxu0 0.0
        %672 = vmatpush2.msra.mxu0 0.0
        %673 = vmatprep.mubr.f32.mxu0 0.0
        %674 = vmatmul.mubr.f32.gmra.mxu0 %v604
        %v675 = vpop.f32.mrf.mxu0
        %v676 = vadd.f32 0.0, %v675
        %v677 = vpop.f32.mrf.mxu0
        %v678 = vadd.f32 0.0, %v677
        %679 = vmatprep.mubr.f32.mxu0 0.0
        %680 = vmatmul.mubr.f32.gmra.mxu0 %v607
        %v681 = vpop.f32.mrf.mxu0
        %v682 = vadd.f32 0.0, %v681
        %v683 = vpop.f32.mrf.mxu0
        %v684 = vadd.f32 0.0, %v683
        %685 = vdwg.mxu0
        %v686 = vlaneseq
        %v687 = vand.u32 %v686, 127
        %v688 = vadd.s32 %v687, 128
        %v689 = vand.u32 %v687, 15
        %v690 = vand.u32 %v688, 15
        %vm691 = vcmp.ge.s32.totalorder %v687, 16
        %vm692 = vcmp.ge.s32.totalorder %v688, 16
        %vm693 = vcmp.lt.s32.totalorder %v687, 240
        %vm694 = vcmp.lt.s32.totalorder %v688, 240
        %vm695 = vcmp.ge.s32.totalorder %v689, 1
        %vm696 = vcmp.ge.s32.totalorder %v690, 1
        %vm697 = vcmp.lt.s32.totalorder %v689, 15
        %vm698 = vcmp.lt.s32.totalorder %v690, 15
        %699 = vrot.lane.b32.xlu0 %v676, 17
        %v700 = vpop.permute.xlu0 %699
        %701 = vrot.lane.b32.xlu0 %v678, 17
        %v702 = vpop.permute.xlu0 %701
        %vm703 = vcmp.lt.s32.totalorder %v687, 17
        %v704 = vsel %vm703, %v700, %v702
        %v705 = vsel %vm703, %v702, %v700
        %vm706 = vmand %vm691, %vm695
        %vm707 = vmand %vm692, %vm696
        %v708 = vsel %vm706, %v705, 0.0
        %v709 = vsel %vm707, %v704, 0.0
        %v710 = vadd.f32 %v708, 0.0
        %v711 = vadd.f32 %v709, 0.0
        %v714 = vrot.slane %v676, 1
        %v715 = vrot.slane %v678, 1
        %718 = vrot.lane.b32.xlu0 %v714, 16
        %v719 = vpop.permute.xlu0 %718
        %720 = vrot.lane.b32.xlu0 %v715, 16
        %v721 = vpop.permute.xlu0 %720
        %vm722 = vcmp.lt.s32.totalorder %v687, 16
        %v723 = vsel %vm722, %v719, %v721
        %v724 = vsel %vm722, %v721, %v719
        %v725 = vsel %vm691, %v724, 0.0
        %v726 = vsel %vm692, %v723, 0.0
        %v727 = vadd.f32 %v710, %v725
        %v728 = vadd.f32 %v711, %v726
        %v729 = vrot.slane %v676, 2
        %v730 = vrot.slane %v678, 2
        %733 = vrot.lane.b32.xlu0 %v729, 15
        %v734 = vpop.permute.xlu0 %733
        %735 = vrot.lane.b32.xlu0 %v730, 15
        %v736 = vpop.permute.xlu0 %735
        %vm737 = vcmp.lt.s32.totalorder %v687, 15
        %v738 = vsel %vm737, %v734, %v736
        %v739 = vsel %vm737, %v736, %v734
        %vm740 = vmand %vm691, %vm697
        %vm741 = vmand %vm692, %vm698
        %v742 = vsel %vm740, %v739, 0.0
        %v743 = vsel %vm741, %v738, 0.0
        %v744 = vadd.f32 %v727, %v742
        %v745 = vadd.f32 %v728, %v743
        %v746 = vrot.slane %v676, 3
        %v747 = vrot.slane %v678, 3
        %750 = vrot.lane.b32.xlu0 %v746, 1
        %v751 = vpop.permute.xlu0 %750
        %752 = vrot.lane.b32.xlu0 %v747, 1
        %v753 = vpop.permute.xlu0 %752
        %vm754 = vcmp.lt.s32.totalorder %v687, 1
        %v755 = vsel %vm754, %v751, %v753
        %v756 = vsel %vm754, %v753, %v751
        %v757 = vsel %vm695, %v756, 0.0
        %v758 = vsel %vm696, %v755, 0.0
        %v759 = vadd.f32 %v744, %v757
        %v760 = vadd.f32 %v745, %v758
        %v761 = vrot.slane %v676, 4
        %v762 = vrot.slane %v678, 4
        %v765 = vadd.f32 %v759, %v761
        %v766 = vadd.f32 %v760, %v762
        %v767 = vrot.slane %v676, 5
        %v768 = vrot.slane %v678, 5
        %771 = vrot.lane.b32.xlu0 %v767, 127
        %v772 = vpop.permute.xlu0 %771
        %773 = vrot.lane.b32.xlu0 %v768, 127
        %v774 = vpop.permute.xlu0 %773
        %vm775 = vcmp.lt.s32.totalorder %v687, 127
        %v776 = vsel %vm775, %v772, %v774
        %v777 = vsel %vm775, %v774, %v772
        %v778 = vsel %vm697, %v776, 0.0
        %v779 = vsel %vm698, %v777, 0.0
        %v780 = vadd.f32 %v765, %v778
        %v781 = vadd.f32 %v766, %v779
        %v782 = vrot.slane %v676, 6
        %v783 = vrot.slane %v678, 6
        %786 = vrot.lane.b32.xlu0 %v782, 113
        %v787 = vpop.permute.xlu0 %786
        %788 = vrot.lane.b32.xlu0 %v783, 113
        %v789 = vpop.permute.xlu0 %788
        %vm790 = vcmp.lt.s32.totalorder %v687, 113
        %v791 = vsel %vm790, %v787, %v789
        %v792 = vsel %vm790, %v789, %v787
        %vm793 = vmand %vm693, %vm695
        %vm794 = vmand %vm694, %vm696
        %v795 = vsel %vm793, %v791, 0.0
        %v796 = vsel %vm794, %v792, 0.0
        %v797 = vadd.f32 %v780, %v795
        %v798 = vadd.f32 %v781, %v796
        %v799 = vrot.slane %v676, 7
        %v800 = vrot.slane %v678, 7
        %803 = vrot.lane.b32.xlu0 %v799, 112
        %v804 = vpop.permute.xlu0 %803
        %805 = vrot.lane.b32.xlu0 %v800, 112
        %v806 = vpop.permute.xlu0 %805
        %vm807 = vcmp.lt.s32.totalorder %v687, 112
        %v808 = vsel %vm807, %v804, %v806
        %v809 = vsel %vm807, %v806, %v804
        %v810 = vsel %vm693, %v808, 0.0
        %v811 = vsel %vm694, %v809, 0.0
        %v812 = vadd.f32 %v797, %v810
        %v813 = vadd.f32 %v798, %v811
        %814 = vrot.lane.b32.xlu0 %v682, 111
        %v815 = vpop.permute.xlu0 %814
        %816 = vrot.lane.b32.xlu0 %v684, 111
        %v817 = vpop.permute.xlu0 %816
        %vm818 = vcmp.lt.s32.totalorder %v687, 111
        %v819 = vsel %vm818, %v815, %v817
        %v820 = vsel %vm818, %v817, %v815
        %vm821 = vmand %vm693, %vm697
        %vm822 = vmand %vm694, %vm698
        %v823 = vsel %vm821, %v819, 0.0
        %v824 = vsel %vm822, %v820, 0.0
        %v825 = vadd.f32 %v812, %v823
        %v826 = vadd.f32 %v813, %v824
        %s827 = sld [smem:[#allocation2]]
        %v828 = vstv %s827
        %v829 = vadd.f32 %v825, %v828
        %v830 = vadd.f32 %v826, %v828
        %v831 = vsub.f32 0.0, %v829
        %v832 = vsub.f32 0.0, %v830
        %v833 = vmul.f32 %v831, 1.442695
        %v834 = vpow.pop %v833
        %v835 = vmul.f32 %v832, 1.442695
        %v836 = vpow.pop %v835
        %v837 = vadd.f32 %v834, 1.0
        %v838 = vadd.f32 %v836, 1.0
        %v839 = vrcp.pop %v837
        %v840 = vrcp.pop %v838
        %v841 = vld [vmem:[%s315] sm:$0xff]
        %v842 = vld [vmem:[%s315 + $0x8] sm:$0xff]
        %v843 = vld [vmem:[%s315 + $0x10] sm:$0xff]
        %v844 = vld [vmem:[%s315 + $0x18] sm:$0xff]
        %v845 = vld [vmem:[%s315 + $0x20] sm:$0xff]
        %v846 = vld [vmem:[%s315 + $0x28] sm:$0xff]
        %v847 = vld [vmem:[%s315 + $0x30] sm:$0xff]
        %v848 = vld [vmem:[%s315 + $0x38] sm:$0xff]
        %v849 = vld [vmem:[%s315 + $0x40] sm:$0xff]
        %v850 = vld [vmem:[%s315 + $0x48] sm:$0xff]
        %v851 = vld [vmem:[%s315 + $0x50] sm:$0xff]
        %v852 = vld [vmem:[%s315 + $0x58] sm:$0xff]
        %v853 = vld [vmem:[%s315 + $0x60] sm:$0xff]
        %v854 = vld [vmem:[%s315 + $0x68] sm:$0xff]
        %v855 = vld [vmem:[%s315 + $0x70] sm:$0xff]
        %v856 = vld [vmem:[%s315 + $0x78] sm:$0xff]
        %v857 = vld [vmem:[%s315 + $0x80] sm:$0xff]
        %v858 = vld [vmem:[%s315 + $0x88] sm:$0xff]
        %v859 = vld [vmem:[%s315 + $0x90] sm:$0xff]
        %v860 = vld [vmem:[%s315 + $0x98] sm:$0xff]
        %v861 = vld [vmem:[%s315 + $0xa0] sm:$0xff]
        %v862 = vld [vmem:[%s315 + $0xa8] sm:$0xff]
        %v863 = vld [vmem:[%s315 + $0xb0] sm:$0xff]
        %v864 = vld [vmem:[%s315 + $0xb8] sm:$0xff]
        %v865 = vld [vmem:[%s315 + $0xc0] sm:$0xff]
        %v866 = vld [vmem:[%s315 + $0xc8] sm:$0xff]
        %v867 = vld [vmem:[%s315 + $0xd0] sm:$0xff]
        %v868 = vld [vmem:[%s315 + $0xd8] sm:$0xff]
        %v869 = vld [vmem:[%s315 + $0xe0] sm:$0xff]
        %v870 = vld [vmem:[%s315 + $0xe8] sm:$0xff]
        %v871 = vld [vmem:[%s315 + $0xf0] sm:$0xff]
        %v872 = vld [vmem:[%s315 + $0xf8] sm:$0xff]
        %v873 = vld [vmem:[%s315 + $0x100] sm:$0xff]
        %v874 = vld [vmem:[%s315 + $0x108] sm:$0xff]
        %v875 = vld [vmem:[%s315 + $0x110] sm:$0xff]
        %v876 = vld [vmem:[%s315 + $0x118] sm:$0xff]
        %v877 = vld [vmem:[%s315 + $0x120] sm:$0xff]
        %v878 = vld [vmem:[%s315 + $0x128] sm:$0xff]
        %v879 = vld [vmem:[%s315 + $0x130] sm:$0xff]
        %v880 = vld [vmem:[%s315 + $0x138] sm:$0xff]
        %v881 = vld [vmem:[%s315 + $0x140] sm:$0xff]
        %v882 = vld [vmem:[%s315 + $0x148] sm:$0xff]
        %v883 = vld [vmem:[%s315 + $0x150] sm:$0xff]
        %v884 = vld [vmem:[%s315 + $0x158] sm:$0xff]
        %v885 = vld [vmem:[%s315 + $0x160] sm:$0xff]
        %v886 = vld [vmem:[%s315 + $0x168] sm:$0xff]
        %v887 = vld [vmem:[%s315 + $0x170] sm:$0xff]
        %v888 = vld [vmem:[%s315 + $0x178] sm:$0xff]
        %v889 = vld [vmem:[%s315 + $0x180] sm:$0xff]
        %v890 = vld [vmem:[%s315 + $0x188] sm:$0xff]
        %v891 = vld [vmem:[%s315 + $0x190] sm:$0xff]
        %v892 = vld [vmem:[%s315 + $0x198] sm:$0xff]
        %v893 = vld [vmem:[%s315 + $0x1a0] sm:$0xff]
        %v894 = vld [vmem:[%s315 + $0x1a8] sm:$0xff]
        %v895 = vld [vmem:[%s315 + $0x1b0] sm:$0xff]
        %v896 = vld [vmem:[%s315 + $0x1b8] sm:$0xff]
        %v897 = vld [vmem:[%s315 + $0x1c0] sm:$0xff]
        %v898 = vld [vmem:[%s315 + $0x1c8] sm:$0xff]
        %v899 = vld [vmem:[%s315 + $0x1d0] sm:$0xff]
        %v900 = vld [vmem:[%s315 + $0x1d8] sm:$0xff]
        %v901 = vld [vmem:[%s315 + $0x1e0] sm:$0xff]
        %v902 = vld [vmem:[%s315 + $0x1e8] sm:$0xff]
        %v903 = vld [vmem:[%s315 + $0x1f0] sm:$0xff]
        %v904 = vld [vmem:[%s315 + $0x1f8] sm:$0xff]
        %v905 = vld [vmem:[%s315 + $0x200] sm:$0xff]
        %v906 = vld [vmem:[%s315 + $0x208] sm:$0xff]
        %v907 = vld [vmem:[%s315 + $0x210] sm:$0xff]
        %v908 = vld [vmem:[%s315 + $0x218] sm:$0xff]
        %v909 = vpack.c.bf16 %v839, %v839
        %v910 = vpack.c.bf16 %v840, %v840
        %v912 = vpack.i.b16 %v909, %v909
        %v914 = vlaneseq
        %v915 = vshrl.u32 %v914, 7
        %v916 = vsub.s32 0, %v915
        %v917 = vrot.slane %v912, %v916
        %v919 = vpack.i.b16 %v910, %v910
        %v921 = vlaneseq
        %v922 = vshrl.u32 %v921, 7
        %v923 = vsub.s32 0, %v922
        %v924 = vrot.slane %v919, %v923
        %v927 = vunpack.c.l.b16 %v917
        %v928 = vunpack.c.l.b16 %v924
        %v929 = vpack.c.b16 %v928, %v927
        %v931 = vmul.bf16 %v841, %v929
        %v932 = vmul.bf16 %v842, %v929
        %v933 = vmul.bf16 %v843, %v929
        %v934 = vmul.bf16 %v844, %v929
        %v935 = vmul.bf16 %v845, %v929
        %v936 = vmul.bf16 %v846, %v929
        %v937 = vmul.bf16 %v847, %v929
        %v938 = vmul.bf16 %v848, %v929
        %v939 = vmul.bf16 %v849, %v929
        %v940 = vmul.bf16 %v850, %v929
        %v941 = vmul.bf16 %v851, %v929
        %v942 = vmul.bf16 %v852, %v929
        %v943 = vmul.bf16 %v853, %v929
        %v944 = vmul.bf16 %v854, %v929
        %v945 = vmul.bf16 %v855, %v929
        %v946 = vmul.bf16 %v856, %v929
        %v947 = vmul.bf16 %v857, %v929
        %v948 = vmul.bf16 %v858, %v929
        %v949 = vmul.bf16 %v859, %v929
        %v950 = vmul.bf16 %v860, %v929
        %v951 = vmul.bf16 %v861, %v929
        %v952 = vmul.bf16 %v862, %v929
        %v953 = vmul.bf16 %v863, %v929
        %v954 = vmul.bf16 %v864, %v929
        %v955 = vmul.bf16 %v865, %v929
        %v956 = vmul.bf16 %v866, %v929
        %v957 = vmul.bf16 %v867, %v929
        %v958 = vmul.bf16 %v868, %v929
        %v959 = vmul.bf16 %v869, %v929
        %v960 = vmul.bf16 %v870, %v929
        %v961 = vmul.bf16 %v871, %v929
        %v962 = vmul.bf16 %v872, %v929
        %v963 = vmul.bf16 %v873, %v929
        %v964 = vmul.bf16 %v874, %v929
        %v965 = vmul.bf16 %v875, %v929
        %v966 = vmul.bf16 %v876, %v929
        %v967 = vmul.bf16 %v877, %v929
        %v968 = vmul.bf16 %v878, %v929
        %v969 = vmul.bf16 %v879, %v929
        %v970 = vmul.bf16 %v880, %v929
        %v971 = vmul.bf16 %v881, %v929
        %v972 = vmul.bf16 %v882, %v929
        %v973 = vmul.bf16 %v883, %v929
        %v974 = vmul.bf16 %v884, %v929
        %v975 = vmul.bf16 %v885, %v929
        %v976 = vmul.bf16 %v886, %v929
        %v977 = vmul.bf16 %v887, %v929
        %v978 = vmul.bf16 %v888, %v929
        %v979 = vmul.bf16 %v889, %v929
        %v980 = vmul.bf16 %v890, %v929
        %v981 = vmul.bf16 %v891, %v929
        %v982 = vmul.bf16 %v892, %v929
        %v983 = vmul.bf16 %v893, %v929
        %v984 = vmul.bf16 %v894, %v929
        %v985 = vmul.bf16 %v895, %v929
        %v986 = vmul.bf16 %v896, %v929
        %v987 = vmul.bf16 %v897, %v929
        %v988 = vmul.bf16 %v898, %v929
        %v989 = vmul.bf16 %v899, %v929
        %v990 = vmul.bf16 %v900, %v929
        %v991 = vmul.bf16 %v901, %v929
        %v992 = vmul.bf16 %v902, %v929
        %v993 = vmul.bf16 %v903, %v929
        %v994 = vmul.bf16 %v904, %v929
        %v995 = vmul.bf16 %v905, %v929
        %v996 = vmul.bf16 %v906, %v929
        %v997 = vmul.bf16 %v907, %v929
        %v998 = vmul.bf16 %v908, %v929
        %v999 = vld [vmem:[%s5] sm:$0xff]
        %v1000 = vld [vmem:[%s5 + $0x8] sm:$0xff]
        %v1001 = vld [vmem:[%s5 + $0x10] sm:$0xf]
        %v1002 = vld [vmem:[%s5 + $0x14] sm:$0xff]
        %v1003 = vld [vmem:[%s5 + $0x1c] sm:$0xff]
        %v1004 = vld [vmem:[%s5 + $0x24] sm:$0xf]
        %v1005 = vld [vmem:[%s5 + $0x28] sm:$0xff]
        %v1006 = vld [vmem:[%s5 + $0x30] sm:$0xff]
        %v1007 = vld [vmem:[%s5 + $0x38] sm:$0xf]
        %v1008 = vld [vmem:[%s5 + $0x3c] sm:$0xff]
        %v1009 = vld [vmem:[%s5 + $0x44] sm:$0xff]
        %v1010 = vld [vmem:[%s5 + $0x4c] sm:$0xf]
        %v1011 = vld [vmem:[%s5 + $0x50] sm:$0xff]
        %v1012 = vld [vmem:[%s5 + $0x58] sm:$0xff]
        %v1013 = vld [vmem:[%s5 + $0x60] sm:$0xf]
        %v1014 = vld [vmem:[%s5 + $0x64] sm:$0xff]
        %v1015 = vld [vmem:[%s5 + $0x6c] sm:$0xff]
        %v1016 = vld [vmem:[%s5 + $0x74] sm:$0xf]
        %v1017 = vld [vmem:[%s5 + $0x78] sm:$0xff]
        %v1018 = vld [vmem:[%s5 + $0x80] sm:$0xff]
        %v1019 = vld [vmem:[%s5 + $0x88] sm:$0xf]
        %v1020 = vld [vmem:[%s5 + $0x8c] sm:$0xff]
        %v1021 = vld [vmem:[%s5 + $0x94] sm:$0xff]
        %v1022 = vld [vmem:[%s5 + $0x9c] sm:$0xf]
        %v1023 = vld [vmem:[%s5 + $0xa0] sm:$0xff]
        %v1024 = vld [vmem:[%s5 + $0xa8] sm:$0xff]
        %v1025 = vld [vmem:[%s5 + $0xb0] sm:$0xf]
        %v1026 = vld [vmem:[%s5 + $0xb4] sm:$0xff]
        %v1027 = vld [vmem:[%s5 + $0xbc] sm:$0xff]
        %v1028 = vld [vmem:[%s5 + $0xc4] sm:$0xf]
        %v1029 = vld [vmem:[%s5 + $0xc8] sm:$0xff]
        %v1030 = vld [vmem:[%s5 + $0xd0] sm:$0xff]
        %v1031 = vld [vmem:[%s5 + $0xd8] sm:$0xf]
        %v1032 = vld [vmem:[%s5 + $0xdc] sm:$0xff]
        %v1033 = vld [vmem:[%s5 + $0xe4] sm:$0xff]
        %v1034 = vld [vmem:[%s5 + $0xec] sm:$0xf]
        %v1035 = vld [vmem:[%s5 + $0xf0] sm:$0xff]
        %v1036 = vld [vmem:[%s5 + $0xf8] sm:$0xff]
        %v1037 = vld [vmem:[%s5 + $0x100] sm:$0xf]
        %v1038 = vld [vmem:[%s5 + $0x104] sm:$0xff]
        %v1039 = vld [vmem:[%s5 + $0x10c] sm:$0xff]
        %v1040 = vld [vmem:[%s5 + $0x114] sm:$0xf]
        %v1041 = vld [vmem:[%s5 + $0x118] sm:$0xff]
        %v1042 = vld [vmem:[%s5 + $0x120] sm:$0xff]
        %v1043 = vld [vmem:[%s5 + $0x128] sm:$0xf]
        %v1044 = vld [vmem:[%s5 + $0x12c] sm:$0xff]
        %v1045 = vld [vmem:[%s5 + $0x134] sm:$0xff]
        %v1046 = vld [vmem:[%s5 + $0x13c] sm:$0xf]
        %v1047 = vld [vmem:[%s5 + $0x140] sm:$0xff]
        %v1048 = vld [vmem:[%s5 + $0x148] sm:$0xff]
        %v1049 = vld [vmem:[%s5 + $0x150] sm:$0xf]
        %v1050 = vld [vmem:[%s5 + $0x154] sm:$0xff]
        %v1051 = vld [vmem:[%s5 + $0x15c] sm:$0xff]
        %v1052 = vld [vmem:[%s5 + $0x164] sm:$0xf]
        %v1053 = vld [vmem:[%s5 + $0x168] sm:$0xff]
        %v1054 = vld [vmem:[%s5 + $0x170] sm:$0xff]
        %v1055 = vld [vmem:[%s5 + $0x178] sm:$0xf]
        %v1056 = vld [vmem:[%s5 + $0x17c] sm:$0xff]
        %v1057 = vld [vmem:[%s5 + $0x184] sm:$0xff]
        %v1058 = vld [vmem:[%s5 + $0x18c] sm:$0xf]
        %v1059 = vld [vmem:[%s5 + $0x190] sm:$0xff]
        %v1060 = vld [vmem:[%s5 + $0x198] sm:$0xff]
        %v1061 = vld [vmem:[%s5 + $0x1a0] sm:$0xf]
        %v1062 = vld [vmem:[%s5 + $0x1a4] sm:$0xff]
        %v1063 = vld [vmem:[%s5 + $0x1ac] sm:$0xff]
        %v1064 = vld [vmem:[%s5 + $0x1b4] sm:$0xf]
        %v1065 = vld [vmem:[%s5 + $0x1b8] sm:$0xff]
        %v1066 = vld [vmem:[%s5 + $0x1c0] sm:$0xff]
        %v1067 = vld [vmem:[%s5 + $0x1c8] sm:$0xf]
        %v1068 = vld [vmem:[%s5 + $0x1cc] sm:$0xff]
        %v1069 = vld [vmem:[%s5 + $0x1d4] sm:$0xff]
        %v1070 = vld [vmem:[%s5 + $0x1dc] sm:$0xf]
        %v1071 = vld [vmem:[%s5 + $0x1e0] sm:$0xff]
        %v1072 = vld [vmem:[%s5 + $0x1e8] sm:$0xff]
        %v1073 = vld [vmem:[%s5 + $0x1f0] sm:$0xf]
        %v1074 = vld [vmem:[%s5 + $0x1f4] sm:$0xff]
        %v1075 = vld [vmem:[%s5 + $0x1fc] sm:$0xff]
        %v1076 = vld [vmem:[%s5 + $0x204] sm:$0xf]
        %v1077 = vld [vmem:[%s5 + $0x208] sm:$0xff]
        %v1078 = vld [vmem:[%s5 + $0x210] sm:$0xff]
        %v1079 = vld [vmem:[%s5 + $0x218] sm:$0xf]
        %v1080 = vld [vmem:[%s5 + $0x21c] sm:$0xff]
        %v1081 = vld [vmem:[%s5 + $0x224] sm:$0xff]
        %v1082 = vld [vmem:[%s5 + $0x22c] sm:$0xf]
        %v1083 = vld [vmem:[%s5 + $0x230] sm:$0xff]
        %v1084 = vld [vmem:[%s5 + $0x238] sm:$0xff]
        %v1085 = vld [vmem:[%s5 + $0x240] sm:$0xf]
        %v1086 = vld [vmem:[%s5 + $0x244] sm:$0xff]
        %v1087 = vld [vmem:[%s5 + $0x24c] sm:$0xff]
        %v1088 = vld [vmem:[%s5 + $0x254] sm:$0xf]
        %v1089 = vld [vmem:[%s5 + $0x258] sm:$0xff]
        %v1090 = vld [vmem:[%s5 + $0x260] sm:$0xff]
        %v1091 = vld [vmem:[%s5 + $0x268] sm:$0xf]
        %v1092 = vld [vmem:[%s5 + $0x26c] sm:$0xff]
        %v1093 = vld [vmem:[%s5 + $0x274] sm:$0xff]
        %v1094 = vld [vmem:[%s5 + $0x27c] sm:$0xf]
        %v1163 = vunpack.c.l.b16 %v931
        %v1164 = vunpack.c.h.b16 %v931
        %v1165 = vunpack.c.l.b16 %v932
        %v1166 = vunpack.c.h.b16 %v932
        %v1167 = vunpack.c.l.b16 %v933
        %v1168 = vunpack.c.h.b16 %v933
        %v1169 = vunpack.c.l.b16 %v934
        %v1170 = vunpack.c.h.b16 %v934
        %v1171 = vunpack.c.l.b16 %v935
        %v1172 = vunpack.c.h.b16 %v935
        %v1173 = vunpack.c.l.b16 %v936
        %v1174 = vunpack.c.h.b16 %v936
        %v1175 = vunpack.c.l.b16 %v937
        %v1176 = vunpack.c.h.b16 %v937
        %v1177 = vunpack.c.l.b16 %v938
        %v1178 = vunpack.c.h.b16 %v938
        %v1179 = vunpack.c.l.b16 %v939
        %v1180 = vunpack.c.h.b16 %v939
        %v1181 = vunpack.c.l.b16 %v940
        %v1182 = vunpack.c.h.b16 %v940
        %v1183 = vunpack.c.l.b16 %v941
        %v1184 = vunpack.c.h.b16 %v941
        %v1185 = vunpack.c.l.b16 %v942
        %v1186 = vunpack.c.h.b16 %v942
        %v1187 = vunpack.c.l.b16 %v943
        %v1188 = vunpack.c.h.b16 %v943
        %v1189 = vunpack.c.l.b16 %v944
        %v1190 = vunpack.c.h.b16 %v944
        %v1191 = vunpack.c.l.b16 %v945
        %v1192 = vunpack.c.h.b16 %v945
        %v1193 = vunpack.c.l.b16 %v946
        %v1194 = vunpack.c.h.b16 %v946
        %v1195 = vunpack.c.l.b16 %v947
        %v1196 = vunpack.c.h.b16 %v947
        %v1197 = vunpack.c.l.b16 %v948
        %v1198 = vunpack.c.h.b16 %v948
        %v1199 = vunpack.c.l.b16 %v949
        %v1200 = vunpack.c.h.b16 %v949
        %v1201 = vunpack.c.l.b16 %v950
        %v1202 = vunpack.c.h.b16 %v950
        %v1203 = vunpack.c.l.b16 %v951
        %v1204 = vunpack.c.h.b16 %v951
        %v1205 = vunpack.c.l.b16 %v952
        %v1206 = vunpack.c.h.b16 %v952
        %v1207 = vunpack.c.l.b16 %v953
        %v1208 = vunpack.c.h.b16 %v953
        %v1209 = vunpack.c.l.b16 %v954
        %v1210 = vunpack.c.h.b16 %v954
        %v1211 = vunpack.c.l.b16 %v955
        %v1212 = vunpack.c.h.b16 %v955
        %v1213 = vunpack.c.l.b16 %v956
        %v1214 = vunpack.c.h.b16 %v956
        %v1215 = vunpack.c.l.b16 %v957
        %v1216 = vunpack.c.h.b16 %v957
        %v1217 = vunpack.c.l.b16 %v958
        %v1218 = vunpack.c.h.b16 %v958
        %v1219 = vunpack.c.l.b16 %v959
        %v1220 = vunpack.c.h.b16 %v959
        %v1221 = vunpack.c.l.b16 %v960
        %v1222 = vunpack.c.h.b16 %v960
        %v1223 = vunpack.c.l.b16 %v961
        %v1224 = vunpack.c.h.b16 %v961
        %v1225 = vunpack.c.l.b16 %v962
        %v1226 = vunpack.c.h.b16 %v962
        %v1227 = vunpack.c.l.b16 %v963
        %v1228 = vunpack.c.h.b16 %v963
        %v1229 = vunpack.c.l.b16 %v964
        %v1230 = vunpack.c.h.b16 %v964
        %v1231 = vunpack.c.l.b16 %v965
        %v1232 = vunpack.c.h.b16 %v965
        %v1233 = vunpack.c.l.b16 %v966
        %v1234 = vunpack.c.h.b16 %v966
        %v1235 = vunpack.c.l.b16 %v967
        %v1236 = vunpack.c.h.b16 %v967
        %v1237 = vunpack.c.l.b16 %v968
        %v1238 = vunpack.c.h.b16 %v968
        %v1239 = vunpack.c.l.b16 %v969
        %v1240 = vunpack.c.h.b16 %v969
        %v1241 = vunpack.c.l.b16 %v970
        %v1242 = vunpack.c.h.b16 %v970
        %v1243 = vunpack.c.l.b16 %v971
        %v1244 = vunpack.c.h.b16 %v971
        %v1245 = vunpack.c.l.b16 %v972
        %v1246 = vunpack.c.h.b16 %v972
        %v1247 = vunpack.c.l.b16 %v973
        %v1248 = vunpack.c.h.b16 %v973
        %v1249 = vunpack.c.l.b16 %v974
        %v1250 = vunpack.c.h.b16 %v974
        %v1251 = vunpack.c.l.b16 %v975
        %v1252 = vunpack.c.h.b16 %v975
        %v1253 = vunpack.c.l.b16 %v976
        %v1254 = vunpack.c.h.b16 %v976
        %v1255 = vunpack.c.l.b16 %v977
        %v1256 = vunpack.c.h.b16 %v977
        %v1257 = vunpack.c.l.b16 %v978
        %v1258 = vunpack.c.h.b16 %v978
        %v1259 = vunpack.c.l.b16 %v979
        %v1260 = vunpack.c.h.b16 %v979
        %v1261 = vunpack.c.l.b16 %v980
        %v1262 = vunpack.c.h.b16 %v980
        %v1263 = vunpack.c.l.b16 %v981
        %v1264 = vunpack.c.h.b16 %v981
        %v1265 = vunpack.c.l.b16 %v982
        %v1266 = vunpack.c.h.b16 %v982
        %v1267 = vunpack.c.l.b16 %v983
        %v1268 = vunpack.c.h.b16 %v983
        %v1269 = vunpack.c.l.b16 %v984
        %v1270 = vunpack.c.h.b16 %v984
        %v1271 = vunpack.c.l.b16 %v985
        %v1272 = vunpack.c.h.b16 %v985
        %v1273 = vunpack.c.l.b16 %v986
        %v1274 = vunpack.c.h.b16 %v986
        %v1275 = vunpack.c.l.b16 %v987
        %v1276 = vunpack.c.h.b16 %v987
        %v1277 = vunpack.c.l.b16 %v988
        %v1278 = vunpack.c.h.b16 %v988
        %v1279 = vunpack.c.l.b16 %v989
        %v1280 = vunpack.c.h.b16 %v989
        %v1281 = vunpack.c.l.b16 %v990
        %v1282 = vunpack.c.h.b16 %v990
        %v1283 = vunpack.c.l.b16 %v991
        %v1284 = vunpack.c.h.b16 %v991
        %v1285 = vunpack.c.l.b16 %v992
        %v1286 = vunpack.c.h.b16 %v992
        %v1287 = vunpack.c.l.b16 %v993
        %v1288 = vunpack.c.h.b16 %v993
        %v1289 = vunpack.c.l.b16 %v994
        %v1290 = vunpack.c.h.b16 %v994
        %v1291 = vunpack.c.l.b16 %v995
        %v1292 = vunpack.c.h.b16 %v995
        %v1293 = vunpack.c.l.b16 %v996
        %v1294 = vunpack.c.h.b16 %v996
        %v1295 = vunpack.c.l.b16 %v997
        %v1296 = vunpack.c.h.b16 %v997
        %v1297 = vunpack.c.l.b16 %v998
        %v1298 = vunpack.c.h.b16 %v998
        %v1299 = vpack.c.b16 %v1165, %v1163
        %v1300 = vpack.c.b16 %v1166, %v1164
        %v1301 = vpack.c.b16 %v1169, %v1167
        %v1302 = vpack.c.b16 %v1170, %v1168
        %v1303 = vpack.c.b16 %v1173, %v1171
        %v1304 = vpack.c.b16 %v1174, %v1172
        %v1305 = vpack.c.b16 %v1177, %v1175
        %v1306 = vpack.c.b16 %v1178, %v1176
        %v1307 = vpack.c.b16 %v1181, %v1179
        %v1308 = vpack.c.b16 %v1182, %v1180
        %v1309 = vpack.c.b16 %v1185, %v1183
        %v1310 = vpack.c.b16 %v1186, %v1184
        %v1311 = vpack.c.b16 %v1189, %v1187
        %v1312 = vpack.c.b16 %v1190, %v1188
        %v1313 = vpack.c.b16 %v1193, %v1191
        %v1314 = vpack.c.b16 %v1194, %v1192
        %v1315 = vpack.c.b16 %v1197, %v1195
        %v1316 = vpack.c.b16 %v1198, %v1196
        %v1317 = vpack.c.b16 %v1201, %v1199
        %v1318 = vpack.c.b16 %v1202, %v1200
        %v1319 = vpack.c.b16 %v1205, %v1203
        %v1320 = vpack.c.b16 %v1206, %v1204
        %v1321 = vpack.c.b16 %v1209, %v1207
        %v1322 = vpack.c.b16 %v1210, %v1208
        %v1323 = vpack.c.b16 %v1213, %v1211
        %v1324 = vpack.c.b16 %v1214, %v1212
        %v1325 = vpack.c.b16 %v1217, %v1215
        %v1326 = vpack.c.b16 %v1218, %v1216
        %v1327 = vpack.c.b16 %v1221, %v1219
        %v1328 = vpack.c.b16 %v1222, %v1220
        %v1329 = vpack.c.b16 %v1225, %v1223
        %v1330 = vpack.c.b16 %v1226, %v1224
        %v1331 = vpack.c.b16 %v1229, %v1227
        %v1332 = vpack.c.b16 %v1230, %v1228
        %v1333 = vpack.c.b16 %v1233, %v1231
        %v1334 = vpack.c.b16 %v1234, %v1232
        %v1335 = vpack.c.b16 %v1237, %v1235
        %v1336 = vpack.c.b16 %v1238, %v1236
        %v1337 = vpack.c.b16 %v1241, %v1239
        %v1338 = vpack.c.b16 %v1242, %v1240
        %v1339 = vpack.c.b16 %v1245, %v1243
        %v1340 = vpack.c.b16 %v1246, %v1244
        %v1341 = vpack.c.b16 %v1249, %v1247
        %v1342 = vpack.c.b16 %v1250, %v1248
        %v1343 = vpack.c.b16 %v1253, %v1251
        %v1344 = vpack.c.b16 %v1254, %v1252
        %v1345 = vpack.c.b16 %v1257, %v1255
        %v1346 = vpack.c.b16 %v1258, %v1256
        %v1347 = vpack.c.b16 %v1261, %v1259
        %v1348 = vpack.c.b16 %v1262, %v1260
        %v1349 = vpack.c.b16 %v1265, %v1263
        %v1350 = vpack.c.b16 %v1266, %v1264
        %v1351 = vpack.c.b16 %v1269, %v1267
        %v1352 = vpack.c.b16 %v1270, %v1268
        %v1353 = vpack.c.b16 %v1273, %v1271
        %v1354 = vpack.c.b16 %v1274, %v1272
        %v1355 = vpack.c.b16 %v1277, %v1275
        %v1356 = vpack.c.b16 %v1278, %v1276
        %v1357 = vpack.c.b16 %v1281, %v1279
        %v1358 = vpack.c.b16 %v1282, %v1280
        %v1359 = vpack.c.b16 %v1285, %v1283
        %v1360 = vpack.c.b16 %v1286, %v1284
        %v1361 = vpack.c.b16 %v1289, %v1287
        %v1362 = vpack.c.b16 %v1290, %v1288
        %v1363 = vpack.c.b16 %v1293, %v1291
        %v1364 = vpack.c.b16 %v1294, %v1292
        %v1365 = vpack.c.b16 %v1297, %v1295
        %v1366 = vpack.c.b16 %v1298, %v1296
        %v1531 = vunpack.c.l.b16 %v999
        %v1532 = vunpack.c.h.b16 %v999
        %v1533 = vunpack.c.l.b16 %v1000
        %v1534 = vunpack.c.h.b16 %v1000
        %v1535 = vunpack.c.l.b16 %v1001
        %v1536 = vunpack.c.l.b16 %v1002
        %v1537 = vunpack.c.h.b16 %v1002
        %v1538 = vunpack.c.l.b16 %v1003
        %v1539 = vunpack.c.h.b16 %v1003
        %v1540 = vunpack.c.l.b16 %v1004
        %v1541 = vunpack.c.l.b16 %v1005
        %v1542 = vunpack.c.h.b16 %v1005
        %v1543 = vunpack.c.l.b16 %v1006
        %v1544 = vunpack.c.h.b16 %v1006
        %v1545 = vunpack.c.l.b16 %v1007
        %v1546 = vunpack.c.l.b16 %v1008
        %v1547 = vunpack.c.h.b16 %v1008
        %v1548 = vunpack.c.l.b16 %v1009
        %v1549 = vunpack.c.h.b16 %v1009
        %v1550 = vunpack.c.l.b16 %v1010
        %v1551 = vunpack.c.l.b16 %v1011
        %v1552 = vunpack.c.h.b16 %v1011
        %v1553 = vunpack.c.l.b16 %v1012
        %v1554 = vunpack.c.h.b16 %v1012
        %v1555 = vunpack.c.l.b16 %v1013
        %v1556 = vunpack.c.l.b16 %v1014
        %v1557 = vunpack.c.h.b16 %v1014
        %v1558 = vunpack.c.l.b16 %v1015
        %v1559 = vunpack.c.h.b16 %v1015
        %v1560 = vunpack.c.l.b16 %v1016
        %v1561 = vunpack.c.l.b16 %v1017
        %v1562 = vunpack.c.h.b16 %v1017
        %v1563 = vunpack.c.l.b16 %v1018
        %v1564 = vunpack.c.h.b16 %v1018
        %v1565 = vunpack.c.l.b16 %v1019
        %v1566 = vunpack.c.l.b16 %v1020
        %v1567 = vunpack.c.h.b16 %v1020
        %v1568 = vunpack.c.l.b16 %v1021
        %v1569 = vunpack.c.h.b16 %v1021
        %v1570 = vunpack.c.l.b16 %v1022
        %v1571 = vunpack.c.l.b16 %v1023
        %v1572 = vunpack.c.h.b16 %v1023
        %v1573 = vunpack.c.l.b16 %v1024
        %v1574 = vunpack.c.h.b16 %v1024
        %v1575 = vunpack.c.l.b16 %v1025
        %v1576 = vunpack.c.l.b16 %v1026
        %v1577 = vunpack.c.h.b16 %v1026
        %v1578 = vunpack.c.l.b16 %v1027
        %v1579 = vunpack.c.h.b16 %v1027
        %v1580 = vunpack.c.l.b16 %v1028
        %v1581 = vunpack.c.l.b16 %v1029
        %v1582 = vunpack.c.h.b16 %v1029
        %v1583 = vunpack.c.l.b16 %v1030
        %v1584 = vunpack.c.h.b16 %v1030
        %v1585 = vunpack.c.l.b16 %v1031
        %v1586 = vunpack.c.l.b16 %v1032
        %v1587 = vunpack.c.h.b16 %v1032
        %v1588 = vunpack.c.l.b16 %v1033
        %v1589 = vunpack.c.h.b16 %v1033
        %v1590 = vunpack.c.l.b16 %v1034
        %v1591 = vunpack.c.l.b16 %v1035
        %v1592 = vunpack.c.h.b16 %v1035
        %v1593 = vunpack.c.l.b16 %v1036
        %v1594 = vunpack.c.h.b16 %v1036
        %v1595 = vunpack.c.l.b16 %v1037
        %v1596 = vunpack.c.l.b16 %v1038
        %v1597 = vunpack.c.h.b16 %v1038
        %v1598 = vunpack.c.l.b16 %v1039
        %v1599 = vunpack.c.h.b16 %v1039
        %v1600 = vunpack.c.l.b16 %v1040
        %v1601 = vunpack.c.l.b16 %v1041
        %v1602 = vunpack.c.h.b16 %v1041
        %v1603 = vunpack.c.l.b16 %v1042
        %v1604 = vunpack.c.h.b16 %v1042
        %v1605 = vunpack.c.l.b16 %v1043
        %v1606 = vunpack.c.l.b16 %v1044
        %v1607 = vunpack.c.h.b16 %v1044
        %v1608 = vunpack.c.l.b16 %v1045
        %v1609 = vunpack.c.h.b16 %v1045
        %v1610 = vunpack.c.l.b16 %v1046
        %v1611 = vunpack.c.l.b16 %v1047
        %v1612 = vunpack.c.h.b16 %v1047
        %v1613 = vunpack.c.l.b16 %v1048
        %v1614 = vunpack.c.h.b16 %v1048
        %v1615 = vunpack.c.l.b16 %v1049
        %v1616 = vunpack.c.l.b16 %v1050
        %v1617 = vunpack.c.h.b16 %v1050
        %v1618 = vunpack.c.l.b16 %v1051
        %v1619 = vunpack.c.h.b16 %v1051
        %v1620 = vunpack.c.l.b16 %v1052
        %v1621 = vunpack.c.l.b16 %v1053
        %v1622 = vunpack.c.h.b16 %v1053
        %v1623 = vunpack.c.l.b16 %v1054
        %v1624 = vunpack.c.h.b16 %v1054
        %v1625 = vunpack.c.l.b16 %v1055
        %v1626 = vunpack.c.l.b16 %v1056
        %v1627 = vunpack.c.h.b16 %v1056
        %v1628 = vunpack.c.l.b16 %v1057
        %v1629 = vunpack.c.h.b16 %v1057
        %v1630 = vunpack.c.l.b16 %v1058
        %v1631 = vunpack.c.l.b16 %v1059
        %v1632 = vunpack.c.h.b16 %v1059
        %v1633 = vunpack.c.l.b16 %v1060
        %v1634 = vunpack.c.h.b16 %v1060
        %v1635 = vunpack.c.l.b16 %v1061
        %v1636 = vunpack.c.l.b16 %v1062
        %v1637 = vunpack.c.h.b16 %v1062
        %v1638 = vunpack.c.l.b16 %v1063
        %v1639 = vunpack.c.h.b16 %v1063
        %v1640 = vunpack.c.l.b16 %v1064
        %v1641 = vunpack.c.l.b16 %v1065
        %v1642 = vunpack.c.h.b16 %v1065
        %v1643 = vunpack.c.l.b16 %v1066
        %v1644 = vunpack.c.h.b16 %v1066
        %v1645 = vunpack.c.l.b16 %v1067
        %v1646 = vunpack.c.l.b16 %v1068
        %v1647 = vunpack.c.h.b16 %v1068
        %v1648 = vunpack.c.l.b16 %v1069
        %v1649 = vunpack.c.h.b16 %v1069
        %v1650 = vunpack.c.l.b16 %v1070
        %v1651 = vunpack.c.l.b16 %v1071
        %v1652 = vunpack.c.h.b16 %v1071
        %v1653 = vunpack.c.l.b16 %v1072
        %v1654 = vunpack.c.h.b16 %v1072
        %v1655 = vunpack.c.l.b16 %v1073
        %v1656 = vunpack.c.l.b16 %v1074
        %v1657 = vunpack.c.h.b16 %v1074
        %v1658 = vunpack.c.l.b16 %v1075
        %v1659 = vunpack.c.h.b16 %v1075
        %v1660 = vunpack.c.l.b16 %v1076
        %v1661 = vunpack.c.l.b16 %v1077
        %v1662 = vunpack.c.h.b16 %v1077
        %v1663 = vunpack.c.l.b16 %v1078
        %v1664 = vunpack.c.h.b16 %v1078
        %v1665 = vunpack.c.l.b16 %v1079
        %v1666 = vunpack.c.l.b16 %v1080
        %v1667 = vunpack.c.h.b16 %v1080
        %v1668 = vunpack.c.l.b16 %v1081
        %v1669 = vunpack.c.h.b16 %v1081
        %v1670 = vunpack.c.l.b16 %v1082
        %v1671 = vunpack.c.l.b16 %v1083
        %v1672 = vunpack.c.h.b16 %v1083
        %v1673 = vunpack.c.l.b16 %v1084
        %v1674 = vunpack.c.h.b16 %v1084
        %v1675 = vunpack.c.l.b16 %v1085
        %v1676 = vunpack.c.l.b16 %v1086
        %v1677 = vunpack.c.h.b16 %v1086
        %v1678 = vunpack.c.l.b16 %v1087
        %v1679 = vunpack.c.h.b16 %v1087
        %v1680 = vunpack.c.l.b16 %v1088
        %v1681 = vunpack.c.l.b16 %v1089
        %v1682 = vunpack.c.h.b16 %v1089
        %v1683 = vunpack.c.l.b16 %v1090
        %v1684 = vunpack.c.h.b16 %v1090
        %v1685 = vunpack.c.l.b16 %v1091
        %v1686 = vunpack.c.l.b16 %v1092
        %v1687 = vunpack.c.h.b16 %v1092
        %v1688 = vunpack.c.l.b16 %v1093
        %v1689 = vunpack.c.h.b16 %v1093
        %v1690 = vunpack.c.l.b16 %v1094
        %v1691 = vpack.c.b16 %v1536, %v1531
        %v1692 = vpack.c.b16 %v1537, %v1532
        %v1693 = vpack.c.b16 %v1538, %v1533
        %v1694 = vpack.c.b16 %v1539, %v1534
        %v1695 = vpack.c.b16 %v1540, %v1535
        %v1696 = vpack.c.b16 %v1546, %v1541
        %v1697 = vpack.c.b16 %v1547, %v1542
        %v1698 = vpack.c.b16 %v1548, %v1543
        %v1699 = vpack.c.b16 %v1549, %v1544
        %v1700 = vpack.c.b16 %v1550, %v1545
        %v1701 = vpack.c.b16 %v1556, %v1551
        %v1702 = vpack.c.b16 %v1557, %v1552
        %v1703 = vpack.c.b16 %v1558, %v1553
        %v1704 = vpack.c.b16 %v1559, %v1554
        %v1705 = vpack.c.b16 %v1560, %v1555
        %v1706 = vpack.c.b16 %v1566, %v1561
        %v1707 = vpack.c.b16 %v1567, %v1562
        %v1708 = vpack.c.b16 %v1568, %v1563
        %v1709 = vpack.c.b16 %v1569, %v1564
        %v1710 = vpack.c.b16 %v1570, %v1565
        %v1711 = vpack.c.b16 %v1576, %v1571
        %v1712 = vpack.c.b16 %v1577, %v1572
        %v1713 = vpack.c.b16 %v1578, %v1573
        %v1714 = vpack.c.b16 %v1579, %v1574
        %v1715 = vpack.c.b16 %v1580, %v1575
        %v1716 = vpack.c.b16 %v1586, %v1581
        %v1717 = vpack.c.b16 %v1587, %v1582
        %v1718 = vpack.c.b16 %v1588, %v1583
        %v1719 = vpack.c.b16 %v1589, %v1584
        %v1720 = vpack.c.b16 %v1590, %v1585
        %v1721 = vpack.c.b16 %v1596, %v1591
        %v1722 = vpack.c.b16 %v1597, %v1592
        %v1723 = vpack.c.b16 %v1598, %v1593
        %v1724 = vpack.c.b16 %v1599, %v1594
        %v1725 = vpack.c.b16 %v1600, %v1595
        %v1726 = vpack.c.b16 %v1606, %v1601
        %v1727 = vpack.c.b16 %v1607, %v1602
        %v1728 = vpack.c.b16 %v1608, %v1603
        %v1729 = vpack.c.b16 %v1609, %v1604
        %v1730 = vpack.c.b16 %v1610, %v1605
        %v1731 = vpack.c.b16 %v1616, %v1611
        %v1732 = vpack.c.b16 %v1617, %v1612
        %v1733 = vpack.c.b16 %v1618, %v1613
        %v1734 = vpack.c.b16 %v1619, %v1614
        %v1735 = vpack.c.b16 %v1620, %v1615
        %v1736 = vpack.c.b16 %v1626, %v1621
        %v1737 = vpack.c.b16 %v1627, %v1622
        %v1738 = vpack.c.b16 %v1628, %v1623
        %v1739 = vpack.c.b16 %v1629, %v1624
        %v1740 = vpack.c.b16 %v1630, %v1625
        %v1741 = vpack.c.b16 %v1636, %v1631
        %v1742 = vpack.c.b16 %v1637, %v1632
        %v1743 = vpack.c.b16 %v1638, %v1633
        %v1744 = vpack.c.b16 %v1639, %v1634
        %v1745 = vpack.c.b16 %v1640, %v1635
        %v1746 = vpack.c.b16 %v1646, %v1641
        %v1747 = vpack.c.b16 %v1647, %v1642
        %v1748 = vpack.c.b16 %v1648, %v1643
        %v1749 = vpack.c.b16 %v1649, %v1644
        %v1750 = vpack.c.b16 %v1650, %v1645
        %v1751 = vpack.c.b16 %v1656, %v1651
        %v1752 = vpack.c.b16 %v1657, %v1652
        %v1753 = vpack.c.b16 %v1658, %v1653
        %v1754 = vpack.c.b16 %v1659, %v1654
        %v1755 = vpack.c.b16 %v1660, %v1655
        %v1756 = vpack.c.b16 %v1666, %v1661
        %v1757 = vpack.c.b16 %v1667, %v1662
        %v1758 = vpack.c.b16 %v1668, %v1663
        %v1759 = vpack.c.b16 %v1669, %v1664
        %v1760 = vpack.c.b16 %v1670, %v1665
        %v1761 = vpack.c.b16 %v1676, %v1671
        %v1762 = vpack.c.b16 %v1677, %v1672
        %v1763 = vpack.c.b16 %v1678, %v1673
        %v1764 = vpack.c.b16 %v1679, %v1674
        %v1765 = vpack.c.b16 %v1680, %v1675
        %v1766 = vpack.c.b16 %v1686, %v1681
        %v1767 = vpack.c.b16 %v1687, %v1682
        %v1768 = vpack.c.b16 %v1688, %v1683
        %v1769 = vpack.c.b16 %v1689, %v1684
        %v1770 = vpack.c.b16 %v1690, %v1685
        %1851 = vmatprep.subr.bf16.mxu0 %v1727
        %1852 = vmatpush1.bf16.msra.mxu0 %v1726
        %1853 = vmatprep.subr.bf16.mxu0 %v1722
        %1854 = vmatpush1.bf16.msra.mxu0 %v1721
        %1855 = vmatprep.subr.bf16.mxu0 %v1717
        %1856 = vmatpush1.bf16.msra.mxu0 %v1716
        %1857 = vmatprep.subr.bf16.mxu0 %v1712
        %1858 = vmatpush1.bf16.msra.mxu0 %v1711
        %1859 = vmatprep.subr.bf16.mxu0 %v1707
        %1860 = vmatpush1.bf16.msra.mxu0 %v1706
        %1861 = vmatprep.subr.bf16.mxu0 %v1702
        %1862 = vmatpush1.bf16.msra.mxu0 %v1701
        %1863 = vmatprep.subr.bf16.mxu0 %v1697
        %1864 = vmatpush1.bf16.msra.mxu0 %v1696
        %1865 = vmatprep.subr.bf16.mxu0 %v1692
        %1866 = vmatpush1.bf16.msra.mxu0 %v1691
        %1867 = vmatprep.subr.bf16.mxu0 %v1767
        %1868 = vmatpush2.bf16.msra.mxu0 %v1766
        %1869 = vmatprep.subr.bf16.mxu0 %v1762
        %1870 = vmatpush2.bf16.msra.mxu0 %v1761
        %1871 = vmatprep.subr.bf16.mxu0 %v1757
        %1872 = vmatpush2.bf16.msra.mxu0 %v1756
        %1873 = vmatprep.subr.bf16.mxu0 %v1752
        %1874 = vmatpush2.bf16.msra.mxu0 %v1751
        %1875 = vmatprep.subr.bf16.mxu0 %v1747
        %1876 = vmatpush2.bf16.msra.mxu0 %v1746
        %1877 = vmatprep.subr.bf16.mxu0 %v1742
        %1878 = vmatpush2.bf16.msra.mxu0 %v1741
        %1879 = vmatprep.subr.bf16.mxu0 %v1737
        %1880 = vmatpush2.bf16.msra.mxu0 %v1736
        %1881 = vmatprep.subr.bf16.mxu0 %v1732
        %1882 = vmatpush2.bf16.msra.mxu0 %v1731
        %1883 = vmatprep.mubr.bf16.mxu0 %v1300
        %1884 = vmatmul.mubr.bf16.gmra.mxu0 %v1299
        %v1885 = vpop.f32.mrf.mxu0
        %v1886 = vadd.f32 0.0, %v1885
        %v1887 = vpop.f32.mrf.mxu0
        %v1888 = vadd.f32 0.0, %v1887
        %v1889 = vpop.f32.mrf.mxu0
        %v1890 = vadd.f32 0.0, %v1889
        %v1891 = vpop.f32.mrf.mxu0
        %v1892 = vadd.f32 0.0, %v1891
        %1893 = vmatprep.mubr.bf16.mxu0 %v1302
        %1894 = vmatmul.mubr.bf16.gmra.mxu0 %v1301
        %v1895 = vpop.f32.mrf.mxu0
        %v1896 = vadd.f32 0.0, %v1895
        %v1897 = vpop.f32.mrf.mxu0
        %v1898 = vadd.f32 0.0, %v1897
        %v1899 = vpop.f32.mrf.mxu0
        %v1900 = vadd.f32 0.0, %v1899
        %v1901 = vpop.f32.mrf.mxu0
        %v1902 = vadd.f32 0.0, %v1901
        %1903 = vmatprep.mubr.bf16.mxu0 %v1304
        %1904 = vmatmul.mubr.bf16.gmra.mxu0 %v1303
        %v1905 = vpop.f32.mrf.mxu0
        %v1906 = vadd.f32 0.0, %v1905
        %v1907 = vpop.f32.mrf.mxu0
        %v1908 = vadd.f32 0.0, %v1907
        %v1909 = vpop.f32.mrf.mxu0
        %v1910 = vadd.f32 0.0, %v1909
        %v1911 = vpop.f32.mrf.mxu0
        %v1912 = vadd.f32 0.0, %v1911
        %1913 = vmatprep.mubr.bf16.mxu0 %v1306
        %1914 = vmatmul.mubr.bf16.gmra.mxu0 %v1305
        %v1915 = vpop.f32.mrf.mxu0
        %v1916 = vadd.f32 0.0, %v1915
        %v1917 = vpop.f32.mrf.mxu0
        %v1918 = vadd.f32 0.0, %v1917
        %v1919 = vpop.f32.mrf.mxu0
        %v1920 = vadd.f32 0.0, %v1919
        %v1921 = vpop.f32.mrf.mxu0
        %v1922 = vadd.f32 0.0, %v1921
        %1923 = vmatprep.mubr.bf16.mxu0 %v1308
        %1924 = vmatmul.mubr.bf16.gmra.mxu0 %v1307
        %v1925 = vpop.f32.mrf.mxu0
        %v1926 = vadd.f32 0.0, %v1925
        %v1927 = vpop.f32.mrf.mxu0
        %v1928 = vadd.f32 0.0, %v1927
        %v1929 = vpop.f32.mrf.mxu0
        %v1930 = vadd.f32 0.0, %v1929
        %v1931 = vpop.f32.mrf.mxu0
        %v1932 = vadd.f32 0.0, %v1931
        %1933 = vmatprep.mubr.bf16.mxu0 %v1310
        %1934 = vmatmul.mubr.bf16.gmra.mxu0 %v1309
        %v1935 = vpop.f32.mrf.mxu0
        %v1936 = vadd.f32 0.0, %v1935
        %v1937 = vpop.f32.mrf.mxu0
        %v1938 = vadd.f32 0.0, %v1937
        %v1939 = vpop.f32.mrf.mxu0
        %v1940 = vadd.f32 0.0, %v1939
        %v1941 = vpop.f32.mrf.mxu0
        %v1942 = vadd.f32 0.0, %v1941
        %1943 = vmatprep.mubr.bf16.mxu0 %v1312
        %1944 = vmatmul.mubr.bf16.gmra.mxu0 %v1311
        %v1945 = vpop.f32.mrf.mxu0
        %v1946 = vadd.f32 0.0, %v1945
        %v1947 = vpop.f32.mrf.mxu0
        %v1948 = vadd.f32 0.0, %v1947
        %v1949 = vpop.f32.mrf.mxu0
        %v1950 = vadd.f32 0.0, %v1949
        %v1951 = vpop.f32.mrf.mxu0
        %v1952 = vadd.f32 0.0, %v1951
        %1953 = vmatprep.mubr.bf16.mxu0 %v1314
        %1954 = vmatmul.mubr.bf16.gmra.mxu0 %v1313
        %v1955 = vpop.f32.mrf.mxu0
        %v1956 = vadd.f32 0.0, %v1955
        %v1957 = vpop.f32.mrf.mxu0
        %v1958 = vadd.f32 0.0, %v1957
        %v1959 = vpop.f32.mrf.mxu0
        %v1960 = vadd.f32 0.0, %v1959
        %v1961 = vpop.f32.mrf.mxu0
        %v1962 = vadd.f32 0.0, %v1961
        %1963 = vmatprep.mubr.bf16.mxu0 %v1316
        %1964 = vmatmul.mubr.bf16.gmra.mxu0 %v1315
        %v1965 = vpop.f32.mrf.mxu0
        %v1966 = vadd.f32 0.0, %v1965
        %v1967 = vpop.f32.mrf.mxu0
        %v1968 = vadd.f32 0.0, %v1967
        %v1969 = vpop.f32.mrf.mxu0
        %v1970 = vadd.f32 0.0, %v1969
        %v1971 = vpop.f32.mrf.mxu0
        %v1972 = vadd.f32 0.0, %v1971
        %1973 = vmatprep.mubr.bf16.mxu0 %v1318
        %1974 = vmatmul.mubr.bf16.gmra.mxu0 %v1317
        %v1975 = vpop.f32.mrf.mxu0
        %v1976 = vadd.f32 0.0, %v1975
        %v1977 = vpop.f32.mrf.mxu0
        %v1978 = vadd.f32 0.0, %v1977
        %v1979 = vpop.f32.mrf.mxu0
        %v1980 = vadd.f32 0.0, %v1979
        %v1981 = vpop.f32.mrf.mxu0
        %v1982 = vadd.f32 0.0, %v1981
        %1983 = vmatprep.mubr.bf16.mxu0 %v1320
        %1984 = vmatmul.mubr.bf16.gmra.mxu0 %v1319
        %v1985 = vpop.f32.mrf.mxu0
        %v1986 = vadd.f32 0.0, %v1985
        %v1987 = vpop.f32.mrf.mxu0
        %v1988 = vadd.f32 0.0, %v1987
        %v1989 = vpop.f32.mrf.mxu0
        %v1990 = vadd.f32 0.0, %v1989
        %v1991 = vpop.f32.mrf.mxu0
        %v1992 = vadd.f32 0.0, %v1991
        %1993 = vmatprep.mubr.bf16.mxu0 %v1322
        %1994 = vmatmul.mubr.bf16.gmra.mxu0 %v1321
        %v1995 = vpop.f32.mrf.mxu0
        %v1996 = vadd.f32 0.0, %v1995
        %v1997 = vpop.f32.mrf.mxu0
        %v1998 = vadd.f32 0.0, %v1997
        %v1999 = vpop.f32.mrf.mxu0
        %v2000 = vadd.f32 0.0, %v1999
        %v2001 = vpop.f32.mrf.mxu0
        %v2002 = vadd.f32 0.0, %v2001
        %2003 = vmatprep.mubr.bf16.mxu0 %v1324
        %2004 = vmatmul.mubr.bf16.gmra.mxu0 %v1323
        %v2005 = vpop.f32.mrf.mxu0
        %v2006 = vadd.f32 0.0, %v2005
        %v2007 = vpop.f32.mrf.mxu0
        %v2008 = vadd.f32 0.0, %v2007
        %v2009 = vpop.f32.mrf.mxu0
        %v2010 = vadd.f32 0.0, %v2009
        %v2011 = vpop.f32.mrf.mxu0
        %v2012 = vadd.f32 0.0, %v2011
        %2013 = vmatprep.mubr.bf16.mxu0 %v1326
        %2014 = vmatmul.mubr.bf16.gmra.mxu0 %v1325
        %v2015 = vpop.f32.mrf.mxu0
        %v2016 = vadd.f32 0.0, %v2015
        %v2017 = vpop.f32.mrf.mxu0
        %v2018 = vadd.f32 0.0, %v2017
        %v2019 = vpop.f32.mrf.mxu0
        %v2020 = vadd.f32 0.0, %v2019
        %v2021 = vpop.f32.mrf.mxu0
        %v2022 = vadd.f32 0.0, %v2021
        %2023 = vmatprep.mubr.bf16.mxu0 %v1328
        %2024 = vmatmul.mubr.bf16.gmra.mxu0 %v1327
        %v2025 = vpop.f32.mrf.mxu0
        %v2026 = vadd.f32 0.0, %v2025
        %v2027 = vpop.f32.mrf.mxu0
        %v2028 = vadd.f32 0.0, %v2027
        %v2029 = vpop.f32.mrf.mxu0
        %v2030 = vadd.f32 0.0, %v2029
        %v2031 = vpop.f32.mrf.mxu0
        %v2032 = vadd.f32 0.0, %v2031
        %2033 = vmatprep.mubr.bf16.mxu0 %v1330
        %2034 = vmatmul.mubr.bf16.gmra.mxu0 %v1329
        %v2035 = vpop.f32.mrf.mxu0
        %v2036 = vadd.f32 0.0, %v2035
        %v2037 = vpop.f32.mrf.mxu0
        %v2038 = vadd.f32 0.0, %v2037
        %v2039 = vpop.f32.mrf.mxu0
        %v2040 = vadd.f32 0.0, %v2039
        %v2041 = vpop.f32.mrf.mxu0
        %v2042 = vadd.f32 0.0, %v2041
        %2043 = vmatprep.mubr.bf16.mxu0 %v1332
        %2044 = vmatmul.mubr.bf16.gmra.mxu0 %v1331
        %v2045 = vpop.f32.mrf.mxu0
        %v2046 = vadd.f32 0.0, %v2045
        %v2047 = vpop.f32.mrf.mxu0
        %v2048 = vadd.f32 0.0, %v2047
        %v2049 = vpop.f32.mrf.mxu0
        %v2050 = vadd.f32 0.0, %v2049
        %v2051 = vpop.f32.mrf.mxu0
        %v2052 = vadd.f32 0.0, %v2051
        %2053 = vmatprep.mubr.bf16.mxu0 %v1334
        %2054 = vmatmul.mubr.bf16.gmra.mxu0 %v1333
        %v2055 = vpop.f32.mrf.mxu0
        %v2056 = vadd.f32 0.0, %v2055
        %v2057 = vpop.f32.mrf.mxu0
        %v2058 = vadd.f32 0.0, %v2057
        %v2059 = vpop.f32.mrf.mxu0
        %v2060 = vadd.f32 0.0, %v2059
        %v2061 = vpop.f32.mrf.mxu0
        %v2062 = vadd.f32 0.0, %v2061
        %2063 = vmatprep.mubr.bf16.mxu0 %v1336
        %2064 = vmatmul.mubr.bf16.gmra.mxu0 %v1335
        %v2065 = vpop.f32.mrf.mxu0
        %v2066 = vadd.f32 0.0, %v2065
        %v2067 = vpop.f32.mrf.mxu0
        %v2068 = vadd.f32 0.0, %v2067
        %v2069 = vpop.f32.mrf.mxu0
        %v2070 = vadd.f32 0.0, %v2069
        %v2071 = vpop.f32.mrf.mxu0
        %v2072 = vadd.f32 0.0, %v2071
        %2073 = vmatprep.mubr.bf16.mxu0 %v1338
        %2074 = vmatmul.mubr.bf16.gmra.mxu0 %v1337
        %v2075 = vpop.f32.mrf.mxu0
        %v2076 = vadd.f32 0.0, %v2075
        %v2077 = vpop.f32.mrf.mxu0
        %v2078 = vadd.f32 0.0, %v2077
        %v2079 = vpop.f32.mrf.mxu0
        %v2080 = vadd.f32 0.0, %v2079
        %v2081 = vpop.f32.mrf.mxu0
        %v2082 = vadd.f32 0.0, %v2081
        %2083 = vmatprep.mubr.bf16.mxu0 %v1340
        %2084 = vmatmul.mubr.bf16.gmra.mxu0 %v1339
        %v2085 = vpop.f32.mrf.mxu0
        %v2086 = vadd.f32 0.0, %v2085
        %v2087 = vpop.f32.mrf.mxu0
        %v2088 = vadd.f32 0.0, %v2087
        %v2089 = vpop.f32.mrf.mxu0
        %v2090 = vadd.f32 0.0, %v2089
        %v2091 = vpop.f32.mrf.mxu0
        %v2092 = vadd.f32 0.0, %v2091
        %2093 = vmatprep.mubr.bf16.mxu0 %v1342
        %2094 = vmatmul.mubr.bf16.gmra.mxu0 %v1341
        %v2095 = vpop.f32.mrf.mxu0
        %v2096 = vadd.f32 0.0, %v2095
        %v2097 = vpop.f32.mrf.mxu0
        %v2098 = vadd.f32 0.0, %v2097
        %v2099 = vpop.f32.mrf.mxu0
        %v2100 = vadd.f32 0.0, %v2099
        %v2101 = vpop.f32.mrf.mxu0
        %v2102 = vadd.f32 0.0, %v2101
        %2103 = vmatprep.mubr.bf16.mxu0 %v1344
        %2104 = vmatmul.mubr.bf16.gmra.mxu0 %v1343
        %v2105 = vpop.f32.mrf.mxu0
        %v2106 = vadd.f32 0.0, %v2105
        %v2107 = vpop.f32.mrf.mxu0
        %v2108 = vadd.f32 0.0, %v2107
        %v2109 = vpop.f32.mrf.mxu0
        %v2110 = vadd.f32 0.0, %v2109
        %v2111 = vpop.f32.mrf.mxu0
        %v2112 = vadd.f32 0.0, %v2111
        %2113 = vmatprep.mubr.bf16.mxu0 %v1346
        %2114 = vmatmul.mubr.bf16.gmra.mxu0 %v1345
        %v2115 = vpop.f32.mrf.mxu0
        %v2116 = vadd.f32 0.0, %v2115
        %v2117 = vpop.f32.mrf.mxu0
        %v2118 = vadd.f32 0.0, %v2117
        %v2119 = vpop.f32.mrf.mxu0
        %v2120 = vadd.f32 0.0, %v2119
        %v2121 = vpop.f32.mrf.mxu0
        %v2122 = vadd.f32 0.0, %v2121
        %2123 = vmatprep.mubr.bf16.mxu0 %v1348
        %2124 = vmatmul.mubr.bf16.gmra.mxu0 %v1347
        %v2125 = vpop.f32.mrf.mxu0
        %v2126 = vadd.f32 0.0, %v2125
        %v2127 = vpop.f32.mrf.mxu0
        %v2128 = vadd.f32 0.0, %v2127
        %v2129 = vpop.f32.mrf.mxu0
        %v2130 = vadd.f32 0.0, %v2129
        %v2131 = vpop.f32.mrf.mxu0
        %v2132 = vadd.f32 0.0, %v2131
        %2133 = vmatprep.mubr.bf16.mxu0 %v1350
        %2134 = vmatmul.mubr.bf16.gmra.mxu0 %v1349
        %v2135 = vpop.f32.mrf.mxu0
        %v2136 = vadd.f32 0.0, %v2135
        %v2137 = vpop.f32.mrf.mxu0
        %v2138 = vadd.f32 0.0, %v2137
        %v2139 = vpop.f32.mrf.mxu0
        %v2140 = vadd.f32 0.0, %v2139
        %v2141 = vpop.f32.mrf.mxu0
        %v2142 = vadd.f32 0.0, %v2141
        %2143 = vmatprep.mubr.bf16.mxu0 %v1352
        %2144 = vmatmul.mubr.bf16.gmra.mxu0 %v1351
        %v2145 = vpop.f32.mrf.mxu0
        %v2146 = vadd.f32 0.0, %v2145
        %v2147 = vpop.f32.mrf.mxu0
        %v2148 = vadd.f32 0.0, %v2147
        %v2149 = vpop.f32.mrf.mxu0
        %v2150 = vadd.f32 0.0, %v2149
        %v2151 = vpop.f32.mrf.mxu0
        %v2152 = vadd.f32 0.0, %v2151
        %2153 = vmatprep.mubr.bf16.mxu0 %v1354
        %2154 = vmatmul.mubr.bf16.gmra.mxu0 %v1353
        %v2155 = vpop.f32.mrf.mxu0
        %v2156 = vadd.f32 0.0, %v2155
        %v2157 = vpop.f32.mrf.mxu0
        %v2158 = vadd.f32 0.0, %v2157
        %v2159 = vpop.f32.mrf.mxu0
        %v2160 = vadd.f32 0.0, %v2159
        %v2161 = vpop.f32.mrf.mxu0
        %v2162 = vadd.f32 0.0, %v2161
        %2163 = vmatprep.mubr.bf16.mxu0 %v1356
        %2164 = vmatmul.mubr.bf16.gmra.mxu0 %v1355
        %v2165 = vpop.f32.mrf.mxu0
        %v2166 = vadd.f32 0.0, %v2165
        %v2167 = vpop.f32.mrf.mxu0
        %v2168 = vadd.f32 0.0, %v2167
        %v2169 = vpop.f32.mrf.mxu0
        %v2170 = vadd.f32 0.0, %v2169
        %v2171 = vpop.f32.mrf.mxu0
        %v2172 = vadd.f32 0.0, %v2171
        %2173 = vmatprep.mubr.bf16.mxu0 %v1358
        %2174 = vmatmul.mubr.bf16.gmra.mxu0 %v1357
        %v2175 = vpop.f32.mrf.mxu0
        %v2176 = vadd.f32 0.0, %v2175
        %v2177 = vpop.f32.mrf.mxu0
        %v2178 = vadd.f32 0.0, %v2177
        %v2179 = vpop.f32.mrf.mxu0
        %v2180 = vadd.f32 0.0, %v2179
        %v2181 = vpop.f32.mrf.mxu0
        %v2182 = vadd.f32 0.0, %v2181
        %2183 = vmatprep.mubr.bf16.mxu0 %v1360
        %2184 = vmatmul.mubr.bf16.gmra.mxu0 %v1359
        %v2185 = vpop.f32.mrf.mxu0
        %v2186 = vadd.f32 0.0, %v2185
        %v2187 = vpop.f32.mrf.mxu0
        %v2188 = vadd.f32 0.0, %v2187
        %v2189 = vpop.f32.mrf.mxu0
        %v2190 = vadd.f32 0.0, %v2189
        %v2191 = vpop.f32.mrf.mxu0
        %v2192 = vadd.f32 0.0, %v2191
        %2193 = vmatprep.mubr.bf16.mxu0 %v1362
        %2194 = vmatmul.mubr.bf16.gmra.mxu0 %v1361
        %v2195 = vpop.f32.mrf.mxu0
        %v2196 = vadd.f32 0.0, %v2195
        %v2197 = vpop.f32.mrf.mxu0
        %v2198 = vadd.f32 0.0, %v2197
        %v2199 = vpop.f32.mrf.mxu0
        %v2200 = vadd.f32 0.0, %v2199
        %v2201 = vpop.f32.mrf.mxu0
        %v2202 = vadd.f32 0.0, %v2201
        %2203 = vmatprep.mubr.bf16.mxu0 %v1364
        %2204 = vmatmul.mubr.bf16.gmra.mxu0 %v1363
        %v2205 = vpop.f32.mrf.mxu0
        %v2206 = vadd.f32 0.0, %v2205
        %v2207 = vpop.f32.mrf.mxu0
        %v2208 = vadd.f32 0.0, %v2207
        %v2209 = vpop.f32.mrf.mxu0
        %v2210 = vadd.f32 0.0, %v2209
        %v2211 = vpop.f32.mrf.mxu0
        %v2212 = vadd.f32 0.0, %v2211
        %2213 = vmatprep.mubr.bf16.mxu0 %v1366
        %2214 = vmatmul.mubr.bf16.gmra.mxu0 %v1365
        %v2215 = vpop.f32.mrf.mxu0
        %v2216 = vadd.f32 0.0, %v2215
        %v2217 = vpop.f32.mrf.mxu0
        %v2218 = vadd.f32 0.0, %v2217
        %v2219 = vpop.f32.mrf.mxu0
        %v2220 = vadd.f32 0.0, %v2219
        %v2221 = vpop.f32.mrf.mxu0
        %v2222 = vadd.f32 0.0, %v2221
        %2223 = vdwg.mxu0
        %2224 = vmatprep.subr.bf16.mxu0 %v1729
        %2225 = vmatpush1.bf16.msra.mxu0 %v1728
        %2226 = vmatprep.subr.bf16.mxu0 %v1724
        %2227 = vmatpush1.bf16.msra.mxu0 %v1723
        %2228 = vmatprep.subr.bf16.mxu0 %v1719
        %2229 = vmatpush1.bf16.msra.mxu0 %v1718
        %2230 = vmatprep.subr.bf16.mxu0 %v1714
        %2231 = vmatpush1.bf16.msra.mxu0 %v1713
        %2232 = vmatprep.subr.bf16.mxu0 %v1709
        %2233 = vmatpush1.bf16.msra.mxu0 %v1708
        %2234 = vmatprep.subr.bf16.mxu0 %v1704
        %2235 = vmatpush1.bf16.msra.mxu0 %v1703
        %2236 = vmatprep.subr.bf16.mxu0 %v1699
        %2237 = vmatpush1.bf16.msra.mxu0 %v1698
        %2238 = vmatprep.subr.bf16.mxu0 %v1694
        %2239 = vmatpush1.bf16.msra.mxu0 %v1693
        %2240 = vmatprep.subr.bf16.mxu0 %v1769
        %2241 = vmatpush2.bf16.msra.mxu0 %v1768
        %2242 = vmatprep.subr.bf16.mxu0 %v1764
        %2243 = vmatpush2.bf16.msra.mxu0 %v1763
        %2244 = vmatprep.subr.bf16.mxu0 %v1759
        %2245 = vmatpush2.bf16.msra.mxu0 %v1758
        %2246 = vmatprep.subr.bf16.mxu0 %v1754
        %2247 = vmatpush2.bf16.msra.mxu0 %v1753
        %2248 = vmatprep.subr.bf16.mxu0 %v1749
        %2249 = vmatpush2.bf16.msra.mxu0 %v1748
        %2250 = vmatprep.subr.bf16.mxu0 %v1744
        %2251 = vmatpush2.bf16.msra.mxu0 %v1743
        %2252 = vmatprep.subr.bf16.mxu0 %v1739
        %2253 = vmatpush2.bf16.msra.mxu0 %v1738
        %2254 = vmatprep.subr.bf16.mxu0 %v1734
        %2255 = vmatpush2.bf16.msra.mxu0 %v1733
        %2256 = vmatprep.mubr.bf16.mxu0 %v1300
        %2257 = vmatmul.mubr.bf16.gmra.mxu0 %v1299
        %v2258 = vpop.f32.mrf.mxu0
        %v2259 = vadd.f32 0.0, %v2258
        %v2260 = vpop.f32.mrf.mxu0
        %v2261 = vadd.f32 0.0, %v2260
        %v2262 = vpop.f32.mrf.mxu0
        %v2263 = vadd.f32 0.0, %v2262
        %v2264 = vpop.f32.mrf.mxu0
        %v2265 = vadd.f32 0.0, %v2264
        %2266 = vmatprep.mubr.bf16.mxu0 %v1302
        %2267 = vmatmul.mubr.bf16.gmra.mxu0 %v1301
        %v2268 = vpop.f32.mrf.mxu0
        %v2269 = vadd.f32 0.0, %v2268
        %v2270 = vpop.f32.mrf.mxu0
        %v2271 = vadd.f32 0.0, %v2270
        %v2272 = vpop.f32.mrf.mxu0
        %v2273 = vadd.f32 0.0, %v2272
        %v2274 = vpop.f32.mrf.mxu0
        %v2275 = vadd.f32 0.0, %v2274
        %2276 = vmatprep.mubr.bf16.mxu0 %v1304
        %2277 = vmatmul.mubr.bf16.gmra.mxu0 %v1303
        %v2278 = vpop.f32.mrf.mxu0
        %v2279 = vadd.f32 0.0, %v2278
        %v2280 = vpop.f32.mrf.mxu0
        %v2281 = vadd.f32 0.0, %v2280
        %v2282 = vpop.f32.mrf.mxu0
        %v2283 = vadd.f32 0.0, %v2282
        %v2284 = vpop.f32.mrf.mxu0
        %v2285 = vadd.f32 0.0, %v2284
        %2286 = vmatprep.mubr.bf16.mxu0 %v1306
        %2287 = vmatmul.mubr.bf16.gmra.mxu0 %v1305
        %v2288 = vpop.f32.mrf.mxu0
        %v2289 = vadd.f32 0.0, %v2288
        %v2290 = vpop.f32.mrf.mxu0
        %v2291 = vadd.f32 0.0, %v2290
        %v2292 = vpop.f32.mrf.mxu0
        %v2293 = vadd.f32 0.0, %v2292
        %v2294 = vpop.f32.mrf.mxu0
        %v2295 = vadd.f32 0.0, %v2294
        %2296 = vmatprep.mubr.bf16.mxu0 %v1308
        %2297 = vmatmul.mubr.bf16.gmra.mxu0 %v1307
        %v2298 = vpop.f32.mrf.mxu0
        %v2299 = vadd.f32 0.0, %v2298
        %v2300 = vpop.f32.mrf.mxu0
        %v2301 = vadd.f32 0.0, %v2300
        %v2302 = vpop.f32.mrf.mxu0
        %v2303 = vadd.f32 0.0, %v2302
        %v2304 = vpop.f32.mrf.mxu0
        %v2305 = vadd.f32 0.0, %v2304
        %2306 = vmatprep.mubr.bf16.mxu0 %v1310
        %2307 = vmatmul.mubr.bf16.gmra.mxu0 %v1309
        %v2308 = vpop.f32.mrf.mxu0
        %v2309 = vadd.f32 0.0, %v2308
        %v2310 = vpop.f32.mrf.mxu0
        %v2311 = vadd.f32 0.0, %v2310
        %v2312 = vpop.f32.mrf.mxu0
        %v2313 = vadd.f32 0.0, %v2312
        %v2314 = vpop.f32.mrf.mxu0
        %v2315 = vadd.f32 0.0, %v2314
        %2316 = vmatprep.mubr.bf16.mxu0 %v1312
        %2317 = vmatmul.mubr.bf16.gmra.mxu0 %v1311
        %v2318 = vpop.f32.mrf.mxu0
        %v2319 = vadd.f32 0.0, %v2318
        %v2320 = vpop.f32.mrf.mxu0
        %v2321 = vadd.f32 0.0, %v2320
        %v2322 = vpop.f32.mrf.mxu0
        %v2323 = vadd.f32 0.0, %v2322
        %v2324 = vpop.f32.mrf.mxu0
        %v2325 = vadd.f32 0.0, %v2324
        %2326 = vmatprep.mubr.bf16.mxu0 %v1314
        %2327 = vmatmul.mubr.bf16.gmra.mxu0 %v1313
        %v2328 = vpop.f32.mrf.mxu0
        %v2329 = vadd.f32 0.0, %v2328
        %v2330 = vpop.f32.mrf.mxu0
        %v2331 = vadd.f32 0.0, %v2330
        %v2332 = vpop.f32.mrf.mxu0
        %v2333 = vadd.f32 0.0, %v2332
        %v2334 = vpop.f32.mrf.mxu0
        %v2335 = vadd.f32 0.0, %v2334
        %2336 = vmatprep.mubr.bf16.mxu0 %v1316
        %2337 = vmatmul.mubr.bf16.gmra.mxu0 %v1315
        %v2338 = vpop.f32.mrf.mxu0
        %v2339 = vadd.f32 0.0, %v2338
        %v2340 = vpop.f32.mrf.mxu0
        %v2341 = vadd.f32 0.0, %v2340
        %v2342 = vpop.f32.mrf.mxu0
        %v2343 = vadd.f32 0.0, %v2342
        %v2344 = vpop.f32.mrf.mxu0
        %v2345 = vadd.f32 0.0, %v2344
        %2346 = vmatprep.mubr.bf16.mxu0 %v1318
        %2347 = vmatmul.mubr.bf16.gmra.mxu0 %v1317
        %v2348 = vpop.f32.mrf.mxu0
        %v2349 = vadd.f32 0.0, %v2348
        %v2350 = vpop.f32.mrf.mxu0
        %v2351 = vadd.f32 0.0, %v2350
        %v2352 = vpop.f32.mrf.mxu0
        %v2353 = vadd.f32 0.0, %v2352
        %v2354 = vpop.f32.mrf.mxu0
        %v2355 = vadd.f32 0.0, %v2354
        %2356 = vmatprep.mubr.bf16.mxu0 %v1320
        %2357 = vmatmul.mubr.bf16.gmra.mxu0 %v1319
        %v2358 = vpop.f32.mrf.mxu0
        %v2359 = vadd.f32 0.0, %v2358
        %v2360 = vpop.f32.mrf.mxu0
        %v2361 = vadd.f32 0.0, %v2360
        %v2362 = vpop.f32.mrf.mxu0
        %v2363 = vadd.f32 0.0, %v2362
        %v2364 = vpop.f32.mrf.mxu0
        %v2365 = vadd.f32 0.0, %v2364
        %2366 = vmatprep.mubr.bf16.mxu0 %v1322
        %2367 = vmatmul.mubr.bf16.gmra.mxu0 %v1321
        %v2368 = vpop.f32.mrf.mxu0
        %v2369 = vadd.f32 0.0, %v2368
        %v2370 = vpop.f32.mrf.mxu0
        %v2371 = vadd.f32 0.0, %v2370
        %v2372 = vpop.f32.mrf.mxu0
        %v2373 = vadd.f32 0.0, %v2372
        %v2374 = vpop.f32.mrf.mxu0
        %v2375 = vadd.f32 0.0, %v2374
        %2376 = vmatprep.mubr.bf16.mxu0 %v1324
        %2377 = vmatmul.mubr.bf16.gmra.mxu0 %v1323
        %v2378 = vpop.f32.mrf.mxu0
        %v2379 = vadd.f32 0.0, %v2378
        %v2380 = vpop.f32.mrf.mxu0
        %v2381 = vadd.f32 0.0, %v2380
        %v2382 = vpop.f32.mrf.mxu0
        %v2383 = vadd.f32 0.0, %v2382
        %v2384 = vpop.f32.mrf.mxu0
        %v2385 = vadd.f32 0.0, %v2384
        %2386 = vmatprep.mubr.bf16.mxu0 %v1326
        %2387 = vmatmul.mubr.bf16.gmra.mxu0 %v1325
        %v2388 = vpop.f32.mrf.mxu0
        %v2389 = vadd.f32 0.0, %v2388
        %v2390 = vpop.f32.mrf.mxu0
        %v2391 = vadd.f32 0.0, %v2390
        %v2392 = vpop.f32.mrf.mxu0
        %v2393 = vadd.f32 0.0, %v2392
        %v2394 = vpop.f32.mrf.mxu0
        %v2395 = vadd.f32 0.0, %v2394
        %2396 = vmatprep.mubr.bf16.mxu0 %v1328
        %2397 = vmatmul.mubr.bf16.gmra.mxu0 %v1327
        %v2398 = vpop.f32.mrf.mxu0
        %v2399 = vadd.f32 0.0, %v2398
        %v2400 = vpop.f32.mrf.mxu0
        %v2401 = vadd.f32 0.0, %v2400
        %v2402 = vpop.f32.mrf.mxu0
        %v2403 = vadd.f32 0.0, %v2402
        %v2404 = vpop.f32.mrf.mxu0
        %v2405 = vadd.f32 0.0, %v2404
        %2406 = vmatprep.mubr.bf16.mxu0 %v1330
        %2407 = vmatmul.mubr.bf16.gmra.mxu0 %v1329
        %v2408 = vpop.f32.mrf.mxu0
        %v2409 = vadd.f32 0.0, %v2408
        %v2410 = vpop.f32.mrf.mxu0
        %v2411 = vadd.f32 0.0, %v2410
        %v2412 = vpop.f32.mrf.mxu0
        %v2413 = vadd.f32 0.0, %v2412
        %v2414 = vpop.f32.mrf.mxu0
        %v2415 = vadd.f32 0.0, %v2414
        %2416 = vmatprep.mubr.bf16.mxu0 %v1332
        %2417 = vmatmul.mubr.bf16.gmra.mxu0 %v1331
        %v2418 = vpop.f32.mrf.mxu0
        %v2419 = vadd.f32 0.0, %v2418
        %v2420 = vpop.f32.mrf.mxu0
        %v2421 = vadd.f32 0.0, %v2420
        %v2422 = vpop.f32.mrf.mxu0
        %v2423 = vadd.f32 0.0, %v2422
        %v2424 = vpop.f32.mrf.mxu0
        %v2425 = vadd.f32 0.0, %v2424
        %2426 = vmatprep.mubr.bf16.mxu0 %v1334
        %2427 = vmatmul.mubr.bf16.gmra.mxu0 %v1333
        %v2428 = vpop.f32.mrf.mxu0
        %v2429 = vadd.f32 0.0, %v2428
        %v2430 = vpop.f32.mrf.mxu0
        %v2431 = vadd.f32 0.0, %v2430
        %v2432 = vpop.f32.mrf.mxu0
        %v2433 = vadd.f32 0.0, %v2432
        %v2434 = vpop.f32.mrf.mxu0
        %v2435 = vadd.f32 0.0, %v2434
        %2436 = vmatprep.mubr.bf16.mxu0 %v1336
        %2437 = vmatmul.mubr.bf16.gmra.mxu0 %v1335
        %v2438 = vpop.f32.mrf.mxu0
        %v2439 = vadd.f32 0.0, %v2438
        %v2440 = vpop.f32.mrf.mxu0
        %v2441 = vadd.f32 0.0, %v2440
        %v2442 = vpop.f32.mrf.mxu0
        %v2443 = vadd.f32 0.0, %v2442
        %v2444 = vpop.f32.mrf.mxu0
        %v2445 = vadd.f32 0.0, %v2444
        %2446 = vmatprep.mubr.bf16.mxu0 %v1338
        %2447 = vmatmul.mubr.bf16.gmra.mxu0 %v1337
        %v2448 = vpop.f32.mrf.mxu0
        %v2449 = vadd.f32 0.0, %v2448
        %v2450 = vpop.f32.mrf.mxu0
        %v2451 = vadd.f32 0.0, %v2450
        %v2452 = vpop.f32.mrf.mxu0
        %v2453 = vadd.f32 0.0, %v2452
        %v2454 = vpop.f32.mrf.mxu0
        %v2455 = vadd.f32 0.0, %v2454
        %2456 = vmatprep.mubr.bf16.mxu0 %v1340
        %2457 = vmatmul.mubr.bf16.gmra.mxu0 %v1339
        %v2458 = vpop.f32.mrf.mxu0
        %v2459 = vadd.f32 0.0, %v2458
        %v2460 = vpop.f32.mrf.mxu0
        %v2461 = vadd.f32 0.0, %v2460
        %v2462 = vpop.f32.mrf.mxu0
        %v2463 = vadd.f32 0.0, %v2462
        %v2464 = vpop.f32.mrf.mxu0
        %v2465 = vadd.f32 0.0, %v2464
        %2466 = vmatprep.mubr.bf16.mxu0 %v1342
        %2467 = vmatmul.mubr.bf16.gmra.mxu0 %v1341
        %v2468 = vpop.f32.mrf.mxu0
        %v2469 = vadd.f32 0.0, %v2468
        %v2470 = vpop.f32.mrf.mxu0
        %v2471 = vadd.f32 0.0, %v2470
        %v2472 = vpop.f32.mrf.mxu0
        %v2473 = vadd.f32 0.0, %v2472
        %v2474 = vpop.f32.mrf.mxu0
        %v2475 = vadd.f32 0.0, %v2474
        %2476 = vmatprep.mubr.bf16.mxu0 %v1344
        %2477 = vmatmul.mubr.bf16.gmra.mxu0 %v1343
        %v2478 = vpop.f32.mrf.mxu0
        %v2479 = vadd.f32 0.0, %v2478
        %v2480 = vpop.f32.mrf.mxu0
        %v2481 = vadd.f32 0.0, %v2480
        %v2482 = vpop.f32.mrf.mxu0
        %v2483 = vadd.f32 0.0, %v2482
        %v2484 = vpop.f32.mrf.mxu0
        %v2485 = vadd.f32 0.0, %v2484
        %2486 = vmatprep.mubr.bf16.mxu0 %v1346
        %2487 = vmatmul.mubr.bf16.gmra.mxu0 %v1345
        %v2488 = vpop.f32.mrf.mxu0
        %v2489 = vadd.f32 0.0, %v2488
        %v2490 = vpop.f32.mrf.mxu0
        %v2491 = vadd.f32 0.0, %v2490
        %v2492 = vpop.f32.mrf.mxu0
        %v2493 = vadd.f32 0.0, %v2492
        %v2494 = vpop.f32.mrf.mxu0
        %v2495 = vadd.f32 0.0, %v2494
        %2496 = vmatprep.mubr.bf16.mxu0 %v1348
        %2497 = vmatmul.mubr.bf16.gmra.mxu0 %v1347
        %v2498 = vpop.f32.mrf.mxu0
        %v2499 = vadd.f32 0.0, %v2498
        %v2500 = vpop.f32.mrf.mxu0
        %v2501 = vadd.f32 0.0, %v2500
        %v2502 = vpop.f32.mrf.mxu0
        %v2503 = vadd.f32 0.0, %v2502
        %v2504 = vpop.f32.mrf.mxu0
        %v2505 = vadd.f32 0.0, %v2504
        %2506 = vmatprep.mubr.bf16.mxu0 %v1350
        %2507 = vmatmul.mubr.bf16.gmra.mxu0 %v1349
        %v2508 = vpop.f32.mrf.mxu0
        %v2509 = vadd.f32 0.0, %v2508
        %v2510 = vpop.f32.mrf.mxu0
        %v2511 = vadd.f32 0.0, %v2510
        %v2512 = vpop.f32.mrf.mxu0
        %v2513 = vadd.f32 0.0, %v2512
        %v2514 = vpop.f32.mrf.mxu0
        %v2515 = vadd.f32 0.0, %v2514
        %2516 = vmatprep.mubr.bf16.mxu0 %v1352
        %2517 = vmatmul.mubr.bf16.gmra.mxu0 %v1351
        %v2518 = vpop.f32.mrf.mxu0
        %v2519 = vadd.f32 0.0, %v2518
        %v2520 = vpop.f32.mrf.mxu0
        %v2521 = vadd.f32 0.0, %v2520
        %v2522 = vpop.f32.mrf.mxu0
        %v2523 = vadd.f32 0.0, %v2522
        %v2524 = vpop.f32.mrf.mxu0
        %v2525 = vadd.f32 0.0, %v2524
        %2526 = vmatprep.mubr.bf16.mxu0 %v1354
        %2527 = vmatmul.mubr.bf16.gmra.mxu0 %v1353
        %v2528 = vpop.f32.mrf.mxu0
        %v2529 = vadd.f32 0.0, %v2528
        %v2530 = vpop.f32.mrf.mxu0
        %v2531 = vadd.f32 0.0, %v2530
        %v2532 = vpop.f32.mrf.mxu0
        %v2533 = vadd.f32 0.0, %v2532
        %v2534 = vpop.f32.mrf.mxu0
        %v2535 = vadd.f32 0.0, %v2534
        %2536 = vmatprep.mubr.bf16.mxu0 %v1356
        %2537 = vmatmul.mubr.bf16.gmra.mxu0 %v1355
        %v2538 = vpop.f32.mrf.mxu0
        %v2539 = vadd.f32 0.0, %v2538
        %v2540 = vpop.f32.mrf.mxu0
        %v2541 = vadd.f32 0.0, %v2540
        %v2542 = vpop.f32.mrf.mxu0
        %v2543 = vadd.f32 0.0, %v2542
        %v2544 = vpop.f32.mrf.mxu0
        %v2545 = vadd.f32 0.0, %v2544
        %2546 = vmatprep.mubr.bf16.mxu0 %v1358
        %2547 = vmatmul.mubr.bf16.gmra.mxu0 %v1357
        %v2548 = vpop.f32.mrf.mxu0
        %v2549 = vadd.f32 0.0, %v2548
        %v2550 = vpop.f32.mrf.mxu0
        %v2551 = vadd.f32 0.0, %v2550
        %v2552 = vpop.f32.mrf.mxu0
        %v2553 = vadd.f32 0.0, %v2552
        %v2554 = vpop.f32.mrf.mxu0
        %v2555 = vadd.f32 0.0, %v2554
        %2556 = vmatprep.mubr.bf16.mxu0 %v1360
        %2557 = vmatmul.mubr.bf16.gmra.mxu0 %v1359
        %v2558 = vpop.f32.mrf.mxu0
        %v2559 = vadd.f32 0.0, %v2558
        %v2560 = vpop.f32.mrf.mxu0
        %v2561 = vadd.f32 0.0, %v2560
        %v2562 = vpop.f32.mrf.mxu0
        %v2563 = vadd.f32 0.0, %v2562
        %v2564 = vpop.f32.mrf.mxu0
        %v2565 = vadd.f32 0.0, %v2564
        %2566 = vmatprep.mubr.bf16.mxu0 %v1362
        %2567 = vmatmul.mubr.bf16.gmra.mxu0 %v1361
        %v2568 = vpop.f32.mrf.mxu0
        %v2569 = vadd.f32 0.0, %v2568
        %v2570 = vpop.f32.mrf.mxu0
        %v2571 = vadd.f32 0.0, %v2570
        %v2572 = vpop.f32.mrf.mxu0
        %v2573 = vadd.f32 0.0, %v2572
        %v2574 = vpop.f32.mrf.mxu0
        %v2575 = vadd.f32 0.0, %v2574
        %2576 = vmatprep.mubr.bf16.mxu0 %v1364
        %2577 = vmatmul.mubr.bf16.gmra.mxu0 %v1363
        %v2578 = vpop.f32.mrf.mxu0
        %v2579 = vadd.f32 0.0, %v2578
        %v2580 = vpop.f32.mrf.mxu0
        %v2581 = vadd.f32 0.0, %v2580
        %v2582 = vpop.f32.mrf.mxu0
        %v2583 = vadd.f32 0.0, %v2582
        %v2584 = vpop.f32.mrf.mxu0
        %v2585 = vadd.f32 0.0, %v2584
        %2586 = vmatprep.mubr.bf16.mxu0 %v1366
        %2587 = vmatmul.mubr.bf16.gmra.mxu0 %v1365
        %v2588 = vpop.f32.mrf.mxu0
        %v2589 = vadd.f32 0.0, %v2588
        %v2590 = vpop.f32.mrf.mxu0
        %v2591 = vadd.f32 0.0, %v2590
        %v2592 = vpop.f32.mrf.mxu0
        %v2593 = vadd.f32 0.0, %v2592
        %v2594 = vpop.f32.mrf.mxu0
        %v2595 = vadd.f32 0.0, %v2594
        %2596 = vdwg.mxu0
        %2597 = vmatprep.subr.bf16.mxu0 0
        %2598 = vmatpush1.bf16.msra.mxu0 %v1730
        %2599 = vmatprep.subr.bf16.mxu0 0
        %2600 = vmatpush1.bf16.msra.mxu0 %v1725
        %2601 = vmatprep.subr.bf16.mxu0 0
        %2602 = vmatpush1.bf16.msra.mxu0 %v1720
        %2603 = vmatprep.subr.bf16.mxu0 0
        %2604 = vmatpush1.bf16.msra.mxu0 %v1715
        %2605 = vmatprep.subr.bf16.mxu0 0
        %2606 = vmatpush1.bf16.msra.mxu0 %v1710
        %2607 = vmatprep.subr.bf16.mxu0 0
        %2608 = vmatpush1.bf16.msra.mxu0 %v1705
        %2609 = vmatprep.subr.bf16.mxu0 0
        %2610 = vmatpush1.bf16.msra.mxu0 %v1700
        %2611 = vmatprep.subr.bf16.mxu0 0
        %2612 = vmatpush1.bf16.msra.mxu0 %v1695
        %2613 = vmatprep.subr.bf16.mxu0 0
        %2614 = vmatpush2.bf16.msra.mxu0 %v1770
        %2615 = vmatprep.subr.bf16.mxu0 0
        %2616 = vmatpush2.bf16.msra.mxu0 %v1765
        %2617 = vmatprep.subr.bf16.mxu0 0
        %2618 = vmatpush2.bf16.msra.mxu0 %v1760
        %2619 = vmatprep.subr.bf16.mxu0 0
        %2620 = vmatpush2.bf16.msra.mxu0 %v1755
        %2621 = vmatprep.subr.bf16.mxu0 0
        %2622 = vmatpush2.bf16.msra.mxu0 %v1750
        %2623 = vmatprep.subr.bf16.mxu0 0
        %2624 = vmatpush2.bf16.msra.mxu0 %v1745
        %2625 = vmatprep.subr.bf16.mxu0 0
        %2626 = vmatpush2.bf16.msra.mxu0 %v1740
        %2627 = vmatprep.subr.bf16.mxu0 0
        %2628 = vmatpush2.bf16.msra.mxu0 %v1735
        %2629 = vmatprep.mubr.bf16.mxu0 %v1300
        %2630 = vmatmul.mubr.bf16.gmra.mxu0 %v1299
        %v2631 = vpop.f32.mrf.mxu0
        %v2632 = vadd.f32 0.0, %v2631
        %v2633 = vpop.f32.mrf.mxu0
        %v2634 = vpop.f32.mrf.mxu0
        %v2635 = vadd.f32 0.0, %v2634
        %v2636 = vpop.f32.mrf.mxu0
        %2637 = vmatprep.mubr.bf16.mxu0 %v1302
        %2638 = vmatmul.mubr.bf16.gmra.mxu0 %v1301
        %v2639 = vpop.f32.mrf.mxu0
        %v2640 = vadd.f32 0.0, %v2639
        %v2641 = vpop.f32.mrf.mxu0
        %v2642 = vpop.f32.mrf.mxu0
        %v2643 = vadd.f32 0.0, %v2642
        %v2644 = vpop.f32.mrf.mxu0
        %2645 = vmatprep.mubr.bf16.mxu0 %v1304
        %2646 = vmatmul.mubr.bf16.gmra.mxu0 %v1303
        %v2647 = vpop.f32.mrf.mxu0
        %v2648 = vadd.f32 0.0, %v2647
        %v2649 = vpop.f32.mrf.mxu0
        %v2650 = vpop.f32.mrf.mxu0
        %v2651 = vadd.f32 0.0, %v2650
        %v2652 = vpop.f32.mrf.mxu0
        %2653 = vmatprep.mubr.bf16.mxu0 %v1306
        %2654 = vmatmul.mubr.bf16.gmra.mxu0 %v1305
        %v2655 = vpop.f32.mrf.mxu0
        %v2656 = vadd.f32 0.0, %v2655
        %v2657 = vpop.f32.mrf.mxu0
        %v2658 = vpop.f32.mrf.mxu0
        %v2659 = vadd.f32 0.0, %v2658
        %v2660 = vpop.f32.mrf.mxu0
        %2661 = vmatprep.mubr.bf16.mxu0 %v1308
        %2662 = vmatmul.mubr.bf16.gmra.mxu0 %v1307
        %v2663 = vpop.f32.mrf.mxu0
        %v2664 = vadd.f32 0.0, %v2663
        %v2665 = vpop.f32.mrf.mxu0
        %v2666 = vpop.f32.mrf.mxu0
        %v2667 = vadd.f32 0.0, %v2666
        %v2668 = vpop.f32.mrf.mxu0
        %2669 = vmatprep.mubr.bf16.mxu0 %v1310
        %2670 = vmatmul.mubr.bf16.gmra.mxu0 %v1309
        %v2671 = vpop.f32.mrf.mxu0
        %v2672 = vadd.f32 0.0, %v2671
        %v2673 = vpop.f32.mrf.mxu0
        %v2674 = vpop.f32.mrf.mxu0
        %v2675 = vadd.f32 0.0, %v2674
        %v2676 = vpop.f32.mrf.mxu0
        %2677 = vmatprep.mubr.bf16.mxu0 %v1312
        %2678 = vmatmul.mubr.bf16.gmra.mxu0 %v1311
        %v2679 = vpop.f32.mrf.mxu0
        %v2680 = vadd.f32 0.0, %v2679
        %v2681 = vpop.f32.mrf.mxu0
        %v2682 = vpop.f32.mrf.mxu0
        %v2683 = vadd.f32 0.0, %v2682
        %v2684 = vpop.f32.mrf.mxu0
        %2685 = vmatprep.mubr.bf16.mxu0 %v1314
        %2686 = vmatmul.mubr.bf16.gmra.mxu0 %v1313
        %v2687 = vpop.f32.mrf.mxu0
        %v2688 = vadd.f32 0.0, %v2687
        %v2689 = vpop.f32.mrf.mxu0
        %v2690 = vpop.f32.mrf.mxu0
        %v2691 = vadd.f32 0.0, %v2690
        %v2692 = vpop.f32.mrf.mxu0
        %2693 = vmatprep.mubr.bf16.mxu0 %v1316
        %2694 = vmatmul.mubr.bf16.gmra.mxu0 %v1315
        %v2695 = vpop.f32.mrf.mxu0
        %v2696 = vadd.f32 0.0, %v2695
        %v2697 = vpop.f32.mrf.mxu0
        %v2698 = vpop.f32.mrf.mxu0
        %v2699 = vadd.f32 0.0, %v2698
        %v2700 = vpop.f32.mrf.mxu0
        %2701 = vmatprep.mubr.bf16.mxu0 %v1318
        %2702 = vmatmul.mubr.bf16.gmra.mxu0 %v1317
        %v2703 = vpop.f32.mrf.mxu0
        %v2704 = vadd.f32 0.0, %v2703
        %v2705 = vpop.f32.mrf.mxu0
        %v2706 = vpop.f32.mrf.mxu0
        %v2707 = vadd.f32 0.0, %v2706
        %v2708 = vpop.f32.mrf.mxu0
        %2709 = vmatprep.mubr.bf16.mxu0 %v1320
        %2710 = vmatmul.mubr.bf16.gmra.mxu0 %v1319
        %v2711 = vpop.f32.mrf.mxu0
        %v2712 = vadd.f32 0.0, %v2711
        %v2713 = vpop.f32.mrf.mxu0
        %v2714 = vpop.f32.mrf.mxu0
        %v2715 = vadd.f32 0.0, %v2714
        %v2716 = vpop.f32.mrf.mxu0
        %2717 = vmatprep.mubr.bf16.mxu0 %v1322
        %2718 = vmatmul.mubr.bf16.gmra.mxu0 %v1321
        %v2719 = vpop.f32.mrf.mxu0
        %v2720 = vadd.f32 0.0, %v2719
        %v2721 = vpop.f32.mrf.mxu0
        %v2722 = vpop.f32.mrf.mxu0
        %v2723 = vadd.f32 0.0, %v2722
        %v2724 = vpop.f32.mrf.mxu0
        %2725 = vmatprep.mubr.bf16.mxu0 %v1324
        %2726 = vmatmul.mubr.bf16.gmra.mxu0 %v1323
        %v2727 = vpop.f32.mrf.mxu0
        %v2728 = vadd.f32 0.0, %v2727
        %v2729 = vpop.f32.mrf.mxu0
        %v2730 = vpop.f32.mrf.mxu0
        %v2731 = vadd.f32 0.0, %v2730
        %v2732 = vpop.f32.mrf.mxu0
        %2733 = vmatprep.mubr.bf16.mxu0 %v1326
        %2734 = vmatmul.mubr.bf16.gmra.mxu0 %v1325
        %v2735 = vpop.f32.mrf.mxu0
        %v2736 = vadd.f32 0.0, %v2735
        %v2737 = vpop.f32.mrf.mxu0
        %v2738 = vpop.f32.mrf.mxu0
        %v2739 = vadd.f32 0.0, %v2738
        %v2740 = vpop.f32.mrf.mxu0
        %2741 = vmatprep.mubr.bf16.mxu0 %v1328
        %2742 = vmatmul.mubr.bf16.gmra.mxu0 %v1327
        %v2743 = vpop.f32.mrf.mxu0
        %v2744 = vadd.f32 0.0, %v2743
        %v2745 = vpop.f32.mrf.mxu0
        %v2746 = vpop.f32.mrf.mxu0
        %v2747 = vadd.f32 0.0, %v2746
        %v2748 = vpop.f32.mrf.mxu0
        %2749 = vmatprep.mubr.bf16.mxu0 %v1330
        %2750 = vmatmul.mubr.bf16.gmra.mxu0 %v1329
        %v2751 = vpop.f32.mrf.mxu0
        %v2752 = vadd.f32 0.0, %v2751
        %v2753 = vpop.f32.mrf.mxu0
        %v2754 = vpop.f32.mrf.mxu0
        %v2755 = vadd.f32 0.0, %v2754
        %v2756 = vpop.f32.mrf.mxu0
        %2757 = vmatprep.mubr.bf16.mxu0 %v1332
        %2758 = vmatmul.mubr.bf16.gmra.mxu0 %v1331
        %v2759 = vpop.f32.mrf.mxu0
        %v2760 = vadd.f32 0.0, %v2759
        %v2761 = vpop.f32.mrf.mxu0
        %v2762 = vpop.f32.mrf.mxu0
        %v2763 = vadd.f32 0.0, %v2762
        %v2764 = vpop.f32.mrf.mxu0
        %2765 = vmatprep.mubr.bf16.mxu0 %v1334
        %2766 = vmatmul.mubr.bf16.gmra.mxu0 %v1333
        %v2767 = vpop.f32.mrf.mxu0
        %v2768 = vadd.f32 0.0, %v2767
        %v2769 = vpop.f32.mrf.mxu0
        %v2770 = vpop.f32.mrf.mxu0
        %v2771 = vadd.f32 0.0, %v2770
        %v2772 = vpop.f32.mrf.mxu0
        %2773 = vmatprep.mubr.bf16.mxu0 %v1336
        %2774 = vmatmul.mubr.bf16.gmra.mxu0 %v1335
        %v2775 = vpop.f32.mrf.mxu0
        %v2776 = vadd.f32 0.0, %v2775
        %v2777 = vpop.f32.mrf.mxu0
        %v2778 = vpop.f32.mrf.mxu0
        %v2779 = vadd.f32 0.0, %v2778
        %v2780 = vpop.f32.mrf.mxu0
        %2781 = vmatprep.mubr.bf16.mxu0 %v1338
        %2782 = vmatmul.mubr.bf16.gmra.mxu0 %v1337
        %v2783 = vpop.f32.mrf.mxu0
        %v2784 = vadd.f32 0.0, %v2783
        %v2785 = vpop.f32.mrf.mxu0
        %v2786 = vpop.f32.mrf.mxu0
        %v2787 = vadd.f32 0.0, %v2786
        %v2788 = vpop.f32.mrf.mxu0
        %2789 = vmatprep.mubr.bf16.mxu0 %v1340
        %2790 = vmatmul.mubr.bf16.gmra.mxu0 %v1339
        %v2791 = vpop.f32.mrf.mxu0
        %v2792 = vadd.f32 0.0, %v2791
        %v2793 = vpop.f32.mrf.mxu0
        %v2794 = vpop.f32.mrf.mxu0
        %v2795 = vadd.f32 0.0, %v2794
        %v2796 = vpop.f32.mrf.mxu0
        %2797 = vmatprep.mubr.bf16.mxu0 %v1342
        %2798 = vmatmul.mubr.bf16.gmra.mxu0 %v1341
        %v2799 = vpop.f32.mrf.mxu0
        %v2800 = vadd.f32 0.0, %v2799
        %v2801 = vpop.f32.mrf.mxu0
        %v2802 = vpop.f32.mrf.mxu0
        %v2803 = vadd.f32 0.0, %v2802
        %v2804 = vpop.f32.mrf.mxu0
        %2805 = vmatprep.mubr.bf16.mxu0 %v1344
        %2806 = vmatmul.mubr.bf16.gmra.mxu0 %v1343
        %v2807 = vpop.f32.mrf.mxu0
        %v2808 = vadd.f32 0.0, %v2807
        %v2809 = vpop.f32.mrf.mxu0
        %v2810 = vpop.f32.mrf.mxu0
        %v2811 = vadd.f32 0.0, %v2810
        %v2812 = vpop.f32.mrf.mxu0
        %2813 = vmatprep.mubr.bf16.mxu0 %v1346
        %2814 = vmatmul.mubr.bf16.gmra.mxu0 %v1345
        %v2815 = vpop.f32.mrf.mxu0
        %v2816 = vadd.f32 0.0, %v2815
        %v2817 = vpop.f32.mrf.mxu0
        %v2818 = vpop.f32.mrf.mxu0
        %v2819 = vadd.f32 0.0, %v2818
        %v2820 = vpop.f32.mrf.mxu0
        %2821 = vmatprep.mubr.bf16.mxu0 %v1348
        %2822 = vmatmul.mubr.bf16.gmra.mxu0 %v1347
        %v2823 = vpop.f32.mrf.mxu0
        %v2824 = vadd.f32 0.0, %v2823
        %v2825 = vpop.f32.mrf.mxu0
        %v2826 = vpop.f32.mrf.mxu0
        %v2827 = vadd.f32 0.0, %v2826
        %v2828 = vpop.f32.mrf.mxu0
        %2829 = vmatprep.mubr.bf16.mxu0 %v1350
        %2830 = vmatmul.mubr.bf16.gmra.mxu0 %v1349
        %v2831 = vpop.f32.mrf.mxu0
        %v2832 = vadd.f32 0.0, %v2831
        %v2833 = vpop.f32.mrf.mxu0
        %v2834 = vpop.f32.mrf.mxu0
        %v2835 = vadd.f32 0.0, %v2834
        %v2836 = vpop.f32.mrf.mxu0
        %2837 = vmatprep.mubr.bf16.mxu0 %v1352
        %2838 = vmatmul.mubr.bf16.gmra.mxu0 %v1351
        %v2839 = vpop.f32.mrf.mxu0
        %v2840 = vadd.f32 0.0, %v2839
        %v2841 = vpop.f32.mrf.mxu0
        %v2842 = vpop.f32.mrf.mxu0
        %v2843 = vadd.f32 0.0, %v2842
        %v2844 = vpop.f32.mrf.mxu0
        %2845 = vmatprep.mubr.bf16.mxu0 %v1354
        %2846 = vmatmul.mubr.bf16.gmra.mxu0 %v1353
        %v2847 = vpop.f32.mrf.mxu0
        %v2848 = vadd.f32 0.0, %v2847
        %v2849 = vpop.f32.mrf.mxu0
        %v2850 = vpop.f32.mrf.mxu0
        %v2851 = vadd.f32 0.0, %v2850
        %v2852 = vpop.f32.mrf.mxu0
        %2853 = vmatprep.mubr.bf16.mxu0 %v1356
        %2854 = vmatmul.mubr.bf16.gmra.mxu0 %v1355
        %v2855 = vpop.f32.mrf.mxu0
        %v2856 = vadd.f32 0.0, %v2855
        %v2857 = vpop.f32.mrf.mxu0
        %v2858 = vpop.f32.mrf.mxu0
        %v2859 = vadd.f32 0.0, %v2858
        %v2860 = vpop.f32.mrf.mxu0
        %2861 = vmatprep.mubr.bf16.mxu0 %v1358
        %2862 = vmatmul.mubr.bf16.gmra.mxu0 %v1357
        %v2863 = vpop.f32.mrf.mxu0
        %v2864 = vadd.f32 0.0, %v2863
        %v2865 = vpop.f32.mrf.mxu0
        %v2866 = vpop.f32.mrf.mxu0
        %v2867 = vadd.f32 0.0, %v2866
        %v2868 = vpop.f32.mrf.mxu0
        %2869 = vmatprep.mubr.bf16.mxu0 %v1360
        %2870 = vmatmul.mubr.bf16.gmra.mxu0 %v1359
        %v2871 = vpop.f32.mrf.mxu0
        %v2872 = vadd.f32 0.0, %v2871
        %v2873 = vpop.f32.mrf.mxu0
        %v2874 = vpop.f32.mrf.mxu0
        %v2875 = vadd.f32 0.0, %v2874
        %v2876 = vpop.f32.mrf.mxu0
        %2877 = vmatprep.mubr.bf16.mxu0 %v1362
        %2878 = vmatmul.mubr.bf16.gmra.mxu0 %v1361
        %v2879 = vpop.f32.mrf.mxu0
        %v2880 = vadd.f32 0.0, %v2879
        %v2881 = vpop.f32.mrf.mxu0
        %v2882 = vpop.f32.mrf.mxu0
        %v2883 = vadd.f32 0.0, %v2882
        %v2884 = vpop.f32.mrf.mxu0
        %2885 = vmatprep.mubr.bf16.mxu0 %v1364
        %2886 = vmatmul.mubr.bf16.gmra.mxu0 %v1363
        %v2887 = vpop.f32.mrf.mxu0
        %v2888 = vadd.f32 0.0, %v2887
        %v2889 = vpop.f32.mrf.mxu0
        %v2890 = vpop.f32.mrf.mxu0
        %v2891 = vadd.f32 0.0, %v2890
        %v2892 = vpop.f32.mrf.mxu0
        %2893 = vmatprep.mubr.bf16.mxu0 %v1366
        %2894 = vmatmul.mubr.bf16.gmra.mxu0 %v1365
        %v2895 = vpop.f32.mrf.mxu0
        %v2896 = vadd.f32 0.0, %v2895
        %v2897 = vpop.f32.mrf.mxu0
        %v2898 = vpop.f32.mrf.mxu0
        %v2899 = vadd.f32 0.0, %v2898
        %v2900 = vpop.f32.mrf.mxu0
        %2901 = vdwg.mxu0
        %2902 = vst [vmem:[%s304] sm:$0xff] %v1886
        %2903 = vst [vmem:[%s304 + $0x8] sm:$0xff] %v1888
        %2904 = vst [vmem:[%s304 + $0x10] sm:$0xff] %v2259
        %2905 = vst [vmem:[%s304 + $0x18] sm:$0xff] %v2261
        %vm2906 = vcmask 261120
        %2907 = vst.msk [vmem:[%s304 + $0x20] sm:$0xff] %vm2906, %v2632
        %2908 = vst [vmem:[%s304 + $0x28] sm:$0xff] %v1890
        %2909 = vst [vmem:[%s304 + $0x30] sm:$0xff] %v1892
        %2910 = vst [vmem:[%s304 + $0x38] sm:$0xff] %v2263
        %2911 = vst [vmem:[%s304 + $0x40] sm:$0xff] %v2265
        %2912 = vst.msk [vmem:[%s304 + $0x48] sm:$0xff] %vm2906, %v2635
        %2913 = vst [vmem:[%s304 + $0x50] sm:$0xff] %v1896
        %2914 = vst [vmem:[%s304 + $0x58] sm:$0xff] %v1898
        %2915 = vst [vmem:[%s304 + $0x60] sm:$0xff] %v2269
        %2916 = vst [vmem:[%s304 + $0x68] sm:$0xff] %v2271
        %2917 = vst.msk [vmem:[%s304 + $0x70] sm:$0xff] %vm2906, %v2640
        %2918 = vst [vmem:[%s304 + $0x78] sm:$0xff] %v1900
        %2919 = vst [vmem:[%s304 + $0x80] sm:$0xff] %v1902
        %2920 = vst [vmem:[%s304 + $0x88] sm:$0xff] %v2273
        %2921 = vst [vmem:[%s304 + $0x90] sm:$0xff] %v2275
        %2922 = vst.msk [vmem:[%s304 + $0x98] sm:$0xff] %vm2906, %v2643
        %2923 = vst [vmem:[%s304 + $0xa0] sm:$0xff] %v1906
        %2924 = vst [vmem:[%s304 + $0xa8] sm:$0xff] %v1908
        %2925 = vst [vmem:[%s304 + $0xb0] sm:$0xff] %v2279
        %2926 = vst [vmem:[%s304 + $0xb8] sm:$0xff] %v2281
        %2927 = vst.msk [vmem:[%s304 + $0xc0] sm:$0xff] %vm2906, %v2648
        %2928 = vst [vmem:[%s304 + $0xc8] sm:$0xff] %v1910
        %2929 = vst [vmem:[%s304 + $0xd0] sm:$0xff] %v1912
        %2930 = vst [vmem:[%s304 + $0xd8] sm:$0xff] %v2283
        %2931 = vst [vmem:[%s304 + $0xe0] sm:$0xff] %v2285
        %2932 = vst.msk [vmem:[%s304 + $0xe8] sm:$0xff] %vm2906, %v2651
        %2933 = vst [vmem:[%s304 + $0xf0] sm:$0xff] %v1916
        %2934 = vst [vmem:[%s304 + $0xf8] sm:$0xff] %v1918
        %2935 = vst [vmem:[%s304 + $0x100] sm:$0xff] %v2289
        %2936 = vst [vmem:[%s304 + $0x108] sm:$0xff] %v2291
        %2937 = vst.msk [vmem:[%s304 + $0x110] sm:$0xff] %vm2906, %v2656
        %2938 = vst [vmem:[%s304 + $0x118] sm:$0xff] %v1920
        %2939 = vst [vmem:[%s304 + $0x120] sm:$0xff] %v1922
        %2940 = vst [vmem:[%s304 + $0x128] sm:$0xff] %v2293
        %2941 = vst [vmem:[%s304 + $0x130] sm:$0xff] %v2295
        %2942 = vst.msk [vmem:[%s304 + $0x138] sm:$0xff] %vm2906, %v2659
        %2943 = vst [vmem:[%s304 + $0x140] sm:$0xff] %v1926
        %2944 = vst [vmem:[%s304 + $0x148] sm:$0xff] %v1928
        %2945 = vst [vmem:[%s304 + $0x150] sm:$0xff] %v2299
        %2946 = vst [vmem:[%s304 + $0x158] sm:$0xff] %v2301
        %2947 = vst.msk [vmem:[%s304 + $0x160] sm:$0xff] %vm2906, %v2664
        %2948 = vst [vmem:[%s304 + $0x168] sm:$0xff] %v1930
        %2949 = vst [vmem:[%s304 + $0x170] sm:$0xff] %v1932
        %2950 = vst [vmem:[%s304 + $0x178] sm:$0xff] %v2303
        %2951 = vst [vmem:[%s304 + $0x180] sm:$0xff] %v2305
        %2952 = vst.msk [vmem:[%s304 + $0x188] sm:$0xff] %vm2906, %v2667
        %2953 = vst [vmem:[%s304 + $0x190] sm:$0xff] %v1936
        %2954 = vst [vmem:[%s304 + $0x198] sm:$0xff] %v1938
        %2955 = vst [vmem:[%s304 + $0x1a0] sm:$0xff] %v2309
        %2956 = vst [vmem:[%s304 + $0x1a8] sm:$0xff] %v2311
        %2957 = vst.msk [vmem:[%s304 + $0x1b0] sm:$0xff] %vm2906, %v2672
        %2958 = vst [vmem:[%s304 + $0x1b8] sm:$0xff] %v1940
        %2959 = vst [vmem:[%s304 + $0x1c0] sm:$0xff] %v1942
        %2960 = vst [vmem:[%s304 + $0x1c8] sm:$0xff] %v2313
        %2961 = vst [vmem:[%s304 + $0x1d0] sm:$0xff] %v2315
        %2962 = vst.msk [vmem:[%s304 + $0x1d8] sm:$0xff] %vm2906, %v2675
        %2963 = vst [vmem:[%s304 + $0x1e0] sm:$0xff] %v1946
        %2964 = vst [vmem:[%s304 + $0x1e8] sm:$0xff] %v1948
        %2965 = vst [vmem:[%s304 + $0x1f0] sm:$0xff] %v2319
        %2966 = vst [vmem:[%s304 + $0x1f8] sm:$0xff] %v2321
        %2967 = vst.msk [vmem:[%s304 + $0x200] sm:$0xff] %vm2906, %v2680
        %2968 = vst [vmem:[%s304 + $0x208] sm:$0xff] %v1950
        %2969 = vst [vmem:[%s304 + $0x210] sm:$0xff] %v1952
        %2970 = vst [vmem:[%s304 + $0x218] sm:$0xff] %v2323
        %2971 = vst [vmem:[%s304 + $0x220] sm:$0xff] %v2325
        %2972 = vst.msk [vmem:[%s304 + $0x228] sm:$0xff] %vm2906, %v2683
        %2973 = vst [vmem:[%s304 + $0x230] sm:$0xff] %v1956
        %2974 = vst [vmem:[%s304 + $0x238] sm:$0xff] %v1958
        %2975 = vst [vmem:[%s304 + $0x240] sm:$0xff] %v2329
        %2976 = vst [vmem:[%s304 + $0x248] sm:$0xff] %v2331
        %2977 = vst.msk [vmem:[%s304 + $0x250] sm:$0xff] %vm2906, %v2688
        %2978 = vst [vmem:[%s304 + $0x258] sm:$0xff] %v1960
        %2979 = vst [vmem:[%s304 + $0x260] sm:$0xff] %v1962
        %2980 = vst [vmem:[%s304 + $0x268] sm:$0xff] %v2333
        %2981 = vst [vmem:[%s304 + $0x270] sm:$0xff] %v2335
        %2982 = vst.msk [vmem:[%s304 + $0x278] sm:$0xff] %vm2906, %v2691
        %2983 = vst [vmem:[%s304 + $0x280] sm:$0xff] %v1966
        %2984 = vst [vmem:[%s304 + $0x288] sm:$0xff] %v1968
        %2985 = vst [vmem:[%s304 + $0x290] sm:$0xff] %v2339
        %2986 = vst [vmem:[%s304 + $0x298] sm:$0xff] %v2341
        %2987 = vst.msk [vmem:[%s304 + $0x2a0] sm:$0xff] %vm2906, %v2696
        %2988 = vst [vmem:[%s304 + $0x2a8] sm:$0xff] %v1970
        %2989 = vst [vmem:[%s304 + $0x2b0] sm:$0xff] %v1972
        %2990 = vst [vmem:[%s304 + $0x2b8] sm:$0xff] %v2343
        %2991 = vst [vmem:[%s304 + $0x2c0] sm:$0xff] %v2345
        %2992 = vst.msk [vmem:[%s304 + $0x2c8] sm:$0xff] %vm2906, %v2699
        %2993 = vst [vmem:[%s304 + $0x2d0] sm:$0xff] %v1976
        %2994 = vst [vmem:[%s304 + $0x2d8] sm:$0xff] %v1978
        %2995 = vst [vmem:[%s304 + $0x2e0] sm:$0xff] %v2349
        %2996 = vst [vmem:[%s304 + $0x2e8] sm:$0xff] %v2351
        %2997 = vst.msk [vmem:[%s304 + $0x2f0] sm:$0xff] %vm2906, %v2704
        %2998 = vst [vmem:[%s304 + $0x2f8] sm:$0xff] %v1980
        %2999 = vst [vmem:[%s304 + $0x300] sm:$0xff] %v1982
        %3000 = vst [vmem:[%s304 + $0x308] sm:$0xff] %v2353
        %3001 = vst [vmem:[%s304 + $0x310] sm:$0xff] %v2355
        %3002 = vst.msk [vmem:[%s304 + $0x318] sm:$0xff] %vm2906, %v2707
        %3003 = vst [vmem:[%s304 + $0x320] sm:$0xff] %v1986
        %3004 = vst [vmem:[%s304 + $0x328] sm:$0xff] %v1988
        %3005 = vst [vmem:[%s304 + $0x330] sm:$0xff] %v2359
        %3006 = vst [vmem:[%s304 + $0x338] sm:$0xff] %v2361
        %3007 = vst.msk [vmem:[%s304 + $0x340] sm:$0xff] %vm2906, %v2712
        %3008 = vst [vmem:[%s304 + $0x348] sm:$0xff] %v1990
        %3009 = vst [vmem:[%s304 + $0x350] sm:$0xff] %v1992
        %3010 = vst [vmem:[%s304 + $0x358] sm:$0xff] %v2363
        %3011 = vst [vmem:[%s304 + $0x360] sm:$0xff] %v2365
        %3012 = vst.msk [vmem:[%s304 + $0x368] sm:$0xff] %vm2906, %v2715
        %3013 = vst [vmem:[%s304 + $0x370] sm:$0xff] %v1996
        %3014 = vst [vmem:[%s304 + $0x378] sm:$0xff] %v1998
        %3015 = vst [vmem:[%s304 + $0x380] sm:$0xff] %v2369
        %3016 = vst [vmem:[%s304 + $0x388] sm:$0xff] %v2371
        %3017 = vst.msk [vmem:[%s304 + $0x390] sm:$0xff] %vm2906, %v2720
        %3018 = vst [vmem:[%s304 + $0x398] sm:$0xff] %v2000
        %3019 = vst [vmem:[%s304 + $0x3a0] sm:$0xff] %v2002
        %3020 = vst [vmem:[%s304 + $0x3a8] sm:$0xff] %v2373
        %3021 = vst [vmem:[%s304 + $0x3b0] sm:$0xff] %v2375
        %3022 = vst.msk [vmem:[%s304 + $0x3b8] sm:$0xff] %vm2906, %v2723
        %3023 = vst [vmem:[%s304 + $0x3c0] sm:$0xff] %v2006
        %3024 = vst [vmem:[%s304 + $0x3c8] sm:$0xff] %v2008
        %3025 = vst [vmem:[%s304 + $0x3d0] sm:$0xff] %v2379
        %3026 = vst [vmem:[%s304 + $0x3d8] sm:$0xff] %v2381
        %3027 = vst.msk [vmem:[%s304 + $0x3e0] sm:$0xff] %vm2906, %v2728
        %3028 = vst [vmem:[%s304 + $0x3e8] sm:$0xff] %v2010
        %3029 = vst [vmem:[%s304 + $0x3f0] sm:$0xff] %v2012
        %3030 = vst [vmem:[%s304 + $0x3f8] sm:$0xff] %v2383
        %3031 = vst [vmem:[%s304 + $0x400] sm:$0xff] %v2385
        %3032 = vst.msk [vmem:[%s304 + $0x408] sm:$0xff] %vm2906, %v2731
        %3033 = vst [vmem:[%s304 + $0x410] sm:$0xff] %v2016
        %3034 = vst [vmem:[%s304 + $0x418] sm:$0xff] %v2018
        %3035 = vst [vmem:[%s304 + $0x420] sm:$0xff] %v2389
        %3036 = vst [vmem:[%s304 + $0x428] sm:$0xff] %v2391
        %3037 = vst.msk [vmem:[%s304 + $0x430] sm:$0xff] %vm2906, %v2736
        %3038 = vst [vmem:[%s304 + $0x438] sm:$0xff] %v2020
        %3039 = vst [vmem:[%s304 + $0x440] sm:$0xff] %v2022
        %3040 = vst [vmem:[%s304 + $0x448] sm:$0xff] %v2393
        %3041 = vst [vmem:[%s304 + $0x450] sm:$0xff] %v2395
        %3042 = vst.msk [vmem:[%s304 + $0x458] sm:$0xff] %vm2906, %v2739
        %3043 = vst [vmem:[%s304 + $0x460] sm:$0xff] %v2026
        %3044 = vst [vmem:[%s304 + $0x468] sm:$0xff] %v2028
        %3045 = vst [vmem:[%s304 + $0x470] sm:$0xff] %v2399
        %3046 = vst [vmem:[%s304 + $0x478] sm:$0xff] %v2401
        %3047 = vst.msk [vmem:[%s304 + $0x480] sm:$0xff] %vm2906, %v2744
        %3048 = vst [vmem:[%s304 + $0x488] sm:$0xff] %v2030
        %3049 = vst [vmem:[%s304 + $0x490] sm:$0xff] %v2032
        %3050 = vst [vmem:[%s304 + $0x498] sm:$0xff] %v2403
        %3051 = vst [vmem:[%s304 + $0x4a0] sm:$0xff] %v2405
        %3052 = vst.msk [vmem:[%s304 + $0x4a8] sm:$0xff] %vm2906, %v2747
        %3053 = vst [vmem:[%s304 + $0x4b0] sm:$0xff] %v2036
        %3054 = vst [vmem:[%s304 + $0x4b8] sm:$0xff] %v2038
        %3055 = vst [vmem:[%s304 + $0x4c0] sm:$0xff] %v2409
        %3056 = vst [vmem:[%s304 + $0x4c8] sm:$0xff] %v2411
        %3057 = vst.msk [vmem:[%s304 + $0x4d0] sm:$0xff] %vm2906, %v2752
        %3058 = vst [vmem:[%s304 + $0x4d8] sm:$0xff] %v2040
        %3059 = vst [vmem:[%s304 + $0x4e0] sm:$0xff] %v2042
        %3060 = vst [vmem:[%s304 + $0x4e8] sm:$0xff] %v2413
        %3061 = vst [vmem:[%s304 + $0x4f0] sm:$0xff] %v2415
        %3062 = vst.msk [vmem:[%s304 + $0x4f8] sm:$0xff] %vm2906, %v2755
        %3063 = vst [vmem:[%s304 + $0x500] sm:$0xff] %v2046
        %3064 = vst [vmem:[%s304 + $0x508] sm:$0xff] %v2048
        %3065 = vst [vmem:[%s304 + $0x510] sm:$0xff] %v2419
        %3066 = vst [vmem:[%s304 + $0x518] sm:$0xff] %v2421
        %3067 = vst.msk [vmem:[%s304 + $0x520] sm:$0xff] %vm2906, %v2760
        %3068 = vst [vmem:[%s304 + $0x528] sm:$0xff] %v2050
        %3069 = vst [vmem:[%s304 + $0x530] sm:$0xff] %v2052
        %3070 = vst [vmem:[%s304 + $0x538] sm:$0xff] %v2423
        %3071 = vst [vmem:[%s304 + $0x540] sm:$0xff] %v2425
        %3072 = vst.msk [vmem:[%s304 + $0x548] sm:$0xff] %vm2906, %v2763
        %3073 = vst [vmem:[%s304 + $0x550] sm:$0xff] %v2056
        %3074 = vst [vmem:[%s304 + $0x558] sm:$0xff] %v2058
        %3075 = vst [vmem:[%s304 + $0x560] sm:$0xff] %v2429
        %3076 = vst [vmem:[%s304 + $0x568] sm:$0xff] %v2431
        %3077 = vst.msk [vmem:[%s304 + $0x570] sm:$0xff] %vm2906, %v2768
        %3078 = vst [vmem:[%s304 + $0x578] sm:$0xff] %v2060
        %3079 = vst [vmem:[%s304 + $0x580] sm:$0xff] %v2062
        %3080 = vst [vmem:[%s304 + $0x588] sm:$0xff] %v2433
        %3081 = vst [vmem:[%s304 + $0x590] sm:$0xff] %v2435
        %3082 = vst.msk [vmem:[%s304 + $0x598] sm:$0xff] %vm2906, %v2771
        %3083 = vst [vmem:[%s304 + $0x5a0] sm:$0xff] %v2066
        %3084 = vst [vmem:[%s304 + $0x5a8] sm:$0xff] %v2068
        %3085 = vst [vmem:[%s304 + $0x5b0] sm:$0xff] %v2439
        %3086 = vst [vmem:[%s304 + $0x5b8] sm:$0xff] %v2441
        %3087 = vst.msk [vmem:[%s304 + $0x5c0] sm:$0xff] %vm2906, %v2776
        %3088 = vst [vmem:[%s304 + $0x5c8] sm:$0xff] %v2070
        %3089 = vst [vmem:[%s304 + $0x5d0] sm:$0xff] %v2072
        %3090 = vst [vmem:[%s304 + $0x5d8] sm:$0xff] %v2443
        %3091 = vst [vmem:[%s304 + $0x5e0] sm:$0xff] %v2445
        %3092 = vst.msk [vmem:[%s304 + $0x5e8] sm:$0xff] %vm2906, %v2779
        %3093 = vst [vmem:[%s304 + $0x5f0] sm:$0xff] %v2076
        %3094 = vst [vmem:[%s304 + $0x5f8] sm:$0xff] %v2078
        %3095 = vst [vmem:[%s304 + $0x600] sm:$0xff] %v2449
        %3096 = vst [vmem:[%s304 + $0x608] sm:$0xff] %v2451
        %3097 = vst.msk [vmem:[%s304 + $0x610] sm:$0xff] %vm2906, %v2784
        %3098 = vst [vmem:[%s304 + $0x618] sm:$0xff] %v2080
        %3099 = vst [vmem:[%s304 + $0x620] sm:$0xff] %v2082
        %3100 = vst [vmem:[%s304 + $0x628] sm:$0xff] %v2453
        %3101 = vst [vmem:[%s304 + $0x630] sm:$0xff] %v2455
        %3102 = vst.msk [vmem:[%s304 + $0x638] sm:$0xff] %vm2906, %v2787
        %3103 = vst [vmem:[%s304 + $0x640] sm:$0xff] %v2086
        %3104 = vst [vmem:[%s304 + $0x648] sm:$0xff] %v2088
        %3105 = vst [vmem:[%s304 + $0x650] sm:$0xff] %v2459
        %3106 = vst [vmem:[%s304 + $0x658] sm:$0xff] %v2461
        %3107 = vst.msk [vmem:[%s304 + $0x660] sm:$0xff] %vm2906, %v2792
        %3108 = vst [vmem:[%s304 + $0x668] sm:$0xff] %v2090
        %3109 = vst [vmem:[%s304 + $0x670] sm:$0xff] %v2092
        %3110 = vst [vmem:[%s304 + $0x678] sm:$0xff] %v2463
        %3111 = vst [vmem:[%s304 + $0x680] sm:$0xff] %v2465
        %3112 = vst.msk [vmem:[%s304 + $0x688] sm:$0xff] %vm2906, %v2795
        %3113 = vst [vmem:[%s304 + $0x690] sm:$0xff] %v2096
        %3114 = vst [vmem:[%s304 + $0x698] sm:$0xff] %v2098
        %3115 = vst [vmem:[%s304 + $0x6a0] sm:$0xff] %v2469
        %3116 = vst [vmem:[%s304 + $0x6a8] sm:$0xff] %v2471
        %3117 = vst.msk [vmem:[%s304 + $0x6b0] sm:$0xff] %vm2906, %v2800
        %3118 = vst [vmem:[%s304 + $0x6b8] sm:$0xff] %v2100
        %3119 = vst [vmem:[%s304 + $0x6c0] sm:$0xff] %v2102
        %3120 = vst [vmem:[%s304 + $0x6c8] sm:$0xff] %v2473
        %3121 = vst [vmem:[%s304 + $0x6d0] sm:$0xff] %v2475
        %3122 = vst.msk [vmem:[%s304 + $0x6d8] sm:$0xff] %vm2906, %v2803
        %3123 = vst [vmem:[%s304 + $0x6e0] sm:$0xff] %v2106
        %3124 = vst [vmem:[%s304 + $0x6e8] sm:$0xff] %v2108
        %3125 = vst [vmem:[%s304 + $0x6f0] sm:$0xff] %v2479
        %3126 = vst [vmem:[%s304 + $0x6f8] sm:$0xff] %v2481
        %3127 = vst.msk [vmem:[%s304 + $0x700] sm:$0xff] %vm2906, %v2808
        %3128 = vst [vmem:[%s304 + $0x708] sm:$0xff] %v2110
        %3129 = vst [vmem:[%s304 + $0x710] sm:$0xff] %v2112
        %3130 = vst [vmem:[%s304 + $0x718] sm:$0xff] %v2483
        %3131 = vst [vmem:[%s304 + $0x720] sm:$0xff] %v2485
        %3132 = vst.msk [vmem:[%s304 + $0x728] sm:$0xff] %vm2906, %v2811
        %3133 = vst [vmem:[%s304 + $0x730] sm:$0xff] %v2116
        %3134 = vst [vmem:[%s304 + $0x738] sm:$0xff] %v2118
        %3135 = vst [vmem:[%s304 + $0x740] sm:$0xff] %v2489
        %3136 = vst [vmem:[%s304 + $0x748] sm:$0xff] %v2491
        %3137 = vst.msk [vmem:[%s304 + $0x750] sm:$0xff] %vm2906, %v2816
        %3138 = vst [vmem:[%s304 + $0x758] sm:$0xff] %v2120
        %3139 = vst [vmem:[%s304 + $0x760] sm:$0xff] %v2122
        %3140 = vst [vmem:[%s304 + $0x768] sm:$0xff] %v2493
        %3141 = vst [vmem:[%s304 + $0x770] sm:$0xff] %v2495
        %3142 = vst.msk [vmem:[%s304 + $0x778] sm:$0xff] %vm2906, %v2819
        %3143 = vst [vmem:[%s304 + $0x780] sm:$0xff] %v2126
        %3144 = vst [vmem:[%s304 + $0x788] sm:$0xff] %v2128
        %3145 = vst [vmem:[%s304 + $0x790] sm:$0xff] %v2499
        %3146 = vst [vmem:[%s304 + $0x798] sm:$0xff] %v2501
        %3147 = vst.msk [vmem:[%s304 + $0x7a0] sm:$0xff] %vm2906, %v2824
        %3148 = vst [vmem:[%s304 + $0x7a8] sm:$0xff] %v2130
        %3149 = vst [vmem:[%s304 + $0x7b0] sm:$0xff] %v2132
        %3150 = vst [vmem:[%s304 + $0x7b8] sm:$0xff] %v2503
        %3151 = vst [vmem:[%s304 + $0x7c0] sm:$0xff] %v2505
        %3152 = vst.msk [vmem:[%s304 + $0x7c8] sm:$0xff] %vm2906, %v2827
        %3153 = vst [vmem:[%s304 + $0x7d0] sm:$0xff] %v2136
        %3154 = vst [vmem:[%s304 + $0x7d8] sm:$0xff] %v2138
        %3155 = vst [vmem:[%s304 + $0x7e0] sm:$0xff] %v2509
        %3156 = vst [vmem:[%s304 + $0x7e8] sm:$0xff] %v2511
        %3157 = vst.msk [vmem:[%s304 + $0x7f0] sm:$0xff] %vm2906, %v2832
        %3158 = vst [vmem:[%s304 + $0x7f8] sm:$0xff] %v2140
        %3159 = vst [vmem:[%s304 + $0x800] sm:$0xff] %v2142
        %3160 = vst [vmem:[%s304 + $0x808] sm:$0xff] %v2513
        %3161 = vst [vmem:[%s304 + $0x810] sm:$0xff] %v2515
        %3162 = vst.msk [vmem:[%s304 + $0x818] sm:$0xff] %vm2906, %v2835
        %3163 = vst [vmem:[%s304 + $0x820] sm:$0xff] %v2146
        %3164 = vst [vmem:[%s304 + $0x828] sm:$0xff] %v2148
        %3165 = vst [vmem:[%s304 + $0x830] sm:$0xff] %v2519
        %3166 = vst [vmem:[%s304 + $0x838] sm:$0xff] %v2521
        %3167 = vst.msk [vmem:[%s304 + $0x840] sm:$0xff] %vm2906, %v2840
        %3168 = vst [vmem:[%s304 + $0x848] sm:$0xff] %v2150
        %3169 = vst [vmem:[%s304 + $0x850] sm:$0xff] %v2152
        %3170 = vst [vmem:[%s304 + $0x858] sm:$0xff] %v2523
        %3171 = vst [vmem:[%s304 + $0x860] sm:$0xff] %v2525
        %3172 = vst.msk [vmem:[%s304 + $0x868] sm:$0xff] %vm2906, %v2843
        %3173 = vst [vmem:[%s304 + $0x870] sm:$0xff] %v2156
        %3174 = vst [vmem:[%s304 + $0x878] sm:$0xff] %v2158
        %3175 = vst [vmem:[%s304 + $0x880] sm:$0xff] %v2529
        %3176 = vst [vmem:[%s304 + $0x888] sm:$0xff] %v2531
        %3177 = vst.msk [vmem:[%s304 + $0x890] sm:$0xff] %vm2906, %v2848
        %3178 = vst [vmem:[%s304 + $0x898] sm:$0xff] %v2160
        %3179 = vst [vmem:[%s304 + $0x8a0] sm:$0xff] %v2162
        %3180 = vst [vmem:[%s304 + $0x8a8] sm:$0xff] %v2533
        %3181 = vst [vmem:[%s304 + $0x8b0] sm:$0xff] %v2535
        %3182 = vst.msk [vmem:[%s304 + $0x8b8] sm:$0xff] %vm2906, %v2851
        %3183 = vst [vmem:[%s304 + $0x8c0] sm:$0xff] %v2166
        %3184 = vst [vmem:[%s304 + $0x8c8] sm:$0xff] %v2168
        %3185 = vst [vmem:[%s304 + $0x8d0] sm:$0xff] %v2539
        %3186 = vst [vmem:[%s304 + $0x8d8] sm:$0xff] %v2541
        %3187 = vst.msk [vmem:[%s304 + $0x8e0] sm:$0xff] %vm2906, %v2856
        %3188 = vst [vmem:[%s304 + $0x8e8] sm:$0xff] %v2170
        %3189 = vst [vmem:[%s304 + $0x8f0] sm:$0xff] %v2172
        %3190 = vst [vmem:[%s304 + $0x8f8] sm:$0xff] %v2543
        %3191 = vst [vmem:[%s304 + $0x900] sm:$0xff] %v2545
        %3192 = vst.msk [vmem:[%s304 + $0x908] sm:$0xff] %vm2906, %v2859
        %3193 = vst [vmem:[%s304 + $0x910] sm:$0xff] %v2176
        %3194 = vst [vmem:[%s304 + $0x918] sm:$0xff] %v2178
        %3195 = vst [vmem:[%s304 + $0x920] sm:$0xff] %v2549
        %3196 = vst [vmem:[%s304 + $0x928] sm:$0xff] %v2551
        %3197 = vst.msk [vmem:[%s304 + $0x930] sm:$0xff] %vm2906, %v2864
        %3198 = vst [vmem:[%s304 + $0x938] sm:$0xff] %v2180
        %3199 = vst [vmem:[%s304 + $0x940] sm:$0xff] %v2182
        %3200 = vst [vmem:[%s304 + $0x948] sm:$0xff] %v2553
        %3201 = vst [vmem:[%s304 + $0x950] sm:$0xff] %v2555
        %3202 = vst.msk [vmem:[%s304 + $0x958] sm:$0xff] %vm2906, %v2867
        %3203 = vst [vmem:[%s304 + $0x960] sm:$0xff] %v2186
        %3204 = vst [vmem:[%s304 + $0x968] sm:$0xff] %v2188
        %3205 = vst [vmem:[%s304 + $0x970] sm:$0xff] %v2559
        %3206 = vst [vmem:[%s304 + $0x978] sm:$0xff] %v2561
        %3207 = vst.msk [vmem:[%s304 + $0x980] sm:$0xff] %vm2906, %v2872
        %3208 = vst [vmem:[%s304 + $0x988] sm:$0xff] %v2190
        %3209 = vst [vmem:[%s304 + $0x990] sm:$0xff] %v2192
        %3210 = vst [vmem:[%s304 + $0x998] sm:$0xff] %v2563
        %3211 = vst [vmem:[%s304 + $0x9a0] sm:$0xff] %v2565
        %3212 = vst.msk [vmem:[%s304 + $0x9a8] sm:$0xff] %vm2906, %v2875
        %3213 = vst [vmem:[%s304 + $0x9b0] sm:$0xff] %v2196
        %3214 = vst [vmem:[%s304 + $0x9b8] sm:$0xff] %v2198
        %3215 = vst [vmem:[%s304 + $0x9c0] sm:$0xff] %v2569
        %3216 = vst [vmem:[%s304 + $0x9c8] sm:$0xff] %v2571
        %3217 = vst.msk [vmem:[%s304 + $0x9d0] sm:$0xff] %vm2906, %v2880
        %3218 = vst [vmem:[%s304 + $0x9d8] sm:$0xff] %v2200
        %3219 = vst [vmem:[%s304 + $0x9e0] sm:$0xff] %v2202
        %3220 = vst [vmem:[%s304 + $0x9e8] sm:$0xff] %v2573
        %3221 = vst [vmem:[%s304 + $0x9f0] sm:$0xff] %v2575
        %3222 = vst.msk [vmem:[%s304 + $0x9f8] sm:$0xff] %vm2906, %v2883
        %3223 = vst [vmem:[%s304 + $0xa00] sm:$0xff] %v2206
        %3224 = vst [vmem:[%s304 + $0xa08] sm:$0xff] %v2208
        %3225 = vst [vmem:[%s304 + $0xa10] sm:$0xff] %v2579
        %3226 = vst [vmem:[%s304 + $0xa18] sm:$0xff] %v2581
        %3227 = vst.msk [vmem:[%s304 + $0xa20] sm:$0xff] %vm2906, %v2888
        %3228 = vst [vmem:[%s304 + $0xa28] sm:$0xff] %v2210
        %3229 = vst [vmem:[%s304 + $0xa30] sm:$0xff] %v2212
        %3230 = vst [vmem:[%s304 + $0xa38] sm:$0xff] %v2583
        %3231 = vst [vmem:[%s304 + $0xa40] sm:$0xff] %v2585
        %3232 = vst.msk [vmem:[%s304 + $0xa48] sm:$0xff] %vm2906, %v2891
        %3233 = vst [vmem:[%s304 + $0xa50] sm:$0xff] %v2216
        %3234 = vst [vmem:[%s304 + $0xa58] sm:$0xff] %v2218
        %3235 = vst [vmem:[%s304 + $0xa60] sm:$0xff] %v2589
        %3236 = vst [vmem:[%s304 + $0xa68] sm:$0xff] %v2591
        %3237 = vst.msk [vmem:[%s304 + $0xa70] sm:$0xff] %vm2906, %v2896
        %3238 = vst [vmem:[%s304 + $0xa78] sm:$0xff] %v2220
        %3239 = vst [vmem:[%s304 + $0xa80] sm:$0xff] %v2222
        %3240 = vst [vmem:[%s304 + $0xa88] sm:$0xff] %v2593
        %3241 = vst [vmem:[%s304 + $0xa90] sm:$0xff] %v2595
        %3242 = vst.msk [vmem:[%s304 + $0xa98] sm:$0xff] %vm2906, %v2899
        %s3243 = sand.u32 %s201, 1
        %s3244 = scalar_lea.sflag [#allocation4], %s3243
        %s3245 = sand.u32 %s201, 1
        %s3246 = smul.addr %s3245, 2720
        %s3247 = scalar_lea.vmem [#allocation3], %s3246
        // Predicated region
        $region49: #{model_forward.3} parent=47 // pred_check
          %p3248 = pneg %p211
        $region50: #{model_forward.3} parent=47 // pred_check_branch
          %3250 = sbr.rel (%p3248) target = $region52
        $region51: #{model_forward.3} parent=47 // pred_region
          %s3251 = smul.u32 68, %s27
          %s3253 = ssub.s32 43520, 43520
          %3254 = vsyncadd %s3244, %s3253
          %s3255 = smul.addr %s3251, 5
          %s3256 = smul.addr %s26, 340
          %s3257 = sadd.s32 %s3255, %s3256
          %s3258 = smul.addr %s3257, 128
          %s3259 = scalar_lea.hbm %s7, %s3258
          %s3260 = sshll.u32 %s3247, 4
          %s3261 = int_to_ptr.vmem [resolvable:$true] %s3260
          %3266 = dma.vmem_to_hbm [thread:$0]  %s3261, 43520, %s3259, %s3244, 640, 640, 40
        $region52: #{model_forward.3} parent=47 // pred_fallthru
          _
      $region48: #{model_forward.3} parent=5 // pred_fallthru
        _
      %p3267 = scmp.le.s32.totalorder 2, %s17
      // Predicated region
      $region53: #{model_forward.3} parent=5 // pred_check
        %p3268 = pneg %p3267
      $region54: #{model_forward.3} parent=5 // pred_check_branch
        %3270 = sbr.rel (%p3268) target = $region56
      $region55: #{model_forward.3} parent=5 // pred_region
        %s3271 = ssub.s32 %s17, 2
        // Predicated region
        $region57: #{model_forward.3} parent=55 // pred_check
          %p3272 = pneg %p217
        $region58: #{model_forward.3} parent=55 // pred_check_branch
          %3274 = sbr.rel (%p3272) target = $region60
        $region59: #{model_forward.3} parent=55 // pred_region
          %s3275 = sand.u32 %s202, 1
          %s3276 = scalar_lea.sflag [#allocation4], %s3275
          %s3277 = sand.u32 %s202, 1
          %s3278 = smul.addr %s3277, 2720
          %s3279 = scalar_lea.vmem [#allocation3], %s3278
          %3280 = dma.done %s3276, 43520
        $region60: #{model_forward.3} parent=55 // pred_fallthru
          _
      $region56: #{model_forward.3} parent=5 // pred_fallthru
        _
    $region6: #{model_forward.3} parent=1 // loop_footer
      %s21 = sadd.s32 1, %s17
    $region7: #{model_forward.3} parent=1 // loop_footer_branch
      %16 = sbr.rel target = $region3
    $region8: #{model_forward.3} parent=1 // loop_exit
      _
    %3281 = vsyncpa [#allocation4], 1
    %s3282 = scalar_lea.sflag [#allocation4], 1
    %3283 = vsyncpa %s3282, 1

</llo_original>
